<compile_context>
chip_gen: v7x
topology: tpu7x:2x2x1
jax: 0.10.0
libtpu: 0.0.40
codegen_flags: <defaults>
</compile_context>

<pallas_src>
import jax
import jax.numpy as jnp
from jax.experimental import pallas as pl
from jax.experimental.pallas import tpu as pltpu


_VMEM = pl.BlockSpec(memory_space=pltpu.MemorySpace.VMEM)
_SMEM = pl.BlockSpec(memory_space=pltpu.MemorySpace.SMEM)
_F32 = jnp.float32


# ----------------------------------------------------------------------------
# fused kernel
# ----------------------------------------------------------------------------
def _ge_fused_kernel(x_cnn_ref, x_rnn_ref, w_cnn_ref, b_cnn_ref,
                     w_in_ref, b_in_ref, whh_ref,
                     w_head_ref, b_head_ref, w_out_ref, b_out_ref,
                     gew_ref, geb_ref,
                     logits_ref, pre_ref):
    L, B, E = x_cnn_ref.shape               # B = batch padded to one sublane tile
    KMAX = w_cnn_ref.shape[0] // E
    H2 = w_in_ref.shape[1]                  # 2 * hidden_dim
    H = H2 // 2
    k = w_out_ref.shape[0]
    g = gew_ref.shape[0]
    N = logits_ref.shape[0]

    # ---- shared: channel softmax + GroupEnhance + adaptive max pool L -> k ----
    # feat: (L, B, C) channels-last; fully batch-vectorized, loop only over g.
    def softmax_ge_pool(feat):
        C = feat.shape[-1]
        Cg = C // g
        m = jnp.max(feat, axis=-1, keepdims=True)
        e = jnp.exp(feat - m)
        sm = e / jnp.sum(e, axis=-1, keepdims=True)            # softmax over channels
        outs = []
        for gi in range(g):
            xg = sm[:, :, gi * Cg:(gi + 1) * Cg]               # (L, B, Cg)
            mean_l = jnp.mean(xg, axis=0, keepdims=True)       # avg_pool over L
            dot = jnp.sum(xg * mean_l, axis=2, keepdims=True)  # (L, B, 1)
            mu = jnp.mean(dot, axis=0, keepdims=True)
            cv = dot - mu
            std = jnp.sqrt(jnp.sum(cv * cv, axis=0, keepdims=True) / (L - 1))
            norm = cv / (std + 1e-5) * gew_ref[gi] + geb_ref[gi]
            outs.append(xg * jax.nn.sigmoid(norm))
        enh = jnp.concatenate(outs, axis=-1)                   # (L, B, C)
        cs = L // k
        return jnp.concatenate(
            [jnp.max(enh[j * cs:(j + 1) * cs], axis=0, keepdims=True)
             for j in range(k)], axis=0)                       # (k, B, C)

    # ----------------- CNN branch: merged-filter conv as ONE matmul -----------
    x = x_cnn_ref[...]                                          # (L, B, E)
    pad = (KMAX - 1) // 2
    z = jnp.zeros((pad, B, E), _F32)
    xp = jnp.concatenate([z, x, z], axis=0)                     # (L+KMAX-1, B, E)
    patches = jnp.concatenate([xp[t:t + L] for t in range(KMAX)], axis=-1)
    conv = jnp.dot(patches.reshape(L * B, KMAX * E), w_cnn_ref[...],
                   preferred_element_type=_F32) + b_cnn_ref[...]
    feat_c = jnp.maximum(conv, 0.0).reshape(L, B, -1)           # ReLU, (L, B, F)

    # ------------- RNN branch: fused bi-directional tanh recurrence -----------
    pre_in = jnp.dot(x_rnn_ref[...], w_in_ref[...],
                     preferred_element_type=_F32) + b_in_ref[...]   # (L*B, 2H)
    pre_in = pre_in.reshape(L, B, H2)
    whh = whh_ref[...]                                          # block-diag (2H, 2H)
    h = jnp.zeros((B, H2), _F32)
    hs = []
    for t in range(L):                                          # static unroll
        p_t = jnp.concatenate([pre_in[t][:, :H], pre_in[L - 1 - t][:, H:]], axis=-1)
        h = jnp.tanh(p_t + jnp.dot(h, whh, preferred_element_type=_F32))
        hs.append(h)
    # output at position t = [fwd state t | bwd state produced at step L-1-t]
    feat_r = jnp.concatenate(
        [jnp.concatenate([hs[t][:, :H], hs[L - 1 - t][:, H:]], axis=-1)
         for t in range(L)], axis=0).reshape(L, B, H2)          # (L, B, 2H)

    # ------------- per-branch softmax + GE + k-pool, concat channels ----------
    cat = jnp.concatenate([softmax_ge_pool(feat_c), softmax_ge_pool(feat_r)],
                          axis=-1)                              # (k, B, 4H)
    C4 = cat.shape[-1]

    # ------ head: conv1 ('same', K=3) + ReLU + output linear + softmax --------
    zk = jnp.zeros((1, B, C4), _F32)
    catp = jnp.concatenate([zk, cat, zk], axis=0)               # (k+2, B, 4H)
    w_out = w_out_ref[...]                                      # (k, 20, class_num)
    cls = w_out.shape[-1]
    acc = jnp.zeros((B, cls), _F32)
    for j in range(k):
        patch = jnp.concatenate([catp[j], catp[j + 1], catp[j + 2]], axis=-1)
        hj = jnp.maximum(
            jnp.dot(patch, w_head_ref[...], preferred_element_type=_F32)
            + b_head_ref[...], 0.0)                             # (B, 20)
        acc = acc + jnp.dot(hj, w_out[j], preferred_element_type=_F32)
    pre = acc + b_out_ref[...]                                  # (B, class_num)
    m = jnp.max(pre, axis=-1, keepdims=True)
    e = jnp.exp(pre - m)
    probs = e / jnp.sum(e, axis=-1, keepdims=True)
    logits_ref[...] = probs[:N].astype(logits_ref.dtype)
    pre_ref[...] = pre[:N].astype(pre_ref.dtype)


# ----------------------------------------------------------------------------
# parameter packing (done ONCE, outside the jitted forward)
# ----------------------------------------------------------------------------
def prepare_params(p, *, k):
    E = p["emb_cnn"].shape[1]
    filter_sizes = p["filter_sizes"]
    KMAX = max(filter_sizes)

    # merged channels-last im2col conv weight: (KMAX*E, F)
    blocks, biases = [], []
    for (w, b), K in zip(p["convs"], filter_sizes):
        wt = jnp.transpose(w, (2, 1, 0))                        # (K, E, O)
        off = (KMAX - 1) // 2 - (K - 1) // 2                    # align 'same' centers
        full = jnp.zeros((KMAX,) + wt.shape[1:], wt.dtype).at[off:off + K].set(wt)
        blocks.append(full.reshape(KMAX * E, -1))
        biases.append(b)
    w_cnn = jnp.concatenate(blocks, axis=1)
    b_cnn = jnp.concatenate(biases).reshape(1, -1)

    pf, pb = p["rnn"]["fwd"], p["rnn"]["bwd"]
    H = pf["wih"].shape[0]
    w_in = jnp.concatenate([pf["wih"].T, pb["wih"].T], axis=1)              # (E, 2H)
    b_in = jnp.concatenate([pf["bih"] + pf["bhh"],
                            pb["bih"] + pb["bhh"]]).reshape(1, 2 * H)
    whh = jnp.zeros((2 * H, 2 * H), jnp.float32)
    whh = whh.at[:H, :H].set(pf["whh"].T).at[H:, H:].set(pb["whh"].T)       # block-diag

    O1, C4, K1 = p["conv1_w"].shape                                         # (20, 4H, 3)
    w_head = jnp.transpose(p["conv1_w"], (2, 1, 0)).reshape(K1 * C4, O1)
    b_head = p["conv1_b"].reshape(1, O1)

    cls = p["out_w"].shape[0]
    w_out = p["out_w"].reshape(cls, O1, k).transpose(2, 1, 0)               # (k, 20, cls)
    b_out = p["out_b"].reshape(1, cls)

    return dict(emb_cnn=p["emb_cnn"], emb_rnn=p["emb_rnn"],
                w_cnn=w_cnn, b_cnn=b_cnn, w_in=w_in, b_in=b_in, whh=whh,
                w_head=w_head, b_head=b_head, w_out=w_out, b_out=b_out,
                ge_w=p["ge_w"], ge_b=p["ge_b"])


# ----------------------------------------------------------------------------
# full forward (one pallas_call)
# ----------------------------------------------------------------------------
def ge_forward(kp, x_tokens):
    N, L = x_tokens.shape
    E = kp["emb_cnn"].shape[1]
    B = ((N + 7) // 8) * 8                          # pad batch to one sublane tile
    tok = x_tokens.T                                # time-major (L, N)
    padn = ((0, 0), (0, B - N), (0, 0))
    x_cnn = jnp.pad(kp["emb_cnn"][tok], padn)                    # (L, B, E)
    x_rnn = jnp.pad(kp["emb_rnn"][tok], padn).reshape(L * B, E)  # (L*B, E)

    cls = kp["b_out"].shape[1]
    out_shape = (jax.ShapeDtypeStruct((N, cls), jnp.float32),
                 jax.ShapeDtypeStruct((N, cls), jnp.float32))
    logits, pre = pl.pallas_call(
        _ge_fused_kernel,
        out_shape=out_shape,
        in_specs=[_VMEM] * 11 + [_SMEM] * 2,
        out_specs=(_VMEM, _VMEM),
    )(x_cnn, x_rnn, kp["w_cnn"], kp["b_cnn"], kp["w_in"], kp["b_in"], kp["whh"],
      kp["w_head"], kp["b_head"], kp["w_out"], kp["b_out"], kp["ge_w"], kp["ge_b"])
    return logits, pre


# ----------------------------------------------------------------------------
# deterministic synthetic parameters (torch-layout; GroupEnhance module-exact)
# ----------------------------------------------------------------------------
def init_params(key, vocab_size, embed_size, filter_num, filter_sizes,
                hidden_dim, class_num, g, k):
    keys = jax.random.split(key, 16)
    p = {"filter_sizes": tuple(filter_sizes)}
    p["emb_cnn"] = 0.1 * jax.random.normal(keys[0], (vocab_size, embed_size), jnp.float32)
    p["emb_rnn"] = 0.1 * jax.random.normal(keys[1], (vocab_size, embed_size), jnp.float32)
    p["convs"] = []
    for i, K in enumerate(filter_sizes):
        w = 0.05 * jax.random.normal(keys[2 + i], (filter_num, embed_size, K), jnp.float32)
        p["convs"].append((w, jnp.zeros((filter_num,), jnp.float32)))
    H, E = hidden_dim, embed_size
    p["rnn"] = {}
    for d, kk in zip(("fwd", "bwd"), (6, 10)):
        p["rnn"][d] = dict(
            wih=0.1 * jax.random.normal(keys[kk], (H, E), jnp.float32),
            whh=0.1 * jax.random.normal(keys[kk + 1], (H, H), jnp.float32),
            bih=0.1 * jax.random.normal(keys[kk + 2], (H,), jnp.float32),
            bhh=0.1 * jax.random.normal(keys[kk + 3], (H,), jnp.float32),
        )
    p["ge_w"] = jnp.zeros((g,), jnp.float32)          # exact module init
    p["ge_b"] = jnp.ones((g,), jnp.float32)           # exact module init
    p["conv1_w"] = 0.05 * jax.random.normal(keys[14], (20, 4 * hidden_dim, 3), jnp.float32)
    p["conv1_b"] = jnp.zeros((20,), jnp.float32)
    p["out_w"] = 0.1 * jax.random.normal(keys[15], (class_num, 20 * k), jnp.float32)
    p["out_b"] = jnp.zeros((class_num,), jnp.float32)
    return p


if __name__ == "__main__":
    # shapes consistent with the module: filter_num*len(filter_size) + 2*H == 4*H
    # (conv1 in_channels); g divides both branch channel counts; L % k == 0.
    vocab_size, embed_size = 50, 32
    filter_num, filter_sizes = 32, (3, 5)
    hidden_dim = 32
    class_num, g, k = 2, 4, 4
    B, L = 2, 16

    key = jax.random.PRNGKey(0)
    kparam, kx = jax.random.split(key)
    raw = init_params(kparam, vocab_size, embed_size, filter_num, filter_sizes,
                      hidden_dim, class_num, g, k)
    kparams = prepare_params(raw, k=k)                # packed once, outside jit
    x_tokens = jax.random.randint(kx, (B, L), 0, vocab_size, dtype=jnp.int32)

    fwd = jax.jit(lambda xs: ge_forward(kparams, xs))
    logits, pre = fwd(x_tokens)
    jax.block_until_ready((logits, pre))

    assert logits.shape == (B, class_num) and pre.shape == (B, class_num)
    assert bool(jnp.all(jnp.isfinite(logits))) and bool(jnp.all(jnp.isfinite(pre)))
    assert bool(jnp.all(jnp.abs(jnp.sum(logits, axis=1) - 1.0) < 1e-4))
    print("KERNEL_OK")
</pallas_src>

<mosaic_0001>
module attributes {stable_mosaic.version = 11 : i64} {
  func.func @_ge_fused_kernel(%arg0: memref<16x8x32xf32, #tpu.memory_space<vmem>>, %arg1: memref<128x32xf32, #tpu.memory_space<vmem>>, %arg2: memref<160x64xf32, #tpu.memory_space<vmem>>, %arg3: memref<1x64xf32, #tpu.memory_space<vmem>>, %arg4: memref<32x64xf32, #tpu.memory_space<vmem>>, %arg5: memref<1x64xf32, #tpu.memory_space<vmem>>, %arg6: memref<64x64xf32, #tpu.memory_space<vmem>>, %arg7: memref<384x20xf32, #tpu.memory_space<vmem>>, %arg8: memref<1x20xf32, #tpu.memory_space<vmem>>, %arg9: memref<4x20x2xf32, #tpu.memory_space<vmem>>, %arg10: memref<1x2xf32, #tpu.memory_space<vmem>>, %arg11: memref<4xf32, #tpu.memory_space<smem>>, %arg12: memref<4xf32, #tpu.memory_space<smem>>, %arg13: memref<2x2xf32, #tpu.memory_space<vmem>>, %arg14: memref<2x2xf32, #tpu.memory_space<vmem>>) attributes {dimension_semantics = [], scalar_prefetch = 0 : i64, scratch_operands = 0 : i64, tpu.core_type = #tpu.core_type<tc>} {
    %c0 = arith.constant 0 : index
    %c0_0 = arith.constant 0 : index
    %c0_1 = arith.constant 0 : index
    %0 = vector.load %arg0[%c0, %c0_0, %c0_1] : memref<16x8x32xf32, #tpu.memory_space<vmem>>, vector<16x8x32xf32>
    %cst = arith.constant 0.000000e+00 : f32
    %1 = vector.broadcast %cst : f32 to vector<2x8x32xf32>
    %2 = tpu.concatenate %1, %0, %1 in 0 : vector<2x8x32xf32>, vector<16x8x32xf32>, vector<2x8x32xf32> -> vector<20x8x32xf32>
    %3 = vector.extract_strided_slice %2 {offsets = [0, 0, 0], sizes = [16, 8, 32], strides = [1, 1, 1]} : vector<20x8x32xf32> to vector<16x8x32xf32>
    %4 = vector.extract_strided_slice %2 {offsets = [1, 0, 0], sizes = [16, 8, 32], strides = [1, 1, 1]} : vector<20x8x32xf32> to vector<16x8x32xf32>
    %5 = vector.extract_strided_slice %2 {offsets = [2, 0, 0], sizes = [16, 8, 32], strides = [1, 1, 1]} : vector<20x8x32xf32> to vector<16x8x32xf32>
    %6 = vector.extract_strided_slice %2 {offsets = [3, 0, 0], sizes = [16, 8, 32], strides = [1, 1, 1]} : vector<20x8x32xf32> to vector<16x8x32xf32>
    %7 = vector.extract_strided_slice %2 {offsets = [4, 0, 0], sizes = [16, 8, 32], strides = [1, 1, 1]} : vector<20x8x32xf32> to vector<16x8x32xf32>
    %8 = tpu.concatenate %3, %4, %5, %6, %7 in 2 : vector<16x8x32xf32>, vector<16x8x32xf32>, vector<16x8x32xf32>, vector<16x8x32xf32>, vector<16x8x32xf32> -> vector<16x8x160xf32>
    %9 = vector.shape_cast %8 : vector<16x8x160xf32> to vector<128x160xf32>
    %c0_2 = arith.constant 0 : index
    %c0_3 = arith.constant 0 : index
    %10 = vector.load %arg2[%c0_2, %c0_3] : memref<160x64xf32, #tpu.memory_space<vmem>>, vector<160x64xf32>
    %cst_4 = arith.constant dense<0.000000e+00> : vector<128x64xf32>
    %11 = tpu.matmul %9, %10, %cst_4 {dimension_numbers = #tpu.dot_dimension_numbers<[1], [0], [0], [1], [0, 0, 1, 1], [], []>} : vector<128x160xf32>, vector<160x64xf32>, vector<128x64xf32> -> vector<128x64xf32>
    %c0_5 = arith.constant 0 : index
    %c0_6 = arith.constant 0 : index
    %12 = vector.load %arg3[%c0_5, %c0_6] : memref<1x64xf32, #tpu.memory_space<vmem>>, vector<1x64xf32>
    %13 = vector.broadcast %12 : vector<1x64xf32> to vector<128x64xf32>
    %14 = arith.addf %11, %13 : vector<128x64xf32>
    %cst_7 = arith.constant 0.000000e+00 : f32
    %15 = vector.broadcast %cst_7 : f32 to vector<128x64xf32>
    %16 = arith.maximumf %14, %15 : vector<128x64xf32>
    %17 = vector.shape_cast %16 : vector<128x64xf32> to vector<16x8x64xf32>
    %c0_8 = arith.constant 0 : index
    %c0_9 = arith.constant 0 : index
    %18 = vector.load %arg1[%c0_8, %c0_9] : memref<128x32xf32, #tpu.memory_space<vmem>>, vector<128x32xf32>
    %c0_10 = arith.constant 0 : index
    %c0_11 = arith.constant 0 : index
    %19 = vector.load %arg4[%c0_10, %c0_11] : memref<32x64xf32, #tpu.memory_space<vmem>>, vector<32x64xf32>
    %cst_12 = arith.constant dense<0.000000e+00> : vector<128x64xf32>
    %20 = tpu.matmul %18, %19, %cst_12 {dimension_numbers = #tpu.dot_dimension_numbers<[1], [0], [0], [1], [0, 0, 1, 1], [], []>} : vector<128x32xf32>, vector<32x64xf32>, vector<128x64xf32> -> vector<128x64xf32>
    %c0_13 = arith.constant 0 : index
    %c0_14 = arith.constant 0 : index
    %21 = vector.load %arg5[%c0_13, %c0_14] : memref<1x64xf32, #tpu.memory_space<vmem>>, vector<1x64xf32>
    %22 = vector.broadcast %21 : vector<1x64xf32> to vector<128x64xf32>
    %23 = arith.addf %20, %22 : vector<128x64xf32>
    %24 = vector.shape_cast %23 : vector<128x64xf32> to vector<16x8x64xf32>
    %c0_15 = arith.constant 0 : index
    %c0_16 = arith.constant 0 : index
    %25 = vector.load %arg6[%c0_15, %c0_16] : memref<64x64xf32, #tpu.memory_space<vmem>>, vector<64x64xf32>
    %cst_17 = arith.constant 0.000000e+00 : f32
    %26 = vector.broadcast %cst_17 : f32 to vector<8x64xf32>
    %27 = vector.extract_strided_slice %24 {offsets = [0, 0, 0], sizes = [1, 8, 64], strides = [1, 1, 1]} : vector<16x8x64xf32> to vector<1x8x64xf32>
    %28 = vector.shape_cast %27 : vector<1x8x64xf32> to vector<8x64xf32>
    %29 = vector.extract_strided_slice %28 {offsets = [0, 0], sizes = [8, 32], strides = [1, 1]} : vector<8x64xf32> to vector<8x32xf32>
    %30 = vector.extract_strided_slice %24 {offsets = [15, 0, 0], sizes = [1, 8, 64], strides = [1, 1, 1]} : vector<16x8x64xf32> to vector<1x8x64xf32>
    %31 = vector.shape_cast %30 : vector<1x8x64xf32> to vector<8x64xf32>
    %32 = vector.extract_strided_slice %31 {offsets = [0, 32], sizes = [8, 32], strides = [1, 1]} : vector<8x64xf32> to vector<8x32xf32>
    %33 = tpu.concatenate %29, %32 in 1 : vector<8x32xf32>, vector<8x32xf32> -> vector<8x64xf32>
    %cst_18 = arith.constant dense<0.000000e+00> : vector<8x64xf32>
    %34 = tpu.matmul %26, %25, %cst_18 {dimension_numbers = #tpu.dot_dimension_numbers<[1], [0], [0], [1], [0, 0, 1, 1], [], []>} : vector<8x64xf32>, vector<64x64xf32>, vector<8x64xf32> -> vector<8x64xf32>
    %35 = arith.addf %33, %34 : vector<8x64xf32>
    %36 = math.tanh %35 : vector<8x64xf32>
    %37 = vector.extract_strided_slice %24 {offsets = [1, 0, 0], sizes = [1, 8, 64], strides = [1, 1, 1]} : vector<16x8x64xf32> to vector<1x8x64xf32>
    %38 = vector.shape_cast %37 : vector<1x8x64xf32> to vector<8x64xf32>
    %39 = vector.extract_strided_slice %38 {offsets = [0, 0], sizes = [8, 32], strides = [1, 1]} : vector<8x64xf32> to vector<8x32xf32>
    %40 = vector.extract_strided_slice %24 {offsets = [14, 0, 0], sizes = [1, 8, 64], strides = [1, 1, 1]} : vector<16x8x64xf32> to vector<1x8x64xf32>
    %41 = vector.shape_cast %40 : vector<1x8x64xf32> to vector<8x64xf32>
    %42 = vector.extract_strided_slice %41 {offsets = [0, 32], sizes = [8, 32], strides = [1, 1]} : vector<8x64xf32> to vector<8x32xf32>
    %43 = tpu.concatenate %39, %42 in 1 : vector<8x32xf32>, vector<8x32xf32> -> vector<8x64xf32>
    %cst_19 = arith.constant dense<0.000000e+00> : vector<8x64xf32>
    %44 = tpu.matmul %36, %25, %cst_19 {dimension_numbers = #tpu.dot_dimension_numbers<[1], [0], [0], [1], [0, 0, 1, 1], [], []>} : vector<8x64xf32>, vector<64x64xf32>, vector<8x64xf32> -> vector<8x64xf32>
    %45 = arith.addf %43, %44 : vector<8x64xf32>
    %46 = math.tanh %45 : vector<8x64xf32>
    %47 = vector.extract_strided_slice %24 {offsets = [2, 0, 0], sizes = [1, 8, 64], strides = [1, 1, 1]} : vector<16x8x64xf32> to vector<1x8x64xf32>
    %48 = vector.shape_cast %47 : vector<1x8x64xf32> to vector<8x64xf32>
    %49 = vector.extract_strided_slice %48 {offsets = [0, 0], sizes = [8, 32], strides = [1, 1]} : vector<8x64xf32> to vector<8x32xf32>
    %50 = vector.extract_strided_slice %24 {offsets = [13, 0, 0], sizes = [1, 8, 64], strides = [1, 1, 1]} : vector<16x8x64xf32> to vector<1x8x64xf32>
    %51 = vector.shape_cast %50 : vector<1x8x64xf32> to vector<8x64xf32>
    %52 = vector.extract_strided_slice %51 {offsets = [0, 32], sizes = [8, 32], strides = [1, 1]} : vector<8x64xf32> to vector<8x32xf32>
    %53 = tpu.concatenate %49, %52 in 1 : vector<8x32xf32>, vector<8x32xf32> -> vector<8x64xf32>
    %cst_20 = arith.constant dense<0.000000e+00> : vector<8x64xf32>
    %54 = tpu.matmul %46, %25, %cst_20 {dimension_numbers = #tpu.dot_dimension_numbers<[1], [0], [0], [1], [0, 0, 1, 1], [], []>} : vector<8x64xf32>, vector<64x64xf32>, vector<8x64xf32> -> vector<8x64xf32>
    %55 = arith.addf %53, %54 : vector<8x64xf32>
    %56 = math.tanh %55 : vector<8x64xf32>
    %57 = vector.extract_strided_slice %24 {offsets = [3, 0, 0], sizes = [1, 8, 64], strides = [1, 1, 1]} : vector<16x8x64xf32> to vector<1x8x64xf32>
    %58 = vector.shape_cast %57 : vector<1x8x64xf32> to vector<8x64xf32>
    %59 = vector.extract_strided_slice %58 {offsets = [0, 0], sizes = [8, 32], strides = [1, 1]} : vector<8x64xf32> to vector<8x32xf32>
    %60 = vector.extract_strided_slice %24 {offsets = [12, 0, 0], sizes = [1, 8, 64], strides = [1, 1, 1]} : vector<16x8x64xf32> to vector<1x8x64xf32>
    %61 = vector.shape_cast %60 : vector<1x8x64xf32> to vector<8x64xf32>
    %62 = vector.extract_strided_slice %61 {offsets = [0, 32], sizes = [8, 32], strides = [1, 1]} : vector<8x64xf32> to vector<8x32xf32>
    %63 = tpu.concatenate %59, %62 in 1 : vector<8x32xf32>, vector<8x32xf32> -> vector<8x64xf32>
    %cst_21 = arith.constant dense<0.000000e+00> : vector<8x64xf32>
    %64 = tpu.matmul %56, %25, %cst_21 {dimension_numbers = #tpu.dot_dimension_numbers<[1], [0], [0], [1], [0, 0, 1, 1], [], []>} : vector<8x64xf32>, vector<64x64xf32>, vector<8x64xf32> -> vector<8x64xf32>
    %65 = arith.addf %63, %64 : vector<8x64xf32>
    %66 = math.tanh %65 : vector<8x64xf32>
    %67 = vector.extract_strided_slice %24 {offsets = [4, 0, 0], sizes = [1, 8, 64], strides = [1, 1, 1]} : vector<16x8x64xf32> to vector<1x8x64xf32>
    %68 = vector.shape_cast %67 : vector<1x8x64xf32> to vector<8x64xf32>
    %69 = vector.extract_strided_slice %68 {offsets = [0, 0], sizes = [8, 32], strides = [1, 1]} : vector<8x64xf32> to vector<8x32xf32>
    %70 = vector.extract_strided_slice %24 {offsets = [11, 0, 0], sizes = [1, 8, 64], strides = [1, 1, 1]} : vector<16x8x64xf32> to vector<1x8x64xf32>
    %71 = vector.shape_cast %70 : vector<1x8x64xf32> to vector<8x64xf32>
    %72 = vector.extract_strided_slice %71 {offsets = [0, 32], sizes = [8, 32], strides = [1, 1]} : vector<8x64xf32> to vector<8x32xf32>
    %73 = tpu.concatenate %69, %72 in 1 : vector<8x32xf32>, vector<8x32xf32> -> vector<8x64xf32>
    %cst_22 = arith.constant dense<0.000000e+00> : vector<8x64xf32>
    %74 = tpu.matmul %66, %25, %cst_22 {dimension_numbers = #tpu.dot_dimension_numbers<[1], [0], [0], [1], [0, 0, 1, 1], [], []>} : vector<8x64xf32>, vector<64x64xf32>, vector<8x64xf32> -> vector<8x64xf32>
    %75 = arith.addf %73, %74 : vector<8x64xf32>
    %76 = math.tanh %75 : vector<8x64xf32>
    %77 = vector.extract_strided_slice %24 {offsets = [5, 0, 0], sizes = [1, 8, 64], strides = [1, 1, 1]} : vector<16x8x64xf32> to vector<1x8x64xf32>
    %78 = vector.shape_cast %77 : vector<1x8x64xf32> to vector<8x64xf32>
    %79 = vector.extract_strided_slice %78 {offsets = [0, 0], sizes = [8, 32], strides = [1, 1]} : vector<8x64xf32> to vector<8x32xf32>
    %80 = vector.extract_strided_slice %24 {offsets = [10, 0, 0], sizes = [1, 8, 64], strides = [1, 1, 1]} : vector<16x8x64xf32> to vector<1x8x64xf32>
    %81 = vector.shape_cast %80 : vector<1x8x64xf32> to vector<8x64xf32>
    %82 = vector.extract_strided_slice %81 {offsets = [0, 32], sizes = [8, 32], strides = [1, 1]} : vector<8x64xf32> to vector<8x32xf32>
    %83 = tpu.concatenate %79, %82 in 1 : vector<8x32xf32>, vector<8x32xf32> -> vector<8x64xf32>
    %cst_23 = arith.constant dense<0.000000e+00> : vector<8x64xf32>
    %84 = tpu.matmul %76, %25, %cst_23 {dimension_numbers = #tpu.dot_dimension_numbers<[1], [0], [0], [1], [0, 0, 1, 1], [], []>} : vector<8x64xf32>, vector<64x64xf32>, vector<8x64xf32> -> vector<8x64xf32>
    %85 = arith.addf %83, %84 : vector<8x64xf32>
    %86 = math.tanh %85 : vector<8x64xf32>
    %87 = vector.extract_strided_slice %24 {offsets = [6, 0, 0], sizes = [1, 8, 64], strides = [1, 1, 1]} : vector<16x8x64xf32> to vector<1x8x64xf32>
    %88 = vector.shape_cast %87 : vector<1x8x64xf32> to vector<8x64xf32>
    %89 = vector.extract_strided_slice %88 {offsets = [0, 0], sizes = [8, 32], strides = [1, 1]} : vector<8x64xf32> to vector<8x32xf32>
    %90 = vector.extract_strided_slice %24 {offsets = [9, 0, 0], sizes = [1, 8, 64], strides = [1, 1, 1]} : vector<16x8x64xf32> to vector<1x8x64xf32>
    %91 = vector.shape_cast %90 : vector<1x8x64xf32> to vector<8x64xf32>
    %92 = vector.extract_strided_slice %91 {offsets = [0, 32], sizes = [8, 32], strides = [1, 1]} : vector<8x64xf32> to vector<8x32xf32>
    %93 = tpu.concatenate %89, %92 in 1 : vector<8x32xf32>, vector<8x32xf32> -> vector<8x64xf32>
    %cst_24 = arith.constant dense<0.000000e+00> : vector<8x64xf32>
    %94 = tpu.matmul %86, %25, %cst_24 {dimension_numbers = #tpu.dot_dimension_numbers<[1], [0], [0], [1], [0, 0, 1, 1], [], []>} : vector<8x64xf32>, vector<64x64xf32>, vector<8x64xf32> -> vector<8x64xf32>
    %95 = arith.addf %93, %94 : vector<8x64xf32>
    %96 = math.tanh %95 : vector<8x64xf32>
    %97 = vector.extract_strided_slice %24 {offsets = [7, 0, 0], sizes = [1, 8, 64], strides = [1, 1, 1]} : vector<16x8x64xf32> to vector<1x8x64xf32>
    %98 = vector.shape_cast %97 : vector<1x8x64xf32> to vector<8x64xf32>
    %99 = vector.extract_strided_slice %98 {offsets = [0, 0], sizes = [8, 32], strides = [1, 1]} : vector<8x64xf32> to vector<8x32xf32>
    %100 = vector.extract_strided_slice %24 {offsets = [8, 0, 0], sizes = [1, 8, 64], strides = [1, 1, 1]} : vector<16x8x64xf32> to vector<1x8x64xf32>
    %101 = vector.shape_cast %100 : vector<1x8x64xf32> to vector<8x64xf32>
    %102 = vector.extract_strided_slice %101 {offsets = [0, 32], sizes = [8, 32], strides = [1, 1]} : vector<8x64xf32> to vector<8x32xf32>
    %103 = tpu.concatenate %99, %102 in 1 : vector<8x32xf32>, vector<8x32xf32> -> vector<8x64xf32>
    %cst_25 = arith.constant dense<0.000000e+00> : vector<8x64xf32>
    %104 = tpu.matmul %96, %25, %cst_25 {dimension_numbers = #tpu.dot_dimension_numbers<[1], [0], [0], [1], [0, 0, 1, 1], [], []>} : vector<8x64xf32>, vector<64x64xf32>, vector<8x64xf32> -> vector<8x64xf32>
    %105 = arith.addf %103, %104 : vector<8x64xf32>
    %106 = math.tanh %105 : vector<8x64xf32>
    %107 = vector.extract_strided_slice %24 {offsets = [8, 0, 0], sizes = [1, 8, 64], strides = [1, 1, 1]} : vector<16x8x64xf32> to vector<1x8x64xf32>
    %108 = vector.shape_cast %107 : vector<1x8x64xf32> to vector<8x64xf32>
    %109 = vector.extract_strided_slice %108 {offsets = [0, 0], sizes = [8, 32], strides = [1, 1]} : vector<8x64xf32> to vector<8x32xf32>
    %110 = vector.extract_strided_slice %24 {offsets = [7, 0, 0], sizes = [1, 8, 64], strides = [1, 1, 1]} : vector<16x8x64xf32> to vector<1x8x64xf32>
    %111 = vector.shape_cast %110 : vector<1x8x64xf32> to vector<8x64xf32>
    %112 = vector.extract_strided_slice %111 {offsets = [0, 32], sizes = [8, 32], strides = [1, 1]} : vector<8x64xf32> to vector<8x32xf32>
    %113 = tpu.concatenate %109, %112 in 1 : vector<8x32xf32>, vector<8x32xf32> -> vector<8x64xf32>
    %cst_26 = arith.constant dense<0.000000e+00> : vector<8x64xf32>
    %114 = tpu.matmul %106, %25, %cst_26 {dimension_numbers = #tpu.dot_dimension_numbers<[1], [0], [0], [1], [0, 0, 1, 1], [], []>} : vector<8x64xf32>, vector<64x64xf32>, vector<8x64xf32> -> vector<8x64xf32>
    %115 = arith.addf %113, %114 : vector<8x64xf32>
    %116 = math.tanh %115 : vector<8x64xf32>
    %117 = vector.extract_strided_slice %24 {offsets = [9, 0, 0], sizes = [1, 8, 64], strides = [1, 1, 1]} : vector<16x8x64xf32> to vector<1x8x64xf32>
    %118 = vector.shape_cast %117 : vector<1x8x64xf32> to vector<8x64xf32>
    %119 = vector.extract_strided_slice %118 {offsets = [0, 0], sizes = [8, 32], strides = [1, 1]} : vector<8x64xf32> to vector<8x32xf32>
    %120 = vector.extract_strided_slice %24 {offsets = [6, 0, 0], sizes = [1, 8, 64], strides = [1, 1, 1]} : vector<16x8x64xf32> to vector<1x8x64xf32>
    %121 = vector.shape_cast %120 : vector<1x8x64xf32> to vector<8x64xf32>
    %122 = vector.extract_strided_slice %121 {offsets = [0, 32], sizes = [8, 32], strides = [1, 1]} : vector<8x64xf32> to vector<8x32xf32>
    %123 = tpu.concatenate %119, %122 in 1 : vector<8x32xf32>, vector<8x32xf32> -> vector<8x64xf32>
    %cst_27 = arith.constant dense<0.000000e+00> : vector<8x64xf32>
    %124 = tpu.matmul %116, %25, %cst_27 {dimension_numbers = #tpu.dot_dimension_numbers<[1], [0], [0], [1], [0, 0, 1, 1], [], []>} : vector<8x64xf32>, vector<64x64xf32>, vector<8x64xf32> -> vector<8x64xf32>
    %125 = arith.addf %123, %124 : vector<8x64xf32>
    %126 = math.tanh %125 : vector<8x64xf32>
    %127 = vector.extract_strided_slice %24 {offsets = [10, 0, 0], sizes = [1, 8, 64], strides = [1, 1, 1]} : vector<16x8x64xf32> to vector<1x8x64xf32>
    %128 = vector.shape_cast %127 : vector<1x8x64xf32> to vector<8x64xf32>
    %129 = vector.extract_strided_slice %128 {offsets = [0, 0], sizes = [8, 32], strides = [1, 1]} : vector<8x64xf32> to vector<8x32xf32>
    %130 = vector.extract_strided_slice %24 {offsets = [5, 0, 0], sizes = [1, 8, 64], strides = [1, 1, 1]} : vector<16x8x64xf32> to vector<1x8x64xf32>
    %131 = vector.shape_cast %130 : vector<1x8x64xf32> to vector<8x64xf32>
    %132 = vector.extract_strided_slice %131 {offsets = [0, 32], sizes = [8, 32], strides = [1, 1]} : vector<8x64xf32> to vector<8x32xf32>
    %133 = tpu.concatenate %129, %132 in 1 : vector<8x32xf32>, vector<8x32xf32> -> vector<8x64xf32>
    %cst_28 = arith.constant dense<0.000000e+00> : vector<8x64xf32>
    %134 = tpu.matmul %126, %25, %cst_28 {dimension_numbers = #tpu.dot_dimension_numbers<[1], [0], [0], [1], [0, 0, 1, 1], [], []>} : vector<8x64xf32>, vector<64x64xf32>, vector<8x64xf32> -> vector<8x64xf32>
    %135 = arith.addf %133, %134 : vector<8x64xf32>
    %136 = math.tanh %135 : vector<8x64xf32>
    %137 = vector.extract_strided_slice %24 {offsets = [11, 0, 0], sizes = [1, 8, 64], strides = [1, 1, 1]} : vector<16x8x64xf32> to vector<1x8x64xf32>
    %138 = vector.shape_cast %137 : vector<1x8x64xf32> to vector<8x64xf32>
    %139 = vector.extract_strided_slice %138 {offsets = [0, 0], sizes = [8, 32], strides = [1, 1]} : vector<8x64xf32> to vector<8x32xf32>
    %140 = vector.extract_strided_slice %24 {offsets = [4, 0, 0], sizes = [1, 8, 64], strides = [1, 1, 1]} : vector<16x8x64xf32> to vector<1x8x64xf32>
    %141 = vector.shape_cast %140 : vector<1x8x64xf32> to vector<8x64xf32>
    %142 = vector.extract_strided_slice %141 {offsets = [0, 32], sizes = [8, 32], strides = [1, 1]} : vector<8x64xf32> to vector<8x32xf32>
    %143 = tpu.concatenate %139, %142 in 1 : vector<8x32xf32>, vector<8x32xf32> -> vector<8x64xf32>
    %cst_29 = arith.constant dense<0.000000e+00> : vector<8x64xf32>
    %144 = tpu.matmul %136, %25, %cst_29 {dimension_numbers = #tpu.dot_dimension_numbers<[1], [0], [0], [1], [0, 0, 1, 1], [], []>} : vector<8x64xf32>, vector<64x64xf32>, vector<8x64xf32> -> vector<8x64xf32>
    %145 = arith.addf %143, %144 : vector<8x64xf32>
    %146 = math.tanh %145 : vector<8x64xf32>
    %147 = vector.extract_strided_slice %24 {offsets = [12, 0, 0], sizes = [1, 8, 64], strides = [1, 1, 1]} : vector<16x8x64xf32> to vector<1x8x64xf32>
    %148 = vector.shape_cast %147 : vector<1x8x64xf32> to vector<8x64xf32>
    %149 = vector.extract_strided_slice %148 {offsets = [0, 0], sizes = [8, 32], strides = [1, 1]} : vector<8x64xf32> to vector<8x32xf32>
    %150 = vector.extract_strided_slice %24 {offsets = [3, 0, 0], sizes = [1, 8, 64], strides = [1, 1, 1]} : vector<16x8x64xf32> to vector<1x8x64xf32>
    %151 = vector.shape_cast %150 : vector<1x8x64xf32> to vector<8x64xf32>
    %152 = vector.extract_strided_slice %151 {offsets = [0, 32], sizes = [8, 32], strides = [1, 1]} : vector<8x64xf32> to vector<8x32xf32>
    %153 = tpu.concatenate %149, %152 in 1 : vector<8x32xf32>, vector<8x32xf32> -> vector<8x64xf32>
    %cst_30 = arith.constant dense<0.000000e+00> : vector<8x64xf32>
    %154 = tpu.matmul %146, %25, %cst_30 {dimension_numbers = #tpu.dot_dimension_numbers<[1], [0], [0], [1], [0, 0, 1, 1], [], []>} : vector<8x64xf32>, vector<64x64xf32>, vector<8x64xf32> -> vector<8x64xf32>
    %155 = arith.addf %153, %154 : vector<8x64xf32>
    %156 = math.tanh %155 : vector<8x64xf32>
    %157 = vector.extract_strided_slice %24 {offsets = [13, 0, 0], sizes = [1, 8, 64], strides = [1, 1, 1]} : vector<16x8x64xf32> to vector<1x8x64xf32>
    %158 = vector.shape_cast %157 : vector<1x8x64xf32> to vector<8x64xf32>
    %159 = vector.extract_strided_slice %158 {offsets = [0, 0], sizes = [8, 32], strides = [1, 1]} : vector<8x64xf32> to vector<8x32xf32>
    %160 = vector.extract_strided_slice %24 {offsets = [2, 0, 0], sizes = [1, 8, 64], strides = [1, 1, 1]} : vector<16x8x64xf32> to vector<1x8x64xf32>
    %161 = vector.shape_cast %160 : vector<1x8x64xf32> to vector<8x64xf32>
    %162 = vector.extract_strided_slice %161 {offsets = [0, 32], sizes = [8, 32], strides = [1, 1]} : vector<8x64xf32> to vector<8x32xf32>
    %163 = tpu.concatenate %159, %162 in 1 : vector<8x32xf32>, vector<8x32xf32> -> vector<8x64xf32>
    %cst_31 = arith.constant dense<0.000000e+00> : vector<8x64xf32>
    %164 = tpu.matmul %156, %25, %cst_31 {dimension_numbers = #tpu.dot_dimension_numbers<[1], [0], [0], [1], [0, 0, 1, 1], [], []>} : vector<8x64xf32>, vector<64x64xf32>, vector<8x64xf32> -> vector<8x64xf32>
    %165 = arith.addf %163, %164 : vector<8x64xf32>
    %166 = math.tanh %165 : vector<8x64xf32>
    %167 = vector.extract_strided_slice %24 {offsets = [14, 0, 0], sizes = [1, 8, 64], strides = [1, 1, 1]} : vector<16x8x64xf32> to vector<1x8x64xf32>
    %168 = vector.shape_cast %167 : vector<1x8x64xf32> to vector<8x64xf32>
    %169 = vector.extract_strided_slice %168 {offsets = [0, 0], sizes = [8, 32], strides = [1, 1]} : vector<8x64xf32> to vector<8x32xf32>
    %170 = vector.extract_strided_slice %24 {offsets = [1, 0, 0], sizes = [1, 8, 64], strides = [1, 1, 1]} : vector<16x8x64xf32> to vector<1x8x64xf32>
    %171 = vector.shape_cast %170 : vector<1x8x64xf32> to vector<8x64xf32>
    %172 = vector.extract_strided_slice %171 {offsets = [0, 32], sizes = [8, 32], strides = [1, 1]} : vector<8x64xf32> to vector<8x32xf32>
    %173 = tpu.concatenate %169, %172 in 1 : vector<8x32xf32>, vector<8x32xf32> -> vector<8x64xf32>
    %cst_32 = arith.constant dense<0.000000e+00> : vector<8x64xf32>
    %174 = tpu.matmul %166, %25, %cst_32 {dimension_numbers = #tpu.dot_dimension_numbers<[1], [0], [0], [1], [0, 0, 1, 1], [], []>} : vector<8x64xf32>, vector<64x64xf32>, vector<8x64xf32> -> vector<8x64xf32>
    %175 = arith.addf %173, %174 : vector<8x64xf32>
    %176 = math.tanh %175 : vector<8x64xf32>
    %177 = vector.extract_strided_slice %24 {offsets = [15, 0, 0], sizes = [1, 8, 64], strides = [1, 1, 1]} : vector<16x8x64xf32> to vector<1x8x64xf32>
    %178 = vector.shape_cast %177 : vector<1x8x64xf32> to vector<8x64xf32>
    %179 = vector.extract_strided_slice %178 {offsets = [0, 0], sizes = [8, 32], strides = [1, 1]} : vector<8x64xf32> to vector<8x32xf32>
    %180 = vector.extract_strided_slice %24 {offsets = [0, 0, 0], sizes = [1, 8, 64], strides = [1, 1, 1]} : vector<16x8x64xf32> to vector<1x8x64xf32>
    %181 = vector.shape_cast %180 : vector<1x8x64xf32> to vector<8x64xf32>
    %182 = vector.extract_strided_slice %181 {offsets = [0, 32], sizes = [8, 32], strides = [1, 1]} : vector<8x64xf32> to vector<8x32xf32>
    %183 = tpu.concatenate %179, %182 in 1 : vector<8x32xf32>, vector<8x32xf32> -> vector<8x64xf32>
    %cst_33 = arith.constant dense<0.000000e+00> : vector<8x64xf32>
    %184 = tpu.matmul %176, %25, %cst_33 {dimension_numbers = #tpu.dot_dimension_numbers<[1], [0], [0], [1], [0, 0, 1, 1], [], []>} : vector<8x64xf32>, vector<64x64xf32>, vector<8x64xf32> -> vector<8x64xf32>
    %185 = arith.addf %183, %184 : vector<8x64xf32>
    %186 = math.tanh %185 : vector<8x64xf32>
    %187 = vector.extract_strided_slice %36 {offsets = [0, 0], sizes = [8, 32], strides = [1, 1]} : vector<8x64xf32> to vector<8x32xf32>
    %188 = vector.extract_strided_slice %186 {offsets = [0, 32], sizes = [8, 32], strides = [1, 1]} : vector<8x64xf32> to vector<8x32xf32>
    %189 = tpu.concatenate %187, %188 in 1 : vector<8x32xf32>, vector<8x32xf32> -> vector<8x64xf32>
    %190 = vector.extract_strided_slice %46 {offsets = [0, 0], sizes = [8, 32], strides = [1, 1]} : vector<8x64xf32> to vector<8x32xf32>
    %191 = vector.extract_strided_slice %176 {offsets = [0, 32], sizes = [8, 32], strides = [1, 1]} : vector<8x64xf32> to vector<8x32xf32>
    %192 = tpu.concatenate %190, %191 in 1 : vector<8x32xf32>, vector<8x32xf32> -> vector<8x64xf32>
    %193 = vector.extract_strided_slice %56 {offsets = [0, 0], sizes = [8, 32], strides = [1, 1]} : vector<8x64xf32> to vector<8x32xf32>
    %194 = vector.extract_strided_slice %166 {offsets = [0, 32], sizes = [8, 32], strides = [1, 1]} : vector<8x64xf32> to vector<8x32xf32>
    %195 = tpu.concatenate %193, %194 in 1 : vector<8x32xf32>, vector<8x32xf32> -> vector<8x64xf32>
    %196 = vector.extract_strided_slice %66 {offsets = [0, 0], sizes = [8, 32], strides = [1, 1]} : vector<8x64xf32> to vector<8x32xf32>
    %197 = vector.extract_strided_slice %156 {offsets = [0, 32], sizes = [8, 32], strides = [1, 1]} : vector<8x64xf32> to vector<8x32xf32>
    %198 = tpu.concatenate %196, %197 in 1 : vector<8x32xf32>, vector<8x32xf32> -> vector<8x64xf32>
    %199 = vector.extract_strided_slice %76 {offsets = [0, 0], sizes = [8, 32], strides = [1, 1]} : vector<8x64xf32> to vector<8x32xf32>
    %200 = vector.extract_strided_slice %146 {offsets = [0, 32], sizes = [8, 32], strides = [1, 1]} : vector<8x64xf32> to vector<8x32xf32>
    %201 = tpu.concatenate %199, %200 in 1 : vector<8x32xf32>, vector<8x32xf32> -> vector<8x64xf32>
    %202 = vector.extract_strided_slice %86 {offsets = [0, 0], sizes = [8, 32], strides = [1, 1]} : vector<8x64xf32> to vector<8x32xf32>
    %203 = vector.extract_strided_slice %136 {offsets = [0, 32], sizes = [8, 32], strides = [1, 1]} : vector<8x64xf32> to vector<8x32xf32>
    %204 = tpu.concatenate %202, %203 in 1 : vector<8x32xf32>, vector<8x32xf32> -> vector<8x64xf32>
    %205 = vector.extract_strided_slice %96 {offsets = [0, 0], sizes = [8, 32], strides = [1, 1]} : vector<8x64xf32> to vector<8x32xf32>
    %206 = vector.extract_strided_slice %126 {offsets = [0, 32], sizes = [8, 32], strides = [1, 1]} : vector<8x64xf32> to vector<8x32xf32>
    %207 = tpu.concatenate %205, %206 in 1 : vector<8x32xf32>, vector<8x32xf32> -> vector<8x64xf32>
    %208 = vector.extract_strided_slice %106 {offsets = [0, 0], sizes = [8, 32], strides = [1, 1]} : vector<8x64xf32> to vector<8x32xf32>
    %209 = vector.extract_strided_slice %116 {offsets = [0, 32], sizes = [8, 32], strides = [1, 1]} : vector<8x64xf32> to vector<8x32xf32>
    %210 = tpu.concatenate %208, %209 in 1 : vector<8x32xf32>, vector<8x32xf32> -> vector<8x64xf32>
    %211 = vector.extract_strided_slice %116 {offsets = [0, 0], sizes = [8, 32], strides = [1, 1]} : vector<8x64xf32> to vector<8x32xf32>
    %212 = vector.extract_strided_slice %106 {offsets = [0, 32], sizes = [8, 32], strides = [1, 1]} : vector<8x64xf32> to vector<8x32xf32>
    %213 = tpu.concatenate %211, %212 in 1 : vector<8x32xf32>, vector<8x32xf32> -> vector<8x64xf32>
    %214 = vector.extract_strided_slice %126 {offsets = [0, 0], sizes = [8, 32], strides = [1, 1]} : vector<8x64xf32> to vector<8x32xf32>
    %215 = vector.extract_strided_slice %96 {offsets = [0, 32], sizes = [8, 32], strides = [1, 1]} : vector<8x64xf32> to vector<8x32xf32>
    %216 = tpu.concatenate %214, %215 in 1 : vector<8x32xf32>, vector<8x32xf32> -> vector<8x64xf32>
    %217 = vector.extract_strided_slice %136 {offsets = [0, 0], sizes = [8, 32], strides = [1, 1]} : vector<8x64xf32> to vector<8x32xf32>
    %218 = vector.extract_strided_slice %86 {offsets = [0, 32], sizes = [8, 32], strides = [1, 1]} : vector<8x64xf32> to vector<8x32xf32>
    %219 = tpu.concatenate %217, %218 in 1 : vector<8x32xf32>, vector<8x32xf32> -> vector<8x64xf32>
    %220 = vector.extract_strided_slice %146 {offsets = [0, 0], sizes = [8, 32], strides = [1, 1]} : vector<8x64xf32> to vector<8x32xf32>
    %221 = vector.extract_strided_slice %76 {offsets = [0, 32], sizes = [8, 32], strides = [1, 1]} : vector<8x64xf32> to vector<8x32xf32>
    %222 = tpu.concatenate %220, %221 in 1 : vector<8x32xf32>, vector<8x32xf32> -> vector<8x64xf32>
    %223 = vector.extract_strided_slice %156 {offsets = [0, 0], sizes = [8, 32], strides = [1, 1]} : vector<8x64xf32> to vector<8x32xf32>
    %224 = vector.extract_strided_slice %66 {offsets = [0, 32], sizes = [8, 32], strides = [1, 1]} : vector<8x64xf32> to vector<8x32xf32>
    %225 = tpu.concatenate %223, %224 in 1 : vector<8x32xf32>, vector<8x32xf32> -> vector<8x64xf32>
    %226 = vector.extract_strided_slice %166 {offsets = [0, 0], sizes = [8, 32], strides = [1, 1]} : vector<8x64xf32> to vector<8x32xf32>
    %227 = vector.extract_strided_slice %56 {offsets = [0, 32], sizes = [8, 32], strides = [1, 1]} : vector<8x64xf32> to vector<8x32xf32>
    %228 = tpu.concatenate %226, %227 in 1 : vector<8x32xf32>, vector<8x32xf32> -> vector<8x64xf32>
    %229 = vector.extract_strided_slice %176 {offsets = [0, 0], sizes = [8, 32], strides = [1, 1]} : vector<8x64xf32> to vector<8x32xf32>
    %230 = vector.extract_strided_slice %46 {offsets = [0, 32], sizes = [8, 32], strides = [1, 1]} : vector<8x64xf32> to vector<8x32xf32>
    %231 = tpu.concatenate %229, %230 in 1 : vector<8x32xf32>, vector<8x32xf32> -> vector<8x64xf32>
    %232 = vector.extract_strided_slice %186 {offsets = [0, 0], sizes = [8, 32], strides = [1, 1]} : vector<8x64xf32> to vector<8x32xf32>
    %233 = vector.extract_strided_slice %36 {offsets = [0, 32], sizes = [8, 32], strides = [1, 1]} : vector<8x64xf32> to vector<8x32xf32>
    %234 = tpu.concatenate %232, %233 in 1 : vector<8x32xf32>, vector<8x32xf32> -> vector<8x64xf32>
    %235 = tpu.concatenate %189, %192, %195, %198, %201, %204, %207, %210, %213, %216, %219, %222, %225, %228, %231, %234 in 0 : vector<8x64xf32>, vector<8x64xf32>, vector<8x64xf32>, vector<8x64xf32>, vector<8x64xf32>, vector<8x64xf32>, vector<8x64xf32>, vector<8x64xf32>, vector<8x64xf32>, vector<8x64xf32>, vector<8x64xf32>, vector<8x64xf32>, vector<8x64xf32>, vector<8x64xf32>, vector<8x64xf32>, vector<8x64xf32> -> vector<128x64xf32>
    %236 = vector.shape_cast %235 : vector<128x64xf32> to vector<16x8x64xf32>
    %cst_34 = arith.constant dense<0xFF800000> : vector<16x8xf32>
    %237 = vector.multi_reduction <maximumf>, %17, %cst_34 [2] : vector<16x8x64xf32> to vector<16x8xf32>
    %238 = vector.shape_cast %237 : vector<16x8xf32> to vector<16x8x1xf32>
    %239 = vector.broadcast %238 : vector<16x8x1xf32> to vector<16x8x64xf32>
    %240 = arith.subf %17, %239 : vector<16x8x64xf32>
    %241 = math.exp %240 : vector<16x8x64xf32>
    %cst_35 = arith.constant dense<0.000000e+00> : vector<16x8xf32>
    %242 = vector.multi_reduction <add>, %241, %cst_35 [2] : vector<16x8x64xf32> to vector<16x8xf32>
    %243 = vector.shape_cast %242 : vector<16x8xf32> to vector<16x8x1xf32>
    %244 = vector.broadcast %243 : vector<16x8x1xf32> to vector<16x8x64xf32>
    %245 = arith.divf %241, %244 : vector<16x8x64xf32>
    %246 = vector.extract_strided_slice %245 {offsets = [0, 0, 0], sizes = [16, 8, 16], strides = [1, 1, 1]} : vector<16x8x64xf32> to vector<16x8x16xf32>
    %cst_36 = arith.constant dense<0.000000e+00> : vector<8x16xf32>
    %247 = vector.multi_reduction <add>, %246, %cst_36 [0] : vector<16x8x16xf32> to vector<8x16xf32>
    %248 = vector.shape_cast %247 : vector<8x16xf32> to vector<1x8x16xf32>
    %cst_37 = arith.constant 1.600000e+01 : f32
    %249 = vector.broadcast %cst_37 : f32 to vector<1x8x16xf32>
    %250 = arith.divf %248, %249 : vector<1x8x16xf32>
    %251 = vector.broadcast %250 : vector<1x8x16xf32> to vector<16x8x16xf32>
    %252 = arith.mulf %246, %251 : vector<16x8x16xf32>
    %cst_38 = arith.constant dense<0.000000e+00> : vector<16x8xf32>
    %253 = vector.multi_reduction <add>, %252, %cst_38 [2] : vector<16x8x16xf32> to vector<16x8xf32>
    %254 = vector.shape_cast %253 : vector<16x8xf32> to vector<16x8x1xf32>
    %cst_39 = arith.constant dense<0.000000e+00> : vector<8x1xf32>
    %255 = vector.multi_reduction <add>, %254, %cst_39 [0] : vector<16x8x1xf32> to vector<8x1xf32>
    %256 = vector.shape_cast %255 : vector<8x1xf32> to vector<1x8x1xf32>
    %cst_40 = arith.constant 1.600000e+01 : f32
    %257 = vector.broadcast %cst_40 : f32 to vector<1x8x1xf32>
    %258 = arith.divf %256, %257 : vector<1x8x1xf32>
    %259 = vector.broadcast %258 : vector<1x8x1xf32> to vector<16x8x1xf32>
    %260 = arith.subf %254, %259 : vector<16x8x1xf32>
    %261 = arith.mulf %260, %260 : vector<16x8x1xf32>
    %cst_41 = arith.constant dense<0.000000e+00> : vector<8x1xf32>
    %262 = vector.multi_reduction <add>, %261, %cst_41 [0] : vector<16x8x1xf32> to vector<8x1xf32>
    %263 = vector.shape_cast %262 : vector<8x1xf32> to vector<1x8x1xf32>
    %cst_42 = arith.constant 1.500000e+01 : f32
    %264 = vector.broadcast %cst_42 : f32 to vector<1x8x1xf32>
    %265 = arith.divf %263, %264 : vector<1x8x1xf32>
    %266 = math.sqrt %265 : vector<1x8x1xf32>
    %cst_43 = arith.constant 9.99999974E-6 : f32
    %267 = vector.broadcast %cst_43 : f32 to vector<1x8x1xf32>
    %268 = arith.addf %266, %267 : vector<1x8x1xf32>
    %269 = vector.broadcast %268 : vector<1x8x1xf32> to vector<16x8x1xf32>
    %270 = arith.divf %260, %269 : vector<16x8x1xf32>
    %c0_44 = arith.constant 0 : index
    %271 = memref.load %arg11[%c0_44] : memref<4xf32, #tpu.memory_space<smem>>
    %272 = vector.broadcast %271 : f32 to vector<16x8x1xf32>
    %273 = arith.mulf %270, %272 : vector<16x8x1xf32>
    %c0_45 = arith.constant 0 : index
    %274 = memref.load %arg12[%c0_45] : memref<4xf32, #tpu.memory_space<smem>>
    %275 = vector.broadcast %274 : f32 to vector<16x8x1xf32>
    %276 = arith.addf %273, %275 : vector<16x8x1xf32>
    %277 = arith.negf %276 : vector<16x8x1xf32>
    %278 = math.exp %277 : vector<16x8x1xf32>
    %cst_46 = arith.constant 1.000000e+00 : f32
    %279 = vector.broadcast %cst_46 : f32 to vector<16x8x1xf32>
    %280 = arith.addf %279, %278 : vector<16x8x1xf32>
    %281 = arith.divf %279, %280 : vector<16x8x1xf32>
    %282 = vector.broadcast %281 : vector<16x8x1xf32> to vector<16x8x16xf32>
    %283 = arith.mulf %246, %282 : vector<16x8x16xf32>
    %284 = vector.extract_strided_slice %245 {offsets = [0, 0, 16], sizes = [16, 8, 16], strides = [1, 1, 1]} : vector<16x8x64xf32> to vector<16x8x16xf32>
    %cst_47 = arith.constant dense<0.000000e+00> : vector<8x16xf32>
    %285 = vector.multi_reduction <add>, %284, %cst_47 [0] : vector<16x8x16xf32> to vector<8x16xf32>
    %286 = vector.shape_cast %285 : vector<8x16xf32> to vector<1x8x16xf32>
    %cst_48 = arith.constant 1.600000e+01 : f32
    %287 = vector.broadcast %cst_48 : f32 to vector<1x8x16xf32>
    %288 = arith.divf %286, %287 : vector<1x8x16xf32>
    %289 = vector.broadcast %288 : vector<1x8x16xf32> to vector<16x8x16xf32>
    %290 = arith.mulf %284, %289 : vector<16x8x16xf32>
    %cst_49 = arith.constant dense<0.000000e+00> : vector<16x8xf32>
    %291 = vector.multi_reduction <add>, %290, %cst_49 [2] : vector<16x8x16xf32> to vector<16x8xf32>
    %292 = vector.shape_cast %291 : vector<16x8xf32> to vector<16x8x1xf32>
    %cst_50 = arith.constant dense<0.000000e+00> : vector<8x1xf32>
    %293 = vector.multi_reduction <add>, %292, %cst_50 [0] : vector<16x8x1xf32> to vector<8x1xf32>
    %294 = vector.shape_cast %293 : vector<8x1xf32> to vector<1x8x1xf32>
    %cst_51 = arith.constant 1.600000e+01 : f32
    %295 = vector.broadcast %cst_51 : f32 to vector<1x8x1xf32>
    %296 = arith.divf %294, %295 : vector<1x8x1xf32>
    %297 = vector.broadcast %296 : vector<1x8x1xf32> to vector<16x8x1xf32>
    %298 = arith.subf %292, %297 : vector<16x8x1xf32>
    %299 = arith.mulf %298, %298 : vector<16x8x1xf32>
    %cst_52 = arith.constant dense<0.000000e+00> : vector<8x1xf32>
    %300 = vector.multi_reduction <add>, %299, %cst_52 [0] : vector<16x8x1xf32> to vector<8x1xf32>
    %301 = vector.shape_cast %300 : vector<8x1xf32> to vector<1x8x1xf32>
    %cst_53 = arith.constant 1.500000e+01 : f32
    %302 = vector.broadcast %cst_53 : f32 to vector<1x8x1xf32>
    %303 = arith.divf %301, %302 : vector<1x8x1xf32>
    %304 = math.sqrt %303 : vector<1x8x1xf32>
    %cst_54 = arith.constant 9.99999974E-6 : f32
    %305 = vector.broadcast %cst_54 : f32 to vector<1x8x1xf32>
    %306 = arith.addf %304, %305 : vector<1x8x1xf32>
    %307 = vector.broadcast %306 : vector<1x8x1xf32> to vector<16x8x1xf32>
    %308 = arith.divf %298, %307 : vector<16x8x1xf32>
    %c1 = arith.constant 1 : index
    %309 = memref.load %arg11[%c1] : memref<4xf32, #tpu.memory_space<smem>>
    %310 = vector.broadcast %309 : f32 to vector<16x8x1xf32>
    %311 = arith.mulf %308, %310 : vector<16x8x1xf32>
    %c1_55 = arith.constant 1 : index
    %312 = memref.load %arg12[%c1_55] : memref<4xf32, #tpu.memory_space<smem>>
    %313 = vector.broadcast %312 : f32 to vector<16x8x1xf32>
    %314 = arith.addf %311, %313 : vector<16x8x1xf32>
    %315 = arith.negf %314 : vector<16x8x1xf32>
    %316 = math.exp %315 : vector<16x8x1xf32>
    %cst_56 = arith.constant 1.000000e+00 : f32
    %317 = vector.broadcast %cst_56 : f32 to vector<16x8x1xf32>
    %318 = arith.addf %317, %316 : vector<16x8x1xf32>
    %319 = arith.divf %317, %318 : vector<16x8x1xf32>
    %320 = vector.broadcast %319 : vector<16x8x1xf32> to vector<16x8x16xf32>
    %321 = arith.mulf %284, %320 : vector<16x8x16xf32>
    %322 = vector.extract_strided_slice %245 {offsets = [0, 0, 32], sizes = [16, 8, 16], strides = [1, 1, 1]} : vector<16x8x64xf32> to vector<16x8x16xf32>
    %cst_57 = arith.constant dense<0.000000e+00> : vector<8x16xf32>
    %323 = vector.multi_reduction <add>, %322, %cst_57 [0] : vector<16x8x16xf32> to vector<8x16xf32>
    %324 = vector.shape_cast %323 : vector<8x16xf32> to vector<1x8x16xf32>
    %cst_58 = arith.constant 1.600000e+01 : f32
    %325 = vector.broadcast %cst_58 : f32 to vector<1x8x16xf32>
    %326 = arith.divf %324, %325 : vector<1x8x16xf32>
    %327 = vector.broadcast %326 : vector<1x8x16xf32> to vector<16x8x16xf32>
    %328 = arith.mulf %322, %327 : vector<16x8x16xf32>
    %cst_59 = arith.constant dense<0.000000e+00> : vector<16x8xf32>
    %329 = vector.multi_reduction <add>, %328, %cst_59 [2] : vector<16x8x16xf32> to vector<16x8xf32>
    %330 = vector.shape_cast %329 : vector<16x8xf32> to vector<16x8x1xf32>
    %cst_60 = arith.constant dense<0.000000e+00> : vector<8x1xf32>
    %331 = vector.multi_reduction <add>, %330, %cst_60 [0] : vector<16x8x1xf32> to vector<8x1xf32>
    %332 = vector.shape_cast %331 : vector<8x1xf32> to vector<1x8x1xf32>
    %cst_61 = arith.constant 1.600000e+01 : f32
    %333 = vector.broadcast %cst_61 : f32 to vector<1x8x1xf32>
    %334 = arith.divf %332, %333 : vector<1x8x1xf32>
    %335 = vector.broadcast %334 : vector<1x8x1xf32> to vector<16x8x1xf32>
    %336 = arith.subf %330, %335 : vector<16x8x1xf32>
    %337 = arith.mulf %336, %336 : vector<16x8x1xf32>
    %cst_62 = arith.constant dense<0.000000e+00> : vector<8x1xf32>
    %338 = vector.multi_reduction <add>, %337, %cst_62 [0] : vector<16x8x1xf32> to vector<8x1xf32>
    %339 = vector.shape_cast %338 : vector<8x1xf32> to vector<1x8x1xf32>
    %cst_63 = arith.constant 1.500000e+01 : f32
    %340 = vector.broadcast %cst_63 : f32 to vector<1x8x1xf32>
    %341 = arith.divf %339, %340 : vector<1x8x1xf32>
    %342 = math.sqrt %341 : vector<1x8x1xf32>
    %cst_64 = arith.constant 9.99999974E-6 : f32
    %343 = vector.broadcast %cst_64 : f32 to vector<1x8x1xf32>
    %344 = arith.addf %342, %343 : vector<1x8x1xf32>
    %345 = vector.broadcast %344 : vector<1x8x1xf32> to vector<16x8x1xf32>
    %346 = arith.divf %336, %345 : vector<16x8x1xf32>
    %c2 = arith.constant 2 : index
    %347 = memref.load %arg11[%c2] : memref<4xf32, #tpu.memory_space<smem>>
    %348 = vector.broadcast %347 : f32 to vector<16x8x1xf32>
    %349 = arith.mulf %346, %348 : vector<16x8x1xf32>
    %c2_65 = arith.constant 2 : index
    %350 = memref.load %arg12[%c2_65] : memref<4xf32, #tpu.memory_space<smem>>
    %351 = vector.broadcast %350 : f32 to vector<16x8x1xf32>
    %352 = arith.addf %349, %351 : vector<16x8x1xf32>
    %353 = arith.negf %352 : vector<16x8x1xf32>
    %354 = math.exp %353 : vector<16x8x1xf32>
    %cst_66 = arith.constant 1.000000e+00 : f32
    %355 = vector.broadcast %cst_66 : f32 to vector<16x8x1xf32>
    %356 = arith.addf %355, %354 : vector<16x8x1xf32>
    %357 = arith.divf %355, %356 : vector<16x8x1xf32>
    %358 = vector.broadcast %357 : vector<16x8x1xf32> to vector<16x8x16xf32>
    %359 = arith.mulf %322, %358 : vector<16x8x16xf32>
    %360 = vector.extract_strided_slice %245 {offsets = [0, 0, 48], sizes = [16, 8, 16], strides = [1, 1, 1]} : vector<16x8x64xf32> to vector<16x8x16xf32>
    %cst_67 = arith.constant dense<0.000000e+00> : vector<8x16xf32>
    %361 = vector.multi_reduction <add>, %360, %cst_67 [0] : vector<16x8x16xf32> to vector<8x16xf32>
    %362 = vector.shape_cast %361 : vector<8x16xf32> to vector<1x8x16xf32>
    %cst_68 = arith.constant 1.600000e+01 : f32
    %363 = vector.broadcast %cst_68 : f32 to vector<1x8x16xf32>
    %364 = arith.divf %362, %363 : vector<1x8x16xf32>
    %365 = vector.broadcast %364 : vector<1x8x16xf32> to vector<16x8x16xf32>
    %366 = arith.mulf %360, %365 : vector<16x8x16xf32>
    %cst_69 = arith.constant dense<0.000000e+00> : vector<16x8xf32>
    %367 = vector.multi_reduction <add>, %366, %cst_69 [2] : vector<16x8x16xf32> to vector<16x8xf32>
    %368 = vector.shape_cast %367 : vector<16x8xf32> to vector<16x8x1xf32>
    %cst_70 = arith.constant dense<0.000000e+00> : vector<8x1xf32>
    %369 = vector.multi_reduction <add>, %368, %cst_70 [0] : vector<16x8x1xf32> to vector<8x1xf32>
    %370 = vector.shape_cast %369 : vector<8x1xf32> to vector<1x8x1xf32>
    %cst_71 = arith.constant 1.600000e+01 : f32
    %371 = vector.broadcast %cst_71 : f32 to vector<1x8x1xf32>
    %372 = arith.divf %370, %371 : vector<1x8x1xf32>
    %373 = vector.broadcast %372 : vector<1x8x1xf32> to vector<16x8x1xf32>
    %374 = arith.subf %368, %373 : vector<16x8x1xf32>
    %375 = arith.mulf %374, %374 : vector<16x8x1xf32>
    %cst_72 = arith.constant dense<0.000000e+00> : vector<8x1xf32>
    %376 = vector.multi_reduction <add>, %375, %cst_72 [0] : vector<16x8x1xf32> to vector<8x1xf32>
    %377 = vector.shape_cast %376 : vector<8x1xf32> to vector<1x8x1xf32>
    %cst_73 = arith.constant 1.500000e+01 : f32
    %378 = vector.broadcast %cst_73 : f32 to vector<1x8x1xf32>
    %379 = arith.divf %377, %378 : vector<1x8x1xf32>
    %380 = math.sqrt %379 : vector<1x8x1xf32>
    %cst_74 = arith.constant 9.99999974E-6 : f32
    %381 = vector.broadcast %cst_74 : f32 to vector<1x8x1xf32>
    %382 = arith.addf %380, %381 : vector<1x8x1xf32>
    %383 = vector.broadcast %382 : vector<1x8x1xf32> to vector<16x8x1xf32>
    %384 = arith.divf %374, %383 : vector<16x8x1xf32>
    %c3 = arith.constant 3 : index
    %385 = memref.load %arg11[%c3] : memref<4xf32, #tpu.memory_space<smem>>
    %386 = vector.broadcast %385 : f32 to vector<16x8x1xf32>
    %387 = arith.mulf %384, %386 : vector<16x8x1xf32>
    %c3_75 = arith.constant 3 : index
    %388 = memref.load %arg12[%c3_75] : memref<4xf32, #tpu.memory_space<smem>>
    %389 = vector.broadcast %388 : f32 to vector<16x8x1xf32>
    %390 = arith.addf %387, %389 : vector<16x8x1xf32>
    %391 = arith.negf %390 : vector<16x8x1xf32>
    %392 = math.exp %391 : vector<16x8x1xf32>
    %cst_76 = arith.constant 1.000000e+00 : f32
    %393 = vector.broadcast %cst_76 : f32 to vector<16x8x1xf32>
    %394 = arith.addf %393, %392 : vector<16x8x1xf32>
    %395 = arith.divf %393, %394 : vector<16x8x1xf32>
    %396 = vector.broadcast %395 : vector<16x8x1xf32> to vector<16x8x16xf32>
    %397 = arith.mulf %360, %396 : vector<16x8x16xf32>
    %398 = tpu.concatenate %283, %321, %359, %397 in 2 : vector<16x8x16xf32>, vector<16x8x16xf32>, vector<16x8x16xf32>, vector<16x8x16xf32> -> vector<16x8x64xf32>
    %399 = vector.extract_strided_slice %398 {offsets = [0, 0, 0], sizes = [4, 8, 64], strides = [1, 1, 1]} : vector<16x8x64xf32> to vector<4x8x64xf32>
    %cst_77 = arith.constant dense<0xFF800000> : vector<8x64xf32>
    %400 = vector.multi_reduction <maximumf>, %399, %cst_77 [0] : vector<4x8x64xf32> to vector<8x64xf32>
    %401 = vector.shape_cast %400 : vector<8x64xf32> to vector<1x8x64xf32>
    %402 = vector.extract_strided_slice %398 {offsets = [4, 0, 0], sizes = [4, 8, 64], strides = [1, 1, 1]} : vector<16x8x64xf32> to vector<4x8x64xf32>
    %cst_78 = arith.constant dense<0xFF800000> : vector<8x64xf32>
    %403 = vector.multi_reduction <maximumf>, %402, %cst_78 [0] : vector<4x8x64xf32> to vector<8x64xf32>
    %404 = vector.shape_cast %403 : vector<8x64xf32> to vector<1x8x64xf32>
    %405 = vector.extract_strided_slice %398 {offsets = [8, 0, 0], sizes = [4, 8, 64], strides = [1, 1, 1]} : vector<16x8x64xf32> to vector<4x8x64xf32>
    %cst_79 = arith.constant dense<0xFF800000> : vector<8x64xf32>
    %406 = vector.multi_reduction <maximumf>, %405, %cst_79 [0] : vector<4x8x64xf32> to vector<8x64xf32>
    %407 = vector.shape_cast %406 : vector<8x64xf32> to vector<1x8x64xf32>
    %408 = vector.extract_strided_slice %398 {offsets = [12, 0, 0], sizes = [4, 8, 64], strides = [1, 1, 1]} : vector<16x8x64xf32> to vector<4x8x64xf32>
    %cst_80 = arith.constant dense<0xFF800000> : vector<8x64xf32>
    %409 = vector.multi_reduction <maximumf>, %408, %cst_80 [0] : vector<4x8x64xf32> to vector<8x64xf32>
    %410 = vector.shape_cast %409 : vector<8x64xf32> to vector<1x8x64xf32>
    %411 = tpu.concatenate %401, %404, %407, %410 in 0 : vector<1x8x64xf32>, vector<1x8x64xf32>, vector<1x8x64xf32>, vector<1x8x64xf32> -> vector<4x8x64xf32>
    %cst_81 = arith.constant dense<0xFF800000> : vector<16x8xf32>
    %412 = vector.multi_reduction <maximumf>, %236, %cst_81 [2] : vector<16x8x64xf32> to vector<16x8xf32>
    %413 = vector.shape_cast %412 : vector<16x8xf32> to vector<16x8x1xf32>
    %414 = vector.broadcast %413 : vector<16x8x1xf32> to vector<16x8x64xf32>
    %415 = arith.subf %236, %414 : vector<16x8x64xf32>
    %416 = math.exp %415 : vector<16x8x64xf32>
    %cst_82 = arith.constant dense<0.000000e+00> : vector<16x8xf32>
    %417 = vector.multi_reduction <add>, %416, %cst_82 [2] : vector<16x8x64xf32> to vector<16x8xf32>
    %418 = vector.shape_cast %417 : vector<16x8xf32> to vector<16x8x1xf32>
    %419 = vector.broadcast %418 : vector<16x8x1xf32> to vector<16x8x64xf32>
    %420 = arith.divf %416, %419 : vector<16x8x64xf32>
    %421 = vector.extract_strided_slice %420 {offsets = [0, 0, 0], sizes = [16, 8, 16], strides = [1, 1, 1]} : vector<16x8x64xf32> to vector<16x8x16xf32>
    %cst_83 = arith.constant dense<0.000000e+00> : vector<8x16xf32>
    %422 = vector.multi_reduction <add>, %421, %cst_83 [0] : vector<16x8x16xf32> to vector<8x16xf32>
    %423 = vector.shape_cast %422 : vector<8x16xf32> to vector<1x8x16xf32>
    %cst_84 = arith.constant 1.600000e+01 : f32
    %424 = vector.broadcast %cst_84 : f32 to vector<1x8x16xf32>
    %425 = arith.divf %423, %424 : vector<1x8x16xf32>
    %426 = vector.broadcast %425 : vector<1x8x16xf32> to vector<16x8x16xf32>
    %427 = arith.mulf %421, %426 : vector<16x8x16xf32>
    %cst_85 = arith.constant dense<0.000000e+00> : vector<16x8xf32>
    %428 = vector.multi_reduction <add>, %427, %cst_85 [2] : vector<16x8x16xf32> to vector<16x8xf32>
    %429 = vector.shape_cast %428 : vector<16x8xf32> to vector<16x8x1xf32>
    %cst_86 = arith.constant dense<0.000000e+00> : vector<8x1xf32>
    %430 = vector.multi_reduction <add>, %429, %cst_86 [0] : vector<16x8x1xf32> to vector<8x1xf32>
    %431 = vector.shape_cast %430 : vector<8x1xf32> to vector<1x8x1xf32>
    %cst_87 = arith.constant 1.600000e+01 : f32
    %432 = vector.broadcast %cst_87 : f32 to vector<1x8x1xf32>
    %433 = arith.divf %431, %432 : vector<1x8x1xf32>
    %434 = vector.broadcast %433 : vector<1x8x1xf32> to vector<16x8x1xf32>
    %435 = arith.subf %429, %434 : vector<16x8x1xf32>
    %436 = arith.mulf %435, %435 : vector<16x8x1xf32>
    %cst_88 = arith.constant dense<0.000000e+00> : vector<8x1xf32>
    %437 = vector.multi_reduction <add>, %436, %cst_88 [0] : vector<16x8x1xf32> to vector<8x1xf32>
    %438 = vector.shape_cast %437 : vector<8x1xf32> to vector<1x8x1xf32>
    %cst_89 = arith.constant 1.500000e+01 : f32
    %439 = vector.broadcast %cst_89 : f32 to vector<1x8x1xf32>
    %440 = arith.divf %438, %439 : vector<1x8x1xf32>
    %441 = math.sqrt %440 : vector<1x8x1xf32>
    %cst_90 = arith.constant 9.99999974E-6 : f32
    %442 = vector.broadcast %cst_90 : f32 to vector<1x8x1xf32>
    %443 = arith.addf %441, %442 : vector<1x8x1xf32>
    %444 = vector.broadcast %443 : vector<1x8x1xf32> to vector<16x8x1xf32>
    %445 = arith.divf %435, %444 : vector<16x8x1xf32>
    %c0_91 = arith.constant 0 : index
    %446 = memref.load %arg11[%c0_91] : memref<4xf32, #tpu.memory_space<smem>>
    %447 = vector.broadcast %446 : f32 to vector<16x8x1xf32>
    %448 = arith.mulf %445, %447 : vector<16x8x1xf32>
    %c0_92 = arith.constant 0 : index
    %449 = memref.load %arg12[%c0_92] : memref<4xf32, #tpu.memory_space<smem>>
    %450 = vector.broadcast %449 : f32 to vector<16x8x1xf32>
    %451 = arith.addf %448, %450 : vector<16x8x1xf32>
    %452 = arith.negf %451 : vector<16x8x1xf32>
    %453 = math.exp %452 : vector<16x8x1xf32>
    %cst_93 = arith.constant 1.000000e+00 : f32
    %454 = vector.broadcast %cst_93 : f32 to vector<16x8x1xf32>
    %455 = arith.addf %454, %453 : vector<16x8x1xf32>
    %456 = arith.divf %454, %455 : vector<16x8x1xf32>
    %457 = vector.broadcast %456 : vector<16x8x1xf32> to vector<16x8x16xf32>
    %458 = arith.mulf %421, %457 : vector<16x8x16xf32>
    %459 = vector.extract_strided_slice %420 {offsets = [0, 0, 16], sizes = [16, 8, 16], strides = [1, 1, 1]} : vector<16x8x64xf32> to vector<16x8x16xf32>
    %cst_94 = arith.constant dense<0.000000e+00> : vector<8x16xf32>
    %460 = vector.multi_reduction <add>, %459, %cst_94 [0] : vector<16x8x16xf32> to vector<8x16xf32>
    %461 = vector.shape_cast %460 : vector<8x16xf32> to vector<1x8x16xf32>
    %cst_95 = arith.constant 1.600000e+01 : f32
    %462 = vector.broadcast %cst_95 : f32 to vector<1x8x16xf32>
    %463 = arith.divf %461, %462 : vector<1x8x16xf32>
    %464 = vector.broadcast %463 : vector<1x8x16xf32> to vector<16x8x16xf32>
    %465 = arith.mulf %459, %464 : vector<16x8x16xf32>
    %cst_96 = arith.constant dense<0.000000e+00> : vector<16x8xf32>
    %466 = vector.multi_reduction <add>, %465, %cst_96 [2] : vector<16x8x16xf32> to vector<16x8xf32>
    %467 = vector.shape_cast %466 : vector<16x8xf32> to vector<16x8x1xf32>
    %cst_97 = arith.constant dense<0.000000e+00> : vector<8x1xf32>
    %468 = vector.multi_reduction <add>, %467, %cst_97 [0] : vector<16x8x1xf32> to vector<8x1xf32>
    %469 = vector.shape_cast %468 : vector<8x1xf32> to vector<1x8x1xf32>
    %cst_98 = arith.constant 1.600000e+01 : f32
    %470 = vector.broadcast %cst_98 : f32 to vector<1x8x1xf32>
    %471 = arith.divf %469, %470 : vector<1x8x1xf32>
    %472 = vector.broadcast %471 : vector<1x8x1xf32> to vector<16x8x1xf32>
    %473 = arith.subf %467, %472 : vector<16x8x1xf32>
    %474 = arith.mulf %473, %473 : vector<16x8x1xf32>
    %cst_99 = arith.constant dense<0.000000e+00> : vector<8x1xf32>
    %475 = vector.multi_reduction <add>, %474, %cst_99 [0] : vector<16x8x1xf32> to vector<8x1xf32>
    %476 = vector.shape_cast %475 : vector<8x1xf32> to vector<1x8x1xf32>
    %cst_100 = arith.constant 1.500000e+01 : f32
    %477 = vector.broadcast %cst_100 : f32 to vector<1x8x1xf32>
    %478 = arith.divf %476, %477 : vector<1x8x1xf32>
    %479 = math.sqrt %478 : vector<1x8x1xf32>
    %cst_101 = arith.constant 9.99999974E-6 : f32
    %480 = vector.broadcast %cst_101 : f32 to vector<1x8x1xf32>
    %481 = arith.addf %479, %480 : vector<1x8x1xf32>
    %482 = vector.broadcast %481 : vector<1x8x1xf32> to vector<16x8x1xf32>
    %483 = arith.divf %473, %482 : vector<16x8x1xf32>
    %c1_102 = arith.constant 1 : index
    %484 = memref.load %arg11[%c1_102] : memref<4xf32, #tpu.memory_space<smem>>
    %485 = vector.broadcast %484 : f32 to vector<16x8x1xf32>
    %486 = arith.mulf %483, %485 : vector<16x8x1xf32>
    %c1_103 = arith.constant 1 : index
    %487 = memref.load %arg12[%c1_103] : memref<4xf32, #tpu.memory_space<smem>>
    %488 = vector.broadcast %487 : f32 to vector<16x8x1xf32>
    %489 = arith.addf %486, %488 : vector<16x8x1xf32>
    %490 = arith.negf %489 : vector<16x8x1xf32>
    %491 = math.exp %490 : vector<16x8x1xf32>
    %cst_104 = arith.constant 1.000000e+00 : f32
    %492 = vector.broadcast %cst_104 : f32 to vector<16x8x1xf32>
    %493 = arith.addf %492, %491 : vector<16x8x1xf32>
    %494 = arith.divf %492, %493 : vector<16x8x1xf32>
    %495 = vector.broadcast %494 : vector<16x8x1xf32> to vector<16x8x16xf32>
    %496 = arith.mulf %459, %495 : vector<16x8x16xf32>
    %497 = vector.extract_strided_slice %420 {offsets = [0, 0, 32], sizes = [16, 8, 16], strides = [1, 1, 1]} : vector<16x8x64xf32> to vector<16x8x16xf32>
    %cst_105 = arith.constant dense<0.000000e+00> : vector<8x16xf32>
    %498 = vector.multi_reduction <add>, %497, %cst_105 [0] : vector<16x8x16xf32> to vector<8x16xf32>
    %499 = vector.shape_cast %498 : vector<8x16xf32> to vector<1x8x16xf32>
    %cst_106 = arith.constant 1.600000e+01 : f32
    %500 = vector.broadcast %cst_106 : f32 to vector<1x8x16xf32>
    %501 = arith.divf %499, %500 : vector<1x8x16xf32>
    %502 = vector.broadcast %501 : vector<1x8x16xf32> to vector<16x8x16xf32>
    %503 = arith.mulf %497, %502 : vector<16x8x16xf32>
    %cst_107 = arith.constant dense<0.000000e+00> : vector<16x8xf32>
    %504 = vector.multi_reduction <add>, %503, %cst_107 [2] : vector<16x8x16xf32> to vector<16x8xf32>
    %505 = vector.shape_cast %504 : vector<16x8xf32> to vector<16x8x1xf32>
    %cst_108 = arith.constant dense<0.000000e+00> : vector<8x1xf32>
    %506 = vector.multi_reduction <add>, %505, %cst_108 [0] : vector<16x8x1xf32> to vector<8x1xf32>
    %507 = vector.shape_cast %506 : vector<8x1xf32> to vector<1x8x1xf32>
    %cst_109 = arith.constant 1.600000e+01 : f32
    %508 = vector.broadcast %cst_109 : f32 to vector<1x8x1xf32>
    %509 = arith.divf %507, %508 : vector<1x8x1xf32>
    %510 = vector.broadcast %509 : vector<1x8x1xf32> to vector<16x8x1xf32>
    %511 = arith.subf %505, %510 : vector<16x8x1xf32>
    %512 = arith.mulf %511, %511 : vector<16x8x1xf32>
    %cst_110 = arith.constant dense<0.000000e+00> : vector<8x1xf32>
    %513 = vector.multi_reduction <add>, %512, %cst_110 [0] : vector<16x8x1xf32> to vector<8x1xf32>
    %514 = vector.shape_cast %513 : vector<8x1xf32> to vector<1x8x1xf32>
    %cst_111 = arith.constant 1.500000e+01 : f32
    %515 = vector.broadcast %cst_111 : f32 to vector<1x8x1xf32>
    %516 = arith.divf %514, %515 : vector<1x8x1xf32>
    %517 = math.sqrt %516 : vector<1x8x1xf32>
    %cst_112 = arith.constant 9.99999974E-6 : f32
    %518 = vector.broadcast %cst_112 : f32 to vector<1x8x1xf32>
    %519 = arith.addf %517, %518 : vector<1x8x1xf32>
    %520 = vector.broadcast %519 : vector<1x8x1xf32> to vector<16x8x1xf32>
    %521 = arith.divf %511, %520 : vector<16x8x1xf32>
    %c2_113 = arith.constant 2 : index
    %522 = memref.load %arg11[%c2_113] : memref<4xf32, #tpu.memory_space<smem>>
    %523 = vector.broadcast %522 : f32 to vector<16x8x1xf32>
    %524 = arith.mulf %521, %523 : vector<16x8x1xf32>
    %c2_114 = arith.constant 2 : index
    %525 = memref.load %arg12[%c2_114] : memref<4xf32, #tpu.memory_space<smem>>
    %526 = vector.broadcast %525 : f32 to vector<16x8x1xf32>
    %527 = arith.addf %524, %526 : vector<16x8x1xf32>
    %528 = arith.negf %527 : vector<16x8x1xf32>
    %529 = math.exp %528 : vector<16x8x1xf32>
    %cst_115 = arith.constant 1.000000e+00 : f32
    %530 = vector.broadcast %cst_115 : f32 to vector<16x8x1xf32>
    %531 = arith.addf %530, %529 : vector<16x8x1xf32>
    %532 = arith.divf %530, %531 : vector<16x8x1xf32>
    %533 = vector.broadcast %532 : vector<16x8x1xf32> to vector<16x8x16xf32>
    %534 = arith.mulf %497, %533 : vector<16x8x16xf32>
    %535 = vector.extract_strided_slice %420 {offsets = [0, 0, 48], sizes = [16, 8, 16], strides = [1, 1, 1]} : vector<16x8x64xf32> to vector<16x8x16xf32>
    %cst_116 = arith.constant dense<0.000000e+00> : vector<8x16xf32>
    %536 = vector.multi_reduction <add>, %535, %cst_116 [0] : vector<16x8x16xf32> to vector<8x16xf32>
    %537 = vector.shape_cast %536 : vector<8x16xf32> to vector<1x8x16xf32>
    %cst_117 = arith.constant 1.600000e+01 : f32
    %538 = vector.broadcast %cst_117 : f32 to vector<1x8x16xf32>
    %539 = arith.divf %537, %538 : vector<1x8x16xf32>
    %540 = vector.broadcast %539 : vector<1x8x16xf32> to vector<16x8x16xf32>
    %541 = arith.mulf %535, %540 : vector<16x8x16xf32>
    %cst_118 = arith.constant dense<0.000000e+00> : vector<16x8xf32>
    %542 = vector.multi_reduction <add>, %541, %cst_118 [2] : vector<16x8x16xf32> to vector<16x8xf32>
    %543 = vector.shape_cast %542 : vector<16x8xf32> to vector<16x8x1xf32>
    %cst_119 = arith.constant dense<0.000000e+00> : vector<8x1xf32>
    %544 = vector.multi_reduction <add>, %543, %cst_119 [0] : vector<16x8x1xf32> to vector<8x1xf32>
    %545 = vector.shape_cast %544 : vector<8x1xf32> to vector<1x8x1xf32>
    %cst_120 = arith.constant 1.600000e+01 : f32
    %546 = vector.broadcast %cst_120 : f32 to vector<1x8x1xf32>
    %547 = arith.divf %545, %546 : vector<1x8x1xf32>
    %548 = vector.broadcast %547 : vector<1x8x1xf32> to vector<16x8x1xf32>
    %549 = arith.subf %543, %548 : vector<16x8x1xf32>
    %550 = arith.mulf %549, %549 : vector<16x8x1xf32>
    %cst_121 = arith.constant dense<0.000000e+00> : vector<8x1xf32>
    %551 = vector.multi_reduction <add>, %550, %cst_121 [0] : vector<16x8x1xf32> to vector<8x1xf32>
    %552 = vector.shape_cast %551 : vector<8x1xf32> to vector<1x8x1xf32>
    %cst_122 = arith.constant 1.500000e+01 : f32
    %553 = vector.broadcast %cst_122 : f32 to vector<1x8x1xf32>
    %554 = arith.divf %552, %553 : vector<1x8x1xf32>
    %555 = math.sqrt %554 : vector<1x8x1xf32>
    %cst_123 = arith.constant 9.99999974E-6 : f32
    %556 = vector.broadcast %cst_123 : f32 to vector<1x8x1xf32>
    %557 = arith.addf %555, %556 : vector<1x8x1xf32>
    %558 = vector.broadcast %557 : vector<1x8x1xf32> to vector<16x8x1xf32>
    %559 = arith.divf %549, %558 : vector<16x8x1xf32>
    %c3_124 = arith.constant 3 : index
    %560 = memref.load %arg11[%c3_124] : memref<4xf32, #tpu.memory_space<smem>>
    %561 = vector.broadcast %560 : f32 to vector<16x8x1xf32>
    %562 = arith.mulf %559, %561 : vector<16x8x1xf32>
    %c3_125 = arith.constant 3 : index
    %563 = memref.load %arg12[%c3_125] : memref<4xf32, #tpu.memory_space<smem>>
    %564 = vector.broadcast %563 : f32 to vector<16x8x1xf32>
    %565 = arith.addf %562, %564 : vector<16x8x1xf32>
    %566 = arith.negf %565 : vector<16x8x1xf32>
    %567 = math.exp %566 : vector<16x8x1xf32>
    %cst_126 = arith.constant 1.000000e+00 : f32
    %568 = vector.broadcast %cst_126 : f32 to vector<16x8x1xf32>
    %569 = arith.addf %568, %567 : vector<16x8x1xf32>
    %570 = arith.divf %568, %569 : vector<16x8x1xf32>
    %571 = vector.broadcast %570 : vector<16x8x1xf32> to vector<16x8x16xf32>
    %572 = arith.mulf %535, %571 : vector<16x8x16xf32>
    %573 = tpu.concatenate %458, %496, %534, %572 in 2 : vector<16x8x16xf32>, vector<16x8x16xf32>, vector<16x8x16xf32>, vector<16x8x16xf32> -> vector<16x8x64xf32>
    %574 = vector.extract_strided_slice %573 {offsets = [0, 0, 0], sizes = [4, 8, 64], strides = [1, 1, 1]} : vector<16x8x64xf32> to vector<4x8x64xf32>
    %cst_127 = arith.constant dense<0xFF800000> : vector<8x64xf32>
    %575 = vector.multi_reduction <maximumf>, %574, %cst_127 [0] : vector<4x8x64xf32> to vector<8x64xf32>
    %576 = vector.shape_cast %575 : vector<8x64xf32> to vector<1x8x64xf32>
    %577 = vector.extract_strided_slice %573 {offsets = [4, 0, 0], sizes = [4, 8, 64], strides = [1, 1, 1]} : vector<16x8x64xf32> to vector<4x8x64xf32>
    %cst_128 = arith.constant dense<0xFF800000> : vector<8x64xf32>
    %578 = vector.multi_reduction <maximumf>, %577, %cst_128 [0] : vector<4x8x64xf32> to vector<8x64xf32>
    %579 = vector.shape_cast %578 : vector<8x64xf32> to vector<1x8x64xf32>
    %580 = vector.extract_strided_slice %573 {offsets = [8, 0, 0], sizes = [4, 8, 64], strides = [1, 1, 1]} : vector<16x8x64xf32> to vector<4x8x64xf32>
    %cst_129 = arith.constant dense<0xFF800000> : vector<8x64xf32>
    %581 = vector.multi_reduction <maximumf>, %580, %cst_129 [0] : vector<4x8x64xf32> to vector<8x64xf32>
    %582 = vector.shape_cast %581 : vector<8x64xf32> to vector<1x8x64xf32>
    %583 = vector.extract_strided_slice %573 {offsets = [12, 0, 0], sizes = [4, 8, 64], strides = [1, 1, 1]} : vector<16x8x64xf32> to vector<4x8x64xf32>
    %cst_130 = arith.constant dense<0xFF800000> : vector<8x64xf32>
    %584 = vector.multi_reduction <maximumf>, %583, %cst_130 [0] : vector<4x8x64xf32> to vector<8x64xf32>
    %585 = vector.shape_cast %584 : vector<8x64xf32> to vector<1x8x64xf32>
    %586 = tpu.concatenate %576, %579, %582, %585 in 0 : vector<1x8x64xf32>, vector<1x8x64xf32>, vector<1x8x64xf32>, vector<1x8x64xf32> -> vector<4x8x64xf32>
    %587 = tpu.concatenate %411, %586 in 2 : vector<4x8x64xf32>, vector<4x8x64xf32> -> vector<4x8x128xf32>
    %cst_131 = arith.constant 0.000000e+00 : f32
    %588 = vector.broadcast %cst_131 : f32 to vector<1x8x128xf32>
    %589 = tpu.concatenate %588, %587, %588 in 0 : vector<1x8x128xf32>, vector<4x8x128xf32>, vector<1x8x128xf32> -> vector<6x8x128xf32>
    %c0_132 = arith.constant 0 : index
    %c0_133 = arith.constant 0 : index
    %c0_134 = arith.constant 0 : index
    %590 = vector.load %arg9[%c0_132, %c0_133, %c0_134] : memref<4x20x2xf32, #tpu.memory_space<vmem>>, vector<4x20x2xf32>
    %cst_135 = arith.constant 0.000000e+00 : f32
    %591 = vector.broadcast %cst_135 : f32 to vector<8x2xf32>
    %592 = vector.extract_strided_slice %589 {offsets = [0, 0, 0], sizes = [1, 8, 128], strides = [1, 1, 1]} : vector<6x8x128xf32> to vector<1x8x128xf32>
    %593 = vector.shape_cast %592 : vector<1x8x128xf32> to vector<8x128xf32>
    %594 = vector.extract_strided_slice %589 {offsets = [1, 0, 0], sizes = [1, 8, 128], strides = [1, 1, 1]} : vector<6x8x128xf32> to vector<1x8x128xf32>
    %595 = vector.shape_cast %594 : vector<1x8x128xf32> to vector<8x128xf32>
    %596 = vector.extract_strided_slice %589 {offsets = [2, 0, 0], sizes = [1, 8, 128], strides = [1, 1, 1]} : vector<6x8x128xf32> to vector<1x8x128xf32>
    %597 = vector.shape_cast %596 : vector<1x8x128xf32> to vector<8x128xf32>
    %598 = tpu.concatenate %593, %595, %597 in 1 : vector<8x128xf32>, vector<8x128xf32>, vector<8x128xf32> -> vector<8x384xf32>
    %c0_136 = arith.constant 0 : index
    %c0_137 = arith.constant 0 : index
    %599 = vector.load %arg7[%c0_136, %c0_137] : memref<384x20xf32, #tpu.memory_space<vmem>>, vector<384x20xf32>
    %cst_138 = arith.constant dense<0.000000e+00> : vector<8x20xf32>
    %600 = tpu.matmul %598, %599, %cst_138 {dimension_numbers = #tpu.dot_dimension_numbers<[1], [0], [0], [1], [0, 0, 1, 1], [], []>} : vector<8x384xf32>, vector<384x20xf32>, vector<8x20xf32> -> vector<8x20xf32>
    %c0_139 = arith.constant 0 : index
    %c0_140 = arith.constant 0 : index
    %601 = vector.load %arg8[%c0_139, %c0_140] : memref<1x20xf32, #tpu.memory_space<vmem>>, vector<1x20xf32>
    %602 = vector.broadcast %601 : vector<1x20xf32> to vector<8x20xf32>
    %603 = arith.addf %600, %602 : vector<8x20xf32>
    %cst_141 = arith.constant 0.000000e+00 : f32
    %604 = vector.broadcast %cst_141 : f32 to vector<8x20xf32>
    %605 = arith.maximumf %603, %604 : vector<8x20xf32>
    %606 = vector.extract_strided_slice %590 {offsets = [0, 0, 0], sizes = [1, 20, 2], strides = [1, 1, 1]} : vector<4x20x2xf32> to vector<1x20x2xf32>
    %607 = vector.shape_cast %606 : vector<1x20x2xf32> to vector<20x2xf32>
    %cst_142 = arith.constant dense<0.000000e+00> : vector<8x2xf32>
    %608 = tpu.matmul %605, %607, %cst_142 {dimension_numbers = #tpu.dot_dimension_numbers<[1], [0], [0], [1], [0, 0, 1, 1], [], []>} : vector<8x20xf32>, vector<20x2xf32>, vector<8x2xf32> -> vector<8x2xf32>
    %609 = arith.addf %591, %608 : vector<8x2xf32>
    %610 = vector.extract_strided_slice %589 {offsets = [1, 0, 0], sizes = [1, 8, 128], strides = [1, 1, 1]} : vector<6x8x128xf32> to vector<1x8x128xf32>
    %611 = vector.shape_cast %610 : vector<1x8x128xf32> to vector<8x128xf32>
    %612 = vector.extract_strided_slice %589 {offsets = [2, 0, 0], sizes = [1, 8, 128], strides = [1, 1, 1]} : vector<6x8x128xf32> to vector<1x8x128xf32>
    %613 = vector.shape_cast %612 : vector<1x8x128xf32> to vector<8x128xf32>
    %614 = vector.extract_strided_slice %589 {offsets = [3, 0, 0], sizes = [1, 8, 128], strides = [1, 1, 1]} : vector<6x8x128xf32> to vector<1x8x128xf32>
    %615 = vector.shape_cast %614 : vector<1x8x128xf32> to vector<8x128xf32>
    %616 = tpu.concatenate %611, %613, %615 in 1 : vector<8x128xf32>, vector<8x128xf32>, vector<8x128xf32> -> vector<8x384xf32>
    %c0_143 = arith.constant 0 : index
    %c0_144 = arith.constant 0 : index
    %617 = vector.load %arg7[%c0_143, %c0_144] : memref<384x20xf32, #tpu.memory_space<vmem>>, vector<384x20xf32>
    %cst_145 = arith.constant dense<0.000000e+00> : vector<8x20xf32>
    %618 = tpu.matmul %616, %617, %cst_145 {dimension_numbers = #tpu.dot_dimension_numbers<[1], [0], [0], [1], [0, 0, 1, 1], [], []>} : vector<8x384xf32>, vector<384x20xf32>, vector<8x20xf32> -> vector<8x20xf32>
    %c0_146 = arith.constant 0 : index
    %c0_147 = arith.constant 0 : index
    %619 = vector.load %arg8[%c0_146, %c0_147] : memref<1x20xf32, #tpu.memory_space<vmem>>, vector<1x20xf32>
    %620 = vector.broadcast %619 : vector<1x20xf32> to vector<8x20xf32>
    %621 = arith.addf %618, %620 : vector<8x20xf32>
    %cst_148 = arith.constant 0.000000e+00 : f32
    %622 = vector.broadcast %cst_148 : f32 to vector<8x20xf32>
    %623 = arith.maximumf %621, %622 : vector<8x20xf32>
    %624 = vector.extract_strided_slice %590 {offsets = [1, 0, 0], sizes = [1, 20, 2], strides = [1, 1, 1]} : vector<4x20x2xf32> to vector<1x20x2xf32>
    %625 = vector.shape_cast %624 : vector<1x20x2xf32> to vector<20x2xf32>
    %cst_149 = arith.constant dense<0.000000e+00> : vector<8x2xf32>
    %626 = tpu.matmul %623, %625, %cst_149 {dimension_numbers = #tpu.dot_dimension_numbers<[1], [0], [0], [1], [0, 0, 1, 1], [], []>} : vector<8x20xf32>, vector<20x2xf32>, vector<8x2xf32> -> vector<8x2xf32>
    %627 = arith.addf %609, %626 : vector<8x2xf32>
    %628 = vector.extract_strided_slice %589 {offsets = [2, 0, 0], sizes = [1, 8, 128], strides = [1, 1, 1]} : vector<6x8x128xf32> to vector<1x8x128xf32>
    %629 = vector.shape_cast %628 : vector<1x8x128xf32> to vector<8x128xf32>
    %630 = vector.extract_strided_slice %589 {offsets = [3, 0, 0], sizes = [1, 8, 128], strides = [1, 1, 1]} : vector<6x8x128xf32> to vector<1x8x128xf32>
    %631 = vector.shape_cast %630 : vector<1x8x128xf32> to vector<8x128xf32>
    %632 = vector.extract_strided_slice %589 {offsets = [4, 0, 0], sizes = [1, 8, 128], strides = [1, 1, 1]} : vector<6x8x128xf32> to vector<1x8x128xf32>
    %633 = vector.shape_cast %632 : vector<1x8x128xf32> to vector<8x128xf32>
    %634 = tpu.concatenate %629, %631, %633 in 1 : vector<8x128xf32>, vector<8x128xf32>, vector<8x128xf32> -> vector<8x384xf32>
    %c0_150 = arith.constant 0 : index
    %c0_151 = arith.constant 0 : index
    %635 = vector.load %arg7[%c0_150, %c0_151] : memref<384x20xf32, #tpu.memory_space<vmem>>, vector<384x20xf32>
    %cst_152 = arith.constant dense<0.000000e+00> : vector<8x20xf32>
    %636 = tpu.matmul %634, %635, %cst_152 {dimension_numbers = #tpu.dot_dimension_numbers<[1], [0], [0], [1], [0, 0, 1, 1], [], []>} : vector<8x384xf32>, vector<384x20xf32>, vector<8x20xf32> -> vector<8x20xf32>
    %c0_153 = arith.constant 0 : index
    %c0_154 = arith.constant 0 : index
    %637 = vector.load %arg8[%c0_153, %c0_154] : memref<1x20xf32, #tpu.memory_space<vmem>>, vector<1x20xf32>
    %638 = vector.broadcast %637 : vector<1x20xf32> to vector<8x20xf32>
    %639 = arith.addf %636, %638 : vector<8x20xf32>
    %cst_155 = arith.constant 0.000000e+00 : f32
    %640 = vector.broadcast %cst_155 : f32 to vector<8x20xf32>
    %641 = arith.maximumf %639, %640 : vector<8x20xf32>
    %642 = vector.extract_strided_slice %590 {offsets = [2, 0, 0], sizes = [1, 20, 2], strides = [1, 1, 1]} : vector<4x20x2xf32> to vector<1x20x2xf32>
    %643 = vector.shape_cast %642 : vector<1x20x2xf32> to vector<20x2xf32>
    %cst_156 = arith.constant dense<0.000000e+00> : vector<8x2xf32>
    %644 = tpu.matmul %641, %643, %cst_156 {dimension_numbers = #tpu.dot_dimension_numbers<[1], [0], [0], [1], [0, 0, 1, 1], [], []>} : vector<8x20xf32>, vector<20x2xf32>, vector<8x2xf32> -> vector<8x2xf32>
    %645 = arith.addf %627, %644 : vector<8x2xf32>
    %646 = vector.extract_strided_slice %589 {offsets = [3, 0, 0], sizes = [1, 8, 128], strides = [1, 1, 1]} : vector<6x8x128xf32> to vector<1x8x128xf32>
    %647 = vector.shape_cast %646 : vector<1x8x128xf32> to vector<8x128xf32>
    %648 = vector.extract_strided_slice %589 {offsets = [4, 0, 0], sizes = [1, 8, 128], strides = [1, 1, 1]} : vector<6x8x128xf32> to vector<1x8x128xf32>
    %649 = vector.shape_cast %648 : vector<1x8x128xf32> to vector<8x128xf32>
    %650 = vector.extract_strided_slice %589 {offsets = [5, 0, 0], sizes = [1, 8, 128], strides = [1, 1, 1]} : vector<6x8x128xf32> to vector<1x8x128xf32>
    %651 = vector.shape_cast %650 : vector<1x8x128xf32> to vector<8x128xf32>
    %652 = tpu.concatenate %647, %649, %651 in 1 : vector<8x128xf32>, vector<8x128xf32>, vector<8x128xf32> -> vector<8x384xf32>
    %c0_157 = arith.constant 0 : index
    %c0_158 = arith.constant 0 : index
    %653 = vector.load %arg7[%c0_157, %c0_158] : memref<384x20xf32, #tpu.memory_space<vmem>>, vector<384x20xf32>
    %cst_159 = arith.constant dense<0.000000e+00> : vector<8x20xf32>
    %654 = tpu.matmul %652, %653, %cst_159 {dimension_numbers = #tpu.dot_dimension_numbers<[1], [0], [0], [1], [0, 0, 1, 1], [], []>} : vector<8x384xf32>, vector<384x20xf32>, vector<8x20xf32> -> vector<8x20xf32>
    %c0_160 = arith.constant 0 : index
    %c0_161 = arith.constant 0 : index
    %655 = vector.load %arg8[%c0_160, %c0_161] : memref<1x20xf32, #tpu.memory_space<vmem>>, vector<1x20xf32>
    %656 = vector.broadcast %655 : vector<1x20xf32> to vector<8x20xf32>
    %657 = arith.addf %654, %656 : vector<8x20xf32>
    %cst_162 = arith.constant 0.000000e+00 : f32
    %658 = vector.broadcast %cst_162 : f32 to vector<8x20xf32>
    %659 = arith.maximumf %657, %658 : vector<8x20xf32>
    %660 = vector.extract_strided_slice %590 {offsets = [3, 0, 0], sizes = [1, 20, 2], strides = [1, 1, 1]} : vector<4x20x2xf32> to vector<1x20x2xf32>
    %661 = vector.shape_cast %660 : vector<1x20x2xf32> to vector<20x2xf32>
    %cst_163 = arith.constant dense<0.000000e+00> : vector<8x2xf32>
    %662 = tpu.matmul %659, %661, %cst_163 {dimension_numbers = #tpu.dot_dimension_numbers<[1], [0], [0], [1], [0, 0, 1, 1], [], []>} : vector<8x20xf32>, vector<20x2xf32>, vector<8x2xf32> -> vector<8x2xf32>
    %663 = arith.addf %645, %662 : vector<8x2xf32>
    %c0_164 = arith.constant 0 : index
    %c0_165 = arith.constant 0 : index
    %664 = vector.load %arg10[%c0_164, %c0_165] : memref<1x2xf32, #tpu.memory_space<vmem>>, vector<1x2xf32>
    %665 = vector.broadcast %664 : vector<1x2xf32> to vector<8x2xf32>
    %666 = arith.addf %663, %665 : vector<8x2xf32>
    %cst_166 = arith.constant dense<0xFF800000> : vector<8xf32>
    %667 = vector.multi_reduction <maximumf>, %666, %cst_166 [1] : vector<8x2xf32> to vector<8xf32>
    %668 = vector.shape_cast %667 : vector<8xf32> to vector<8x1xf32>
    %669 = vector.broadcast %668 : vector<8x1xf32> to vector<8x2xf32>
    %670 = arith.subf %666, %669 : vector<8x2xf32>
    %671 = math.exp %670 : vector<8x2xf32>
    %cst_167 = arith.constant dense<0.000000e+00> : vector<8xf32>
    %672 = vector.multi_reduction <add>, %671, %cst_167 [1] : vector<8x2xf32> to vector<8xf32>
    %673 = vector.shape_cast %672 : vector<8xf32> to vector<8x1xf32>
    %674 = vector.broadcast %673 : vector<8x1xf32> to vector<8x2xf32>
    %675 = arith.divf %671, %674 : vector<8x2xf32>
    %676 = vector.extract_strided_slice %675 {offsets = [0, 0], sizes = [2, 2], strides = [1, 1]} : vector<8x2xf32> to vector<2x2xf32>
    %c0_168 = arith.constant 0 : index
    %c0_169 = arith.constant 0 : index
    %677 = vector.load %arg13[%c0_168, %c0_169] : memref<2x2xf32, #tpu.memory_space<vmem>>, vector<2x2xf32>
    tpu.vector_store %arg13[%c0_168, %c0_169], %676 {strides = array<i32>} : memref<2x2xf32, #tpu.memory_space<vmem>>, vector<2x2xf32>,
    %678 = vector.extract_strided_slice %666 {offsets = [0, 0], sizes = [2, 2], strides = [1, 1]} : vector<8x2xf32> to vector<2x2xf32>
    %c0_170 = arith.constant 0 : index
    %c0_171 = arith.constant 0 : index
    %679 = vector.load %arg14[%c0_170, %c0_171] : memref<2x2xf32, #tpu.memory_space<vmem>>, vector<2x2xf32>
    tpu.vector_store %arg14[%c0_170, %c0_171], %678 {strides = array<i32>} : memref<2x2xf32, #tpu.memory_space<vmem>>, vector<2x2xf32>,
    return
  }
}

</mosaic_0001>

<llo_original>
// kernel: _lambda_.1
$region0: #{_lambda_.1}
  #allocation0 [shape = 'u32[]', space=smem, size = 0x4, offset = 0x4, fixed_abs, tag = 'smem constant byte address 0x4 - core index']
  #allocation1 [shape = 'u32[144,128]{1,0:T(1,128)}', space=vmem, size = 0x12000, scoped, tag = 'internal scratch']
  %s0 = inlined_call_operand.vmem [shape: f32[16,8,32], index: 0, kind: input, shape index: {}]
  %s1 = inlined_call_operand.vmem [shape: f32[128,32], index: 1, kind: input, shape index: {}]
  %s2 = inlined_call_operand.vmem [shape: f32[160,64], index: 2, kind: input, shape index: {}]
  %s3 = inlined_call_operand.vmem [shape: f32[1,64], index: 3, kind: input, shape index: {}]
  %s4 = inlined_call_operand.vmem [shape: f32[32,64], index: 4, kind: input, shape index: {}]
  %s5 = inlined_call_operand.vmem [shape: f32[1,64], index: 5, kind: input, shape index: {}]
  %s6 = inlined_call_operand.vmem [shape: f32[64,64], index: 6, kind: input, shape index: {}]
  %s7 = inlined_call_operand.vmem [shape: f32[384,20], index: 7, kind: input, shape index: {}]
  %s8 = inlined_call_operand.vmem [shape: f32[1,20], index: 8, kind: input, shape index: {}]
  %s9 = inlined_call_operand.vmem [shape: f32[4,20,2], index: 9, kind: input, shape index: {}]
  %s10 = inlined_call_operand.vmem [shape: f32[1,2], index: 10, kind: input, shape index: {}]
  %s11 = inlined_call_operand.vmem [shape: f32[4], index: 11, kind: input, shape index: {}]
  %s12 = inlined_call_operand.vmem [shape: f32[4], index: 12, kind: input, shape index: {}]
  %s13 = inlined_call_operand.hbm [shape: f32[2,2], index: 13, kind: output, shape index: {0}]
  %s14 = inlined_call_operand.hbm [shape: f32[2,2], index: 14, kind: output, shape index: {1}]
  %15 = xla_tuple %s13, %s14
  %s16 = sld [smem:[#allocation0]]
  $region78: #{_lambda_.1} parent=0
    _
  %s18 = ssub.s32 1, %s16
  %s19 = scalar_select 0, %s18, %s16
  $region1: #{_lambda_.1} parent=0
    #allocation2 [shape = 'u8[512]{0}', space=smem, size = 0x200, scoped, tag = 'input window, operand 11, single buffered']
    #allocation3 [shape = 's32[1]{0}', space=sflag, size = 0x4, scoped, tag = 'scoped memory for _lambda_.1']
    #allocation4 [shape = 's32[1]{0}', space=sflag, size = 0x4, scoped, tag = 'scoped memory for _lambda_.1']
    #allocation5 [shape = 'u8[512]{0}', space=smem, size = 0x200, scoped, tag = 'input window, operand 12, single buffered']
    #allocation6 [shape = 's32[1]{0}', space=sflag, size = 0x4, scoped, tag = 'scoped memory for _lambda_.1']
    #allocation7 [shape = 'u8[1024]{0}', space=vmem, size = 0x400, scoped, tag = 'output window, operand 0, single buffered']
    #allocation8 [shape = 'u8[1024]{0}', space=vmem, size = 0x400, scoped, tag = 'output window, operand 1, single buffered']
    #allocation9 [shape = 's32[1]{0}', space=sflag, size = 0x4, scoped, tag = 'scoped memory for _lambda_.1']
    %20 = vsyncpa [#allocation4], 0
    %21 = vsyncpa [#allocation6], 0
    %22 = vsyncpa [#allocation3], 0
    %23 = vsyncpa [#allocation9], 0
    // Predicated region
    $region2: #{_lambda_.1} parent=1 // pred_check
      _
    $region3: #{_lambda_.1} parent=1 // pred_check_branch
      %25 = sbr.rel (0) target = $region5
    $region4: #{_lambda_.1} parent=1 // pred_region
      _
    $region5: #{_lambda_.1} parent=1 // pred_fallthru
      _
    // Predicated region
    $region6: #{_lambda_.1} parent=1 // pred_check
      _
    $region7: #{_lambda_.1} parent=1 // pred_check_branch
      %27 = sbr.rel (0) target = $region9
    $region8: #{_lambda_.1} parent=1 // pred_region
      _
    $region9: #{_lambda_.1} parent=1 // pred_fallthru
      _
    // Predicated region
    $region10: #{_lambda_.1} parent=1 // pred_check
      _
    $region11: #{_lambda_.1} parent=1 // pred_check_branch
      %29 = sbr.rel (0) target = $region13
    $region12: #{_lambda_.1} parent=1 // pred_region
      _
    $region13: #{_lambda_.1} parent=1 // pred_fallthru
      _
    // Predicated region
    $region14: #{_lambda_.1} parent=1 // pred_check
      _
    $region15: #{_lambda_.1} parent=1 // pred_check_branch
      %31 = sbr.rel (0) target = $region17
    $region16: #{_lambda_.1} parent=1 // pred_region
      _
    $region17: #{_lambda_.1} parent=1 // pred_fallthru
      _
    // Predicated region
    $region18: #{_lambda_.1} parent=1 // pred_check
      _
    $region19: #{_lambda_.1} parent=1 // pred_check_branch
      %33 = sbr.rel (0) target = $region21
    $region20: #{_lambda_.1} parent=1 // pred_region
      _
    $region21: #{_lambda_.1} parent=1 // pred_fallthru
      _
    // Predicated region
    $region22: #{_lambda_.1} parent=1 // pred_check
      _
    $region23: #{_lambda_.1} parent=1 // pred_check_branch
      %35 = sbr.rel (0) target = $region25
    $region24: #{_lambda_.1} parent=1 // pred_region
      _
    $region25: #{_lambda_.1} parent=1 // pred_fallthru
      _
    // Predicated region
    $region26: #{_lambda_.1} parent=1 // pred_check
      _
    $region27: #{_lambda_.1} parent=1 // pred_check_branch
      %37 = sbr.rel (0) target = $region29
    $region28: #{_lambda_.1} parent=1 // pred_region
      _
    $region29: #{_lambda_.1} parent=1 // pred_fallthru
      _
    // Predicated region
    $region30: #{_lambda_.1} parent=1 // pred_check
      _
    $region31: #{_lambda_.1} parent=1 // pred_check_branch
      %39 = sbr.rel (0) target = $region33
    $region32: #{_lambda_.1} parent=1 // pred_region
      _
    $region33: #{_lambda_.1} parent=1 // pred_fallthru
      _
    // Predicated region
    $region34: #{_lambda_.1} parent=1 // pred_check
      _
    $region35: #{_lambda_.1} parent=1 // pred_check_branch
      %41 = sbr.rel (0) target = $region37
    $region36: #{_lambda_.1} parent=1 // pred_region
      _
    $region37: #{_lambda_.1} parent=1 // pred_fallthru
      _
    // Predicated region
    $region38: #{_lambda_.1} parent=1 // pred_check
      _
    $region39: #{_lambda_.1} parent=1 // pred_check_branch
      %43 = sbr.rel (0) target = $region41
    $region40: #{_lambda_.1} parent=1 // pred_region
      _
    $region41: #{_lambda_.1} parent=1 // pred_fallthru
      _
    // Predicated region
    $region42: #{_lambda_.1} parent=1 // pred_check
      _
    $region43: #{_lambda_.1} parent=1 // pred_check_branch
      %45 = sbr.rel (0) target = $region45
    $region44: #{_lambda_.1} parent=1 // pred_region
      _
    $region45: #{_lambda_.1} parent=1 // pred_fallthru
      _
    // Predicated region
    $region46: #{_lambda_.1} parent=1 // pred_check
      _
    $region47: #{_lambda_.1} parent=1 // pred_check_branch
      %47 = sbr.rel (0) target = $region49
    $region48: #{_lambda_.1} parent=1 // pred_region
      %s49 = ssub.s32 16, 16
      %50 = vsyncadd [#allocation4], %s49
      %s52 = sshll.u32 %s11, 4
      %s53 = int_to_ptr.vmem [resolvable:$true] %s52
      %55 = dma.vmem_to_smem %s53, 16, [#allocation2], [#allocation4]
    $region49: #{_lambda_.1} parent=1 // pred_fallthru
      _
    // Predicated region
    $region50: #{_lambda_.1} parent=1 // pred_check
      _
    $region51: #{_lambda_.1} parent=1 // pred_check_branch
      %57 = sbr.rel (0) target = $region53
    $region52: #{_lambda_.1} parent=1 // pred_region
      %s59 = ssub.s32 16, 16
      %60 = vsyncadd [#allocation6], %s59
      %s62 = sshll.u32 %s12, 4
      %s63 = int_to_ptr.vmem [resolvable:$true] %s62
      %65 = dma.vmem_to_smem %s63, 16, [#allocation5], [#allocation6]
    $region53: #{_lambda_.1} parent=1 // pred_fallthru
      _
    // Predicated region
    $region54: #{_lambda_.1} parent=1 // pred_check
      _
    $region55: #{_lambda_.1} parent=1 // pred_check_branch
      %67 = sbr.rel (0) target = $region57
    $region56: #{_lambda_.1} parent=1 // pred_region
      %68 = dma.done [#allocation4], 16
    $region57: #{_lambda_.1} parent=1 // pred_fallthru
      _
    // Predicated region
    $region58: #{_lambda_.1} parent=1 // pred_check
      _
    $region59: #{_lambda_.1} parent=1 // pred_check_branch
      %70 = sbr.rel (0) target = $region61
    $region60: #{_lambda_.1} parent=1 // pred_region
      %71 = dma.done [#allocation6], 16
    $region61: #{_lambda_.1} parent=1 // pred_fallthru
      _
    %72 = sfence
    %v73 = vld [vmem:[%s0] sm:$0xff]
    %v74 = vld [vmem:[%s0 + $0x8] sm:$0xff]
    %v75 = vld [vmem:[%s0 + $0x10] sm:$0xff]
    %v76 = vld [vmem:[%s0 + $0x18] sm:$0xff]
    %v77 = vld [vmem:[%s0 + $0x20] sm:$0xff]
    %v78 = vld [vmem:[%s0 + $0x28] sm:$0xff]
    %v79 = vld [vmem:[%s0 + $0x30] sm:$0xff]
    %v80 = vld [vmem:[%s0 + $0x38] sm:$0xff]
    %v81 = vld [vmem:[%s0 + $0x40] sm:$0xff]
    %v82 = vld [vmem:[%s0 + $0x48] sm:$0xff]
    %v83 = vld [vmem:[%s0 + $0x50] sm:$0xff]
    %v84 = vld [vmem:[%s0 + $0x58] sm:$0xff]
    %v85 = vld [vmem:[%s0 + $0x60] sm:$0xff]
    %v86 = vld [vmem:[%s0 + $0x68] sm:$0xff]
    %v87 = vld [vmem:[%s0 + $0x70] sm:$0xff]
    %v88 = vld [vmem:[%s0 + $0x78] sm:$0xff]
    %105 = vrot.lane.b32.xlu0 0.0, 32
    %v106 = vpop.permute.xlu0 %105
    %107 = vrot.lane.b32.xlu0 %v73, 32
    %v108 = vpop.permute.xlu0 %107
    %109 = vrot.lane.b32.xlu0 %v74, 32
    %v110 = vpop.permute.xlu0 %109
    %111 = vrot.lane.b32.xlu0 %v75, 32
    %v112 = vpop.permute.xlu0 %111
    %113 = vrot.lane.b32.xlu0 %v76, 32
    %v114 = vpop.permute.xlu0 %113
    %115 = vrot.lane.b32.xlu0 %v77, 32
    %v116 = vpop.permute.xlu0 %115
    %117 = vrot.lane.b32.xlu0 %v78, 32
    %v118 = vpop.permute.xlu0 %117
    %119 = vrot.lane.b32.xlu0 %v79, 32
    %v120 = vpop.permute.xlu0 %119
    %121 = vrot.lane.b32.xlu0 %v80, 32
    %v122 = vpop.permute.xlu0 %121
    %123 = vrot.lane.b32.xlu0 %v81, 32
    %v124 = vpop.permute.xlu0 %123
    %125 = vrot.lane.b32.xlu0 %v82, 32
    %v126 = vpop.permute.xlu0 %125
    %127 = vrot.lane.b32.xlu0 %v83, 32
    %v128 = vpop.permute.xlu0 %127
    %129 = vrot.lane.b32.xlu0 %v84, 32
    %v130 = vpop.permute.xlu0 %129
    %131 = vrot.lane.b32.xlu0 %v85, 32
    %v132 = vpop.permute.xlu0 %131
    %133 = vrot.lane.b32.xlu0 %v86, 32
    %v134 = vpop.permute.xlu0 %133
    %135 = vrot.lane.b32.xlu0 %v87, 32
    %v136 = vpop.permute.xlu0 %135
    %154 = vrot.lane.b32.xlu0 %v73, 64
    %v155 = vpop.permute.xlu0 %154
    %156 = vrot.lane.b32.xlu0 %v74, 64
    %v157 = vpop.permute.xlu0 %156
    %158 = vrot.lane.b32.xlu0 %v75, 64
    %v159 = vpop.permute.xlu0 %158
    %160 = vrot.lane.b32.xlu0 %v76, 64
    %v161 = vpop.permute.xlu0 %160
    %162 = vrot.lane.b32.xlu0 %v77, 64
    %v163 = vpop.permute.xlu0 %162
    %164 = vrot.lane.b32.xlu0 %v78, 64
    %v165 = vpop.permute.xlu0 %164
    %166 = vrot.lane.b32.xlu0 %v79, 64
    %v167 = vpop.permute.xlu0 %166
    %168 = vrot.lane.b32.xlu0 %v80, 64
    %v169 = vpop.permute.xlu0 %168
    %170 = vrot.lane.b32.xlu0 %v81, 64
    %v171 = vpop.permute.xlu0 %170
    %172 = vrot.lane.b32.xlu0 %v82, 64
    %v173 = vpop.permute.xlu0 %172
    %174 = vrot.lane.b32.xlu0 %v83, 64
    %v175 = vpop.permute.xlu0 %174
    %176 = vrot.lane.b32.xlu0 %v84, 64
    %v177 = vpop.permute.xlu0 %176
    %178 = vrot.lane.b32.xlu0 %v85, 64
    %v179 = vpop.permute.xlu0 %178
    %180 = vrot.lane.b32.xlu0 %v86, 64
    %v181 = vpop.permute.xlu0 %180
    %182 = vrot.lane.b32.xlu0 %v87, 64
    %v183 = vpop.permute.xlu0 %182
    %184 = vrot.lane.b32.xlu0 %v88, 64
    %v185 = vpop.permute.xlu0 %184
    %202 = vrot.lane.b32.xlu0 %v74, 96
    %v203 = vpop.permute.xlu0 %202
    %204 = vrot.lane.b32.xlu0 %v75, 96
    %v205 = vpop.permute.xlu0 %204
    %206 = vrot.lane.b32.xlu0 %v76, 96
    %v207 = vpop.permute.xlu0 %206
    %208 = vrot.lane.b32.xlu0 %v77, 96
    %v209 = vpop.permute.xlu0 %208
    %210 = vrot.lane.b32.xlu0 %v78, 96
    %v211 = vpop.permute.xlu0 %210
    %212 = vrot.lane.b32.xlu0 %v79, 96
    %v213 = vpop.permute.xlu0 %212
    %214 = vrot.lane.b32.xlu0 %v80, 96
    %v215 = vpop.permute.xlu0 %214
    %216 = vrot.lane.b32.xlu0 %v81, 96
    %v217 = vpop.permute.xlu0 %216
    %218 = vrot.lane.b32.xlu0 %v82, 96
    %v219 = vpop.permute.xlu0 %218
    %220 = vrot.lane.b32.xlu0 %v83, 96
    %v221 = vpop.permute.xlu0 %220
    %222 = vrot.lane.b32.xlu0 %v84, 96
    %v223 = vpop.permute.xlu0 %222
    %224 = vrot.lane.b32.xlu0 %v85, 96
    %v225 = vpop.permute.xlu0 %224
    %226 = vrot.lane.b32.xlu0 %v86, 96
    %v227 = vpop.permute.xlu0 %226
    %228 = vrot.lane.b32.xlu0 %v87, 96
    %v229 = vpop.permute.xlu0 %228
    %230 = vrot.lane.b32.xlu0 %v88, 96
    %v231 = vpop.permute.xlu0 %230
    %232 = vrot.lane.b32.xlu0 0.0, 96
    %v233 = vpop.permute.xlu0 %232
    %vm250 = vcmask 261120
    %v251 = vsel %vm250, 0.0, %v106
    %v252 = vsel %vm250, 0.0, %v108
    %v253 = vsel %vm250, %v73, %v110
    %v254 = vsel %vm250, %v74, %v112
    %v255 = vsel %vm250, %v75, %v114
    %v256 = vsel %vm250, %v76, %v116
    %v257 = vsel %vm250, %v77, %v118
    %v258 = vsel %vm250, %v78, %v120
    %v259 = vsel %vm250, %v79, %v122
    %v260 = vsel %vm250, %v80, %v124
    %v261 = vsel %vm250, %v81, %v126
    %v262 = vsel %vm250, %v82, %v128
    %v263 = vsel %vm250, %v83, %v130
    %v264 = vsel %vm250, %v84, %v132
    %v265 = vsel %vm250, %v85, %v134
    %v266 = vsel %vm250, %v86, %v136
    %vm267 = vcmask 523264
    %v268 = vsel %vm267, %v251, %v155
    %v269 = vsel %vm267, %v252, %v157
    %v270 = vsel %vm267, %v253, %v159
    %v271 = vsel %vm267, %v254, %v161
    %v272 = vsel %vm267, %v255, %v163
    %v273 = vsel %vm267, %v256, %v165
    %v274 = vsel %vm267, %v257, %v167
    %v275 = vsel %vm267, %v258, %v169
    %v276 = vsel %vm267, %v259, %v171
    %v277 = vsel %vm267, %v260, %v173
    %v278 = vsel %vm267, %v261, %v175
    %v279 = vsel %vm267, %v262, %v177
    %v280 = vsel %vm267, %v263, %v179
    %v281 = vsel %vm267, %v264, %v181
    %v282 = vsel %vm267, %v265, %v183
    %v283 = vsel %vm267, %v266, %v185
    %vm284 = vcmask 785408
    %v285 = vsel %vm284, %v268, %v203
    %v286 = vsel %vm284, %v269, %v205
    %v287 = vsel %vm284, %v270, %v207
    %v288 = vsel %vm284, %v271, %v209
    %v289 = vsel %vm284, %v272, %v211
    %v290 = vsel %vm284, %v273, %v213
    %v291 = vsel %vm284, %v274, %v215
    %v292 = vsel %vm284, %v275, %v217
    %v293 = vsel %vm284, %v276, %v219
    %v294 = vsel %vm284, %v277, %v221
    %v295 = vsel %vm284, %v278, %v223
    %v296 = vsel %vm284, %v279, %v225
    %v297 = vsel %vm284, %v280, %v227
    %v298 = vsel %vm284, %v281, %v229
    %v299 = vsel %vm284, %v282, %v231
    %v300 = vsel %vm284, %v283, %v233
    %v301 = vld [vmem:[%s2] sm:$0xff]
    %v302 = vld [vmem:[%s2 + $0x8] sm:$0xff]
    %v303 = vld [vmem:[%s2 + $0x10] sm:$0xff]
    %v304 = vld [vmem:[%s2 + $0x18] sm:$0xff]
    %v305 = vld [vmem:[%s2 + $0x20] sm:$0xff]
    %v306 = vld [vmem:[%s2 + $0x28] sm:$0xff]
    %v307 = vld [vmem:[%s2 + $0x30] sm:$0xff]
    %v308 = vld [vmem:[%s2 + $0x38] sm:$0xff]
    %v309 = vld [vmem:[%s2 + $0x40] sm:$0xff]
    %v310 = vld [vmem:[%s2 + $0x48] sm:$0xff]
    %v311 = vld [vmem:[%s2 + $0x50] sm:$0xff]
    %v312 = vld [vmem:[%s2 + $0x58] sm:$0xff]
    %v313 = vld [vmem:[%s2 + $0x60] sm:$0xff]
    %v314 = vld [vmem:[%s2 + $0x68] sm:$0xff]
    %v315 = vld [vmem:[%s2 + $0x70] sm:$0xff]
    %v316 = vld [vmem:[%s2 + $0x78] sm:$0xff]
    %v317 = vld [vmem:[%s2 + $0x80] sm:$0xff]
    %v318 = vld [vmem:[%s2 + $0x88] sm:$0xff]
    %v319 = vld [vmem:[%s2 + $0x90] sm:$0xff]
    %v320 = vld [vmem:[%s2 + $0x98] sm:$0xff]
    %v321 = vld [vmem:[%s3] sm:$0x1]
    %v323 = vlaneseq
    %v324 = vshrl.u32 %v323, 7
    %v325 = vsub.s32 0, %v324
    %v326 = vrot.slane %v321, %v325
    %v328 = vsel %vm250, %v75, 0
    %v330 = vsel %vm250, %v76, 0
    %v332 = vsel %vm250, %v77, 0
    %v334 = vsel %vm250, %v78, 0
    %v336 = vsel %vm250, %v79, 0
    %v338 = vsel %vm250, %v80, 0
    %v340 = vsel %vm250, %v81, 0
    %v342 = vsel %vm250, %v82, 0
    %v344 = vsel %vm250, %v83, 0
    %v346 = vsel %vm250, %v84, 0
    %v348 = vsel %vm250, %v85, 0
    %v350 = vsel %vm250, %v86, 0
    %v352 = vsel %vm250, %v87, 0
    %v354 = vsel %vm250, %v88, 0
    %v356 = vsel %vm250, 0.0, 0
    %358 = vmatprep.subr.mxu0 0.0
    %359 = vmatpush1.msra.mxu0 %v301
    %360 = vmatprep.subr.mxu0 0.0
    %361 = vmatpush1.msra.mxu0 %v302
    %362 = vmatprep.subr.mxu0 0.0
    %363 = vmatpush1.msra.mxu0 %v303
    %364 = vmatprep.subr.mxu0 0.0
    %365 = vmatpush1.msra.mxu0 %v304
    %366 = vmatprep.subr.mxu0 0.0
    %367 = vmatpush1.msra.mxu0 %v305
    %368 = vmatprep.subr.mxu0 0.0
    %369 = vmatpush1.msra.mxu0 %v306
    %370 = vmatprep.subr.mxu0 0.0
    %371 = vmatpush1.msra.mxu0 %v307
    %372 = vmatprep.subr.mxu0 0.0
    %373 = vmatpush1.msra.mxu0 %v308
    %374 = vmatprep.subr.mxu0 0.0
    %375 = vmatpush1.msra.mxu0 %v309
    %376 = vmatprep.subr.mxu0 0.0
    %377 = vmatpush1.msra.mxu0 %v310
    %378 = vmatprep.subr.mxu0 0.0
    %379 = vmatpush1.msra.mxu0 %v311
    %380 = vmatprep.subr.mxu0 0.0
    %381 = vmatpush1.msra.mxu0 %v312
    %382 = vmatprep.subr.mxu0 0.0
    %383 = vmatpush1.msra.mxu0 %v313
    %384 = vmatprep.subr.mxu0 0.0
    %385 = vmatpush1.msra.mxu0 %v314
    %386 = vmatprep.subr.mxu0 0.0
    %387 = vmatpush1.msra.mxu0 %v315
    %388 = vmatprep.subr.mxu0 0.0
    %389 = vmatpush1.msra.mxu0 %v316
    %390 = vmatprep.subr.mxu0 0.0
    %391 = vmatpush1.msra.mxu0 %v317
    %392 = vmatprep.subr.mxu0 0.0
    %393 = vmatpush1.msra.mxu0 %v318
    %394 = vmatprep.subr.mxu0 0.0
    %395 = vmatpush1.msra.mxu0 %v319
    %396 = vmatprep.subr.mxu0 0.0
    %397 = vmatpush1.msra.mxu0 %v320
    %398 = vmatprep.subr.mxu0 0.0
    %399 = vmatpush1.msra.mxu0 0.0
    %400 = vmatprep.subr.mxu0 0.0
    %401 = vmatpush1.msra.mxu0 0.0
    %402 = vmatprep.subr.mxu0 0.0
    %403 = vmatpush1.msra.mxu0 0.0
    %404 = vmatprep.subr.mxu0 0.0
    %405 = vmatpush1.msra.mxu0 0.0
    %406 = vmatprep.subr.mxu0 0.0
    %407 = vmatpush1.msra.mxu0 0.0
    %408 = vmatprep.subr.mxu0 0.0
    %409 = vmatpush1.msra.mxu0 0.0
    %410 = vmatprep.subr.mxu0 0.0
    %411 = vmatpush1.msra.mxu0 0.0
    %412 = vmatprep.subr.mxu0 0.0
    %413 = vmatpush1.msra.mxu0 0.0
    %414 = vmatprep.subr.mxu0 0.0
    %415 = vmatpush1.msra.mxu0 0.0
    %416 = vmatprep.subr.mxu0 0.0
    %417 = vmatpush1.msra.mxu0 0.0
    %418 = vmatprep.subr.mxu0 0.0
    %419 = vmatpush1.msra.mxu0 0.0
    %420 = vmatprep.subr.mxu0 0.0
    %421 = vmatpush1.msra.mxu0 0.0
    %422 = vmatprep.mubr.f32.mxu0 %v328
    %423 = vmatmul.mubr.f32.gmra.mrb[0].mxu0 %v285
    %v424 = vpop.f32.mrb[0].mxu0
    %v425 = vadd.f32 %v326, %v424
    %v426 = vpop.f32.mrb[0].mxu0
    %427 = vmatprep.mubr.f32.mxu0 %v330
    %428 = vmatmul.mubr.f32.gmra.mrb[0].mxu0 %v286
    %v429 = vpop.f32.mrb[0].mxu0
    %v430 = vadd.f32 %v326, %v429
    %v431 = vpop.f32.mrb[0].mxu0
    %432 = vmatprep.mubr.f32.mxu0 %v332
    %433 = vmatmul.mubr.f32.gmra.mrb[0].mxu0 %v287
    %v434 = vpop.f32.mrb[0].mxu0
    %v435 = vadd.f32 %v326, %v434
    %v436 = vpop.f32.mrb[0].mxu0
    %437 = vmatprep.mubr.f32.mxu0 %v334
    %438 = vmatmul.mubr.f32.gmra.mrb[0].mxu0 %v288
    %v439 = vpop.f32.mrb[0].mxu0
    %v440 = vadd.f32 %v326, %v439
    %v441 = vpop.f32.mrb[0].mxu0
    %442 = vmatprep.mubr.f32.mxu0 %v336
    %443 = vmatmul.mubr.f32.gmra.mrb[0].mxu0 %v289
    %v444 = vpop.f32.mrb[0].mxu0
    %v445 = vadd.f32 %v326, %v444
    %v446 = vpop.f32.mrb[0].mxu0
    %447 = vmatprep.mubr.f32.mxu0 %v338
    %448 = vmatmul.mubr.f32.gmra.mrb[0].mxu0 %v290
    %v449 = vpop.f32.mrb[0].mxu0
    %v450 = vadd.f32 %v326, %v449
    %v451 = vpop.f32.mrb[0].mxu0
    %452 = vmatprep.mubr.f32.mxu0 %v340
    %453 = vmatmul.mubr.f32.gmra.mrb[0].mxu0 %v291
    %v454 = vpop.f32.mrb[0].mxu0
    %v455 = vadd.f32 %v326, %v454
    %v456 = vpop.f32.mrb[0].mxu0
    %457 = vmatprep.mubr.f32.mxu0 %v342
    %458 = vmatmul.mubr.f32.gmra.mrb[0].mxu0 %v292
    %v459 = vpop.f32.mrb[0].mxu0
    %v460 = vadd.f32 %v326, %v459
    %v461 = vpop.f32.mrb[0].mxu0
    %462 = vmatprep.mubr.f32.mxu0 %v344
    %463 = vmatmul.mubr.f32.gmra.mrb[0].mxu0 %v293
    %v464 = vpop.f32.mrb[0].mxu0
    %v465 = vadd.f32 %v326, %v464
    %v466 = vpop.f32.mrb[0].mxu0
    %467 = vmatprep.mubr.f32.mxu0 %v346
    %468 = vmatmul.mubr.f32.gmra.mrb[0].mxu0 %v294
    %v469 = vpop.f32.mrb[0].mxu0
    %v470 = vadd.f32 %v326, %v469
    %v471 = vpop.f32.mrb[0].mxu0
    %472 = vmatprep.mubr.f32.mxu0 %v348
    %473 = vmatmul.mubr.f32.gmra.mrb[0].mxu0 %v295
    %v474 = vpop.f32.mrb[0].mxu0
    %v475 = vadd.f32 %v326, %v474
    %v476 = vpop.f32.mrb[0].mxu0
    %477 = vmatprep.mubr.f32.mxu0 %v350
    %478 = vmatmul.mubr.f32.gmra.mrb[0].mxu0 %v296
    %v479 = vpop.f32.mrb[0].mxu0
    %v480 = vadd.f32 %v326, %v479
    %v481 = vpop.f32.mrb[0].mxu0
    %482 = vmatprep.mubr.f32.mxu0 %v352
    %483 = vmatmul.mubr.f32.gmra.mrb[0].mxu0 %v297
    %v484 = vpop.f32.mrb[0].mxu0
    %v485 = vadd.f32 %v326, %v484
    %v486 = vpop.f32.mrb[0].mxu0
    %487 = vmatprep.mubr.f32.mxu0 %v354
    %488 = vmatmul.mubr.f32.gmra.mrb[0].mxu0 %v298
    %v489 = vpop.f32.mrb[0].mxu0
    %v490 = vadd.f32 %v326, %v489
    %v491 = vpop.f32.mrb[0].mxu0
    %492 = vmatprep.mubr.f32.mxu0 %v356
    %493 = vmatmul.mubr.f32.gmra.mrb[0].mxu0 %v299
    %v494 = vpop.f32.mrb[0].mxu0
    %v495 = vadd.f32 %v326, %v494
    %v496 = vpop.f32.mrb[0].mxu0
    %497 = vmatprep.mubr.f32.mxu0 %v356
    %498 = vmatmul.mubr.f32.gmra.mrb[0].mxu0 %v300
    %v499 = vpop.f32.mrb[0].mxu0
    %v500 = vadd.f32 %v326, %v499
    %v501 = vpop.f32.mrb[0].mxu0
    %502 = vdwg.mxu0
    %v503 = vmax.f32 %v425, 0.0
    %v504 = vmax.f32 %v430, 0.0
    %v505 = vmax.f32 %v435, 0.0
    %v506 = vmax.f32 %v440, 0.0
    %v507 = vmax.f32 %v445, 0.0
    %v508 = vmax.f32 %v450, 0.0
    %v509 = vmax.f32 %v455, 0.0
    %v510 = vmax.f32 %v460, 0.0
    %v511 = vmax.f32 %v465, 0.0
    %v512 = vmax.f32 %v470, 0.0
    %v513 = vmax.f32 %v475, 0.0
    %v514 = vmax.f32 %v480, 0.0
    %v515 = vmax.f32 %v485, 0.0
    %v516 = vmax.f32 %v490, 0.0
    %v517 = vmax.f32 %v495, 0.0
    %v518 = vmax.f32 %v500, 0.0
    %v519 = vld [vmem:[%s1] sm:$0xff]
    %v520 = vld [vmem:[%s1 + $0x8] sm:$0xff]
    %v521 = vld [vmem:[%s1 + $0x10] sm:$0xff]
    %v522 = vld [vmem:[%s1 + $0x18] sm:$0xff]
    %v523 = vld [vmem:[%s1 + $0x20] sm:$0xff]
    %v524 = vld [vmem:[%s1 + $0x28] sm:$0xff]
    %v525 = vld [vmem:[%s1 + $0x30] sm:$0xff]
    %v526 = vld [vmem:[%s1 + $0x38] sm:$0xff]
    %v527 = vld [vmem:[%s1 + $0x40] sm:$0xff]
    %v528 = vld [vmem:[%s1 + $0x48] sm:$0xff]
    %v529 = vld [vmem:[%s1 + $0x50] sm:$0xff]
    %v530 = vld [vmem:[%s1 + $0x58] sm:$0xff]
    %v531 = vld [vmem:[%s1 + $0x60] sm:$0xff]
    %v532 = vld [vmem:[%s1 + $0x68] sm:$0xff]
    %v533 = vld [vmem:[%s1 + $0x70] sm:$0xff]
    %v534 = vld [vmem:[%s1 + $0x78] sm:$0xff]
    %v535 = vld [vmem:[%s4] sm:$0xff]
    %v536 = vld [vmem:[%s4 + $0x8] sm:$0xff]
    %v537 = vld [vmem:[%s4 + $0x10] sm:$0xff]
    %v538 = vld [vmem:[%s4 + $0x18] sm:$0xff]
    %v539 = vld [vmem:[%s5] sm:$0x1]
    %v541 = vlaneseq
    %v542 = vshrl.u32 %v541, 7
    %v543 = vsub.s32 0, %v542
    %v544 = vrot.slane %v539, %v543
    %v547 = vsel %vm250, %v519, 0
    %v550 = vsel %vm250, %v520, 0
    %v553 = vsel %vm250, %v521, 0
    %v556 = vsel %vm250, %v522, 0
    %v559 = vsel %vm250, %v523, 0
    %v562 = vsel %vm250, %v524, 0
    %v565 = vsel %vm250, %v525, 0
    %v568 = vsel %vm250, %v526, 0
    %v571 = vsel %vm250, %v527, 0
    %v574 = vsel %vm250, %v528, 0
    %v577 = vsel %vm250, %v529, 0
    %v580 = vsel %vm250, %v530, 0
    %v583 = vsel %vm250, %v531, 0
    %v586 = vsel %vm250, %v532, 0
    %v589 = vsel %vm250, %v533, 0
    %v592 = vsel %vm250, %v534, 0
    %594 = vmatprep.subr.mxu0 0.0
    %595 = vmatpush1.msra.mxu0 %v535
    %596 = vmatprep.subr.mxu0 0.0
    %597 = vmatpush1.msra.mxu0 %v536
    %598 = vmatprep.subr.mxu0 0.0
    %599 = vmatpush1.msra.mxu0 %v537
    %600 = vmatprep.subr.mxu0 0.0
    %601 = vmatpush1.msra.mxu0 %v538
    %602 = vmatprep.subr.mxu0 0.0
    %603 = vmatpush1.msra.mxu0 0.0
    %604 = vmatprep.subr.mxu0 0.0
    %605 = vmatpush1.msra.mxu0 0.0
    %606 = vmatprep.subr.mxu0 0.0
    %607 = vmatpush1.msra.mxu0 0.0
    %608 = vmatprep.subr.mxu0 0.0
    %609 = vmatpush1.msra.mxu0 0.0
    %610 = vmatprep.subr.mxu0 0.0
    %611 = vmatpush1.msra.mxu0 0.0
    %612 = vmatprep.subr.mxu0 0.0
    %613 = vmatpush1.msra.mxu0 0.0
    %614 = vmatprep.subr.mxu0 0.0
    %615 = vmatpush1.msra.mxu0 0.0
    %616 = vmatprep.subr.mxu0 0.0
    %617 = vmatpush1.msra.mxu0 0.0
    %618 = vmatprep.subr.mxu0 0.0
    %619 = vmatpush1.msra.mxu0 0.0
    %620 = vmatprep.subr.mxu0 0.0
    %621 = vmatpush1.msra.mxu0 0.0
    %622 = vmatprep.subr.mxu0 0.0
    %623 = vmatpush1.msra.mxu0 0.0
    %624 = vmatprep.subr.mxu0 0.0
    %625 = vmatpush1.msra.mxu0 0.0
    %626 = vmatprep.subr.mxu0 0.0
    %627 = vmatpush1.msra.mxu0 0.0
    %628 = vmatprep.subr.mxu0 0.0
    %629 = vmatpush1.msra.mxu0 0.0
    %630 = vmatprep.subr.mxu0 0.0
    %631 = vmatpush1.msra.mxu0 0.0
    %632 = vmatprep.subr.mxu0 0.0
    %633 = vmatpush1.msra.mxu0 0.0
    %634 = vmatprep.subr.mxu0 0.0
    %635 = vmatpush1.msra.mxu0 0.0
    %636 = vmatprep.subr.mxu0 0.0
    %637 = vmatpush1.msra.mxu0 0.0
    %638 = vmatprep.subr.mxu0 0.0
    %639 = vmatpush1.msra.mxu0 0.0
    %640 = vmatprep.subr.mxu0 0.0
    %641 = vmatpush1.msra.mxu0 0.0
    %642 = vmatprep.subr.mxu0 0.0
    %643 = vmatpush1.msra.mxu0 0.0
    %644 = vmatprep.subr.mxu0 0.0
    %645 = vmatpush1.msra.mxu0 0.0
    %646 = vmatprep.subr.mxu0 0.0
    %647 = vmatpush1.msra.mxu0 0.0
    %648 = vmatprep.subr.mxu0 0.0
    %649 = vmatpush1.msra.mxu0 0.0
    %650 = vmatprep.subr.mxu0 0.0
    %651 = vmatpush1.msra.mxu0 0.0
    %652 = vmatprep.subr.mxu0 0.0
    %653 = vmatpush1.msra.mxu0 0.0
    %654 = vmatprep.subr.mxu0 0.0
    %655 = vmatpush1.msra.mxu0 0.0
    %656 = vmatprep.subr.mxu0 0.0
    %657 = vmatpush1.msra.mxu0 0.0
    %658 = vmatprep.mubr.f32.mxu0 0.0
    %659 = vmatmul.mubr.f32.gmra.mrb[0].mxu0 %v547
    %v660 = vpop.f32.mrb[0].mxu0
    %v661 = vadd.f32 %v544, %v660
    %v662 = vpop.f32.mrb[0].mxu0
    %663 = vmatprep.mubr.f32.mxu0 0.0
    %664 = vmatmul.mubr.f32.gmra.mrb[0].mxu0 %v550
    %v665 = vpop.f32.mrb[0].mxu0
    %v666 = vadd.f32 %v544, %v665
    %v667 = vpop.f32.mrb[0].mxu0
    %668 = vmatprep.mubr.f32.mxu0 0.0
    %669 = vmatmul.mubr.f32.gmra.mrb[0].mxu0 %v553
    %v670 = vpop.f32.mrb[0].mxu0
    %v671 = vadd.f32 %v544, %v670
    %v672 = vpop.f32.mrb[0].mxu0
    %673 = vmatprep.mubr.f32.mxu0 0.0
    %674 = vmatmul.mubr.f32.gmra.mrb[0].mxu0 %v556
    %v675 = vpop.f32.mrb[0].mxu0
    %v676 = vadd.f32 %v544, %v675
    %v677 = vpop.f32.mrb[0].mxu0
    %678 = vmatprep.mubr.f32.mxu0 0.0
    %679 = vmatmul.mubr.f32.gmra.mrb[0].mxu0 %v559
    %v680 = vpop.f32.mrb[0].mxu0
    %v681 = vadd.f32 %v544, %v680
    %v682 = vpop.f32.mrb[0].mxu0
    %683 = vmatprep.mubr.f32.mxu0 0.0
    %684 = vmatmul.mubr.f32.gmra.mrb[0].mxu0 %v562
    %v685 = vpop.f32.mrb[0].mxu0
    %v686 = vadd.f32 %v544, %v685
    %v687 = vpop.f32.mrb[0].mxu0
    %688 = vmatprep.mubr.f32.mxu0 0.0
    %689 = vmatmul.mubr.f32.gmra.mrb[0].mxu0 %v565
    %v690 = vpop.f32.mrb[0].mxu0
    %v691 = vadd.f32 %v544, %v690
    %v692 = vpop.f32.mrb[0].mxu0
    %693 = vmatprep.mubr.f32.mxu0 0.0
    %694 = vmatmul.mubr.f32.gmra.mrb[0].mxu0 %v568
    %v695 = vpop.f32.mrb[0].mxu0
    %v696 = vadd.f32 %v544, %v695
    %v697 = vpop.f32.mrb[0].mxu0
    %698 = vmatprep.mubr.f32.mxu0 0.0
    %699 = vmatmul.mubr.f32.gmra.mrb[0].mxu0 %v571
    %v700 = vpop.f32.mrb[0].mxu0
    %v701 = vadd.f32 %v544, %v700
    %v702 = vpop.f32.mrb[0].mxu0
    %703 = vmatprep.mubr.f32.mxu0 0.0
    %704 = vmatmul.mubr.f32.gmra.mrb[0].mxu0 %v574
    %v705 = vpop.f32.mrb[0].mxu0
    %v706 = vadd.f32 %v544, %v705
    %v707 = vpop.f32.mrb[0].mxu0
    %708 = vmatprep.mubr.f32.mxu0 0.0
    %709 = vmatmul.mubr.f32.gmra.mrb[0].mxu0 %v577
    %v710 = vpop.f32.mrb[0].mxu0
    %v711 = vadd.f32 %v544, %v710
    %v712 = vpop.f32.mrb[0].mxu0
    %713 = vmatprep.mubr.f32.mxu0 0.0
    %714 = vmatmul.mubr.f32.gmra.mrb[0].mxu0 %v580
    %v715 = vpop.f32.mrb[0].mxu0
    %v716 = vadd.f32 %v544, %v715
    %v717 = vpop.f32.mrb[0].mxu0
    %718 = vmatprep.mubr.f32.mxu0 0.0
    %719 = vmatmul.mubr.f32.gmra.mrb[0].mxu0 %v583
    %v720 = vpop.f32.mrb[0].mxu0
    %v721 = vadd.f32 %v544, %v720
    %v722 = vpop.f32.mrb[0].mxu0
    %723 = vmatprep.mubr.f32.mxu0 0.0
    %724 = vmatmul.mubr.f32.gmra.mrb[0].mxu0 %v586
    %v725 = vpop.f32.mrb[0].mxu0
    %v726 = vadd.f32 %v544, %v725
    %v727 = vpop.f32.mrb[0].mxu0
    %728 = vmatprep.mubr.f32.mxu0 0.0
    %729 = vmatmul.mubr.f32.gmra.mrb[0].mxu0 %v589
    %v730 = vpop.f32.mrb[0].mxu0
    %v731 = vadd.f32 %v544, %v730
    %v732 = vpop.f32.mrb[0].mxu0
    %733 = vmatprep.mubr.f32.mxu0 0.0
    %734 = vmatmul.mubr.f32.gmra.mrb[0].mxu0 %v592
    %v735 = vpop.f32.mrb[0].mxu0
    %v736 = vadd.f32 %v544, %v735
    %v737 = vpop.f32.mrb[0].mxu0
    %738 = vdwg.mxu0
    %v739 = vld [vmem:[%s6] sm:$0xff]
    %v740 = vld [vmem:[%s6 + $0x8] sm:$0xff]
    %v741 = vld [vmem:[%s6 + $0x10] sm:$0xff]
    %v742 = vld [vmem:[%s6 + $0x18] sm:$0xff]
    %v743 = vld [vmem:[%s6 + $0x20] sm:$0xff]
    %v744 = vld [vmem:[%s6 + $0x28] sm:$0xff]
    %v745 = vld [vmem:[%s6 + $0x30] sm:$0xff]
    %v746 = vld [vmem:[%s6 + $0x38] sm:$0xff]
    %v747 = vsel %vm250, %v661, %v736
    %v748 = vsel %vm267, 0.0, 0
    %750 = vmatprep.subr.mxu0 0.0
    %751 = vmatpush1.msra.mxu0 %v739
    %752 = vmatprep.subr.mxu0 0.0
    %753 = vmatpush1.msra.mxu0 %v740
    %754 = vmatprep.subr.mxu0 0.0
    %755 = vmatpush1.msra.mxu0 %v741
    %756 = vmatprep.subr.mxu0 0.0
    %757 = vmatpush1.msra.mxu0 %v742
    %758 = vmatprep.subr.mxu0 0.0
    %759 = vmatpush1.msra.mxu0 %v743
    %760 = vmatprep.subr.mxu0 0.0
    %761 = vmatpush1.msra.mxu0 %v744
    %762 = vmatprep.subr.mxu0 0.0
    %763 = vmatpush1.msra.mxu0 %v745
    %764 = vmatprep.subr.mxu0 0.0
    %765 = vmatpush1.msra.mxu0 %v746
    %766 = vmatprep.subr.mxu0 0.0
    %767 = vmatpush1.msra.mxu0 0.0
    %768 = vmatprep.subr.mxu0 0.0
    %769 = vmatpush1.msra.mxu0 0.0
    %770 = vmatprep.subr.mxu0 0.0
    %771 = vmatpush1.msra.mxu0 0.0
    %772 = vmatprep.subr.mxu0 0.0
    %773 = vmatpush1.msra.mxu0 0.0
    %774 = vmatprep.subr.mxu0 0.0
    %775 = vmatpush1.msra.mxu0 0.0
    %776 = vmatprep.subr.mxu0 0.0
    %777 = vmatpush1.msra.mxu0 0.0
    %778 = vmatprep.subr.mxu0 0.0
    %779 = vmatpush1.msra.mxu0 0.0
    %780 = vmatprep.subr.mxu0 0.0
    %781 = vmatpush1.msra.mxu0 0.0
    %782 = vmatprep.subr.mxu0 0.0
    %783 = vmatpush1.msra.mxu0 0.0
    %784 = vmatprep.subr.mxu0 0.0
    %785 = vmatpush1.msra.mxu0 0.0
    %786 = vmatprep.subr.mxu0 0.0
    %787 = vmatpush1.msra.mxu0 0.0
    %788 = vmatprep.subr.mxu0 0.0
    %789 = vmatpush1.msra.mxu0 0.0
    %790 = vmatprep.subr.mxu0 0.0
    %791 = vmatpush1.msra.mxu0 0.0
    %792 = vmatprep.subr.mxu0 0.0
    %793 = vmatpush1.msra.mxu0 0.0
    %794 = vmatprep.subr.mxu0 0.0
    %795 = vmatpush1.msra.mxu0 0.0
    %796 = vmatprep.subr.mxu0 0.0
    %797 = vmatpush1.msra.mxu0 0.0
    %798 = vmatprep.subr.mxu0 0.0
    %799 = vmatpush1.msra.mxu0 0.0
    %800 = vmatprep.subr.mxu0 0.0
    %801 = vmatpush1.msra.mxu0 0.0
    %802 = vmatprep.subr.mxu0 0.0
    %803 = vmatpush1.msra.mxu0 0.0
    %804 = vmatprep.subr.mxu0 0.0
    %805 = vmatpush1.msra.mxu0 0.0
    %806 = vmatprep.subr.mxu0 0.0
    %807 = vmatpush1.msra.mxu0 0.0
    %808 = vmatprep.subr.mxu0 0.0
    %809 = vmatpush1.msra.mxu0 0.0
    %810 = vmatprep.subr.mxu0 0.0
    %811 = vmatpush1.msra.mxu0 0.0
    %812 = vmatprep.subr.mxu0 0.0
    %813 = vmatpush1.msra.mxu0 0.0
    %814 = vmatprep.mubr.f32.mxu0 0.0
    %815 = vmatmul.mubr.f32.gmra.mrb[0].mxu0 %v748
    %v816 = vpop.f32.mrb[0].mxu0
    %v817 = vadd.f32 0.0, %v816
    %v818 = vpop.f32.mrb[0].mxu0
    %819 = vdwg.mxu0
    %v820 = vadd.f32 %v747, %v817
    %v821 = vtanh.pop %v820
    %v822 = vsel %vm250, %v666, %v731
    %v824 = vsel %vm267, %v821, 0
    %826 = vmatprep.subr.mxu0 0.0
    %827 = vmatpush1.msra.mxu0 %v739
    %828 = vmatprep.subr.mxu0 0.0
    %829 = vmatpush1.msra.mxu0 %v740
    %830 = vmatprep.subr.mxu0 0.0
    %831 = vmatpush1.msra.mxu0 %v741
    %832 = vmatprep.subr.mxu0 0.0
    %833 = vmatpush1.msra.mxu0 %v742
    %834 = vmatprep.subr.mxu0 0.0
    %835 = vmatpush1.msra.mxu0 %v743
    %836 = vmatprep.subr.mxu0 0.0
    %837 = vmatpush1.msra.mxu0 %v744
    %838 = vmatprep.subr.mxu0 0.0
    %839 = vmatpush1.msra.mxu0 %v745
    %840 = vmatprep.subr.mxu0 0.0
    %841 = vmatpush1.msra.mxu0 %v746
    %842 = vmatprep.subr.mxu0 0.0
    %843 = vmatpush1.msra.mxu0 0.0
    %844 = vmatprep.subr.mxu0 0.0
    %845 = vmatpush1.msra.mxu0 0.0
    %846 = vmatprep.subr.mxu0 0.0
    %847 = vmatpush1.msra.mxu0 0.0
    %848 = vmatprep.subr.mxu0 0.0
    %849 = vmatpush1.msra.mxu0 0.0
    %850 = vmatprep.subr.mxu0 0.0
    %851 = vmatpush1.msra.mxu0 0.0
    %852 = vmatprep.subr.mxu0 0.0
    %853 = vmatpush1.msra.mxu0 0.0
    %854 = vmatprep.subr.mxu0 0.0
    %855 = vmatpush1.msra.mxu0 0.0
    %856 = vmatprep.subr.mxu0 0.0
    %857 = vmatpush1.msra.mxu0 0.0
    %858 = vmatprep.subr.mxu0 0.0
    %859 = vmatpush1.msra.mxu0 0.0
    %860 = vmatprep.subr.mxu0 0.0
    %861 = vmatpush1.msra.mxu0 0.0
    %862 = vmatprep.subr.mxu0 0.0
    %863 = vmatpush1.msra.mxu0 0.0
    %864 = vmatprep.subr.mxu0 0.0
    %865 = vmatpush1.msra.mxu0 0.0
    %866 = vmatprep.subr.mxu0 0.0
    %867 = vmatpush1.msra.mxu0 0.0
    %868 = vmatprep.subr.mxu0 0.0
    %869 = vmatpush1.msra.mxu0 0.0
    %870 = vmatprep.subr.mxu0 0.0
    %871 = vmatpush1.msra.mxu0 0.0
    %872 = vmatprep.subr.mxu0 0.0
    %873 = vmatpush1.msra.mxu0 0.0
    %874 = vmatprep.subr.mxu0 0.0
    %875 = vmatpush1.msra.mxu0 0.0
    %876 = vmatprep.subr.mxu0 0.0
    %877 = vmatpush1.msra.mxu0 0.0
    %878 = vmatprep.subr.mxu0 0.0
    %879 = vmatpush1.msra.mxu0 0.0
    %880 = vmatprep.subr.mxu0 0.0
    %881 = vmatpush1.msra.mxu0 0.0
    %882 = vmatprep.subr.mxu0 0.0
    %883 = vmatpush1.msra.mxu0 0.0
    %884 = vmatprep.subr.mxu0 0.0
    %885 = vmatpush1.msra.mxu0 0.0
    %886 = vmatprep.subr.mxu0 0.0
    %887 = vmatpush1.msra.mxu0 0.0
    %888 = vmatprep.subr.mxu0 0.0
    %889 = vmatpush1.msra.mxu0 0.0
    %890 = vmatprep.mubr.f32.mxu0 0.0
    %891 = vmatmul.mubr.f32.gmra.mrb[0].mxu0 %v824
    %v892 = vpop.f32.mrb[0].mxu0
    %v893 = vadd.f32 0.0, %v892
    %v894 = vpop.f32.mrb[0].mxu0
    %895 = vdwg.mxu0
    %v896 = vadd.f32 %v822, %v893
    %v897 = vtanh.pop %v896
    %v898 = vsel %vm250, %v671, %v726
    %v900 = vsel %vm267, %v897, 0
    %902 = vmatprep.subr.mxu0 0.0
    %903 = vmatpush1.msra.mxu0 %v739
    %904 = vmatprep.subr.mxu0 0.0
    %905 = vmatpush1.msra.mxu0 %v740
    %906 = vmatprep.subr.mxu0 0.0
    %907 = vmatpush1.msra.mxu0 %v741
    %908 = vmatprep.subr.mxu0 0.0
    %909 = vmatpush1.msra.mxu0 %v742
    %910 = vmatprep.subr.mxu0 0.0
    %911 = vmatpush1.msra.mxu0 %v743
    %912 = vmatprep.subr.mxu0 0.0
    %913 = vmatpush1.msra.mxu0 %v744
    %914 = vmatprep.subr.mxu0 0.0
    %915 = vmatpush1.msra.mxu0 %v745
    %916 = vmatprep.subr.mxu0 0.0
    %917 = vmatpush1.msra.mxu0 %v746
    %918 = vmatprep.subr.mxu0 0.0
    %919 = vmatpush1.msra.mxu0 0.0
    %920 = vmatprep.subr.mxu0 0.0
    %921 = vmatpush1.msra.mxu0 0.0
    %922 = vmatprep.subr.mxu0 0.0
    %923 = vmatpush1.msra.mxu0 0.0
    %924 = vmatprep.subr.mxu0 0.0
    %925 = vmatpush1.msra.mxu0 0.0
    %926 = vmatprep.subr.mxu0 0.0
    %927 = vmatpush1.msra.mxu0 0.0
    %928 = vmatprep.subr.mxu0 0.0
    %929 = vmatpush1.msra.mxu0 0.0
    %930 = vmatprep.subr.mxu0 0.0
    %931 = vmatpush1.msra.mxu0 0.0
    %932 = vmatprep.subr.mxu0 0.0
    %933 = vmatpush1.msra.mxu0 0.0
    %934 = vmatprep.subr.mxu0 0.0
    %935 = vmatpush1.msra.mxu0 0.0
    %936 = vmatprep.subr.mxu0 0.0
    %937 = vmatpush1.msra.mxu0 0.0
    %938 = vmatprep.subr.mxu0 0.0
    %939 = vmatpush1.msra.mxu0 0.0
    %940 = vmatprep.subr.mxu0 0.0
    %941 = vmatpush1.msra.mxu0 0.0
    %942 = vmatprep.subr.mxu0 0.0
    %943 = vmatpush1.msra.mxu0 0.0
    %944 = vmatprep.subr.mxu0 0.0
    %945 = vmatpush1.msra.mxu0 0.0
    %946 = vmatprep.subr.mxu0 0.0
    %947 = vmatpush1.msra.mxu0 0.0
    %948 = vmatprep.subr.mxu0 0.0
    %949 = vmatpush1.msra.mxu0 0.0
    %950 = vmatprep.subr.mxu0 0.0
    %951 = vmatpush1.msra.mxu0 0.0
    %952 = vmatprep.subr.mxu0 0.0
    %953 = vmatpush1.msra.mxu0 0.0
    %954 = vmatprep.subr.mxu0 0.0
    %955 = vmatpush1.msra.mxu0 0.0
    %956 = vmatprep.subr.mxu0 0.0
    %957 = vmatpush1.msra.mxu0 0.0
    %958 = vmatprep.subr.mxu0 0.0
    %959 = vmatpush1.msra.mxu0 0.0
    %960 = vmatprep.subr.mxu0 0.0
    %961 = vmatpush1.msra.mxu0 0.0
    %962 = vmatprep.subr.mxu0 0.0
    %963 = vmatpush1.msra.mxu0 0.0
    %964 = vmatprep.subr.mxu0 0.0
    %965 = vmatpush1.msra.mxu0 0.0
    %966 = vmatprep.mubr.f32.mxu0 0.0
    %967 = vmatmul.mubr.f32.gmra.mrb[0].mxu0 %v900
    %v968 = vpop.f32.mrb[0].mxu0
    %v969 = vadd.f32 0.0, %v968
    %v970 = vpop.f32.mrb[0].mxu0
    %971 = vdwg.mxu0
    %v972 = vadd.f32 %v898, %v969
    %v973 = vtanh.pop %v972
    %v974 = vsel %vm250, %v676, %v721
    %v976 = vsel %vm267, %v973, 0
    %978 = vmatprep.subr.mxu0 0.0
    %979 = vmatpush1.msra.mxu0 %v739
    %980 = vmatprep.subr.mxu0 0.0
    %981 = vmatpush1.msra.mxu0 %v740
    %982 = vmatprep.subr.mxu0 0.0
    %983 = vmatpush1.msra.mxu0 %v741
    %984 = vmatprep.subr.mxu0 0.0
    %985 = vmatpush1.msra.mxu0 %v742
    %986 = vmatprep.subr.mxu0 0.0
    %987 = vmatpush1.msra.mxu0 %v743
    %988 = vmatprep.subr.mxu0 0.0
    %989 = vmatpush1.msra.mxu0 %v744
    %990 = vmatprep.subr.mxu0 0.0
    %991 = vmatpush1.msra.mxu0 %v745
    %992 = vmatprep.subr.mxu0 0.0
    %993 = vmatpush1.msra.mxu0 %v746
    %994 = vmatprep.subr.mxu0 0.0
    %995 = vmatpush1.msra.mxu0 0.0
    %996 = vmatprep.subr.mxu0 0.0
    %997 = vmatpush1.msra.mxu0 0.0
    %998 = vmatprep.subr.mxu0 0.0
    %999 = vmatpush1.msra.mxu0 0.0
    %1000 = vmatprep.subr.mxu0 0.0
    %1001 = vmatpush1.msra.mxu0 0.0
    %1002 = vmatprep.subr.mxu0 0.0
    %1003 = vmatpush1.msra.mxu0 0.0
    %1004 = vmatprep.subr.mxu0 0.0
    %1005 = vmatpush1.msra.mxu0 0.0
    %1006 = vmatprep.subr.mxu0 0.0
    %1007 = vmatpush1.msra.mxu0 0.0
    %1008 = vmatprep.subr.mxu0 0.0
    %1009 = vmatpush1.msra.mxu0 0.0
    %1010 = vmatprep.subr.mxu0 0.0
    %1011 = vmatpush1.msra.mxu0 0.0
    %1012 = vmatprep.subr.mxu0 0.0
    %1013 = vmatpush1.msra.mxu0 0.0
    %1014 = vmatprep.subr.mxu0 0.0
    %1015 = vmatpush1.msra.mxu0 0.0
    %1016 = vmatprep.subr.mxu0 0.0
    %1017 = vmatpush1.msra.mxu0 0.0
    %1018 = vmatprep.subr.mxu0 0.0
    %1019 = vmatpush1.msra.mxu0 0.0
    %1020 = vmatprep.subr.mxu0 0.0
    %1021 = vmatpush1.msra.mxu0 0.0
    %1022 = vmatprep.subr.mxu0 0.0
    %1023 = vmatpush1.msra.mxu0 0.0
    %1024 = vmatprep.subr.mxu0 0.0
    %1025 = vmatpush1.msra.mxu0 0.0
    %1026 = vmatprep.subr.mxu0 0.0
    %1027 = vmatpush1.msra.mxu0 0.0
    %1028 = vmatprep.subr.mxu0 0.0
    %1029 = vmatpush1.msra.mxu0 0.0
    %1030 = vmatprep.subr.mxu0 0.0
    %1031 = vmatpush1.msra.mxu0 0.0
    %1032 = vmatprep.subr.mxu0 0.0
    %1033 = vmatpush1.msra.mxu0 0.0
    %1034 = vmatprep.subr.mxu0 0.0
    %1035 = vmatpush1.msra.mxu0 0.0
    %1036 = vmatprep.subr.mxu0 0.0
    %1037 = vmatpush1.msra.mxu0 0.0
    %1038 = vmatprep.subr.mxu0 0.0
    %1039 = vmatpush1.msra.mxu0 0.0
    %1040 = vmatprep.subr.mxu0 0.0
    %1041 = vmatpush1.msra.mxu0 0.0
    %1042 = vmatprep.mubr.f32.mxu0 0.0
    %1043 = vmatmul.mubr.f32.gmra.mrb[0].mxu0 %v976
    %v1044 = vpop.f32.mrb[0].mxu0
    %v1045 = vadd.f32 0.0, %v1044
    %v1046 = vpop.f32.mrb[0].mxu0
    %1047 = vdwg.mxu0
    %v1048 = vadd.f32 %v974, %v1045
    %v1049 = vtanh.pop %v1048
    %v1050 = vsel %vm250, %v681, %v716
    %v1052 = vsel %vm267, %v1049, 0
    %1054 = vmatprep.subr.mxu0 0.0
    %1055 = vmatpush1.msra.mxu0 %v739
    %1056 = vmatprep.subr.mxu0 0.0
    %1057 = vmatpush1.msra.mxu0 %v740
    %1058 = vmatprep.subr.mxu0 0.0
    %1059 = vmatpush1.msra.mxu0 %v741
    %1060 = vmatprep.subr.mxu0 0.0
    %1061 = vmatpush1.msra.mxu0 %v742
    %1062 = vmatprep.subr.mxu0 0.0
    %1063 = vmatpush1.msra.mxu0 %v743
    %1064 = vmatprep.subr.mxu0 0.0
    %1065 = vmatpush1.msra.mxu0 %v744
    %1066 = vmatprep.subr.mxu0 0.0
    %1067 = vmatpush1.msra.mxu0 %v745
    %1068 = vmatprep.subr.mxu0 0.0
    %1069 = vmatpush1.msra.mxu0 %v746
    %1070 = vmatprep.subr.mxu0 0.0
    %1071 = vmatpush1.msra.mxu0 0.0
    %1072 = vmatprep.subr.mxu0 0.0
    %1073 = vmatpush1.msra.mxu0 0.0
    %1074 = vmatprep.subr.mxu0 0.0
    %1075 = vmatpush1.msra.mxu0 0.0
    %1076 = vmatprep.subr.mxu0 0.0
    %1077 = vmatpush1.msra.mxu0 0.0
    %1078 = vmatprep.subr.mxu0 0.0
    %1079 = vmatpush1.msra.mxu0 0.0
    %1080 = vmatprep.subr.mxu0 0.0
    %1081 = vmatpush1.msra.mxu0 0.0
    %1082 = vmatprep.subr.mxu0 0.0
    %1083 = vmatpush1.msra.mxu0 0.0
    %1084 = vmatprep.subr.mxu0 0.0
    %1085 = vmatpush1.msra.mxu0 0.0
    %1086 = vmatprep.subr.mxu0 0.0
    %1087 = vmatpush1.msra.mxu0 0.0
    %1088 = vmatprep.subr.mxu0 0.0
    %1089 = vmatpush1.msra.mxu0 0.0
    %1090 = vmatprep.subr.mxu0 0.0
    %1091 = vmatpush1.msra.mxu0 0.0
    %1092 = vmatprep.subr.mxu0 0.0
    %1093 = vmatpush1.msra.mxu0 0.0
    %1094 = vmatprep.subr.mxu0 0.0
    %1095 = vmatpush1.msra.mxu0 0.0
    %1096 = vmatprep.subr.mxu0 0.0
    %1097 = vmatpush1.msra.mxu0 0.0
    %1098 = vmatprep.subr.mxu0 0.0
    %1099 = vmatpush1.msra.mxu0 0.0
    %1100 = vmatprep.subr.mxu0 0.0
    %1101 = vmatpush1.msra.mxu0 0.0
    %1102 = vmatprep.subr.mxu0 0.0
    %1103 = vmatpush1.msra.mxu0 0.0
    %1104 = vmatprep.subr.mxu0 0.0
    %1105 = vmatpush1.msra.mxu0 0.0
    %1106 = vmatprep.subr.mxu0 0.0
    %1107 = vmatpush1.msra.mxu0 0.0
    %1108 = vmatprep.subr.mxu0 0.0
    %1109 = vmatpush1.msra.mxu0 0.0
    %1110 = vmatprep.subr.mxu0 0.0
    %1111 = vmatpush1.msra.mxu0 0.0
    %1112 = vmatprep.subr.mxu0 0.0
    %1113 = vmatpush1.msra.mxu0 0.0
    %1114 = vmatprep.subr.mxu0 0.0
    %1115 = vmatpush1.msra.mxu0 0.0
    %1116 = vmatprep.subr.mxu0 0.0
    %1117 = vmatpush1.msra.mxu0 0.0
    %1118 = vmatprep.mubr.f32.mxu0 0.0
    %1119 = vmatmul.mubr.f32.gmra.mrb[0].mxu0 %v1052
    %v1120 = vpop.f32.mrb[0].mxu0
    %v1121 = vadd.f32 0.0, %v1120
    %v1122 = vpop.f32.mrb[0].mxu0
    %1123 = vdwg.mxu0
    %v1124 = vadd.f32 %v1050, %v1121
    %v1125 = vtanh.pop %v1124
    %v1126 = vsel %vm250, %v686, %v711
    %v1128 = vsel %vm267, %v1125, 0
    %1130 = vmatprep.subr.mxu0 0.0
    %1131 = vmatpush1.msra.mxu0 %v739
    %1132 = vmatprep.subr.mxu0 0.0
    %1133 = vmatpush1.msra.mxu0 %v740
    %1134 = vmatprep.subr.mxu0 0.0
    %1135 = vmatpush1.msra.mxu0 %v741
    %1136 = vmatprep.subr.mxu0 0.0
    %1137 = vmatpush1.msra.mxu0 %v742
    %1138 = vmatprep.subr.mxu0 0.0
    %1139 = vmatpush1.msra.mxu0 %v743
    %1140 = vmatprep.subr.mxu0 0.0
    %1141 = vmatpush1.msra.mxu0 %v744
    %1142 = vmatprep.subr.mxu0 0.0
    %1143 = vmatpush1.msra.mxu0 %v745
    %1144 = vmatprep.subr.mxu0 0.0
    %1145 = vmatpush1.msra.mxu0 %v746
    %1146 = vmatprep.subr.mxu0 0.0
    %1147 = vmatpush1.msra.mxu0 0.0
    %1148 = vmatprep.subr.mxu0 0.0
    %1149 = vmatpush1.msra.mxu0 0.0
    %1150 = vmatprep.subr.mxu0 0.0
    %1151 = vmatpush1.msra.mxu0 0.0
    %1152 = vmatprep.subr.mxu0 0.0
    %1153 = vmatpush1.msra.mxu0 0.0
    %1154 = vmatprep.subr.mxu0 0.0
    %1155 = vmatpush1.msra.mxu0 0.0
    %1156 = vmatprep.subr.mxu0 0.0
    %1157 = vmatpush1.msra.mxu0 0.0
    %1158 = vmatprep.subr.mxu0 0.0
    %1159 = vmatpush1.msra.mxu0 0.0
    %1160 = vmatprep.subr.mxu0 0.0
    %1161 = vmatpush1.msra.mxu0 0.0
    %1162 = vmatprep.subr.mxu0 0.0
    %1163 = vmatpush1.msra.mxu0 0.0
    %1164 = vmatprep.subr.mxu0 0.0
    %1165 = vmatpush1.msra.mxu0 0.0
    %1166 = vmatprep.subr.mxu0 0.0
    %1167 = vmatpush1.msra.mxu0 0.0
    %1168 = vmatprep.subr.mxu0 0.0
    %1169 = vmatpush1.msra.mxu0 0.0
    %1170 = vmatprep.subr.mxu0 0.0
    %1171 = vmatpush1.msra.mxu0 0.0
    %1172 = vmatprep.subr.mxu0 0.0
    %1173 = vmatpush1.msra.mxu0 0.0
    %1174 = vmatprep.subr.mxu0 0.0
    %1175 = vmatpush1.msra.mxu0 0.0
    %1176 = vmatprep.subr.mxu0 0.0
    %1177 = vmatpush1.msra.mxu0 0.0
    %1178 = vmatprep.subr.mxu0 0.0
    %1179 = vmatpush1.msra.mxu0 0.0
    %1180 = vmatprep.subr.mxu0 0.0
    %1181 = vmatpush1.msra.mxu0 0.0
    %1182 = vmatprep.subr.mxu0 0.0
    %1183 = vmatpush1.msra.mxu0 0.0
    %1184 = vmatprep.subr.mxu0 0.0
    %1185 = vmatpush1.msra.mxu0 0.0
    %1186 = vmatprep.subr.mxu0 0.0
    %1187 = vmatpush1.msra.mxu0 0.0
    %1188 = vmatprep.subr.mxu0 0.0
    %1189 = vmatpush1.msra.mxu0 0.0
    %1190 = vmatprep.subr.mxu0 0.0
    %1191 = vmatpush1.msra.mxu0 0.0
    %1192 = vmatprep.subr.mxu0 0.0
    %1193 = vmatpush1.msra.mxu0 0.0
    %1194 = vmatprep.mubr.f32.mxu0 0.0
    %1195 = vmatmul.mubr.f32.gmra.mrb[0].mxu0 %v1128
    %v1196 = vpop.f32.mrb[0].mxu0
    %v1197 = vadd.f32 0.0, %v1196
    %v1198 = vpop.f32.mrb[0].mxu0
    %1199 = vdwg.mxu0
    %v1200 = vadd.f32 %v1126, %v1197
    %v1201 = vtanh.pop %v1200
    %v1202 = vsel %vm250, %v691, %v706
    %v1204 = vsel %vm267, %v1201, 0
    %1206 = vmatprep.subr.mxu0 0.0
    %1207 = vmatpush1.msra.mxu0 %v739
    %1208 = vmatprep.subr.mxu0 0.0
    %1209 = vmatpush1.msra.mxu0 %v740
    %1210 = vmatprep.subr.mxu0 0.0
    %1211 = vmatpush1.msra.mxu0 %v741
    %1212 = vmatprep.subr.mxu0 0.0
    %1213 = vmatpush1.msra.mxu0 %v742
    %1214 = vmatprep.subr.mxu0 0.0
    %1215 = vmatpush1.msra.mxu0 %v743
    %1216 = vmatprep.subr.mxu0 0.0
    %1217 = vmatpush1.msra.mxu0 %v744
    %1218 = vmatprep.subr.mxu0 0.0
    %1219 = vmatpush1.msra.mxu0 %v745
    %1220 = vmatprep.subr.mxu0 0.0
    %1221 = vmatpush1.msra.mxu0 %v746
    %1222 = vmatprep.subr.mxu0 0.0
    %1223 = vmatpush1.msra.mxu0 0.0
    %1224 = vmatprep.subr.mxu0 0.0
    %1225 = vmatpush1.msra.mxu0 0.0
    %1226 = vmatprep.subr.mxu0 0.0
    %1227 = vmatpush1.msra.mxu0 0.0
    %1228 = vmatprep.subr.mxu0 0.0
    %1229 = vmatpush1.msra.mxu0 0.0
    %1230 = vmatprep.subr.mxu0 0.0
    %1231 = vmatpush1.msra.mxu0 0.0
    %1232 = vmatprep.subr.mxu0 0.0
    %1233 = vmatpush1.msra.mxu0 0.0
    %1234 = vmatprep.subr.mxu0 0.0
    %1235 = vmatpush1.msra.mxu0 0.0
    %1236 = vmatprep.subr.mxu0 0.0
    %1237 = vmatpush1.msra.mxu0 0.0
    %1238 = vmatprep.subr.mxu0 0.0
    %1239 = vmatpush1.msra.mxu0 0.0
    %1240 = vmatprep.subr.mxu0 0.0
    %1241 = vmatpush1.msra.mxu0 0.0
    %1242 = vmatprep.subr.mxu0 0.0
    %1243 = vmatpush1.msra.mxu0 0.0
    %1244 = vmatprep.subr.mxu0 0.0
    %1245 = vmatpush1.msra.mxu0 0.0
    %1246 = vmatprep.subr.mxu0 0.0
    %1247 = vmatpush1.msra.mxu0 0.0
    %1248 = vmatprep.subr.mxu0 0.0
    %1249 = vmatpush1.msra.mxu0 0.0
    %1250 = vmatprep.subr.mxu0 0.0
    %1251 = vmatpush1.msra.mxu0 0.0
    %1252 = vmatprep.subr.mxu0 0.0
    %1253 = vmatpush1.msra.mxu0 0.0
    %1254 = vmatprep.subr.mxu0 0.0
    %1255 = vmatpush1.msra.mxu0 0.0
    %1256 = vmatprep.subr.mxu0 0.0
    %1257 = vmatpush1.msra.mxu0 0.0
    %1258 = vmatprep.subr.mxu0 0.0
    %1259 = vmatpush1.msra.mxu0 0.0
    %1260 = vmatprep.subr.mxu0 0.0
    %1261 = vmatpush1.msra.mxu0 0.0
    %1262 = vmatprep.subr.mxu0 0.0
    %1263 = vmatpush1.msra.mxu0 0.0
    %1264 = vmatprep.subr.mxu0 0.0
    %1265 = vmatpush1.msra.mxu0 0.0
    %1266 = vmatprep.subr.mxu0 0.0
    %1267 = vmatpush1.msra.mxu0 0.0
    %1268 = vmatprep.subr.mxu0 0.0
    %1269 = vmatpush1.msra.mxu0 0.0
    %1270 = vmatprep.mubr.f32.mxu0 0.0
    %1271 = vmatmul.mubr.f32.gmra.mrb[0].mxu0 %v1204
    %v1272 = vpop.f32.mrb[0].mxu0
    %v1273 = vadd.f32 0.0, %v1272
    %v1274 = vpop.f32.mrb[0].mxu0
    %1275 = vdwg.mxu0
    %v1276 = vadd.f32 %v1202, %v1273
    %v1277 = vtanh.pop %v1276
    %v1278 = vsel %vm250, %v696, %v701
    %v1280 = vsel %vm267, %v1277, 0
    %1282 = vmatprep.subr.mxu0 0.0
    %1283 = vmatpush1.msra.mxu0 %v739
    %1284 = vmatprep.subr.mxu0 0.0
    %1285 = vmatpush1.msra.mxu0 %v740
    %1286 = vmatprep.subr.mxu0 0.0
    %1287 = vmatpush1.msra.mxu0 %v741
    %1288 = vmatprep.subr.mxu0 0.0
    %1289 = vmatpush1.msra.mxu0 %v742
    %1290 = vmatprep.subr.mxu0 0.0
    %1291 = vmatpush1.msra.mxu0 %v743
    %1292 = vmatprep.subr.mxu0 0.0
    %1293 = vmatpush1.msra.mxu0 %v744
    %1294 = vmatprep.subr.mxu0 0.0
    %1295 = vmatpush1.msra.mxu0 %v745
    %1296 = vmatprep.subr.mxu0 0.0
    %1297 = vmatpush1.msra.mxu0 %v746
    %1298 = vmatprep.subr.mxu0 0.0
    %1299 = vmatpush1.msra.mxu0 0.0
    %1300 = vmatprep.subr.mxu0 0.0
    %1301 = vmatpush1.msra.mxu0 0.0
    %1302 = vmatprep.subr.mxu0 0.0
    %1303 = vmatpush1.msra.mxu0 0.0
    %1304 = vmatprep.subr.mxu0 0.0
    %1305 = vmatpush1.msra.mxu0 0.0
    %1306 = vmatprep.subr.mxu0 0.0
    %1307 = vmatpush1.msra.mxu0 0.0
    %1308 = vmatprep.subr.mxu0 0.0
    %1309 = vmatpush1.msra.mxu0 0.0
    %1310 = vmatprep.subr.mxu0 0.0
    %1311 = vmatpush1.msra.mxu0 0.0
    %1312 = vmatprep.subr.mxu0 0.0
    %1313 = vmatpush1.msra.mxu0 0.0
    %1314 = vmatprep.subr.mxu0 0.0
    %1315 = vmatpush1.msra.mxu0 0.0
    %1316 = vmatprep.subr.mxu0 0.0
    %1317 = vmatpush1.msra.mxu0 0.0
    %1318 = vmatprep.subr.mxu0 0.0
    %1319 = vmatpush1.msra.mxu0 0.0
    %1320 = vmatprep.subr.mxu0 0.0
    %1321 = vmatpush1.msra.mxu0 0.0
    %1322 = vmatprep.subr.mxu0 0.0
    %1323 = vmatpush1.msra.mxu0 0.0
    %1324 = vmatprep.subr.mxu0 0.0
    %1325 = vmatpush1.msra.mxu0 0.0
    %1326 = vmatprep.subr.mxu0 0.0
    %1327 = vmatpush1.msra.mxu0 0.0
    %1328 = vmatprep.subr.mxu0 0.0
    %1329 = vmatpush1.msra.mxu0 0.0
    %1330 = vmatprep.subr.mxu0 0.0
    %1331 = vmatpush1.msra.mxu0 0.0
    %1332 = vmatprep.subr.mxu0 0.0
    %1333 = vmatpush1.msra.mxu0 0.0
    %1334 = vmatprep.subr.mxu0 0.0
    %1335 = vmatpush1.msra.mxu0 0.0
    %1336 = vmatprep.subr.mxu0 0.0
    %1337 = vmatpush1.msra.mxu0 0.0
    %1338 = vmatprep.subr.mxu0 0.0
    %1339 = vmatpush1.msra.mxu0 0.0
    %1340 = vmatprep.subr.mxu0 0.0
    %1341 = vmatpush1.msra.mxu0 0.0
    %1342 = vmatprep.subr.mxu0 0.0
    %1343 = vmatpush1.msra.mxu0 0.0
    %1344 = vmatprep.subr.mxu0 0.0
    %1345 = vmatpush1.msra.mxu0 0.0
    %1346 = vmatprep.mubr.f32.mxu0 0.0
    %1347 = vmatmul.mubr.f32.gmra.mrb[0].mxu0 %v1280
    %v1348 = vpop.f32.mrb[0].mxu0
    %v1349 = vadd.f32 0.0, %v1348
    %v1350 = vpop.f32.mrb[0].mxu0
    %1351 = vdwg.mxu0
    %v1352 = vadd.f32 %v1278, %v1349
    %v1353 = vtanh.pop %v1352
    %v1354 = vsel %vm250, %v701, %v696
    %v1356 = vsel %vm267, %v1353, 0
    %1358 = vmatprep.subr.mxu0 0.0
    %1359 = vmatpush1.msra.mxu0 %v739
    %1360 = vmatprep.subr.mxu0 0.0
    %1361 = vmatpush1.msra.mxu0 %v740
    %1362 = vmatprep.subr.mxu0 0.0
    %1363 = vmatpush1.msra.mxu0 %v741
    %1364 = vmatprep.subr.mxu0 0.0
    %1365 = vmatpush1.msra.mxu0 %v742
    %1366 = vmatprep.subr.mxu0 0.0
    %1367 = vmatpush1.msra.mxu0 %v743
    %1368 = vmatprep.subr.mxu0 0.0
    %1369 = vmatpush1.msra.mxu0 %v744
    %1370 = vmatprep.subr.mxu0 0.0
    %1371 = vmatpush1.msra.mxu0 %v745
    %1372 = vmatprep.subr.mxu0 0.0
    %1373 = vmatpush1.msra.mxu0 %v746
    %1374 = vmatprep.subr.mxu0 0.0
    %1375 = vmatpush1.msra.mxu0 0.0
    %1376 = vmatprep.subr.mxu0 0.0
    %1377 = vmatpush1.msra.mxu0 0.0
    %1378 = vmatprep.subr.mxu0 0.0
    %1379 = vmatpush1.msra.mxu0 0.0
    %1380 = vmatprep.subr.mxu0 0.0
    %1381 = vmatpush1.msra.mxu0 0.0
    %1382 = vmatprep.subr.mxu0 0.0
    %1383 = vmatpush1.msra.mxu0 0.0
    %1384 = vmatprep.subr.mxu0 0.0
    %1385 = vmatpush1.msra.mxu0 0.0
    %1386 = vmatprep.subr.mxu0 0.0
    %1387 = vmatpush1.msra.mxu0 0.0
    %1388 = vmatprep.subr.mxu0 0.0
    %1389 = vmatpush1.msra.mxu0 0.0
    %1390 = vmatprep.subr.mxu0 0.0
    %1391 = vmatpush1.msra.mxu0 0.0
    %1392 = vmatprep.subr.mxu0 0.0
    %1393 = vmatpush1.msra.mxu0 0.0
    %1394 = vmatprep.subr.mxu0 0.0
    %1395 = vmatpush1.msra.mxu0 0.0
    %1396 = vmatprep.subr.mxu0 0.0
    %1397 = vmatpush1.msra.mxu0 0.0
    %1398 = vmatprep.subr.mxu0 0.0
    %1399 = vmatpush1.msra.mxu0 0.0
    %1400 = vmatprep.subr.mxu0 0.0
    %1401 = vmatpush1.msra.mxu0 0.0
    %1402 = vmatprep.subr.mxu0 0.0
    %1403 = vmatpush1.msra.mxu0 0.0
    %1404 = vmatprep.subr.mxu0 0.0
    %1405 = vmatpush1.msra.mxu0 0.0
    %1406 = vmatprep.subr.mxu0 0.0
    %1407 = vmatpush1.msra.mxu0 0.0
    %1408 = vmatprep.subr.mxu0 0.0
    %1409 = vmatpush1.msra.mxu0 0.0
    %1410 = vmatprep.subr.mxu0 0.0
    %1411 = vmatpush1.msra.mxu0 0.0
    %1412 = vmatprep.subr.mxu0 0.0
    %1413 = vmatpush1.msra.mxu0 0.0
    %1414 = vmatprep.subr.mxu0 0.0
    %1415 = vmatpush1.msra.mxu0 0.0
    %1416 = vmatprep.subr.mxu0 0.0
    %1417 = vmatpush1.msra.mxu0 0.0
    %1418 = vmatprep.subr.mxu0 0.0
    %1419 = vmatpush1.msra.mxu0 0.0
    %1420 = vmatprep.subr.mxu0 0.0
    %1421 = vmatpush1.msra.mxu0 0.0
    %1422 = vmatprep.mubr.f32.mxu0 0.0
    %1423 = vmatmul.mubr.f32.gmra.mrb[0].mxu0 %v1356
    %v1424 = vpop.f32.mrb[0].mxu0
    %v1425 = vadd.f32 0.0, %v1424
    %v1426 = vpop.f32.mrb[0].mxu0
    %1427 = vdwg.mxu0
    %v1428 = vadd.f32 %v1354, %v1425
    %v1429 = vtanh.pop %v1428
    %v1430 = vsel %vm250, %v706, %v691
    %v1432 = vsel %vm267, %v1429, 0
    %1434 = vmatprep.subr.mxu0 0.0
    %1435 = vmatpush1.msra.mxu0 %v739
    %1436 = vmatprep.subr.mxu0 0.0
    %1437 = vmatpush1.msra.mxu0 %v740
    %1438 = vmatprep.subr.mxu0 0.0
    %1439 = vmatpush1.msra.mxu0 %v741
    %1440 = vmatprep.subr.mxu0 0.0
    %1441 = vmatpush1.msra.mxu0 %v742
    %1442 = vmatprep.subr.mxu0 0.0
    %1443 = vmatpush1.msra.mxu0 %v743
    %1444 = vmatprep.subr.mxu0 0.0
    %1445 = vmatpush1.msra.mxu0 %v744
    %1446 = vmatprep.subr.mxu0 0.0
    %1447 = vmatpush1.msra.mxu0 %v745
    %1448 = vmatprep.subr.mxu0 0.0
    %1449 = vmatpush1.msra.mxu0 %v746
    %1450 = vmatprep.subr.mxu0 0.0
    %1451 = vmatpush1.msra.mxu0 0.0
    %1452 = vmatprep.subr.mxu0 0.0
    %1453 = vmatpush1.msra.mxu0 0.0
    %1454 = vmatprep.subr.mxu0 0.0
    %1455 = vmatpush1.msra.mxu0 0.0
    %1456 = vmatprep.subr.mxu0 0.0
    %1457 = vmatpush1.msra.mxu0 0.0
    %1458 = vmatprep.subr.mxu0 0.0
    %1459 = vmatpush1.msra.mxu0 0.0
    %1460 = vmatprep.subr.mxu0 0.0
    %1461 = vmatpush1.msra.mxu0 0.0
    %1462 = vmatprep.subr.mxu0 0.0
    %1463 = vmatpush1.msra.mxu0 0.0
    %1464 = vmatprep.subr.mxu0 0.0
    %1465 = vmatpush1.msra.mxu0 0.0
    %1466 = vmatprep.subr.mxu0 0.0
    %1467 = vmatpush1.msra.mxu0 0.0
    %1468 = vmatprep.subr.mxu0 0.0
    %1469 = vmatpush1.msra.mxu0 0.0
    %1470 = vmatprep.subr.mxu0 0.0
    %1471 = vmatpush1.msra.mxu0 0.0
    %1472 = vmatprep.subr.mxu0 0.0
    %1473 = vmatpush1.msra.mxu0 0.0
    %1474 = vmatprep.subr.mxu0 0.0
    %1475 = vmatpush1.msra.mxu0 0.0
    %1476 = vmatprep.subr.mxu0 0.0
    %1477 = vmatpush1.msra.mxu0 0.0
    %1478 = vmatprep.subr.mxu0 0.0
    %1479 = vmatpush1.msra.mxu0 0.0
    %1480 = vmatprep.subr.mxu0 0.0
    %1481 = vmatpush1.msra.mxu0 0.0
    %1482 = vmatprep.subr.mxu0 0.0
    %1483 = vmatpush1.msra.mxu0 0.0
    %1484 = vmatprep.subr.mxu0 0.0
    %1485 = vmatpush1.msra.mxu0 0.0
    %1486 = vmatprep.subr.mxu0 0.0
    %1487 = vmatpush1.msra.mxu0 0.0
    %1488 = vmatprep.subr.mxu0 0.0
    %1489 = vmatpush1.msra.mxu0 0.0
    %1490 = vmatprep.subr.mxu0 0.0
    %1491 = vmatpush1.msra.mxu0 0.0
    %1492 = vmatprep.subr.mxu0 0.0
    %1493 = vmatpush1.msra.mxu0 0.0
    %1494 = vmatprep.subr.mxu0 0.0
    %1495 = vmatpush1.msra.mxu0 0.0
    %1496 = vmatprep.subr.mxu0 0.0
    %1497 = vmatpush1.msra.mxu0 0.0
    %1498 = vmatprep.mubr.f32.mxu0 0.0
    %1499 = vmatmul.mubr.f32.gmra.mrb[0].mxu0 %v1432
    %v1500 = vpop.f32.mrb[0].mxu0
    %v1501 = vadd.f32 0.0, %v1500
    %v1502 = vpop.f32.mrb[0].mxu0
    %1503 = vdwg.mxu0
    %v1504 = vadd.f32 %v1430, %v1501
    %v1505 = vtanh.pop %v1504
    %v1506 = vsel %vm250, %v711, %v686
    %v1508 = vsel %vm267, %v1505, 0
    %1510 = vmatprep.subr.mxu0 0.0
    %1511 = vmatpush1.msra.mxu0 %v739
    %1512 = vmatprep.subr.mxu0 0.0
    %1513 = vmatpush1.msra.mxu0 %v740
    %1514 = vmatprep.subr.mxu0 0.0
    %1515 = vmatpush1.msra.mxu0 %v741
    %1516 = vmatprep.subr.mxu0 0.0
    %1517 = vmatpush1.msra.mxu0 %v742
    %1518 = vmatprep.subr.mxu0 0.0
    %1519 = vmatpush1.msra.mxu0 %v743
    %1520 = vmatprep.subr.mxu0 0.0
    %1521 = vmatpush1.msra.mxu0 %v744
    %1522 = vmatprep.subr.mxu0 0.0
    %1523 = vmatpush1.msra.mxu0 %v745
    %1524 = vmatprep.subr.mxu0 0.0
    %1525 = vmatpush1.msra.mxu0 %v746
    %1526 = vmatprep.subr.mxu0 0.0
    %1527 = vmatpush1.msra.mxu0 0.0
    %1528 = vmatprep.subr.mxu0 0.0
    %1529 = vmatpush1.msra.mxu0 0.0
    %1530 = vmatprep.subr.mxu0 0.0
    %1531 = vmatpush1.msra.mxu0 0.0
    %1532 = vmatprep.subr.mxu0 0.0
    %1533 = vmatpush1.msra.mxu0 0.0
    %1534 = vmatprep.subr.mxu0 0.0
    %1535 = vmatpush1.msra.mxu0 0.0
    %1536 = vmatprep.subr.mxu0 0.0
    %1537 = vmatpush1.msra.mxu0 0.0
    %1538 = vmatprep.subr.mxu0 0.0
    %1539 = vmatpush1.msra.mxu0 0.0
    %1540 = vmatprep.subr.mxu0 0.0
    %1541 = vmatpush1.msra.mxu0 0.0
    %1542 = vmatprep.subr.mxu0 0.0
    %1543 = vmatpush1.msra.mxu0 0.0
    %1544 = vmatprep.subr.mxu0 0.0
    %1545 = vmatpush1.msra.mxu0 0.0
    %1546 = vmatprep.subr.mxu0 0.0
    %1547 = vmatpush1.msra.mxu0 0.0
    %1548 = vmatprep.subr.mxu0 0.0
    %1549 = vmatpush1.msra.mxu0 0.0
    %1550 = vmatprep.subr.mxu0 0.0
    %1551 = vmatpush1.msra.mxu0 0.0
    %1552 = vmatprep.subr.mxu0 0.0
    %1553 = vmatpush1.msra.mxu0 0.0
    %1554 = vmatprep.subr.mxu0 0.0
    %1555 = vmatpush1.msra.mxu0 0.0
    %1556 = vmatprep.subr.mxu0 0.0
    %1557 = vmatpush1.msra.mxu0 0.0
    %1558 = vmatprep.subr.mxu0 0.0
    %1559 = vmatpush1.msra.mxu0 0.0
    %1560 = vmatprep.subr.mxu0 0.0
    %1561 = vmatpush1.msra.mxu0 0.0
    %1562 = vmatprep.subr.mxu0 0.0
    %1563 = vmatpush1.msra.mxu0 0.0
    %1564 = vmatprep.subr.mxu0 0.0
    %1565 = vmatpush1.msra.mxu0 0.0
    %1566 = vmatprep.subr.mxu0 0.0
    %1567 = vmatpush1.msra.mxu0 0.0
    %1568 = vmatprep.subr.mxu0 0.0
    %1569 = vmatpush1.msra.mxu0 0.0
    %1570 = vmatprep.subr.mxu0 0.0
    %1571 = vmatpush1.msra.mxu0 0.0
    %1572 = vmatprep.subr.mxu0 0.0
    %1573 = vmatpush1.msra.mxu0 0.0
    %1574 = vmatprep.mubr.f32.mxu0 0.0
    %1575 = vmatmul.mubr.f32.gmra.mrb[0].mxu0 %v1508
    %v1576 = vpop.f32.mrb[0].mxu0
    %v1577 = vadd.f32 0.0, %v1576
    %v1578 = vpop.f32.mrb[0].mxu0
    %1579 = vdwg.mxu0
    %v1580 = vadd.f32 %v1506, %v1577
    %v1581 = vtanh.pop %v1580
    %v1582 = vsel %vm250, %v716, %v681
    %v1584 = vsel %vm267, %v1581, 0
    %1586 = vmatprep.subr.mxu0 0.0
    %1587 = vmatpush1.msra.mxu0 %v739
    %1588 = vmatprep.subr.mxu0 0.0
    %1589 = vmatpush1.msra.mxu0 %v740
    %1590 = vmatprep.subr.mxu0 0.0
    %1591 = vmatpush1.msra.mxu0 %v741
    %1592 = vmatprep.subr.mxu0 0.0
    %1593 = vmatpush1.msra.mxu0 %v742
    %1594 = vmatprep.subr.mxu0 0.0
    %1595 = vmatpush1.msra.mxu0 %v743
    %1596 = vmatprep.subr.mxu0 0.0
    %1597 = vmatpush1.msra.mxu0 %v744
    %1598 = vmatprep.subr.mxu0 0.0
    %1599 = vmatpush1.msra.mxu0 %v745
    %1600 = vmatprep.subr.mxu0 0.0
    %1601 = vmatpush1.msra.mxu0 %v746
    %1602 = vmatprep.subr.mxu0 0.0
    %1603 = vmatpush1.msra.mxu0 0.0
    %1604 = vmatprep.subr.mxu0 0.0
    %1605 = vmatpush1.msra.mxu0 0.0
    %1606 = vmatprep.subr.mxu0 0.0
    %1607 = vmatpush1.msra.mxu0 0.0
    %1608 = vmatprep.subr.mxu0 0.0
    %1609 = vmatpush1.msra.mxu0 0.0
    %1610 = vmatprep.subr.mxu0 0.0
    %1611 = vmatpush1.msra.mxu0 0.0
    %1612 = vmatprep.subr.mxu0 0.0
    %1613 = vmatpush1.msra.mxu0 0.0
    %1614 = vmatprep.subr.mxu0 0.0
    %1615 = vmatpush1.msra.mxu0 0.0
    %1616 = vmatprep.subr.mxu0 0.0
    %1617 = vmatpush1.msra.mxu0 0.0
    %1618 = vmatprep.subr.mxu0 0.0
    %1619 = vmatpush1.msra.mxu0 0.0
    %1620 = vmatprep.subr.mxu0 0.0
    %1621 = vmatpush1.msra.mxu0 0.0
    %1622 = vmatprep.subr.mxu0 0.0
    %1623 = vmatpush1.msra.mxu0 0.0
    %1624 = vmatprep.subr.mxu0 0.0
    %1625 = vmatpush1.msra.mxu0 0.0
    %1626 = vmatprep.subr.mxu0 0.0
    %1627 = vmatpush1.msra.mxu0 0.0
    %1628 = vmatprep.subr.mxu0 0.0
    %1629 = vmatpush1.msra.mxu0 0.0
    %1630 = vmatprep.subr.mxu0 0.0
    %1631 = vmatpush1.msra.mxu0 0.0
    %1632 = vmatprep.subr.mxu0 0.0
    %1633 = vmatpush1.msra.mxu0 0.0
    %1634 = vmatprep.subr.mxu0 0.0
    %1635 = vmatpush1.msra.mxu0 0.0
    %1636 = vmatprep.subr.mxu0 0.0
    %1637 = vmatpush1.msra.mxu0 0.0
    %1638 = vmatprep.subr.mxu0 0.0
    %1639 = vmatpush1.msra.mxu0 0.0
    %1640 = vmatprep.subr.mxu0 0.0
    %1641 = vmatpush1.msra.mxu0 0.0
    %1642 = vmatprep.subr.mxu0 0.0
    %1643 = vmatpush1.msra.mxu0 0.0
    %1644 = vmatprep.subr.mxu0 0.0
    %1645 = vmatpush1.msra.mxu0 0.0
    %1646 = vmatprep.subr.mxu0 0.0
    %1647 = vmatpush1.msra.mxu0 0.0
    %1648 = vmatprep.subr.mxu0 0.0
    %1649 = vmatpush1.msra.mxu0 0.0
    %1650 = vmatprep.mubr.f32.mxu0 0.0
    %1651 = vmatmul.mubr.f32.gmra.mrb[0].mxu0 %v1584
    %v1652 = vpop.f32.mrb[0].mxu0
    %v1653 = vadd.f32 0.0, %v1652
    %v1654 = vpop.f32.mrb[0].mxu0
    %1655 = vdwg.mxu0
    %v1656 = vadd.f32 %v1582, %v1653
    %v1657 = vtanh.pop %v1656
    %v1658 = vsel %vm250, %v721, %v676
    %v1660 = vsel %vm267, %v1657, 0
    %1662 = vmatprep.subr.mxu0 0.0
    %1663 = vmatpush1.msra.mxu0 %v739
    %1664 = vmatprep.subr.mxu0 0.0
    %1665 = vmatpush1.msra.mxu0 %v740
    %1666 = vmatprep.subr.mxu0 0.0
    %1667 = vmatpush1.msra.mxu0 %v741
    %1668 = vmatprep.subr.mxu0 0.0
    %1669 = vmatpush1.msra.mxu0 %v742
    %1670 = vmatprep.subr.mxu0 0.0
    %1671 = vmatpush1.msra.mxu0 %v743
    %1672 = vmatprep.subr.mxu0 0.0
    %1673 = vmatpush1.msra.mxu0 %v744
    %1674 = vmatprep.subr.mxu0 0.0
    %1675 = vmatpush1.msra.mxu0 %v745
    %1676 = vmatprep.subr.mxu0 0.0
    %1677 = vmatpush1.msra.mxu0 %v746
    %1678 = vmatprep.subr.mxu0 0.0
    %1679 = vmatpush1.msra.mxu0 0.0
    %1680 = vmatprep.subr.mxu0 0.0
    %1681 = vmatpush1.msra.mxu0 0.0
    %1682 = vmatprep.subr.mxu0 0.0
    %1683 = vmatpush1.msra.mxu0 0.0
    %1684 = vmatprep.subr.mxu0 0.0
    %1685 = vmatpush1.msra.mxu0 0.0
    %1686 = vmatprep.subr.mxu0 0.0
    %1687 = vmatpush1.msra.mxu0 0.0
    %1688 = vmatprep.subr.mxu0 0.0
    %1689 = vmatpush1.msra.mxu0 0.0
    %1690 = vmatprep.subr.mxu0 0.0
    %1691 = vmatpush1.msra.mxu0 0.0
    %1692 = vmatprep.subr.mxu0 0.0
    %1693 = vmatpush1.msra.mxu0 0.0
    %1694 = vmatprep.subr.mxu0 0.0
    %1695 = vmatpush1.msra.mxu0 0.0
    %1696 = vmatprep.subr.mxu0 0.0
    %1697 = vmatpush1.msra.mxu0 0.0
    %1698 = vmatprep.subr.mxu0 0.0
    %1699 = vmatpush1.msra.mxu0 0.0
    %1700 = vmatprep.subr.mxu0 0.0
    %1701 = vmatpush1.msra.mxu0 0.0
    %1702 = vmatprep.subr.mxu0 0.0
    %1703 = vmatpush1.msra.mxu0 0.0
    %1704 = vmatprep.subr.mxu0 0.0
    %1705 = vmatpush1.msra.mxu0 0.0
    %1706 = vmatprep.subr.mxu0 0.0
    %1707 = vmatpush1.msra.mxu0 0.0
    %1708 = vmatprep.subr.mxu0 0.0
    %1709 = vmatpush1.msra.mxu0 0.0
    %1710 = vmatprep.subr.mxu0 0.0
    %1711 = vmatpush1.msra.mxu0 0.0
    %1712 = vmatprep.subr.mxu0 0.0
    %1713 = vmatpush1.msra.mxu0 0.0
    %1714 = vmatprep.subr.mxu0 0.0
    %1715 = vmatpush1.msra.mxu0 0.0
    %1716 = vmatprep.subr.mxu0 0.0
    %1717 = vmatpush1.msra.mxu0 0.0
    %1718 = vmatprep.subr.mxu0 0.0
    %1719 = vmatpush1.msra.mxu0 0.0
    %1720 = vmatprep.subr.mxu0 0.0
    %1721 = vmatpush1.msra.mxu0 0.0
    %1722 = vmatprep.subr.mxu0 0.0
    %1723 = vmatpush1.msra.mxu0 0.0
    %1724 = vmatprep.subr.mxu0 0.0
    %1725 = vmatpush1.msra.mxu0 0.0
    %1726 = vmatprep.mubr.f32.mxu0 0.0
    %1727 = vmatmul.mubr.f32.gmra.mrb[0].mxu0 %v1660
    %v1728 = vpop.f32.mrb[0].mxu0
    %v1729 = vadd.f32 0.0, %v1728
    %v1730 = vpop.f32.mrb[0].mxu0
    %1731 = vdwg.mxu0
    %v1732 = vadd.f32 %v1658, %v1729
    %v1733 = vtanh.pop %v1732
    %v1734 = vsel %vm250, %v726, %v671
    %v1736 = vsel %vm267, %v1733, 0
    %1738 = vmatprep.subr.mxu0 0.0
    %1739 = vmatpush1.msra.mxu0 %v739
    %1740 = vmatprep.subr.mxu0 0.0
    %1741 = vmatpush1.msra.mxu0 %v740
    %1742 = vmatprep.subr.mxu0 0.0
    %1743 = vmatpush1.msra.mxu0 %v741
    %1744 = vmatprep.subr.mxu0 0.0
    %1745 = vmatpush1.msra.mxu0 %v742
    %1746 = vmatprep.subr.mxu0 0.0
    %1747 = vmatpush1.msra.mxu0 %v743
    %1748 = vmatprep.subr.mxu0 0.0
    %1749 = vmatpush1.msra.mxu0 %v744
    %1750 = vmatprep.subr.mxu0 0.0
    %1751 = vmatpush1.msra.mxu0 %v745
    %1752 = vmatprep.subr.mxu0 0.0
    %1753 = vmatpush1.msra.mxu0 %v746
    %1754 = vmatprep.subr.mxu0 0.0
    %1755 = vmatpush1.msra.mxu0 0.0
    %1756 = vmatprep.subr.mxu0 0.0
    %1757 = vmatpush1.msra.mxu0 0.0
    %1758 = vmatprep.subr.mxu0 0.0
    %1759 = vmatpush1.msra.mxu0 0.0
    %1760 = vmatprep.subr.mxu0 0.0
    %1761 = vmatpush1.msra.mxu0 0.0
    %1762 = vmatprep.subr.mxu0 0.0
    %1763 = vmatpush1.msra.mxu0 0.0
    %1764 = vmatprep.subr.mxu0 0.0
    %1765 = vmatpush1.msra.mxu0 0.0
    %1766 = vmatprep.subr.mxu0 0.0
    %1767 = vmatpush1.msra.mxu0 0.0
    %1768 = vmatprep.subr.mxu0 0.0
    %1769 = vmatpush1.msra.mxu0 0.0
    %1770 = vmatprep.subr.mxu0 0.0
    %1771 = vmatpush1.msra.mxu0 0.0
    %1772 = vmatprep.subr.mxu0 0.0
    %1773 = vmatpush1.msra.mxu0 0.0
    %1774 = vmatprep.subr.mxu0 0.0
    %1775 = vmatpush1.msra.mxu0 0.0
    %1776 = vmatprep.subr.mxu0 0.0
    %1777 = vmatpush1.msra.mxu0 0.0
    %1778 = vmatprep.subr.mxu0 0.0
    %1779 = vmatpush1.msra.mxu0 0.0
    %1780 = vmatprep.subr.mxu0 0.0
    %1781 = vmatpush1.msra.mxu0 0.0
    %1782 = vmatprep.subr.mxu0 0.0
    %1783 = vmatpush1.msra.mxu0 0.0
    %1784 = vmatprep.subr.mxu0 0.0
    %1785 = vmatpush1.msra.mxu0 0.0
    %1786 = vmatprep.subr.mxu0 0.0
    %1787 = vmatpush1.msra.mxu0 0.0
    %1788 = vmatprep.subr.mxu0 0.0
    %1789 = vmatpush1.msra.mxu0 0.0
    %1790 = vmatprep.subr.mxu0 0.0
    %1791 = vmatpush1.msra.mxu0 0.0
    %1792 = vmatprep.subr.mxu0 0.0
    %1793 = vmatpush1.msra.mxu0 0.0
    %1794 = vmatprep.subr.mxu0 0.0
    %1795 = vmatpush1.msra.mxu0 0.0
    %1796 = vmatprep.subr.mxu0 0.0
    %1797 = vmatpush1.msra.mxu0 0.0
    %1798 = vmatprep.subr.mxu0 0.0
    %1799 = vmatpush1.msra.mxu0 0.0
    %1800 = vmatprep.subr.mxu0 0.0
    %1801 = vmatpush1.msra.mxu0 0.0
    %1802 = vmatprep.mubr.f32.mxu0 0.0
    %1803 = vmatmul.mubr.f32.gmra.mrb[0].mxu0 %v1736
    %v1804 = vpop.f32.mrb[0].mxu0
    %v1805 = vadd.f32 0.0, %v1804
    %v1806 = vpop.f32.mrb[0].mxu0
    %1807 = vdwg.mxu0
    %v1808 = vadd.f32 %v1734, %v1805
    %v1809 = vtanh.pop %v1808
    %v1810 = vsel %vm250, %v731, %v666
    %v1812 = vsel %vm267, %v1809, 0
    %1814 = vmatprep.subr.mxu0 0.0
    %1815 = vmatpush1.msra.mxu0 %v739
    %1816 = vmatprep.subr.mxu0 0.0
    %1817 = vmatpush1.msra.mxu0 %v740
    %1818 = vmatprep.subr.mxu0 0.0
    %1819 = vmatpush1.msra.mxu0 %v741
    %1820 = vmatprep.subr.mxu0 0.0
    %1821 = vmatpush1.msra.mxu0 %v742
    %1822 = vmatprep.subr.mxu0 0.0
    %1823 = vmatpush1.msra.mxu0 %v743
    %1824 = vmatprep.subr.mxu0 0.0
    %1825 = vmatpush1.msra.mxu0 %v744
    %1826 = vmatprep.subr.mxu0 0.0
    %1827 = vmatpush1.msra.mxu0 %v745
    %1828 = vmatprep.subr.mxu0 0.0
    %1829 = vmatpush1.msra.mxu0 %v746
    %1830 = vmatprep.subr.mxu0 0.0
    %1831 = vmatpush1.msra.mxu0 0.0
    %1832 = vmatprep.subr.mxu0 0.0
    %1833 = vmatpush1.msra.mxu0 0.0
    %1834 = vmatprep.subr.mxu0 0.0
    %1835 = vmatpush1.msra.mxu0 0.0
    %1836 = vmatprep.subr.mxu0 0.0
    %1837 = vmatpush1.msra.mxu0 0.0
    %1838 = vmatprep.subr.mxu0 0.0
    %1839 = vmatpush1.msra.mxu0 0.0
    %1840 = vmatprep.subr.mxu0 0.0
    %1841 = vmatpush1.msra.mxu0 0.0
    %1842 = vmatprep.subr.mxu0 0.0
    %1843 = vmatpush1.msra.mxu0 0.0
    %1844 = vmatprep.subr.mxu0 0.0
    %1845 = vmatpush1.msra.mxu0 0.0
    %1846 = vmatprep.subr.mxu0 0.0
    %1847 = vmatpush1.msra.mxu0 0.0
    %1848 = vmatprep.subr.mxu0 0.0
    %1849 = vmatpush1.msra.mxu0 0.0
    %1850 = vmatprep.subr.mxu0 0.0
    %1851 = vmatpush1.msra.mxu0 0.0
    %1852 = vmatprep.subr.mxu0 0.0
    %1853 = vmatpush1.msra.mxu0 0.0
    %1854 = vmatprep.subr.mxu0 0.0
    %1855 = vmatpush1.msra.mxu0 0.0
    %1856 = vmatprep.subr.mxu0 0.0
    %1857 = vmatpush1.msra.mxu0 0.0
    %1858 = vmatprep.subr.mxu0 0.0
    %1859 = vmatpush1.msra.mxu0 0.0
    %1860 = vmatprep.subr.mxu0 0.0
    %1861 = vmatpush1.msra.mxu0 0.0
    %1862 = vmatprep.subr.mxu0 0.0
    %1863 = vmatpush1.msra.mxu0 0.0
    %1864 = vmatprep.subr.mxu0 0.0
    %1865 = vmatpush1.msra.mxu0 0.0
    %1866 = vmatprep.subr.mxu0 0.0
    %1867 = vmatpush1.msra.mxu0 0.0
    %1868 = vmatprep.subr.mxu0 0.0
    %1869 = vmatpush1.msra.mxu0 0.0
    %1870 = vmatprep.subr.mxu0 0.0
    %1871 = vmatpush1.msra.mxu0 0.0
    %1872 = vmatprep.subr.mxu0 0.0
    %1873 = vmatpush1.msra.mxu0 0.0
    %1874 = vmatprep.subr.mxu0 0.0
    %1875 = vmatpush1.msra.mxu0 0.0
    %1876 = vmatprep.subr.mxu0 0.0
    %1877 = vmatpush1.msra.mxu0 0.0
    %1878 = vmatprep.mubr.f32.mxu0 0.0
    %1879 = vmatmul.mubr.f32.gmra.mrb[0].mxu0 %v1812
    %v1880 = vpop.f32.mrb[0].mxu0
    %v1881 = vadd.f32 0.0, %v1880
    %v1882 = vpop.f32.mrb[0].mxu0
    %1883 = vdwg.mxu0
    %v1884 = vadd.f32 %v1810, %v1881
    %v1885 = vtanh.pop %v1884
    %v1886 = vsel %vm250, %v736, %v661
    %v1888 = vsel %vm267, %v1885, 0
    %1890 = vmatprep.subr.mxu0 0.0
    %1891 = vmatpush1.msra.mxu0 %v739
    %1892 = vmatprep.subr.mxu0 0.0
    %1893 = vmatpush1.msra.mxu0 %v740
    %1894 = vmatprep.subr.mxu0 0.0
    %1895 = vmatpush1.msra.mxu0 %v741
    %1896 = vmatprep.subr.mxu0 0.0
    %1897 = vmatpush1.msra.mxu0 %v742
    %1898 = vmatprep.subr.mxu0 0.0
    %1899 = vmatpush1.msra.mxu0 %v743
    %1900 = vmatprep.subr.mxu0 0.0
    %1901 = vmatpush1.msra.mxu0 %v744
    %1902 = vmatprep.subr.mxu0 0.0
    %1903 = vmatpush1.msra.mxu0 %v745
    %1904 = vmatprep.subr.mxu0 0.0
    %1905 = vmatpush1.msra.mxu0 %v746
    %1906 = vmatprep.subr.mxu0 0.0
    %1907 = vmatpush1.msra.mxu0 0.0
    %1908 = vmatprep.subr.mxu0 0.0
    %1909 = vmatpush1.msra.mxu0 0.0
    %1910 = vmatprep.subr.mxu0 0.0
    %1911 = vmatpush1.msra.mxu0 0.0
    %1912 = vmatprep.subr.mxu0 0.0
    %1913 = vmatpush1.msra.mxu0 0.0
    %1914 = vmatprep.subr.mxu0 0.0
    %1915 = vmatpush1.msra.mxu0 0.0
    %1916 = vmatprep.subr.mxu0 0.0
    %1917 = vmatpush1.msra.mxu0 0.0
    %1918 = vmatprep.subr.mxu0 0.0
    %1919 = vmatpush1.msra.mxu0 0.0
    %1920 = vmatprep.subr.mxu0 0.0
    %1921 = vmatpush1.msra.mxu0 0.0
    %1922 = vmatprep.subr.mxu0 0.0
    %1923 = vmatpush1.msra.mxu0 0.0
    %1924 = vmatprep.subr.mxu0 0.0
    %1925 = vmatpush1.msra.mxu0 0.0
    %1926 = vmatprep.subr.mxu0 0.0
    %1927 = vmatpush1.msra.mxu0 0.0
    %1928 = vmatprep.subr.mxu0 0.0
    %1929 = vmatpush1.msra.mxu0 0.0
    %1930 = vmatprep.subr.mxu0 0.0
    %1931 = vmatpush1.msra.mxu0 0.0
    %1932 = vmatprep.subr.mxu0 0.0
    %1933 = vmatpush1.msra.mxu0 0.0
    %1934 = vmatprep.subr.mxu0 0.0
    %1935 = vmatpush1.msra.mxu0 0.0
    %1936 = vmatprep.subr.mxu0 0.0
    %1937 = vmatpush1.msra.mxu0 0.0
    %1938 = vmatprep.subr.mxu0 0.0
    %1939 = vmatpush1.msra.mxu0 0.0
    %1940 = vmatprep.subr.mxu0 0.0
    %1941 = vmatpush1.msra.mxu0 0.0
    %1942 = vmatprep.subr.mxu0 0.0
    %1943 = vmatpush1.msra.mxu0 0.0
    %1944 = vmatprep.subr.mxu0 0.0
    %1945 = vmatpush1.msra.mxu0 0.0
    %1946 = vmatprep.subr.mxu0 0.0
    %1947 = vmatpush1.msra.mxu0 0.0
    %1948 = vmatprep.subr.mxu0 0.0
    %1949 = vmatpush1.msra.mxu0 0.0
    %1950 = vmatprep.subr.mxu0 0.0
    %1951 = vmatpush1.msra.mxu0 0.0
    %1952 = vmatprep.subr.mxu0 0.0
    %1953 = vmatpush1.msra.mxu0 0.0
    %1954 = vmatprep.mubr.f32.mxu0 0.0
    %1955 = vmatmul.mubr.f32.gmra.mrb[0].mxu0 %v1888
    %v1956 = vpop.f32.mrb[0].mxu0
    %v1957 = vadd.f32 0.0, %v1956
    %v1958 = vpop.f32.mrb[0].mxu0
    %1959 = vdwg.mxu0
    %v1960 = vadd.f32 %v1886, %v1957
    %v1961 = vtanh.pop %v1960
    %v1962 = vsel %vm250, %v821, %v1961
    %v1963 = vsel %vm250, %v897, %v1885
    %v1964 = vsel %vm250, %v973, %v1809
    %v1965 = vsel %vm250, %v1049, %v1733
    %v1966 = vsel %vm250, %v1125, %v1657
    %v1967 = vsel %vm250, %v1201, %v1581
    %v1968 = vsel %vm250, %v1277, %v1505
    %v1969 = vsel %vm250, %v1353, %v1429
    %v1970 = vsel %vm250, %v1429, %v1353
    %v1971 = vsel %vm250, %v1505, %v1277
    %v1972 = vsel %vm250, %v1581, %v1201
    %v1973 = vsel %vm250, %v1657, %v1125
    %v1974 = vsel %vm250, %v1733, %v1049
    %v1975 = vsel %vm250, %v1809, %v973
    %v1976 = vsel %vm250, %v1885, %v897
    %v1977 = vsel %vm250, %v1961, %v821
    %v1978 = vsel %vm267, %v503, -inf
    %1979 = vmax.xlane.f32.xlu0 %v1978
    %v1980 = vpop.xlane.xlu0 %1979
    %v1981 = vsel %vm267, %v504, -inf
    %1982 = vmax.xlane.f32.xlu0 %v1981
    %v1983 = vpop.xlane.xlu0 %1982
    %v1984 = vsel %vm267, %v505, -inf
    %1985 = vmax.xlane.f32.xlu0 %v1984
    %v1986 = vpop.xlane.xlu0 %1985
    %v1987 = vsel %vm267, %v506, -inf
    %1988 = vmax.xlane.f32.xlu0 %v1987
    %v1989 = vpop.xlane.xlu0 %1988
    %v1990 = vsel %vm267, %v507, -inf
    %1991 = vmax.xlane.f32.xlu0 %v1990
    %v1992 = vpop.xlane.xlu0 %1991
    %v1993 = vsel %vm267, %v508, -inf
    %1994 = vmax.xlane.f32.xlu0 %v1993
    %v1995 = vpop.xlane.xlu0 %1994
    %v1996 = vsel %vm267, %v509, -inf
    %1997 = vmax.xlane.f32.xlu0 %v1996
    %v1998 = vpop.xlane.xlu0 %1997
    %v1999 = vsel %vm267, %v510, -inf
    %2000 = vmax.xlane.f32.xlu0 %v1999
    %v2001 = vpop.xlane.xlu0 %2000
    %v2002 = vsel %vm267, %v511, -inf
    %2003 = vmax.xlane.f32.xlu0 %v2002
    %v2004 = vpop.xlane.xlu0 %2003
    %v2005 = vsel %vm267, %v512, -inf
    %2006 = vmax.xlane.f32.xlu0 %v2005
    %v2007 = vpop.xlane.xlu0 %2006
    %v2008 = vsel %vm267, %v513, -inf
    %2009 = vmax.xlane.f32.xlu0 %v2008
    %v2010 = vpop.xlane.xlu0 %2009
    %v2011 = vsel %vm267, %v514, -inf
    %2012 = vmax.xlane.f32.xlu0 %v2011
    %v2013 = vpop.xlane.xlu0 %2012
    %v2014 = vsel %vm267, %v515, -inf
    %2015 = vmax.xlane.f32.xlu0 %v2014
    %v2016 = vpop.xlane.xlu0 %2015
    %v2017 = vsel %vm267, %v516, -inf
    %2018 = vmax.xlane.f32.xlu0 %v2017
    %v2019 = vpop.xlane.xlu0 %2018
    %v2020 = vsel %vm267, %v517, -inf
    %2021 = vmax.xlane.f32.xlu0 %v2020
    %v2022 = vpop.xlane.xlu0 %2021
    %v2023 = vsel %vm267, %v518, -inf
    %2024 = vmax.xlane.f32.xlu0 %v2023
    %v2025 = vpop.xlane.xlu0 %2024
    %v2026 = vsub.f32 %v503, %v1980
    %v2027 = vsub.f32 %v504, %v1983
    %v2028 = vsub.f32 %v505, %v1986
    %v2029 = vsub.f32 %v506, %v1989
    %v2030 = vsub.f32 %v507, %v1992
    %v2031 = vsub.f32 %v508, %v1995
    %v2032 = vsub.f32 %v509, %v1998
    %v2033 = vsub.f32 %v510, %v2001
    %v2034 = vsub.f32 %v511, %v2004
    %v2035 = vsub.f32 %v512, %v2007
    %v2036 = vsub.f32 %v513, %v2010
    %v2037 = vsub.f32 %v514, %v2013
    %v2038 = vsub.f32 %v515, %v2016
    %v2039 = vsub.f32 %v516, %v2019
    %v2040 = vsub.f32 %v517, %v2022
    %v2041 = vsub.f32 %v518, %v2025
    %v2042 = vmul.f32 %v2026, 1.442695
    %v2043 = vpow.pop %v2042
    %v2044 = vmul.f32 %v2027, 1.442695
    %v2045 = vpow.pop %v2044
    %v2046 = vmul.f32 %v2028, 1.442695
    %v2047 = vpow.pop %v2046
    %v2048 = vmul.f32 %v2029, 1.442695
    %v2049 = vpow.pop %v2048
    %v2050 = vmul.f32 %v2030, 1.442695
    %v2051 = vpow.pop %v2050
    %v2052 = vmul.f32 %v2031, 1.442695
    %v2053 = vpow.pop %v2052
    %v2054 = vmul.f32 %v2032, 1.442695
    %v2055 = vpow.pop %v2054
    %v2056 = vmul.f32 %v2033, 1.442695
    %v2057 = vpow.pop %v2056
    %v2058 = vmul.f32 %v2034, 1.442695
    %v2059 = vpow.pop %v2058
    %v2060 = vmul.f32 %v2035, 1.442695
    %v2061 = vpow.pop %v2060
    %v2062 = vmul.f32 %v2036, 1.442695
    %v2063 = vpow.pop %v2062
    %v2064 = vmul.f32 %v2037, 1.442695
    %v2065 = vpow.pop %v2064
    %v2066 = vmul.f32 %v2038, 1.442695
    %v2067 = vpow.pop %v2066
    %v2068 = vmul.f32 %v2039, 1.442695
    %v2069 = vpow.pop %v2068
    %v2070 = vmul.f32 %v2040, 1.442695
    %v2071 = vpow.pop %v2070
    %v2072 = vmul.f32 %v2041, 1.442695
    %v2073 = vpow.pop %v2072
    %v2074 = vsel %vm267, %v2043, 0.0
    %2075 = vadd.xlane.f32.xlu0 %v2074
    %v2076 = vpop.xlane.xlu0 %2075
    %v2077 = vsel %vm267, %v2045, 0.0
    %2078 = vadd.xlane.f32.xlu0 %v2077
    %v2079 = vpop.xlane.xlu0 %2078
    %v2080 = vsel %vm267, %v2047, 0.0
    %2081 = vadd.xlane.f32.xlu0 %v2080
    %v2082 = vpop.xlane.xlu0 %2081
    %v2083 = vsel %vm267, %v2049, 0.0
    %2084 = vadd.xlane.f32.xlu0 %v2083
    %v2085 = vpop.xlane.xlu0 %2084
    %v2086 = vsel %vm267, %v2051, 0.0
    %2087 = vadd.xlane.f32.xlu0 %v2086
    %v2088 = vpop.xlane.xlu0 %2087
    %v2089 = vsel %vm267, %v2053, 0.0
    %2090 = vadd.xlane.f32.xlu0 %v2089
    %v2091 = vpop.xlane.xlu0 %2090
    %v2092 = vsel %vm267, %v2055, 0.0
    %2093 = vadd.xlane.f32.xlu0 %v2092
    %v2094 = vpop.xlane.xlu0 %2093
    %v2095 = vsel %vm267, %v2057, 0.0
    %2096 = vadd.xlane.f32.xlu0 %v2095
    %v2097 = vpop.xlane.xlu0 %2096
    %v2098 = vsel %vm267, %v2059, 0.0
    %2099 = vadd.xlane.f32.xlu0 %v2098
    %v2100 = vpop.xlane.xlu0 %2099
    %v2101 = vsel %vm267, %v2061, 0.0
    %2102 = vadd.xlane.f32.xlu0 %v2101
    %v2103 = vpop.xlane.xlu0 %2102
    %v2104 = vsel %vm267, %v2063, 0.0
    %2105 = vadd.xlane.f32.xlu0 %v2104
    %v2106 = vpop.xlane.xlu0 %2105
    %v2107 = vsel %vm267, %v2065, 0.0
    %2108 = vadd.xlane.f32.xlu0 %v2107
    %v2109 = vpop.xlane.xlu0 %2108
    %v2110 = vsel %vm267, %v2067, 0.0
    %2111 = vadd.xlane.f32.xlu0 %v2110
    %v2112 = vpop.xlane.xlu0 %2111
    %v2113 = vsel %vm267, %v2069, 0.0
    %2114 = vadd.xlane.f32.xlu0 %v2113
    %v2115 = vpop.xlane.xlu0 %2114
    %v2116 = vsel %vm267, %v2071, 0.0
    %2117 = vadd.xlane.f32.xlu0 %v2116
    %v2118 = vpop.xlane.xlu0 %2117
    %v2119 = vsel %vm267, %v2073, 0.0
    %2120 = vadd.xlane.f32.xlu0 %v2119
    %v2121 = vpop.xlane.xlu0 %2120
    %v2122 = vrcp.pop %v2076
    %v2123 = vmul.f32 %v2043, %v2122
    %v2124 = vrcp.pop %v2079
    %v2125 = vmul.f32 %v2045, %v2124
    %v2126 = vrcp.pop %v2082
    %v2127 = vmul.f32 %v2047, %v2126
    %v2128 = vrcp.pop %v2085
    %v2129 = vmul.f32 %v2049, %v2128
    %v2130 = vrcp.pop %v2088
    %v2131 = vmul.f32 %v2051, %v2130
    %v2132 = vrcp.pop %v2091
    %v2133 = vmul.f32 %v2053, %v2132
    %v2134 = vrcp.pop %v2094
    %v2135 = vmul.f32 %v2055, %v2134
    %v2136 = vrcp.pop %v2097
    %v2137 = vmul.f32 %v2057, %v2136
    %v2138 = vrcp.pop %v2100
    %v2139 = vmul.f32 %v2059, %v2138
    %v2140 = vrcp.pop %v2103
    %v2141 = vmul.f32 %v2061, %v2140
    %v2142 = vrcp.pop %v2106
    %v2143 = vmul.f32 %v2063, %v2142
    %v2144 = vrcp.pop %v2109
    %v2145 = vmul.f32 %v2065, %v2144
    %v2146 = vrcp.pop %v2112
    %v2147 = vmul.f32 %v2067, %v2146
    %v2148 = vrcp.pop %v2115
    %v2149 = vmul.f32 %v2069, %v2148
    %v2150 = vrcp.pop %v2118
    %v2151 = vmul.f32 %v2071, %v2150
    %v2152 = vrcp.pop %v2121
    %v2153 = vmul.f32 %v2073, %v2152
    %vm2154 = vcmask 130048
    %v2155 = vsel %vm2154, %v2123, 0.0
    %v2156 = vsel %vm2154, %v2125, 0.0
    %v2157 = vadd.f32 %v2155, %v2156
    %v2158 = vsel %vm2154, %v2127, 0.0
    %v2159 = vadd.f32 %v2157, %v2158
    %v2160 = vsel %vm2154, %v2129, 0.0
    %v2161 = vadd.f32 %v2159, %v2160
    %v2162 = vsel %vm2154, %v2131, 0.0
    %v2163 = vadd.f32 %v2161, %v2162
    %v2164 = vsel %vm2154, %v2133, 0.0
    %v2165 = vadd.f32 %v2163, %v2164
    %v2166 = vsel %vm2154, %v2135, 0.0
    %v2167 = vadd.f32 %v2165, %v2166
    %v2168 = vsel %vm2154, %v2137, 0.0
    %v2169 = vadd.f32 %v2167, %v2168
    %v2170 = vsel %vm2154, %v2139, 0.0
    %v2171 = vadd.f32 %v2169, %v2170
    %v2172 = vsel %vm2154, %v2141, 0.0
    %v2173 = vadd.f32 %v2171, %v2172
    %v2174 = vsel %vm2154, %v2143, 0.0
    %v2175 = vadd.f32 %v2173, %v2174
    %v2176 = vsel %vm2154, %v2145, 0.0
    %v2177 = vadd.f32 %v2175, %v2176
    %v2178 = vsel %vm2154, %v2147, 0.0
    %v2179 = vadd.f32 %v2177, %v2178
    %v2180 = vsel %vm2154, %v2149, 0.0
    %v2181 = vadd.f32 %v2179, %v2180
    %v2182 = vsel %vm2154, %v2151, 0.0
    %v2183 = vadd.f32 %v2181, %v2182
    %v2184 = vsel %vm2154, %v2153, 0.0
    %v2185 = vadd.f32 %v2183, %v2184
    %v2186 = vrcp.pop 16.0
    %v2187 = vmul.f32 %v2185, %v2186
    %v2188 = vmul.f32 %v2123, %v2187
    %v2189 = vmul.f32 %v2125, %v2187
    %v2190 = vmul.f32 %v2127, %v2187
    %v2191 = vmul.f32 %v2129, %v2187
    %v2192 = vmul.f32 %v2131, %v2187
    %v2193 = vmul.f32 %v2133, %v2187
    %v2194 = vmul.f32 %v2135, %v2187
    %v2195 = vmul.f32 %v2137, %v2187
    %v2196 = vmul.f32 %v2139, %v2187
    %v2197 = vmul.f32 %v2141, %v2187
    %v2198 = vmul.f32 %v2143, %v2187
    %v2199 = vmul.f32 %v2145, %v2187
    %v2200 = vmul.f32 %v2147, %v2187
    %v2201 = vmul.f32 %v2149, %v2187
    %v2202 = vmul.f32 %v2151, %v2187
    %v2203 = vmul.f32 %v2153, %v2187
    %v2204 = vsel %vm2154, %v2188, 0.0
    %2205 = vadd.xlane.f32.xlu0 %v2204
    %v2206 = vpop.xlane.xlu0 %2205
    %v2207 = vsel %vm2154, %v2189, 0.0
    %2208 = vadd.xlane.f32.xlu0 %v2207
    %v2209 = vpop.xlane.xlu0 %2208
    %v2210 = vsel %vm2154, %v2190, 0.0
    %2211 = vadd.xlane.f32.xlu0 %v2210
    %v2212 = vpop.xlane.xlu0 %2211
    %v2213 = vsel %vm2154, %v2191, 0.0
    %2214 = vadd.xlane.f32.xlu0 %v2213
    %v2215 = vpop.xlane.xlu0 %2214
    %v2216 = vsel %vm2154, %v2192, 0.0
    %2217 = vadd.xlane.f32.xlu0 %v2216
    %v2218 = vpop.xlane.xlu0 %2217
    %v2219 = vsel %vm2154, %v2193, 0.0
    %2220 = vadd.xlane.f32.xlu0 %v2219
    %v2221 = vpop.xlane.xlu0 %2220
    %v2222 = vsel %vm2154, %v2194, 0.0
    %2223 = vadd.xlane.f32.xlu0 %v2222
    %v2224 = vpop.xlane.xlu0 %2223
    %v2225 = vsel %vm2154, %v2195, 0.0
    %2226 = vadd.xlane.f32.xlu0 %v2225
    %v2227 = vpop.xlane.xlu0 %2226
    %v2228 = vsel %vm2154, %v2196, 0.0
    %2229 = vadd.xlane.f32.xlu0 %v2228
    %v2230 = vpop.xlane.xlu0 %2229
    %v2231 = vsel %vm2154, %v2197, 0.0
    %2232 = vadd.xlane.f32.xlu0 %v2231
    %v2233 = vpop.xlane.xlu0 %2232
    %v2234 = vsel %vm2154, %v2198, 0.0
    %2235 = vadd.xlane.f32.xlu0 %v2234
    %v2236 = vpop.xlane.xlu0 %2235
    %v2237 = vsel %vm2154, %v2199, 0.0
    %2238 = vadd.xlane.f32.xlu0 %v2237
    %v2239 = vpop.xlane.xlu0 %2238
    %v2240 = vsel %vm2154, %v2200, 0.0
    %2241 = vadd.xlane.f32.xlu0 %v2240
    %v2242 = vpop.xlane.xlu0 %2241
    %v2243 = vsel %vm2154, %v2201, 0.0
    %2244 = vadd.xlane.f32.xlu0 %v2243
    %v2245 = vpop.xlane.xlu0 %2244
    %v2246 = vsel %vm2154, %v2202, 0.0
    %2247 = vadd.xlane.f32.xlu0 %v2246
    %v2248 = vpop.xlane.xlu0 %2247
    %v2249 = vsel %vm2154, %v2203, 0.0
    %2250 = vadd.xlane.f32.xlu0 %v2249
    %v2251 = vpop.xlane.xlu0 %2250
    %v2252 = vadd.f32 %v2206, %v2209
    %v2253 = vadd.f32 %v2252, %v2212
    %v2254 = vadd.f32 %v2253, %v2215
    %v2255 = vadd.f32 %v2254, %v2218
    %v2256 = vadd.f32 %v2255, %v2221
    %v2257 = vadd.f32 %v2256, %v2224
    %v2258 = vadd.f32 %v2257, %v2227
    %v2259 = vadd.f32 %v2258, %v2230
    %v2260 = vadd.f32 %v2259, %v2233
    %v2261 = vadd.f32 %v2260, %v2236
    %v2262 = vadd.f32 %v2261, %v2239
    %v2263 = vadd.f32 %v2262, %v2242
    %v2264 = vadd.f32 %v2263, %v2245
    %v2265 = vadd.f32 %v2264, %v2248
    %v2266 = vadd.f32 %v2265, %v2251
    %v2267 = vmul.f32 %v2266, %v2186
    %v2268 = vsub.f32 %v2206, %v2267
    %v2269 = vsub.f32 %v2209, %v2267
    %v2270 = vsub.f32 %v2212, %v2267
    %v2271 = vsub.f32 %v2215, %v2267
    %v2272 = vsub.f32 %v2218, %v2267
    %v2273 = vsub.f32 %v2221, %v2267
    %v2274 = vsub.f32 %v2224, %v2267
    %v2275 = vsub.f32 %v2227, %v2267
    %v2276 = vsub.f32 %v2230, %v2267
    %v2277 = vsub.f32 %v2233, %v2267
    %v2278 = vsub.f32 %v2236, %v2267
    %v2279 = vsub.f32 %v2239, %v2267
    %v2280 = vsub.f32 %v2242, %v2267
    %v2281 = vsub.f32 %v2245, %v2267
    %v2282 = vsub.f32 %v2248, %v2267
    %v2283 = vsub.f32 %v2251, %v2267
    %v2284 = vmul.f32 %v2268, %v2268
    %v2285 = vmul.f32 %v2269, %v2269
    %v2286 = vmul.f32 %v2270, %v2270
    %v2287 = vmul.f32 %v2271, %v2271
    %v2288 = vmul.f32 %v2272, %v2272
    %v2289 = vmul.f32 %v2273, %v2273
    %v2290 = vmul.f32 %v2274, %v2274
    %v2291 = vmul.f32 %v2275, %v2275
    %v2292 = vmul.f32 %v2276, %v2276
    %v2293 = vmul.f32 %v2277, %v2277
    %v2294 = vmul.f32 %v2278, %v2278
    %v2295 = vmul.f32 %v2279, %v2279
    %v2296 = vmul.f32 %v2280, %v2280
    %v2297 = vmul.f32 %v2281, %v2281
    %v2298 = vmul.f32 %v2282, %v2282
    %v2299 = vmul.f32 %v2283, %v2283
    %v2300 = vadd.f32 %v2284, %v2285
    %v2301 = vadd.f32 %v2300, %v2286
    %v2302 = vadd.f32 %v2301, %v2287
    %v2303 = vadd.f32 %v2302, %v2288
    %v2304 = vadd.f32 %v2303, %v2289
    %v2305 = vadd.f32 %v2304, %v2290
    %v2306 = vadd.f32 %v2305, %v2291
    %v2307 = vadd.f32 %v2306, %v2292
    %v2308 = vadd.f32 %v2307, %v2293
    %v2309 = vadd.f32 %v2308, %v2294
    %v2310 = vadd.f32 %v2309, %v2295
    %v2311 = vadd.f32 %v2310, %v2296
    %v2312 = vadd.f32 %v2311, %v2297
    %v2313 = vadd.f32 %v2312, %v2298
    %v2314 = vadd.f32 %v2313, %v2299
    %v2315 = vrcp.pop 15.0
    %v2316 = vmul.f32 %v2314, %v2315
    %v2317 = vrsqrt.pop %v2316
    %v2318 = vmul.f32 %v2316, %v2317
    %vm2319 = vcmp.eq.f32.partialorder %v2316, inf
    %v2320 = vsel %vm2319, %v2316, %v2318
    %vm2321 = vcmp.eq.f32.partialorder %v2316, 0.0
    %v2322 = vand.u32 %v2316, 2147483648
    %v2323 = vsel %vm2321, %v2322, %v2320
    %v2324 = vadd.f32 %v2323, 1e-05
    %v2325 = vrcp.pop %v2324
    %v2326 = vmul.f32 %v2268, %v2325
    %v2327 = vmul.f32 %v2269, %v2325
    %v2328 = vmul.f32 %v2270, %v2325
    %v2329 = vmul.f32 %v2271, %v2325
    %v2330 = vmul.f32 %v2272, %v2325
    %v2331 = vmul.f32 %v2273, %v2325
    %v2332 = vmul.f32 %v2274, %v2325
    %v2333 = vmul.f32 %v2275, %v2325
    %v2334 = vmul.f32 %v2276, %v2325
    %v2335 = vmul.f32 %v2277, %v2325
    %v2336 = vmul.f32 %v2278, %v2325
    %v2337 = vmul.f32 %v2279, %v2325
    %v2338 = vmul.f32 %v2280, %v2325
    %v2339 = vmul.f32 %v2281, %v2325
    %v2340 = vmul.f32 %v2282, %v2325
    %v2341 = vmul.f32 %v2283, %v2325
    %s2342 = sld [smem:[#allocation2]]
    %v2343 = vstv %s2342
    %v2344 = vmul.f32 %v2326, %v2343
    %v2345 = vmul.f32 %v2327, %v2343
    %v2346 = vmul.f32 %v2328, %v2343
    %v2347 = vmul.f32 %v2329, %v2343
    %v2348 = vmul.f32 %v2330, %v2343
    %v2349 = vmul.f32 %v2331, %v2343
    %v2350 = vmul.f32 %v2332, %v2343
    %v2351 = vmul.f32 %v2333, %v2343
    %v2352 = vmul.f32 %v2334, %v2343
    %v2353 = vmul.f32 %v2335, %v2343
    %v2354 = vmul.f32 %v2336, %v2343
    %v2355 = vmul.f32 %v2337, %v2343
    %v2356 = vmul.f32 %v2338, %v2343
    %v2357 = vmul.f32 %v2339, %v2343
    %v2358 = vmul.f32 %v2340, %v2343
    %v2359 = vmul.f32 %v2341, %v2343
    %s2360 = sld [smem:[#allocation5]]
    %v2361 = vstv %s2360
    %v2362 = vadd.f32 %v2344, %v2361
    %v2363 = vadd.f32 %v2345, %v2361
    %v2364 = vadd.f32 %v2346, %v2361
    %v2365 = vadd.f32 %v2347, %v2361
    %v2366 = vadd.f32 %v2348, %v2361
    %v2367 = vadd.f32 %v2349, %v2361
    %v2368 = vadd.f32 %v2350, %v2361
    %v2369 = vadd.f32 %v2351, %v2361
    %v2370 = vadd.f32 %v2352, %v2361
    %v2371 = vadd.f32 %v2353, %v2361
    %v2372 = vadd.f32 %v2354, %v2361
    %v2373 = vadd.f32 %v2355, %v2361
    %v2374 = vadd.f32 %v2356, %v2361
    %v2375 = vadd.f32 %v2357, %v2361
    %v2376 = vadd.f32 %v2358, %v2361
    %v2377 = vadd.f32 %v2359, %v2361
    %v2378 = vxor.u32 %v2362, 2147483648
    %v2379 = vxor.u32 %v2363, 2147483648
    %v2380 = vxor.u32 %v2364, 2147483648
    %v2381 = vxor.u32 %v2365, 2147483648
    %v2382 = vxor.u32 %v2366, 2147483648
    %v2383 = vxor.u32 %v2367, 2147483648
    %v2384 = vxor.u32 %v2368, 2147483648
    %v2385 = vxor.u32 %v2369, 2147483648
    %v2386 = vxor.u32 %v2370, 2147483648
    %v2387 = vxor.u32 %v2371, 2147483648
    %v2388 = vxor.u32 %v2372, 2147483648
    %v2389 = vxor.u32 %v2373, 2147483648
    %v2390 = vxor.u32 %v2374, 2147483648
    %v2391 = vxor.u32 %v2375, 2147483648
    %v2392 = vxor.u32 %v2376, 2147483648
    %v2393 = vxor.u32 %v2377, 2147483648
    %v2394 = vmul.f32 %v2378, 1.442695
    %v2395 = vpow.pop %v2394
    %v2396 = vmul.f32 %v2379, 1.442695
    %v2397 = vpow.pop %v2396
    %v2398 = vmul.f32 %v2380, 1.442695
    %v2399 = vpow.pop %v2398
    %v2400 = vmul.f32 %v2381, 1.442695
    %v2401 = vpow.pop %v2400
    %v2402 = vmul.f32 %v2382, 1.442695
    %v2403 = vpow.pop %v2402
    %v2404 = vmul.f32 %v2383, 1.442695
    %v2405 = vpow.pop %v2404
    %v2406 = vmul.f32 %v2384, 1.442695
    %v2407 = vpow.pop %v2406
    %v2408 = vmul.f32 %v2385, 1.442695
    %v2409 = vpow.pop %v2408
    %v2410 = vmul.f32 %v2386, 1.442695
    %v2411 = vpow.pop %v2410
    %v2412 = vmul.f32 %v2387, 1.442695
    %v2413 = vpow.pop %v2412
    %v2414 = vmul.f32 %v2388, 1.442695
    %v2415 = vpow.pop %v2414
    %v2416 = vmul.f32 %v2389, 1.442695
    %v2417 = vpow.pop %v2416
    %v2418 = vmul.f32 %v2390, 1.442695
    %v2419 = vpow.pop %v2418
    %v2420 = vmul.f32 %v2391, 1.442695
    %v2421 = vpow.pop %v2420
    %v2422 = vmul.f32 %v2392, 1.442695
    %v2423 = vpow.pop %v2422
    %v2424 = vmul.f32 %v2393, 1.442695
    %v2425 = vpow.pop %v2424
    %v2426 = vadd.f32 %v2395, 1.0
    %v2427 = vadd.f32 %v2397, 1.0
    %v2428 = vadd.f32 %v2399, 1.0
    %v2429 = vadd.f32 %v2401, 1.0
    %v2430 = vadd.f32 %v2403, 1.0
    %v2431 = vadd.f32 %v2405, 1.0
    %v2432 = vadd.f32 %v2407, 1.0
    %v2433 = vadd.f32 %v2409, 1.0
    %v2434 = vadd.f32 %v2411, 1.0
    %v2435 = vadd.f32 %v2413, 1.0
    %v2436 = vadd.f32 %v2415, 1.0
    %v2437 = vadd.f32 %v2417, 1.0
    %v2438 = vadd.f32 %v2419, 1.0
    %v2439 = vadd.f32 %v2421, 1.0
    %v2440 = vadd.f32 %v2423, 1.0
    %v2441 = vadd.f32 %v2425, 1.0
    %v2442 = vrcp.pop %v2426
    %v2443 = vmul.f32 1.0, %v2442
    %v2444 = vrcp.pop %v2427
    %v2445 = vmul.f32 1.0, %v2444
    %v2446 = vrcp.pop %v2428
    %v2447 = vmul.f32 1.0, %v2446
    %v2448 = vrcp.pop %v2429
    %v2449 = vmul.f32 1.0, %v2448
    %v2450 = vrcp.pop %v2430
    %v2451 = vmul.f32 1.0, %v2450
    %v2452 = vrcp.pop %v2431
    %v2453 = vmul.f32 1.0, %v2452
    %v2454 = vrcp.pop %v2432
    %v2455 = vmul.f32 1.0, %v2454
    %v2456 = vrcp.pop %v2433
    %v2457 = vmul.f32 1.0, %v2456
    %v2458 = vrcp.pop %v2434
    %v2459 = vmul.f32 1.0, %v2458
    %v2460 = vrcp.pop %v2435
    %v2461 = vmul.f32 1.0, %v2460
    %v2462 = vrcp.pop %v2436
    %v2463 = vmul.f32 1.0, %v2462
    %v2464 = vrcp.pop %v2437
    %v2465 = vmul.f32 1.0, %v2464
    %v2466 = vrcp.pop %v2438
    %v2467 = vmul.f32 1.0, %v2466
    %v2468 = vrcp.pop %v2439
    %v2469 = vmul.f32 1.0, %v2468
    %v2470 = vrcp.pop %v2440
    %v2471 = vmul.f32 1.0, %v2470
    %v2472 = vrcp.pop %v2441
    %v2473 = vmul.f32 1.0, %v2472
    %v2474 = vmul.f32 %v2123, %v2443
    %v2475 = vmul.f32 %v2125, %v2445
    %v2476 = vmul.f32 %v2127, %v2447
    %v2477 = vmul.f32 %v2129, %v2449
    %v2478 = vmul.f32 %v2131, %v2451
    %v2479 = vmul.f32 %v2133, %v2453
    %v2480 = vmul.f32 %v2135, %v2455
    %v2481 = vmul.f32 %v2137, %v2457
    %v2482 = vmul.f32 %v2139, %v2459
    %v2483 = vmul.f32 %v2141, %v2461
    %v2484 = vmul.f32 %v2143, %v2463
    %v2485 = vmul.f32 %v2145, %v2465
    %v2486 = vmul.f32 %v2147, %v2467
    %v2487 = vmul.f32 %v2149, %v2469
    %v2488 = vmul.f32 %v2151, %v2471
    %v2489 = vmul.f32 %v2153, %v2473
    %vm2490 = vcmask 261248
    %v2491 = vsel %vm2490, %v2123, 0.0
    %v2492 = vsel %vm2490, %v2125, 0.0
    %v2493 = vadd.f32 %v2491, %v2492
    %v2494 = vsel %vm2490, %v2127, 0.0
    %v2495 = vadd.f32 %v2493, %v2494
    %v2496 = vsel %vm2490, %v2129, 0.0
    %v2497 = vadd.f32 %v2495, %v2496
    %v2498 = vsel %vm2490, %v2131, 0.0
    %v2499 = vadd.f32 %v2497, %v2498
    %v2500 = vsel %vm2490, %v2133, 0.0
    %v2501 = vadd.f32 %v2499, %v2500
    %v2502 = vsel %vm2490, %v2135, 0.0
    %v2503 = vadd.f32 %v2501, %v2502
    %v2504 = vsel %vm2490, %v2137, 0.0
    %v2505 = vadd.f32 %v2503, %v2504
    %v2506 = vsel %vm2490, %v2139, 0.0
    %v2507 = vadd.f32 %v2505, %v2506
    %v2508 = vsel %vm2490, %v2141, 0.0
    %v2509 = vadd.f32 %v2507, %v2508
    %v2510 = vsel %vm2490, %v2143, 0.0
    %v2511 = vadd.f32 %v2509, %v2510
    %v2512 = vsel %vm2490, %v2145, 0.0
    %v2513 = vadd.f32 %v2511, %v2512
    %v2514 = vsel %vm2490, %v2147, 0.0
    %v2515 = vadd.f32 %v2513, %v2514
    %v2516 = vsel %vm2490, %v2149, 0.0
    %v2517 = vadd.f32 %v2515, %v2516
    %v2518 = vsel %vm2490, %v2151, 0.0
    %v2519 = vadd.f32 %v2517, %v2518
    %v2520 = vsel %vm2490, %v2153, 0.0
    %v2521 = vadd.f32 %v2519, %v2520
    %v2522 = vmul.f32 %v2521, %v2186
    %v2523 = vmul.f32 %v2123, %v2522
    %v2524 = vmul.f32 %v2125, %v2522
    %v2525 = vmul.f32 %v2127, %v2522
    %v2526 = vmul.f32 %v2129, %v2522
    %v2527 = vmul.f32 %v2131, %v2522
    %v2528 = vmul.f32 %v2133, %v2522
    %v2529 = vmul.f32 %v2135, %v2522
    %v2530 = vmul.f32 %v2137, %v2522
    %v2531 = vmul.f32 %v2139, %v2522
    %v2532 = vmul.f32 %v2141, %v2522
    %v2533 = vmul.f32 %v2143, %v2522
    %v2534 = vmul.f32 %v2145, %v2522
    %v2535 = vmul.f32 %v2147, %v2522
    %v2536 = vmul.f32 %v2149, %v2522
    %v2537 = vmul.f32 %v2151, %v2522
    %v2538 = vmul.f32 %v2153, %v2522
    %2555 = vrot.lane.b32.xlu0 %v2523, 112
    %v2556 = vpop.permute.xlu0 %2555
    %2557 = vrot.lane.b32.xlu0 %v2524, 112
    %v2558 = vpop.permute.xlu0 %2557
    %2559 = vrot.lane.b32.xlu0 %v2525, 112
    %v2560 = vpop.permute.xlu0 %2559
    %2561 = vrot.lane.b32.xlu0 %v2526, 112
    %v2562 = vpop.permute.xlu0 %2561
    %2563 = vrot.lane.b32.xlu0 %v2527, 112
    %v2564 = vpop.permute.xlu0 %2563
    %2565 = vrot.lane.b32.xlu0 %v2528, 112
    %v2566 = vpop.permute.xlu0 %2565
    %2567 = vrot.lane.b32.xlu0 %v2529, 112
    %v2568 = vpop.permute.xlu0 %2567
    %2569 = vrot.lane.b32.xlu0 %v2530, 112
    %v2570 = vpop.permute.xlu0 %2569
    %2571 = vrot.lane.b32.xlu0 %v2531, 112
    %v2572 = vpop.permute.xlu0 %2571
    %2573 = vrot.lane.b32.xlu0 %v2532, 112
    %v2574 = vpop.permute.xlu0 %2573
    %2575 = vrot.lane.b32.xlu0 %v2533, 112
    %v2576 = vpop.permute.xlu0 %2575
    %2577 = vrot.lane.b32.xlu0 %v2534, 112
    %v2578 = vpop.permute.xlu0 %2577
    %2579 = vrot.lane.b32.xlu0 %v2535, 112
    %v2580 = vpop.permute.xlu0 %2579
    %2581 = vrot.lane.b32.xlu0 %v2536, 112
    %v2582 = vpop.permute.xlu0 %2581
    %2583 = vrot.lane.b32.xlu0 %v2537, 112
    %v2584 = vpop.permute.xlu0 %2583
    %2585 = vrot.lane.b32.xlu0 %v2538, 112
    %v2586 = vpop.permute.xlu0 %2585
    %v2603 = vsel %vm2154, %v2556, 0.0
    %2604 = vadd.xlane.f32.xlu0 %v2603
    %v2605 = vpop.xlane.xlu0 %2604
    %v2606 = vsel %vm2154, %v2558, 0.0
    %2607 = vadd.xlane.f32.xlu0 %v2606
    %v2608 = vpop.xlane.xlu0 %2607
    %v2609 = vsel %vm2154, %v2560, 0.0
    %2610 = vadd.xlane.f32.xlu0 %v2609
    %v2611 = vpop.xlane.xlu0 %2610
    %v2612 = vsel %vm2154, %v2562, 0.0
    %2613 = vadd.xlane.f32.xlu0 %v2612
    %v2614 = vpop.xlane.xlu0 %2613
    %v2615 = vsel %vm2154, %v2564, 0.0
    %2616 = vadd.xlane.f32.xlu0 %v2615
    %v2617 = vpop.xlane.xlu0 %2616
    %v2618 = vsel %vm2154, %v2566, 0.0
    %2619 = vadd.xlane.f32.xlu0 %v2618
    %v2620 = vpop.xlane.xlu0 %2619
    %v2621 = vsel %vm2154, %v2568, 0.0
    %2622 = vadd.xlane.f32.xlu0 %v2621
    %v2623 = vpop.xlane.xlu0 %2622
    %v2624 = vsel %vm2154, %v2570, 0.0
    %2625 = vadd.xlane.f32.xlu0 %v2624
    %v2626 = vpop.xlane.xlu0 %2625
    %v2627 = vsel %vm2154, %v2572, 0.0
    %2628 = vadd.xlane.f32.xlu0 %v2627
    %v2629 = vpop.xlane.xlu0 %2628
    %v2630 = vsel %vm2154, %v2574, 0.0
    %2631 = vadd.xlane.f32.xlu0 %v2630
    %v2632 = vpop.xlane.xlu0 %2631
    %v2633 = vsel %vm2154, %v2576, 0.0
    %2634 = vadd.xlane.f32.xlu0 %v2633
    %v2635 = vpop.xlane.xlu0 %2634
    %v2636 = vsel %vm2154, %v2578, 0.0
    %2637 = vadd.xlane.f32.xlu0 %v2636
    %v2638 = vpop.xlane.xlu0 %2637
    %v2639 = vsel %vm2154, %v2580, 0.0
    %2640 = vadd.xlane.f32.xlu0 %v2639
    %v2641 = vpop.xlane.xlu0 %2640
    %v2642 = vsel %vm2154, %v2582, 0.0
    %2643 = vadd.xlane.f32.xlu0 %v2642
    %v2644 = vpop.xlane.xlu0 %2643
    %v2645 = vsel %vm2154, %v2584, 0.0
    %2646 = vadd.xlane.f32.xlu0 %v2645
    %v2647 = vpop.xlane.xlu0 %2646
    %v2648 = vsel %vm2154, %v2586, 0.0
    %2649 = vadd.xlane.f32.xlu0 %v2648
    %v2650 = vpop.xlane.xlu0 %2649
    %v2651 = vadd.f32 %v2605, %v2608
    %v2652 = vadd.f32 %v2651, %v2611
    %v2653 = vadd.f32 %v2652, %v2614
    %v2654 = vadd.f32 %v2653, %v2617
    %v2655 = vadd.f32 %v2654, %v2620
    %v2656 = vadd.f32 %v2655, %v2623
    %v2657 = vadd.f32 %v2656, %v2626
    %v2658 = vadd.f32 %v2657, %v2629
    %v2659 = vadd.f32 %v2658, %v2632
    %v2660 = vadd.f32 %v2659, %v2635
    %v2661 = vadd.f32 %v2660, %v2638
    %v2662 = vadd.f32 %v2661, %v2641
    %v2663 = vadd.f32 %v2662, %v2644
    %v2664 = vadd.f32 %v2663, %v2647
    %v2665 = vadd.f32 %v2664, %v2650
    %v2666 = vmul.f32 %v2665, %v2186
    %v2667 = vsub.f32 %v2605, %v2666
    %v2668 = vsub.f32 %v2608, %v2666
    %v2669 = vsub.f32 %v2611, %v2666
    %v2670 = vsub.f32 %v2614, %v2666
    %v2671 = vsub.f32 %v2617, %v2666
    %v2672 = vsub.f32 %v2620, %v2666
    %v2673 = vsub.f32 %v2623, %v2666
    %v2674 = vsub.f32 %v2626, %v2666
    %v2675 = vsub.f32 %v2629, %v2666
    %v2676 = vsub.f32 %v2632, %v2666
    %v2677 = vsub.f32 %v2635, %v2666
    %v2678 = vsub.f32 %v2638, %v2666
    %v2679 = vsub.f32 %v2641, %v2666
    %v2680 = vsub.f32 %v2644, %v2666
    %v2681 = vsub.f32 %v2647, %v2666
    %v2682 = vsub.f32 %v2650, %v2666
    %v2683 = vmul.f32 %v2667, %v2667
    %v2684 = vmul.f32 %v2668, %v2668
    %v2685 = vmul.f32 %v2669, %v2669
    %v2686 = vmul.f32 %v2670, %v2670
    %v2687 = vmul.f32 %v2671, %v2671
    %v2688 = vmul.f32 %v2672, %v2672
    %v2689 = vmul.f32 %v2673, %v2673
    %v2690 = vmul.f32 %v2674, %v2674
    %v2691 = vmul.f32 %v2675, %v2675
    %v2692 = vmul.f32 %v2676, %v2676
    %v2693 = vmul.f32 %v2677, %v2677
    %v2694 = vmul.f32 %v2678, %v2678
    %v2695 = vmul.f32 %v2679, %v2679
    %v2696 = vmul.f32 %v2680, %v2680
    %v2697 = vmul.f32 %v2681, %v2681
    %v2698 = vmul.f32 %v2682, %v2682
    %v2699 = vadd.f32 %v2683, %v2684
    %v2700 = vadd.f32 %v2699, %v2685
    %v2701 = vadd.f32 %v2700, %v2686
    %v2702 = vadd.f32 %v2701, %v2687
    %v2703 = vadd.f32 %v2702, %v2688
    %v2704 = vadd.f32 %v2703, %v2689
    %v2705 = vadd.f32 %v2704, %v2690
    %v2706 = vadd.f32 %v2705, %v2691
    %v2707 = vadd.f32 %v2706, %v2692
    %v2708 = vadd.f32 %v2707, %v2693
    %v2709 = vadd.f32 %v2708, %v2694
    %v2710 = vadd.f32 %v2709, %v2695
    %v2711 = vadd.f32 %v2710, %v2696
    %v2712 = vadd.f32 %v2711, %v2697
    %v2713 = vadd.f32 %v2712, %v2698
    %v2714 = vmul.f32 %v2713, %v2315
    %v2715 = vrsqrt.pop %v2714
    %v2716 = vmul.f32 %v2714, %v2715
    %vm2717 = vcmp.eq.f32.partialorder %v2714, inf
    %v2718 = vsel %vm2717, %v2714, %v2716
    %vm2719 = vcmp.eq.f32.partialorder %v2714, 0.0
    %v2720 = vand.u32 %v2714, 2147483648
    %v2721 = vsel %vm2719, %v2720, %v2718
    %v2722 = vadd.f32 %v2721, 1e-05
    %v2723 = vrcp.pop %v2722
    %v2724 = vmul.f32 %v2667, %v2723
    %v2725 = vmul.f32 %v2668, %v2723
    %v2726 = vmul.f32 %v2669, %v2723
    %v2727 = vmul.f32 %v2670, %v2723
    %v2728 = vmul.f32 %v2671, %v2723
    %v2729 = vmul.f32 %v2672, %v2723
    %v2730 = vmul.f32 %v2673, %v2723
    %v2731 = vmul.f32 %v2674, %v2723
    %v2732 = vmul.f32 %v2675, %v2723
    %v2733 = vmul.f32 %v2676, %v2723
    %v2734 = vmul.f32 %v2677, %v2723
    %v2735 = vmul.f32 %v2678, %v2723
    %v2736 = vmul.f32 %v2679, %v2723
    %v2737 = vmul.f32 %v2680, %v2723
    %v2738 = vmul.f32 %v2681, %v2723
    %v2739 = vmul.f32 %v2682, %v2723
    %s2740 = sld [smem:[#allocation2 + $0x1]]
    %v2741 = vstv %s2740
    %v2742 = vmul.f32 %v2724, %v2741
    %v2743 = vmul.f32 %v2725, %v2741
    %v2744 = vmul.f32 %v2726, %v2741
    %v2745 = vmul.f32 %v2727, %v2741
    %v2746 = vmul.f32 %v2728, %v2741
    %v2747 = vmul.f32 %v2729, %v2741
    %v2748 = vmul.f32 %v2730, %v2741
    %v2749 = vmul.f32 %v2731, %v2741
    %v2750 = vmul.f32 %v2732, %v2741
    %v2751 = vmul.f32 %v2733, %v2741
    %v2752 = vmul.f32 %v2734, %v2741
    %v2753 = vmul.f32 %v2735, %v2741
    %v2754 = vmul.f32 %v2736, %v2741
    %v2755 = vmul.f32 %v2737, %v2741
    %v2756 = vmul.f32 %v2738, %v2741
    %v2757 = vmul.f32 %v2739, %v2741
    %s2758 = sld [smem:[#allocation5 + $0x1]]
    %v2759 = vstv %s2758
    %v2760 = vadd.f32 %v2742, %v2759
    %v2761 = vadd.f32 %v2743, %v2759
    %v2762 = vadd.f32 %v2744, %v2759
    %v2763 = vadd.f32 %v2745, %v2759
    %v2764 = vadd.f32 %v2746, %v2759
    %v2765 = vadd.f32 %v2747, %v2759
    %v2766 = vadd.f32 %v2748, %v2759
    %v2767 = vadd.f32 %v2749, %v2759
    %v2768 = vadd.f32 %v2750, %v2759
    %v2769 = vadd.f32 %v2751, %v2759
    %v2770 = vadd.f32 %v2752, %v2759
    %v2771 = vadd.f32 %v2753, %v2759
    %v2772 = vadd.f32 %v2754, %v2759
    %v2773 = vadd.f32 %v2755, %v2759
    %v2774 = vadd.f32 %v2756, %v2759
    %v2775 = vadd.f32 %v2757, %v2759
    %v2776 = vxor.u32 %v2760, 2147483648
    %v2777 = vxor.u32 %v2761, 2147483648
    %v2778 = vxor.u32 %v2762, 2147483648
    %v2779 = vxor.u32 %v2763, 2147483648
    %v2780 = vxor.u32 %v2764, 2147483648
    %v2781 = vxor.u32 %v2765, 2147483648
    %v2782 = vxor.u32 %v2766, 2147483648
    %v2783 = vxor.u32 %v2767, 2147483648
    %v2784 = vxor.u32 %v2768, 2147483648
    %v2785 = vxor.u32 %v2769, 2147483648
    %v2786 = vxor.u32 %v2770, 2147483648
    %v2787 = vxor.u32 %v2771, 2147483648
    %v2788 = vxor.u32 %v2772, 2147483648
    %v2789 = vxor.u32 %v2773, 2147483648
    %v2790 = vxor.u32 %v2774, 2147483648
    %v2791 = vxor.u32 %v2775, 2147483648
    %v2792 = vmul.f32 %v2776, 1.442695
    %v2793 = vpow.pop %v2792
    %v2794 = vmul.f32 %v2777, 1.442695
    %v2795 = vpow.pop %v2794
    %v2796 = vmul.f32 %v2778, 1.442695
    %v2797 = vpow.pop %v2796
    %v2798 = vmul.f32 %v2779, 1.442695
    %v2799 = vpow.pop %v2798
    %v2800 = vmul.f32 %v2780, 1.442695
    %v2801 = vpow.pop %v2800
    %v2802 = vmul.f32 %v2781, 1.442695
    %v2803 = vpow.pop %v2802
    %v2804 = vmul.f32 %v2782, 1.442695
    %v2805 = vpow.pop %v2804
    %v2806 = vmul.f32 %v2783, 1.442695
    %v2807 = vpow.pop %v2806
    %v2808 = vmul.f32 %v2784, 1.442695
    %v2809 = vpow.pop %v2808
    %v2810 = vmul.f32 %v2785, 1.442695
    %v2811 = vpow.pop %v2810
    %v2812 = vmul.f32 %v2786, 1.442695
    %v2813 = vpow.pop %v2812
    %v2814 = vmul.f32 %v2787, 1.442695
    %v2815 = vpow.pop %v2814
    %v2816 = vmul.f32 %v2788, 1.442695
    %v2817 = vpow.pop %v2816
    %v2818 = vmul.f32 %v2789, 1.442695
    %v2819 = vpow.pop %v2818
    %v2820 = vmul.f32 %v2790, 1.442695
    %v2821 = vpow.pop %v2820
    %v2822 = vmul.f32 %v2791, 1.442695
    %v2823 = vpow.pop %v2822
    %v2824 = vadd.f32 %v2793, 1.0
    %v2825 = vadd.f32 %v2795, 1.0
    %v2826 = vadd.f32 %v2797, 1.0
    %v2827 = vadd.f32 %v2799, 1.0
    %v2828 = vadd.f32 %v2801, 1.0
    %v2829 = vadd.f32 %v2803, 1.0
    %v2830 = vadd.f32 %v2805, 1.0
    %v2831 = vadd.f32 %v2807, 1.0
    %v2832 = vadd.f32 %v2809, 1.0
    %v2833 = vadd.f32 %v2811, 1.0
    %v2834 = vadd.f32 %v2813, 1.0
    %v2835 = vadd.f32 %v2815, 1.0
    %v2836 = vadd.f32 %v2817, 1.0
    %v2837 = vadd.f32 %v2819, 1.0
    %v2838 = vadd.f32 %v2821, 1.0
    %v2839 = vadd.f32 %v2823, 1.0
    %v2840 = vrcp.pop %v2824
    %v2841 = vmul.f32 1.0, %v2840
    %v2842 = vrcp.pop %v2825
    %v2843 = vmul.f32 1.0, %v2842
    %v2844 = vrcp.pop %v2826
    %v2845 = vmul.f32 1.0, %v2844
    %v2846 = vrcp.pop %v2827
    %v2847 = vmul.f32 1.0, %v2846
    %v2848 = vrcp.pop %v2828
    %v2849 = vmul.f32 1.0, %v2848
    %v2850 = vrcp.pop %v2829
    %v2851 = vmul.f32 1.0, %v2850
    %v2852 = vrcp.pop %v2830
    %v2853 = vmul.f32 1.0, %v2852
    %v2854 = vrcp.pop %v2831
    %v2855 = vmul.f32 1.0, %v2854
    %v2856 = vrcp.pop %v2832
    %v2857 = vmul.f32 1.0, %v2856
    %v2858 = vrcp.pop %v2833
    %v2859 = vmul.f32 1.0, %v2858
    %v2860 = vrcp.pop %v2834
    %v2861 = vmul.f32 1.0, %v2860
    %v2862 = vrcp.pop %v2835
    %v2863 = vmul.f32 1.0, %v2862
    %v2864 = vrcp.pop %v2836
    %v2865 = vmul.f32 1.0, %v2864
    %v2866 = vrcp.pop %v2837
    %v2867 = vmul.f32 1.0, %v2866
    %v2868 = vrcp.pop %v2838
    %v2869 = vmul.f32 1.0, %v2868
    %v2870 = vrcp.pop %v2839
    %v2871 = vmul.f32 1.0, %v2870
    %v2872 = vmul.f32 %v2123, %v2841
    %v2873 = vmul.f32 %v2125, %v2843
    %v2874 = vmul.f32 %v2127, %v2845
    %v2875 = vmul.f32 %v2129, %v2847
    %v2876 = vmul.f32 %v2131, %v2849
    %v2877 = vmul.f32 %v2133, %v2851
    %v2878 = vmul.f32 %v2135, %v2853
    %v2879 = vmul.f32 %v2137, %v2855
    %v2880 = vmul.f32 %v2139, %v2857
    %v2881 = vmul.f32 %v2141, %v2859
    %v2882 = vmul.f32 %v2143, %v2861
    %v2883 = vmul.f32 %v2145, %v2863
    %v2884 = vmul.f32 %v2147, %v2865
    %v2885 = vmul.f32 %v2149, %v2867
    %v2886 = vmul.f32 %v2151, %v2869
    %v2887 = vmul.f32 %v2153, %v2871
    %vm2888 = vcmask 392448
    %v2889 = vsel %vm2888, %v2123, 0.0
    %v2890 = vsel %vm2888, %v2125, 0.0
    %v2891 = vadd.f32 %v2889, %v2890
    %v2892 = vsel %vm2888, %v2127, 0.0
    %v2893 = vadd.f32 %v2891, %v2892
    %v2894 = vsel %vm2888, %v2129, 0.0
    %v2895 = vadd.f32 %v2893, %v2894
    %v2896 = vsel %vm2888, %v2131, 0.0
    %v2897 = vadd.f32 %v2895, %v2896
    %v2898 = vsel %vm2888, %v2133, 0.0
    %v2899 = vadd.f32 %v2897, %v2898
    %v2900 = vsel %vm2888, %v2135, 0.0
    %v2901 = vadd.f32 %v2899, %v2900
    %v2902 = vsel %vm2888, %v2137, 0.0
    %v2903 = vadd.f32 %v2901, %v2902
    %v2904 = vsel %vm2888, %v2139, 0.0
    %v2905 = vadd.f32 %v2903, %v2904
    %v2906 = vsel %vm2888, %v2141, 0.0
    %v2907 = vadd.f32 %v2905, %v2906
    %v2908 = vsel %vm2888, %v2143, 0.0
    %v2909 = vadd.f32 %v2907, %v2908
    %v2910 = vsel %vm2888, %v2145, 0.0
    %v2911 = vadd.f32 %v2909, %v2910
    %v2912 = vsel %vm2888, %v2147, 0.0
    %v2913 = vadd.f32 %v2911, %v2912
    %v2914 = vsel %vm2888, %v2149, 0.0
    %v2915 = vadd.f32 %v2913, %v2914
    %v2916 = vsel %vm2888, %v2151, 0.0
    %v2917 = vadd.f32 %v2915, %v2916
    %v2918 = vsel %vm2888, %v2153, 0.0
    %v2919 = vadd.f32 %v2917, %v2918
    %v2920 = vmul.f32 %v2919, %v2186
    %v2921 = vmul.f32 %v2123, %v2920
    %v2922 = vmul.f32 %v2125, %v2920
    %v2923 = vmul.f32 %v2127, %v2920
    %v2924 = vmul.f32 %v2129, %v2920
    %v2925 = vmul.f32 %v2131, %v2920
    %v2926 = vmul.f32 %v2133, %v2920
    %v2927 = vmul.f32 %v2135, %v2920
    %v2928 = vmul.f32 %v2137, %v2920
    %v2929 = vmul.f32 %v2139, %v2920
    %v2930 = vmul.f32 %v2141, %v2920
    %v2931 = vmul.f32 %v2143, %v2920
    %v2932 = vmul.f32 %v2145, %v2920
    %v2933 = vmul.f32 %v2147, %v2920
    %v2934 = vmul.f32 %v2149, %v2920
    %v2935 = vmul.f32 %v2151, %v2920
    %v2936 = vmul.f32 %v2153, %v2920
    %2953 = vrot.lane.b32.xlu0 %v2921, 96
    %v2954 = vpop.permute.xlu0 %2953
    %2955 = vrot.lane.b32.xlu0 %v2922, 96
    %v2956 = vpop.permute.xlu0 %2955
    %2957 = vrot.lane.b32.xlu0 %v2923, 96
    %v2958 = vpop.permute.xlu0 %2957
    %2959 = vrot.lane.b32.xlu0 %v2924, 96
    %v2960 = vpop.permute.xlu0 %2959
    %2961 = vrot.lane.b32.xlu0 %v2925, 96
    %v2962 = vpop.permute.xlu0 %2961
    %2963 = vrot.lane.b32.xlu0 %v2926, 96
    %v2964 = vpop.permute.xlu0 %2963
    %2965 = vrot.lane.b32.xlu0 %v2927, 96
    %v2966 = vpop.permute.xlu0 %2965
    %2967 = vrot.lane.b32.xlu0 %v2928, 96
    %v2968 = vpop.permute.xlu0 %2967
    %2969 = vrot.lane.b32.xlu0 %v2929, 96
    %v2970 = vpop.permute.xlu0 %2969
    %2971 = vrot.lane.b32.xlu0 %v2930, 96
    %v2972 = vpop.permute.xlu0 %2971
    %2973 = vrot.lane.b32.xlu0 %v2931, 96
    %v2974 = vpop.permute.xlu0 %2973
    %2975 = vrot.lane.b32.xlu0 %v2932, 96
    %v2976 = vpop.permute.xlu0 %2975
    %2977 = vrot.lane.b32.xlu0 %v2933, 96
    %v2978 = vpop.permute.xlu0 %2977
    %2979 = vrot.lane.b32.xlu0 %v2934, 96
    %v2980 = vpop.permute.xlu0 %2979
    %2981 = vrot.lane.b32.xlu0 %v2935, 96
    %v2982 = vpop.permute.xlu0 %2981
    %2983 = vrot.lane.b32.xlu0 %v2936, 96
    %v2984 = vpop.permute.xlu0 %2983
    %v3001 = vsel %vm2154, %v2954, 0.0
    %3002 = vadd.xlane.f32.xlu0 %v3001
    %v3003 = vpop.xlane.xlu0 %3002
    %v3004 = vsel %vm2154, %v2956, 0.0
    %3005 = vadd.xlane.f32.xlu0 %v3004
    %v3006 = vpop.xlane.xlu0 %3005
    %v3007 = vsel %vm2154, %v2958, 0.0
    %3008 = vadd.xlane.f32.xlu0 %v3007
    %v3009 = vpop.xlane.xlu0 %3008
    %v3010 = vsel %vm2154, %v2960, 0.0
    %3011 = vadd.xlane.f32.xlu0 %v3010
    %v3012 = vpop.xlane.xlu0 %3011
    %v3013 = vsel %vm2154, %v2962, 0.0
    %3014 = vadd.xlane.f32.xlu0 %v3013
    %v3015 = vpop.xlane.xlu0 %3014
    %v3016 = vsel %vm2154, %v2964, 0.0
    %3017 = vadd.xlane.f32.xlu0 %v3016
    %v3018 = vpop.xlane.xlu0 %3017
    %v3019 = vsel %vm2154, %v2966, 0.0
    %3020 = vadd.xlane.f32.xlu0 %v3019
    %v3021 = vpop.xlane.xlu0 %3020
    %v3022 = vsel %vm2154, %v2968, 0.0
    %3023 = vadd.xlane.f32.xlu0 %v3022
    %v3024 = vpop.xlane.xlu0 %3023
    %v3025 = vsel %vm2154, %v2970, 0.0
    %3026 = vadd.xlane.f32.xlu0 %v3025
    %v3027 = vpop.xlane.xlu0 %3026
    %v3028 = vsel %vm2154, %v2972, 0.0
    %3029 = vadd.xlane.f32.xlu0 %v3028
    %v3030 = vpop.xlane.xlu0 %3029
    %v3031 = vsel %vm2154, %v2974, 0.0
    %3032 = vadd.xlane.f32.xlu0 %v3031
    %v3033 = vpop.xlane.xlu0 %3032
    %v3034 = vsel %vm2154, %v2976, 0.0
    %3035 = vadd.xlane.f32.xlu0 %v3034
    %v3036 = vpop.xlane.xlu0 %3035
    %v3037 = vsel %vm2154, %v2978, 0.0
    %3038 = vadd.xlane.f32.xlu0 %v3037
    %v3039 = vpop.xlane.xlu0 %3038
    %v3040 = vsel %vm2154, %v2980, 0.0
    %3041 = vadd.xlane.f32.xlu0 %v3040
    %v3042 = vpop.xlane.xlu0 %3041
    %v3043 = vsel %vm2154, %v2982, 0.0
    %3044 = vadd.xlane.f32.xlu0 %v3043
    %v3045 = vpop.xlane.xlu0 %3044
    %v3046 = vsel %vm2154, %v2984, 0.0
    %3047 = vadd.xlane.f32.xlu0 %v3046
    %v3048 = vpop.xlane.xlu0 %3047
    %v3049 = vadd.f32 %v3003, %v3006
    %v3050 = vadd.f32 %v3049, %v3009
    %v3051 = vadd.f32 %v3050, %v3012
    %v3052 = vadd.f32 %v3051, %v3015
    %v3053 = vadd.f32 %v3052, %v3018
    %v3054 = vadd.f32 %v3053, %v3021
    %v3055 = vadd.f32 %v3054, %v3024
    %v3056 = vadd.f32 %v3055, %v3027
    %v3057 = vadd.f32 %v3056, %v3030
    %v3058 = vadd.f32 %v3057, %v3033
    %v3059 = vadd.f32 %v3058, %v3036
    %v3060 = vadd.f32 %v3059, %v3039
    %v3061 = vadd.f32 %v3060, %v3042
    %v3062 = vadd.f32 %v3061, %v3045
    %v3063 = vadd.f32 %v3062, %v3048
    %v3064 = vmul.f32 %v3063, %v2186
    %v3065 = vsub.f32 %v3003, %v3064
    %v3066 = vsub.f32 %v3006, %v3064
    %v3067 = vsub.f32 %v3009, %v3064
    %v3068 = vsub.f32 %v3012, %v3064
    %v3069 = vsub.f32 %v3015, %v3064
    %v3070 = vsub.f32 %v3018, %v3064
    %v3071 = vsub.f32 %v3021, %v3064
    %v3072 = vsub.f32 %v3024, %v3064
    %v3073 = vsub.f32 %v3027, %v3064
    %v3074 = vsub.f32 %v3030, %v3064
    %v3075 = vsub.f32 %v3033, %v3064
    %v3076 = vsub.f32 %v3036, %v3064
    %v3077 = vsub.f32 %v3039, %v3064
    %v3078 = vsub.f32 %v3042, %v3064
    %v3079 = vsub.f32 %v3045, %v3064
    %v3080 = vsub.f32 %v3048, %v3064
    %v3081 = vmul.f32 %v3065, %v3065
    %v3082 = vmul.f32 %v3066, %v3066
    %v3083 = vmul.f32 %v3067, %v3067
    %v3084 = vmul.f32 %v3068, %v3068
    %v3085 = vmul.f32 %v3069, %v3069
    %v3086 = vmul.f32 %v3070, %v3070
    %v3087 = vmul.f32 %v3071, %v3071
    %v3088 = vmul.f32 %v3072, %v3072
    %v3089 = vmul.f32 %v3073, %v3073
    %v3090 = vmul.f32 %v3074, %v3074
    %v3091 = vmul.f32 %v3075, %v3075
    %v3092 = vmul.f32 %v3076, %v3076
    %v3093 = vmul.f32 %v3077, %v3077
    %v3094 = vmul.f32 %v3078, %v3078
    %v3095 = vmul.f32 %v3079, %v3079
    %v3096 = vmul.f32 %v3080, %v3080
    %v3097 = vadd.f32 %v3081, %v3082
    %v3098 = vadd.f32 %v3097, %v3083
    %v3099 = vadd.f32 %v3098, %v3084
    %v3100 = vadd.f32 %v3099, %v3085
    %v3101 = vadd.f32 %v3100, %v3086
    %v3102 = vadd.f32 %v3101, %v3087
    %v3103 = vadd.f32 %v3102, %v3088
    %v3104 = vadd.f32 %v3103, %v3089
    %v3105 = vadd.f32 %v3104, %v3090
    %v3106 = vadd.f32 %v3105, %v3091
    %v3107 = vadd.f32 %v3106, %v3092
    %v3108 = vadd.f32 %v3107, %v3093
    %v3109 = vadd.f32 %v3108, %v3094
    %v3110 = vadd.f32 %v3109, %v3095
    %v3111 = vadd.f32 %v3110, %v3096
    %v3112 = vmul.f32 %v3111, %v2315
    %v3113 = vrsqrt.pop %v3112
    %v3114 = vmul.f32 %v3112, %v3113
    %vm3115 = vcmp.eq.f32.partialorder %v3112, inf
    %v3116 = vsel %vm3115, %v3112, %v3114
    %vm3117 = vcmp.eq.f32.partialorder %v3112, 0.0
    %v3118 = vand.u32 %v3112, 2147483648
    %v3119 = vsel %vm3117, %v3118, %v3116
    %v3120 = vadd.f32 %v3119, 1e-05
    %v3121 = vrcp.pop %v3120
    %v3122 = vmul.f32 %v3065, %v3121
    %v3123 = vmul.f32 %v3066, %v3121
    %v3124 = vmul.f32 %v3067, %v3121
    %v3125 = vmul.f32 %v3068, %v3121
    %v3126 = vmul.f32 %v3069, %v3121
    %v3127 = vmul.f32 %v3070, %v3121
    %v3128 = vmul.f32 %v3071, %v3121
    %v3129 = vmul.f32 %v3072, %v3121
    %v3130 = vmul.f32 %v3073, %v3121
    %v3131 = vmul.f32 %v3074, %v3121
    %v3132 = vmul.f32 %v3075, %v3121
    %v3133 = vmul.f32 %v3076, %v3121
    %v3134 = vmul.f32 %v3077, %v3121
    %v3135 = vmul.f32 %v3078, %v3121
    %v3136 = vmul.f32 %v3079, %v3121
    %v3137 = vmul.f32 %v3080, %v3121
    %s3138 = sld [smem:[#allocation2 + $0x2]]
    %v3139 = vstv %s3138
    %v3140 = vmul.f32 %v3122, %v3139
    %v3141 = vmul.f32 %v3123, %v3139
    %v3142 = vmul.f32 %v3124, %v3139
    %v3143 = vmul.f32 %v3125, %v3139
    %v3144 = vmul.f32 %v3126, %v3139
    %v3145 = vmul.f32 %v3127, %v3139
    %v3146 = vmul.f32 %v3128, %v3139
    %v3147 = vmul.f32 %v3129, %v3139
    %v3148 = vmul.f32 %v3130, %v3139
    %v3149 = vmul.f32 %v3131, %v3139
    %v3150 = vmul.f32 %v3132, %v3139
    %v3151 = vmul.f32 %v3133, %v3139
    %v3152 = vmul.f32 %v3134, %v3139
    %v3153 = vmul.f32 %v3135, %v3139
    %v3154 = vmul.f32 %v3136, %v3139
    %v3155 = vmul.f32 %v3137, %v3139
    %s3156 = sld [smem:[#allocation5 + $0x2]]
    %v3157 = vstv %s3156
    %v3158 = vadd.f32 %v3140, %v3157
    %v3159 = vadd.f32 %v3141, %v3157
    %v3160 = vadd.f32 %v3142, %v3157
    %v3161 = vadd.f32 %v3143, %v3157
    %v3162 = vadd.f32 %v3144, %v3157
    %v3163 = vadd.f32 %v3145, %v3157
    %v3164 = vadd.f32 %v3146, %v3157
    %v3165 = vadd.f32 %v3147, %v3157
    %v3166 = vadd.f32 %v3148, %v3157
    %v3167 = vadd.f32 %v3149, %v3157
    %v3168 = vadd.f32 %v3150, %v3157
    %v3169 = vadd.f32 %v3151, %v3157
    %v3170 = vadd.f32 %v3152, %v3157
    %v3171 = vadd.f32 %v3153, %v3157
    %v3172 = vadd.f32 %v3154, %v3157
    %v3173 = vadd.f32 %v3155, %v3157
    %v3174 = vxor.u32 %v3158, 2147483648
    %v3175 = vxor.u32 %v3159, 2147483648
    %v3176 = vxor.u32 %v3160, 2147483648
    %v3177 = vxor.u32 %v3161, 2147483648
    %v3178 = vxor.u32 %v3162, 2147483648
    %v3179 = vxor.u32 %v3163, 2147483648
    %v3180 = vxor.u32 %v3164, 2147483648
    %v3181 = vxor.u32 %v3165, 2147483648
    %v3182 = vxor.u32 %v3166, 2147483648
    %v3183 = vxor.u32 %v3167, 2147483648
    %v3184 = vxor.u32 %v3168, 2147483648
    %v3185 = vxor.u32 %v3169, 2147483648
    %v3186 = vxor.u32 %v3170, 2147483648
    %v3187 = vxor.u32 %v3171, 2147483648
    %v3188 = vxor.u32 %v3172, 2147483648
    %v3189 = vxor.u32 %v3173, 2147483648
    %v3190 = vmul.f32 %v3174, 1.442695
    %v3191 = vpow.pop %v3190
    %v3192 = vmul.f32 %v3175, 1.442695
    %v3193 = vpow.pop %v3192
    %v3194 = vmul.f32 %v3176, 1.442695
    %v3195 = vpow.pop %v3194
    %v3196 = vmul.f32 %v3177, 1.442695
    %v3197 = vpow.pop %v3196
    %v3198 = vmul.f32 %v3178, 1.442695
    %v3199 = vpow.pop %v3198
    %v3200 = vmul.f32 %v3179, 1.442695
    %v3201 = vpow.pop %v3200
    %v3202 = vmul.f32 %v3180, 1.442695
    %v3203 = vpow.pop %v3202
    %v3204 = vmul.f32 %v3181, 1.442695
    %v3205 = vpow.pop %v3204
    %v3206 = vmul.f32 %v3182, 1.442695
    %v3207 = vpow.pop %v3206
    %v3208 = vmul.f32 %v3183, 1.442695
    %v3209 = vpow.pop %v3208
    %v3210 = vmul.f32 %v3184, 1.442695
    %v3211 = vpow.pop %v3210
    %v3212 = vmul.f32 %v3185, 1.442695
    %v3213 = vpow.pop %v3212
    %v3214 = vmul.f32 %v3186, 1.442695
    %v3215 = vpow.pop %v3214
    %v3216 = vmul.f32 %v3187, 1.442695
    %v3217 = vpow.pop %v3216
    %v3218 = vmul.f32 %v3188, 1.442695
    %v3219 = vpow.pop %v3218
    %v3220 = vmul.f32 %v3189, 1.442695
    %v3221 = vpow.pop %v3220
    %v3222 = vadd.f32 %v3191, 1.0
    %v3223 = vadd.f32 %v3193, 1.0
    %v3224 = vadd.f32 %v3195, 1.0
    %v3225 = vadd.f32 %v3197, 1.0
    %v3226 = vadd.f32 %v3199, 1.0
    %v3227 = vadd.f32 %v3201, 1.0
    %v3228 = vadd.f32 %v3203, 1.0
    %v3229 = vadd.f32 %v3205, 1.0
    %v3230 = vadd.f32 %v3207, 1.0
    %v3231 = vadd.f32 %v3209, 1.0
    %v3232 = vadd.f32 %v3211, 1.0
    %v3233 = vadd.f32 %v3213, 1.0
    %v3234 = vadd.f32 %v3215, 1.0
    %v3235 = vadd.f32 %v3217, 1.0
    %v3236 = vadd.f32 %v3219, 1.0
    %v3237 = vadd.f32 %v3221, 1.0
    %v3238 = vrcp.pop %v3222
    %v3239 = vmul.f32 1.0, %v3238
    %v3240 = vrcp.pop %v3223
    %v3241 = vmul.f32 1.0, %v3240
    %v3242 = vrcp.pop %v3224
    %v3243 = vmul.f32 1.0, %v3242
    %v3244 = vrcp.pop %v3225
    %v3245 = vmul.f32 1.0, %v3244
    %v3246 = vrcp.pop %v3226
    %v3247 = vmul.f32 1.0, %v3246
    %v3248 = vrcp.pop %v3227
    %v3249 = vmul.f32 1.0, %v3248
    %v3250 = vrcp.pop %v3228
    %v3251 = vmul.f32 1.0, %v3250
    %v3252 = vrcp.pop %v3229
    %v3253 = vmul.f32 1.0, %v3252
    %v3254 = vrcp.pop %v3230
    %v3255 = vmul.f32 1.0, %v3254
    %v3256 = vrcp.pop %v3231
    %v3257 = vmul.f32 1.0, %v3256
    %v3258 = vrcp.pop %v3232
    %v3259 = vmul.f32 1.0, %v3258
    %v3260 = vrcp.pop %v3233
    %v3261 = vmul.f32 1.0, %v3260
    %v3262 = vrcp.pop %v3234
    %v3263 = vmul.f32 1.0, %v3262
    %v3264 = vrcp.pop %v3235
    %v3265 = vmul.f32 1.0, %v3264
    %v3266 = vrcp.pop %v3236
    %v3267 = vmul.f32 1.0, %v3266
    %v3268 = vrcp.pop %v3237
    %v3269 = vmul.f32 1.0, %v3268
    %v3270 = vmul.f32 %v2123, %v3239
    %v3271 = vmul.f32 %v2125, %v3241
    %v3272 = vmul.f32 %v2127, %v3243
    %v3273 = vmul.f32 %v2129, %v3245
    %v3274 = vmul.f32 %v2131, %v3247
    %v3275 = vmul.f32 %v2133, %v3249
    %v3276 = vmul.f32 %v2135, %v3251
    %v3277 = vmul.f32 %v2137, %v3253
    %v3278 = vmul.f32 %v2139, %v3255
    %v3279 = vmul.f32 %v2141, %v3257
    %v3280 = vmul.f32 %v2143, %v3259
    %v3281 = vmul.f32 %v2145, %v3261
    %v3282 = vmul.f32 %v2147, %v3263
    %v3283 = vmul.f32 %v2149, %v3265
    %v3284 = vmul.f32 %v2151, %v3267
    %v3285 = vmul.f32 %v2153, %v3269
    %vm3286 = vcmask 523648
    %v3287 = vsel %vm3286, %v2123, 0.0
    %v3288 = vsel %vm3286, %v2125, 0.0
    %v3289 = vadd.f32 %v3287, %v3288
    %v3290 = vsel %vm3286, %v2127, 0.0
    %v3291 = vadd.f32 %v3289, %v3290
    %v3292 = vsel %vm3286, %v2129, 0.0
    %v3293 = vadd.f32 %v3291, %v3292
    %v3294 = vsel %vm3286, %v2131, 0.0
    %v3295 = vadd.f32 %v3293, %v3294
    %v3296 = vsel %vm3286, %v2133, 0.0
    %v3297 = vadd.f32 %v3295, %v3296
    %v3298 = vsel %vm3286, %v2135, 0.0
    %v3299 = vadd.f32 %v3297, %v3298
    %v3300 = vsel %vm3286, %v2137, 0.0
    %v3301 = vadd.f32 %v3299, %v3300
    %v3302 = vsel %vm3286, %v2139, 0.0
    %v3303 = vadd.f32 %v3301, %v3302
    %v3304 = vsel %vm3286, %v2141, 0.0
    %v3305 = vadd.f32 %v3303, %v3304
    %v3306 = vsel %vm3286, %v2143, 0.0
    %v3307 = vadd.f32 %v3305, %v3306
    %v3308 = vsel %vm3286, %v2145, 0.0
    %v3309 = vadd.f32 %v3307, %v3308
    %v3310 = vsel %vm3286, %v2147, 0.0
    %v3311 = vadd.f32 %v3309, %v3310
    %v3312 = vsel %vm3286, %v2149, 0.0
    %v3313 = vadd.f32 %v3311, %v3312
    %v3314 = vsel %vm3286, %v2151, 0.0
    %v3315 = vadd.f32 %v3313, %v3314
    %v3316 = vsel %vm3286, %v2153, 0.0
    %v3317 = vadd.f32 %v3315, %v3316
    %v3318 = vmul.f32 %v3317, %v2186
    %v3319 = vmul.f32 %v2123, %v3318
    %v3320 = vmul.f32 %v2125, %v3318
    %v3321 = vmul.f32 %v2127, %v3318
    %v3322 = vmul.f32 %v2129, %v3318
    %v3323 = vmul.f32 %v2131, %v3318
    %v3324 = vmul.f32 %v2133, %v3318
    %v3325 = vmul.f32 %v2135, %v3318
    %v3326 = vmul.f32 %v2137, %v3318
    %v3327 = vmul.f32 %v2139, %v3318
    %v3328 = vmul.f32 %v2141, %v3318
    %v3329 = vmul.f32 %v2143, %v3318
    %v3330 = vmul.f32 %v2145, %v3318
    %v3331 = vmul.f32 %v2147, %v3318
    %v3332 = vmul.f32 %v2149, %v3318
    %v3333 = vmul.f32 %v2151, %v3318
    %v3334 = vmul.f32 %v2153, %v3318
    %3351 = vrot.lane.b32.xlu0 %v3319, 80
    %v3352 = vpop.permute.xlu0 %3351
    %3353 = vrot.lane.b32.xlu0 %v3320, 80
    %v3354 = vpop.permute.xlu0 %3353
    %3355 = vrot.lane.b32.xlu0 %v3321, 80
    %v3356 = vpop.permute.xlu0 %3355
    %3357 = vrot.lane.b32.xlu0 %v3322, 80
    %v3358 = vpop.permute.xlu0 %3357
    %3359 = vrot.lane.b32.xlu0 %v3323, 80
    %v3360 = vpop.permute.xlu0 %3359
    %3361 = vrot.lane.b32.xlu0 %v3324, 80
    %v3362 = vpop.permute.xlu0 %3361
    %3363 = vrot.lane.b32.xlu0 %v3325, 80
    %v3364 = vpop.permute.xlu0 %3363
    %3365 = vrot.lane.b32.xlu0 %v3326, 80
    %v3366 = vpop.permute.xlu0 %3365
    %3367 = vrot.lane.b32.xlu0 %v3327, 80
    %v3368 = vpop.permute.xlu0 %3367
    %3369 = vrot.lane.b32.xlu0 %v3328, 80
    %v3370 = vpop.permute.xlu0 %3369
    %3371 = vrot.lane.b32.xlu0 %v3329, 80
    %v3372 = vpop.permute.xlu0 %3371
    %3373 = vrot.lane.b32.xlu0 %v3330, 80
    %v3374 = vpop.permute.xlu0 %3373
    %3375 = vrot.lane.b32.xlu0 %v3331, 80
    %v3376 = vpop.permute.xlu0 %3375
    %3377 = vrot.lane.b32.xlu0 %v3332, 80
    %v3378 = vpop.permute.xlu0 %3377
    %3379 = vrot.lane.b32.xlu0 %v3333, 80
    %v3380 = vpop.permute.xlu0 %3379
    %3381 = vrot.lane.b32.xlu0 %v3334, 80
    %v3382 = vpop.permute.xlu0 %3381
    %v3399 = vsel %vm2154, %v3352, 0.0
    %3400 = vadd.xlane.f32.xlu0 %v3399
    %v3401 = vpop.xlane.xlu0 %3400
    %v3402 = vsel %vm2154, %v3354, 0.0
    %3403 = vadd.xlane.f32.xlu0 %v3402
    %v3404 = vpop.xlane.xlu0 %3403
    %v3405 = vsel %vm2154, %v3356, 0.0
    %3406 = vadd.xlane.f32.xlu0 %v3405
    %v3407 = vpop.xlane.xlu0 %3406
    %v3408 = vsel %vm2154, %v3358, 0.0
    %3409 = vadd.xlane.f32.xlu0 %v3408
    %v3410 = vpop.xlane.xlu0 %3409
    %v3411 = vsel %vm2154, %v3360, 0.0
    %3412 = vadd.xlane.f32.xlu0 %v3411
    %v3413 = vpop.xlane.xlu0 %3412
    %v3414 = vsel %vm2154, %v3362, 0.0
    %3415 = vadd.xlane.f32.xlu0 %v3414
    %v3416 = vpop.xlane.xlu0 %3415
    %v3417 = vsel %vm2154, %v3364, 0.0
    %3418 = vadd.xlane.f32.xlu0 %v3417
    %v3419 = vpop.xlane.xlu0 %3418
    %v3420 = vsel %vm2154, %v3366, 0.0
    %3421 = vadd.xlane.f32.xlu0 %v3420
    %v3422 = vpop.xlane.xlu0 %3421
    %v3423 = vsel %vm2154, %v3368, 0.0
    %3424 = vadd.xlane.f32.xlu0 %v3423
    %v3425 = vpop.xlane.xlu0 %3424
    %v3426 = vsel %vm2154, %v3370, 0.0
    %3427 = vadd.xlane.f32.xlu0 %v3426
    %v3428 = vpop.xlane.xlu0 %3427
    %v3429 = vsel %vm2154, %v3372, 0.0
    %3430 = vadd.xlane.f32.xlu0 %v3429
    %v3431 = vpop.xlane.xlu0 %3430
    %v3432 = vsel %vm2154, %v3374, 0.0
    %3433 = vadd.xlane.f32.xlu0 %v3432
    %v3434 = vpop.xlane.xlu0 %3433
    %v3435 = vsel %vm2154, %v3376, 0.0
    %3436 = vadd.xlane.f32.xlu0 %v3435
    %v3437 = vpop.xlane.xlu0 %3436
    %v3438 = vsel %vm2154, %v3378, 0.0
    %3439 = vadd.xlane.f32.xlu0 %v3438
    %v3440 = vpop.xlane.xlu0 %3439
    %v3441 = vsel %vm2154, %v3380, 0.0
    %3442 = vadd.xlane.f32.xlu0 %v3441
    %v3443 = vpop.xlane.xlu0 %3442
    %v3444 = vsel %vm2154, %v3382, 0.0
    %3445 = vadd.xlane.f32.xlu0 %v3444
    %v3446 = vpop.xlane.xlu0 %3445
    %v3447 = vadd.f32 %v3401, %v3404
    %v3448 = vadd.f32 %v3447, %v3407
    %v3449 = vadd.f32 %v3448, %v3410
    %v3450 = vadd.f32 %v3449, %v3413
    %v3451 = vadd.f32 %v3450, %v3416
    %v3452 = vadd.f32 %v3451, %v3419
    %v3453 = vadd.f32 %v3452, %v3422
    %v3454 = vadd.f32 %v3453, %v3425
    %v3455 = vadd.f32 %v3454, %v3428
    %v3456 = vadd.f32 %v3455, %v3431
    %v3457 = vadd.f32 %v3456, %v3434
    %v3458 = vadd.f32 %v3457, %v3437
    %v3459 = vadd.f32 %v3458, %v3440
    %v3460 = vadd.f32 %v3459, %v3443
    %v3461 = vadd.f32 %v3460, %v3446
    %v3462 = vmul.f32 %v3461, %v2186
    %v3463 = vsub.f32 %v3401, %v3462
    %v3464 = vsub.f32 %v3404, %v3462
    %v3465 = vsub.f32 %v3407, %v3462
    %v3466 = vsub.f32 %v3410, %v3462
    %v3467 = vsub.f32 %v3413, %v3462
    %v3468 = vsub.f32 %v3416, %v3462
    %v3469 = vsub.f32 %v3419, %v3462
    %v3470 = vsub.f32 %v3422, %v3462
    %v3471 = vsub.f32 %v3425, %v3462
    %v3472 = vsub.f32 %v3428, %v3462
    %v3473 = vsub.f32 %v3431, %v3462
    %v3474 = vsub.f32 %v3434, %v3462
    %v3475 = vsub.f32 %v3437, %v3462
    %v3476 = vsub.f32 %v3440, %v3462
    %v3477 = vsub.f32 %v3443, %v3462
    %v3478 = vsub.f32 %v3446, %v3462
    %v3479 = vmul.f32 %v3463, %v3463
    %v3480 = vmul.f32 %v3464, %v3464
    %v3481 = vmul.f32 %v3465, %v3465
    %v3482 = vmul.f32 %v3466, %v3466
    %v3483 = vmul.f32 %v3467, %v3467
    %v3484 = vmul.f32 %v3468, %v3468
    %v3485 = vmul.f32 %v3469, %v3469
    %v3486 = vmul.f32 %v3470, %v3470
    %v3487 = vmul.f32 %v3471, %v3471
    %v3488 = vmul.f32 %v3472, %v3472
    %v3489 = vmul.f32 %v3473, %v3473
    %v3490 = vmul.f32 %v3474, %v3474
    %v3491 = vmul.f32 %v3475, %v3475
    %v3492 = vmul.f32 %v3476, %v3476
    %v3493 = vmul.f32 %v3477, %v3477
    %v3494 = vmul.f32 %v3478, %v3478
    %v3495 = vadd.f32 %v3479, %v3480
    %v3496 = vadd.f32 %v3495, %v3481
    %v3497 = vadd.f32 %v3496, %v3482
    %v3498 = vadd.f32 %v3497, %v3483
    %v3499 = vadd.f32 %v3498, %v3484
    %v3500 = vadd.f32 %v3499, %v3485
    %v3501 = vadd.f32 %v3500, %v3486
    %v3502 = vadd.f32 %v3501, %v3487
    %v3503 = vadd.f32 %v3502, %v3488
    %v3504 = vadd.f32 %v3503, %v3489
    %v3505 = vadd.f32 %v3504, %v3490
    %v3506 = vadd.f32 %v3505, %v3491
    %v3507 = vadd.f32 %v3506, %v3492
    %v3508 = vadd.f32 %v3507, %v3493
    %v3509 = vadd.f32 %v3508, %v3494
    %v3510 = vmul.f32 %v3509, %v2315
    %v3511 = vrsqrt.pop %v3510
    %v3512 = vmul.f32 %v3510, %v3511
    %vm3513 = vcmp.eq.f32.partialorder %v3510, inf
    %v3514 = vsel %vm3513, %v3510, %v3512
    %vm3515 = vcmp.eq.f32.partialorder %v3510, 0.0
    %v3516 = vand.u32 %v3510, 2147483648
    %v3517 = vsel %vm3515, %v3516, %v3514
    %v3518 = vadd.f32 %v3517, 1e-05
    %v3519 = vrcp.pop %v3518
    %v3520 = vmul.f32 %v3463, %v3519
    %v3521 = vmul.f32 %v3464, %v3519
    %v3522 = vmul.f32 %v3465, %v3519
    %v3523 = vmul.f32 %v3466, %v3519
    %v3524 = vmul.f32 %v3467, %v3519
    %v3525 = vmul.f32 %v3468, %v3519
    %v3526 = vmul.f32 %v3469, %v3519
    %v3527 = vmul.f32 %v3470, %v3519
    %v3528 = vmul.f32 %v3471, %v3519
    %v3529 = vmul.f32 %v3472, %v3519
    %v3530 = vmul.f32 %v3473, %v3519
    %v3531 = vmul.f32 %v3474, %v3519
    %v3532 = vmul.f32 %v3475, %v3519
    %v3533 = vmul.f32 %v3476, %v3519
    %v3534 = vmul.f32 %v3477, %v3519
    %v3535 = vmul.f32 %v3478, %v3519
    %s3536 = sld [smem:[#allocation2 + $0x3]]
    %v3537 = vstv %s3536
    %v3538 = vmul.f32 %v3520, %v3537
    %v3539 = vmul.f32 %v3521, %v3537
    %v3540 = vmul.f32 %v3522, %v3537
    %v3541 = vmul.f32 %v3523, %v3537
    %v3542 = vmul.f32 %v3524, %v3537
    %v3543 = vmul.f32 %v3525, %v3537
    %v3544 = vmul.f32 %v3526, %v3537
    %v3545 = vmul.f32 %v3527, %v3537
    %v3546 = vmul.f32 %v3528, %v3537
    %v3547 = vmul.f32 %v3529, %v3537
    %v3548 = vmul.f32 %v3530, %v3537
    %v3549 = vmul.f32 %v3531, %v3537
    %v3550 = vmul.f32 %v3532, %v3537
    %v3551 = vmul.f32 %v3533, %v3537
    %v3552 = vmul.f32 %v3534, %v3537
    %v3553 = vmul.f32 %v3535, %v3537
    %s3554 = sld [smem:[#allocation5 + $0x3]]
    %v3555 = vstv %s3554
    %v3556 = vadd.f32 %v3538, %v3555
    %v3557 = vadd.f32 %v3539, %v3555
    %v3558 = vadd.f32 %v3540, %v3555
    %v3559 = vadd.f32 %v3541, %v3555
    %v3560 = vadd.f32 %v3542, %v3555
    %v3561 = vadd.f32 %v3543, %v3555
    %v3562 = vadd.f32 %v3544, %v3555
    %v3563 = vadd.f32 %v3545, %v3555
    %v3564 = vadd.f32 %v3546, %v3555
    %v3565 = vadd.f32 %v3547, %v3555
    %v3566 = vadd.f32 %v3548, %v3555
    %v3567 = vadd.f32 %v3549, %v3555
    %v3568 = vadd.f32 %v3550, %v3555
    %v3569 = vadd.f32 %v3551, %v3555
    %v3570 = vadd.f32 %v3552, %v3555
    %v3571 = vadd.f32 %v3553, %v3555
    %v3572 = vxor.u32 %v3556, 2147483648
    %v3573 = vxor.u32 %v3557, 2147483648
    %v3574 = vxor.u32 %v3558, 2147483648
    %v3575 = vxor.u32 %v3559, 2147483648
    %v3576 = vxor.u32 %v3560, 2147483648
    %v3577 = vxor.u32 %v3561, 2147483648
    %v3578 = vxor.u32 %v3562, 2147483648
    %v3579 = vxor.u32 %v3563, 2147483648
    %v3580 = vxor.u32 %v3564, 2147483648
    %v3581 = vxor.u32 %v3565, 2147483648
    %v3582 = vxor.u32 %v3566, 2147483648
    %v3583 = vxor.u32 %v3567, 2147483648
    %v3584 = vxor.u32 %v3568, 2147483648
    %v3585 = vxor.u32 %v3569, 2147483648
    %v3586 = vxor.u32 %v3570, 2147483648
    %v3587 = vxor.u32 %v3571, 2147483648
    %v3588 = vmul.f32 %v3572, 1.442695
    %v3589 = vpow.pop %v3588
    %v3590 = vmul.f32 %v3573, 1.442695
    %v3591 = vpow.pop %v3590
    %v3592 = vmul.f32 %v3574, 1.442695
    %v3593 = vpow.pop %v3592
    %v3594 = vmul.f32 %v3575, 1.442695
    %v3595 = vpow.pop %v3594
    %v3596 = vmul.f32 %v3576, 1.442695
    %v3597 = vpow.pop %v3596
    %v3598 = vmul.f32 %v3577, 1.442695
    %v3599 = vpow.pop %v3598
    %v3600 = vmul.f32 %v3578, 1.442695
    %v3601 = vpow.pop %v3600
    %v3602 = vmul.f32 %v3579, 1.442695
    %v3603 = vpow.pop %v3602
    %v3604 = vmul.f32 %v3580, 1.442695
    %v3605 = vpow.pop %v3604
    %v3606 = vmul.f32 %v3581, 1.442695
    %v3607 = vpow.pop %v3606
    %v3608 = vmul.f32 %v3582, 1.442695
    %v3609 = vpow.pop %v3608
    %v3610 = vmul.f32 %v3583, 1.442695
    %v3611 = vpow.pop %v3610
    %v3612 = vmul.f32 %v3584, 1.442695
    %v3613 = vpow.pop %v3612
    %v3614 = vmul.f32 %v3585, 1.442695
    %v3615 = vpow.pop %v3614
    %v3616 = vmul.f32 %v3586, 1.442695
    %v3617 = vpow.pop %v3616
    %v3618 = vmul.f32 %v3587, 1.442695
    %v3619 = vpow.pop %v3618
    %v3620 = vadd.f32 %v3589, 1.0
    %v3621 = vadd.f32 %v3591, 1.0
    %v3622 = vadd.f32 %v3593, 1.0
    %v3623 = vadd.f32 %v3595, 1.0
    %v3624 = vadd.f32 %v3597, 1.0
    %v3625 = vadd.f32 %v3599, 1.0
    %v3626 = vadd.f32 %v3601, 1.0
    %v3627 = vadd.f32 %v3603, 1.0
    %v3628 = vadd.f32 %v3605, 1.0
    %v3629 = vadd.f32 %v3607, 1.0
    %v3630 = vadd.f32 %v3609, 1.0
    %v3631 = vadd.f32 %v3611, 1.0
    %v3632 = vadd.f32 %v3613, 1.0
    %v3633 = vadd.f32 %v3615, 1.0
    %v3634 = vadd.f32 %v3617, 1.0
    %v3635 = vadd.f32 %v3619, 1.0
    %v3636 = vrcp.pop %v3620
    %v3637 = vmul.f32 1.0, %v3636
    %v3638 = vrcp.pop %v3621
    %v3639 = vmul.f32 1.0, %v3638
    %v3640 = vrcp.pop %v3622
    %v3641 = vmul.f32 1.0, %v3640
    %v3642 = vrcp.pop %v3623
    %v3643 = vmul.f32 1.0, %v3642
    %v3644 = vrcp.pop %v3624
    %v3645 = vmul.f32 1.0, %v3644
    %v3646 = vrcp.pop %v3625
    %v3647 = vmul.f32 1.0, %v3646
    %v3648 = vrcp.pop %v3626
    %v3649 = vmul.f32 1.0, %v3648
    %v3650 = vrcp.pop %v3627
    %v3651 = vmul.f32 1.0, %v3650
    %v3652 = vrcp.pop %v3628
    %v3653 = vmul.f32 1.0, %v3652
    %v3654 = vrcp.pop %v3629
    %v3655 = vmul.f32 1.0, %v3654
    %v3656 = vrcp.pop %v3630
    %v3657 = vmul.f32 1.0, %v3656
    %v3658 = vrcp.pop %v3631
    %v3659 = vmul.f32 1.0, %v3658
    %v3660 = vrcp.pop %v3632
    %v3661 = vmul.f32 1.0, %v3660
    %v3662 = vrcp.pop %v3633
    %v3663 = vmul.f32 1.0, %v3662
    %v3664 = vrcp.pop %v3634
    %v3665 = vmul.f32 1.0, %v3664
    %v3666 = vrcp.pop %v3635
    %v3667 = vmul.f32 1.0, %v3666
    %v3668 = vmul.f32 %v2123, %v3637
    %v3669 = vmul.f32 %v2125, %v3639
    %v3670 = vmul.f32 %v2127, %v3641
    %v3671 = vmul.f32 %v2129, %v3643
    %v3672 = vmul.f32 %v2131, %v3645
    %v3673 = vmul.f32 %v2133, %v3647
    %v3674 = vmul.f32 %v2135, %v3649
    %v3675 = vmul.f32 %v2137, %v3651
    %v3676 = vmul.f32 %v2139, %v3653
    %v3677 = vmul.f32 %v2141, %v3655
    %v3678 = vmul.f32 %v2143, %v3657
    %v3679 = vmul.f32 %v2145, %v3659
    %v3680 = vmul.f32 %v2147, %v3661
    %v3681 = vmul.f32 %v2149, %v3663
    %v3682 = vmul.f32 %v2151, %v3665
    %v3683 = vmul.f32 %v2153, %v3667
    %v3684 = vsel %vm2154, %v2474, %v2872
    %v3685 = vsel %vm2154, %v2475, %v2873
    %v3686 = vsel %vm2154, %v2476, %v2874
    %v3687 = vsel %vm2154, %v2477, %v2875
    %v3688 = vsel %vm2154, %v2478, %v2876
    %v3689 = vsel %vm2154, %v2479, %v2877
    %v3690 = vsel %vm2154, %v2480, %v2878
    %v3691 = vsel %vm2154, %v2481, %v2879
    %v3692 = vsel %vm2154, %v2482, %v2880
    %v3693 = vsel %vm2154, %v2483, %v2881
    %v3694 = vsel %vm2154, %v2484, %v2882
    %v3695 = vsel %vm2154, %v2485, %v2883
    %v3696 = vsel %vm2154, %v2486, %v2884
    %v3697 = vsel %vm2154, %v2487, %v2885
    %v3698 = vsel %vm2154, %v2488, %v2886
    %v3699 = vsel %vm2154, %v2489, %v2887
    %v3700 = vsel %vm250, %v3684, %v3270
    %v3701 = vsel %vm250, %v3685, %v3271
    %v3702 = vsel %vm250, %v3686, %v3272
    %v3703 = vsel %vm250, %v3687, %v3273
    %v3704 = vsel %vm250, %v3688, %v3274
    %v3705 = vsel %vm250, %v3689, %v3275
    %v3706 = vsel %vm250, %v3690, %v3276
    %v3707 = vsel %vm250, %v3691, %v3277
    %v3708 = vsel %vm250, %v3692, %v3278
    %v3709 = vsel %vm250, %v3693, %v3279
    %v3710 = vsel %vm250, %v3694, %v3280
    %v3711 = vsel %vm250, %v3695, %v3281
    %v3712 = vsel %vm250, %v3696, %v3282
    %v3713 = vsel %vm250, %v3697, %v3283
    %v3714 = vsel %vm250, %v3698, %v3284
    %v3715 = vsel %vm250, %v3699, %v3285
    %vm3716 = vcmask 392192
    %v3717 = vsel %vm3716, %v3700, %v3668
    %v3718 = vsel %vm3716, %v3701, %v3669
    %v3719 = vsel %vm3716, %v3702, %v3670
    %v3720 = vsel %vm3716, %v3703, %v3671
    %v3721 = vsel %vm3716, %v3704, %v3672
    %v3722 = vsel %vm3716, %v3705, %v3673
    %v3723 = vsel %vm3716, %v3706, %v3674
    %v3724 = vsel %vm3716, %v3707, %v3675
    %v3725 = vsel %vm3716, %v3708, %v3676
    %v3726 = vsel %vm3716, %v3709, %v3677
    %v3727 = vsel %vm3716, %v3710, %v3678
    %v3728 = vsel %vm3716, %v3711, %v3679
    %v3729 = vsel %vm3716, %v3712, %v3680
    %v3730 = vsel %vm3716, %v3713, %v3681
    %v3731 = vsel %vm3716, %v3714, %v3682
    %v3732 = vsel %vm3716, %v3715, %v3683
    %v3733 = vsel %vm267, %v3717, -inf
    %v3734 = vsel %vm267, %v3718, -inf
    %v3735 = vsel %vm267, %v3719, -inf
    %v3736 = vsel %vm267, %v3720, -inf
    %v3737 = vmax.f32 %v3733, %v3734
    %v3738 = vmax.f32 %v3735, %v3736
    %v3739 = vmax.f32 %v3737, %v3738
    %v3740 = vsel %vm267, %v3721, -inf
    %v3741 = vsel %vm267, %v3722, -inf
    %v3742 = vsel %vm267, %v3723, -inf
    %v3743 = vsel %vm267, %v3724, -inf
    %v3744 = vmax.f32 %v3740, %v3741
    %v3745 = vmax.f32 %v3742, %v3743
    %v3746 = vmax.f32 %v3744, %v3745
    %v3747 = vsel %vm267, %v3725, -inf
    %v3748 = vsel %vm267, %v3726, -inf
    %v3749 = vsel %vm267, %v3727, -inf
    %v3750 = vsel %vm267, %v3728, -inf
    %v3751 = vmax.f32 %v3747, %v3748
    %v3752 = vmax.f32 %v3749, %v3750
    %v3753 = vmax.f32 %v3751, %v3752
    %v3754 = vsel %vm267, %v3729, -inf
    %v3755 = vsel %vm267, %v3730, -inf
    %v3756 = vsel %vm267, %v3731, -inf
    %v3757 = vsel %vm267, %v3732, -inf
    %v3758 = vmax.f32 %v3754, %v3755
    %v3759 = vmax.f32 %v3756, %v3757
    %v3760 = vmax.f32 %v3758, %v3759
    %v3761 = vsel %vm267, %v1962, -inf
    %3762 = vmax.xlane.f32.xlu0 %v3761
    %v3763 = vpop.xlane.xlu0 %3762
    %v3764 = vsel %vm267, %v1963, -inf
    %3765 = vmax.xlane.f32.xlu0 %v3764
    %v3766 = vpop.xlane.xlu0 %3765
    %v3767 = vsel %vm267, %v1964, -inf
    %3768 = vmax.xlane.f32.xlu0 %v3767
    %v3769 = vpop.xlane.xlu0 %3768
    %v3770 = vsel %vm267, %v1965, -inf
    %3771 = vmax.xlane.f32.xlu0 %v3770
    %v3772 = vpop.xlane.xlu0 %3771
    %v3773 = vsel %vm267, %v1966, -inf
    %3774 = vmax.xlane.f32.xlu0 %v3773
    %v3775 = vpop.xlane.xlu0 %3774
    %v3776 = vsel %vm267, %v1967, -inf
    %3777 = vmax.xlane.f32.xlu0 %v3776
    %v3778 = vpop.xlane.xlu0 %3777
    %v3779 = vsel %vm267, %v1968, -inf
    %3780 = vmax.xlane.f32.xlu0 %v3779
    %v3781 = vpop.xlane.xlu0 %3780
    %v3782 = vsel %vm267, %v1969, -inf
    %3783 = vmax.xlane.f32.xlu0 %v3782
    %v3784 = vpop.xlane.xlu0 %3783
    %v3785 = vsel %vm267, %v1970, -inf
    %3786 = vmax.xlane.f32.xlu0 %v3785
    %v3787 = vpop.xlane.xlu0 %3786
    %v3788 = vsel %vm267, %v1971, -inf
    %3789 = vmax.xlane.f32.xlu0 %v3788
    %v3790 = vpop.xlane.xlu0 %3789
    %v3791 = vsel %vm267, %v1972, -inf
    %3792 = vmax.xlane.f32.xlu0 %v3791
    %v3793 = vpop.xlane.xlu0 %3792
    %v3794 = vsel %vm267, %v1973, -inf
    %3795 = vmax.xlane.f32.xlu0 %v3794
    %v3796 = vpop.xlane.xlu0 %3795
    %v3797 = vsel %vm267, %v1974, -inf
    %3798 = vmax.xlane.f32.xlu0 %v3797
    %v3799 = vpop.xlane.xlu0 %3798
    %v3800 = vsel %vm267, %v1975, -inf
    %3801 = vmax.xlane.f32.xlu0 %v3800
    %v3802 = vpop.xlane.xlu0 %3801
    %v3803 = vsel %vm267, %v1976, -inf
    %3804 = vmax.xlane.f32.xlu0 %v3803
    %v3805 = vpop.xlane.xlu0 %3804
    %v3806 = vsel %vm267, %v1977, -inf
    %3807 = vmax.xlane.f32.xlu0 %v3806
    %v3808 = vpop.xlane.xlu0 %3807
    %v3809 = vsub.f32 %v1962, %v3763
    %v3810 = vsub.f32 %v1963, %v3766
    %v3811 = vsub.f32 %v1964, %v3769
    %v3812 = vsub.f32 %v1965, %v3772
    %v3813 = vsub.f32 %v1966, %v3775
    %v3814 = vsub.f32 %v1967, %v3778
    %v3815 = vsub.f32 %v1968, %v3781
    %v3816 = vsub.f32 %v1969, %v3784
    %v3817 = vsub.f32 %v1970, %v3787
    %v3818 = vsub.f32 %v1971, %v3790
    %v3819 = vsub.f32 %v1972, %v3793
    %v3820 = vsub.f32 %v1973, %v3796
    %v3821 = vsub.f32 %v1974, %v3799
    %v3822 = vsub.f32 %v1975, %v3802
    %v3823 = vsub.f32 %v1976, %v3805
    %v3824 = vsub.f32 %v1977, %v3808
    %v3825 = vmul.f32 %v3809, 1.442695
    %v3826 = vpow.pop %v3825
    %v3827 = vmul.f32 %v3810, 1.442695
    %v3828 = vpow.pop %v3827
    %v3829 = vmul.f32 %v3811, 1.442695
    %v3830 = vpow.pop %v3829
    %v3831 = vmul.f32 %v3812, 1.442695
    %v3832 = vpow.pop %v3831
    %v3833 = vmul.f32 %v3813, 1.442695
    %v3834 = vpow.pop %v3833
    %v3835 = vmul.f32 %v3814, 1.442695
    %v3836 = vpow.pop %v3835
    %v3837 = vmul.f32 %v3815, 1.442695
    %v3838 = vpow.pop %v3837
    %v3839 = vmul.f32 %v3816, 1.442695
    %v3840 = vpow.pop %v3839
    %v3841 = vmul.f32 %v3817, 1.442695
    %v3842 = vpow.pop %v3841
    %v3843 = vmul.f32 %v3818, 1.442695
    %v3844 = vpow.pop %v3843
    %v3845 = vmul.f32 %v3819, 1.442695
    %v3846 = vpow.pop %v3845
    %v3847 = vmul.f32 %v3820, 1.442695
    %v3848 = vpow.pop %v3847
    %v3849 = vmul.f32 %v3821, 1.442695
    %v3850 = vpow.pop %v3849
    %v3851 = vmul.f32 %v3822, 1.442695
    %v3852 = vpow.pop %v3851
    %v3853 = vmul.f32 %v3823, 1.442695
    %v3854 = vpow.pop %v3853
    %v3855 = vmul.f32 %v3824, 1.442695
    %v3856 = vpow.pop %v3855
    %v3857 = vsel %vm267, %v3826, 0.0
    %3858 = vadd.xlane.f32.xlu0 %v3857
    %v3859 = vpop.xlane.xlu0 %3858
    %v3860 = vsel %vm267, %v3828, 0.0
    %3861 = vadd.xlane.f32.xlu0 %v3860
    %v3862 = vpop.xlane.xlu0 %3861
    %v3863 = vsel %vm267, %v3830, 0.0
    %3864 = vadd.xlane.f32.xlu0 %v3863
    %v3865 = vpop.xlane.xlu0 %3864
    %v3866 = vsel %vm267, %v3832, 0.0
    %3867 = vadd.xlane.f32.xlu0 %v3866
    %v3868 = vpop.xlane.xlu0 %3867
    %v3869 = vsel %vm267, %v3834, 0.0
    %3870 = vadd.xlane.f32.xlu0 %v3869
    %v3871 = vpop.xlane.xlu0 %3870
    %v3872 = vsel %vm267, %v3836, 0.0
    %3873 = vadd.xlane.f32.xlu0 %v3872
    %v3874 = vpop.xlane.xlu0 %3873
    %v3875 = vsel %vm267, %v3838, 0.0
    %3876 = vadd.xlane.f32.xlu0 %v3875
    %v3877 = vpop.xlane.xlu0 %3876
    %v3878 = vsel %vm267, %v3840, 0.0
    %3879 = vadd.xlane.f32.xlu0 %v3878
    %v3880 = vpop.xlane.xlu0 %3879
    %v3881 = vsel %vm267, %v3842, 0.0
    %3882 = vadd.xlane.f32.xlu0 %v3881
    %v3883 = vpop.xlane.xlu0 %3882
    %v3884 = vsel %vm267, %v3844, 0.0
    %3885 = vadd.xlane.f32.xlu0 %v3884
    %v3886 = vpop.xlane.xlu0 %3885
    %v3887 = vsel %vm267, %v3846, 0.0
    %3888 = vadd.xlane.f32.xlu0 %v3887
    %v3889 = vpop.xlane.xlu0 %3888
    %v3890 = vsel %vm267, %v3848, 0.0
    %3891 = vadd.xlane.f32.xlu0 %v3890
    %v3892 = vpop.xlane.xlu0 %3891
    %v3893 = vsel %vm267, %v3850, 0.0
    %3894 = vadd.xlane.f32.xlu0 %v3893
    %v3895 = vpop.xlane.xlu0 %3894
    %v3896 = vsel %vm267, %v3852, 0.0
    %3897 = vadd.xlane.f32.xlu0 %v3896
    %v3898 = vpop.xlane.xlu0 %3897
    %v3899 = vsel %vm267, %v3854, 0.0
    %3900 = vadd.xlane.f32.xlu0 %v3899
    %v3901 = vpop.xlane.xlu0 %3900
    %v3902 = vsel %vm267, %v3856, 0.0
    %3903 = vadd.xlane.f32.xlu0 %v3902
    %v3904 = vpop.xlane.xlu0 %3903
    %v3905 = vrcp.pop %v3859
    %v3906 = vmul.f32 %v3826, %v3905
    %v3907 = vrcp.pop %v3862
    %v3908 = vmul.f32 %v3828, %v3907
    %v3909 = vrcp.pop %v3865
    %v3910 = vmul.f32 %v3830, %v3909
    %v3911 = vrcp.pop %v3868
    %v3912 = vmul.f32 %v3832, %v3911
    %v3913 = vrcp.pop %v3871
    %v3914 = vmul.f32 %v3834, %v3913
    %v3915 = vrcp.pop %v3874
    %v3916 = vmul.f32 %v3836, %v3915
    %v3917 = vrcp.pop %v3877
    %v3918 = vmul.f32 %v3838, %v3917
    %v3919 = vrcp.pop %v3880
    %v3920 = vmul.f32 %v3840, %v3919
    %v3921 = vrcp.pop %v3883
    %v3922 = vmul.f32 %v3842, %v3921
    %v3923 = vrcp.pop %v3886
    %v3924 = vmul.f32 %v3844, %v3923
    %v3925 = vrcp.pop %v3889
    %v3926 = vmul.f32 %v3846, %v3925
    %v3927 = vrcp.pop %v3892
    %v3928 = vmul.f32 %v3848, %v3927
    %v3929 = vrcp.pop %v3895
    %v3930 = vmul.f32 %v3850, %v3929
    %v3931 = vrcp.pop %v3898
    %v3932 = vmul.f32 %v3852, %v3931
    %v3933 = vrcp.pop %v3901
    %v3934 = vmul.f32 %v3854, %v3933
    %v3935 = vrcp.pop %v3904
    %v3936 = vmul.f32 %v3856, %v3935
    %v3937 = vsel %vm2154, %v3906, 0.0
    %v3938 = vsel %vm2154, %v3908, 0.0
    %v3939 = vadd.f32 %v3937, %v3938
    %v3940 = vsel %vm2154, %v3910, 0.0
    %v3941 = vadd.f32 %v3939, %v3940
    %v3942 = vsel %vm2154, %v3912, 0.0
    %v3943 = vadd.f32 %v3941, %v3942
    %v3944 = vsel %vm2154, %v3914, 0.0
    %v3945 = vadd.f32 %v3943, %v3944
    %v3946 = vsel %vm2154, %v3916, 0.0
    %v3947 = vadd.f32 %v3945, %v3946
    %v3948 = vsel %vm2154, %v3918, 0.0
    %v3949 = vadd.f32 %v3947, %v3948
    %v3950 = vsel %vm2154, %v3920, 0.0
    %v3951 = vadd.f32 %v3949, %v3950
    %v3952 = vsel %vm2154, %v3922, 0.0
    %v3953 = vadd.f32 %v3951, %v3952
    %v3954 = vsel %vm2154, %v3924, 0.0
    %v3955 = vadd.f32 %v3953, %v3954
    %v3956 = vsel %vm2154, %v3926, 0.0
    %v3957 = vadd.f32 %v3955, %v3956
    %v3958 = vsel %vm2154, %v3928, 0.0
    %v3959 = vadd.f32 %v3957, %v3958
    %v3960 = vsel %vm2154, %v3930, 0.0
    %v3961 = vadd.f32 %v3959, %v3960
    %v3962 = vsel %vm2154, %v3932, 0.0
    %v3963 = vadd.f32 %v3961, %v3962
    %v3964 = vsel %vm2154, %v3934, 0.0
    %v3965 = vadd.f32 %v3963, %v3964
    %v3966 = vsel %vm2154, %v3936, 0.0
    %v3967 = vadd.f32 %v3965, %v3966
    %v3968 = vmul.f32 %v3967, %v2186
    %v3969 = vmul.f32 %v3906, %v3968
    %v3970 = vmul.f32 %v3908, %v3968
    %v3971 = vmul.f32 %v3910, %v3968
    %v3972 = vmul.f32 %v3912, %v3968
    %v3973 = vmul.f32 %v3914, %v3968
    %v3974 = vmul.f32 %v3916, %v3968
    %v3975 = vmul.f32 %v3918, %v3968
    %v3976 = vmul.f32 %v3920, %v3968
    %v3977 = vmul.f32 %v3922, %v3968
    %v3978 = vmul.f32 %v3924, %v3968
    %v3979 = vmul.f32 %v3926, %v3968
    %v3980 = vmul.f32 %v3928, %v3968
    %v3981 = vmul.f32 %v3930, %v3968
    %v3982 = vmul.f32 %v3932, %v3968
    %v3983 = vmul.f32 %v3934, %v3968
    %v3984 = vmul.f32 %v3936, %v3968
    %v3985 = vsel %vm2154, %v3969, 0.0
    %3986 = vadd.xlane.f32.xlu0 %v3985
    %v3987 = vpop.xlane.xlu0 %3986
    %v3988 = vsel %vm2154, %v3970, 0.0
    %3989 = vadd.xlane.f32.xlu0 %v3988
    %v3990 = vpop.xlane.xlu0 %3989
    %v3991 = vsel %vm2154, %v3971, 0.0
    %3992 = vadd.xlane.f32.xlu0 %v3991
    %v3993 = vpop.xlane.xlu0 %3992
    %v3994 = vsel %vm2154, %v3972, 0.0
    %3995 = vadd.xlane.f32.xlu0 %v3994
    %v3996 = vpop.xlane.xlu0 %3995
    %v3997 = vsel %vm2154, %v3973, 0.0
    %3998 = vadd.xlane.f32.xlu0 %v3997
    %v3999 = vpop.xlane.xlu0 %3998
    %v4000 = vsel %vm2154, %v3974, 0.0
    %4001 = vadd.xlane.f32.xlu0 %v4000
    %v4002 = vpop.xlane.xlu0 %4001
    %v4003 = vsel %vm2154, %v3975, 0.0
    %4004 = vadd.xlane.f32.xlu0 %v4003
    %v4005 = vpop.xlane.xlu0 %4004
    %v4006 = vsel %vm2154, %v3976, 0.0
    %4007 = vadd.xlane.f32.xlu0 %v4006
    %v4008 = vpop.xlane.xlu0 %4007
    %v4009 = vsel %vm2154, %v3977, 0.0
    %4010 = vadd.xlane.f32.xlu0 %v4009
    %v4011 = vpop.xlane.xlu0 %4010
    %v4012 = vsel %vm2154, %v3978, 0.0
    %4013 = vadd.xlane.f32.xlu0 %v4012
    %v4014 = vpop.xlane.xlu0 %4013
    %v4015 = vsel %vm2154, %v3979, 0.0
    %4016 = vadd.xlane.f32.xlu0 %v4015
    %v4017 = vpop.xlane.xlu0 %4016
    %v4018 = vsel %vm2154, %v3980, 0.0
    %4019 = vadd.xlane.f32.xlu0 %v4018
    %v4020 = vpop.xlane.xlu0 %4019
    %v4021 = vsel %vm2154, %v3981, 0.0
    %4022 = vadd.xlane.f32.xlu0 %v4021
    %v4023 = vpop.xlane.xlu0 %4022
    %v4024 = vsel %vm2154, %v3982, 0.0
    %4025 = vadd.xlane.f32.xlu0 %v4024
    %v4026 = vpop.xlane.xlu0 %4025
    %v4027 = vsel %vm2154, %v3983, 0.0
    %4028 = vadd.xlane.f32.xlu0 %v4027
    %v4029 = vpop.xlane.xlu0 %4028
    %v4030 = vsel %vm2154, %v3984, 0.0
    %4031 = vadd.xlane.f32.xlu0 %v4030
    %v4032 = vpop.xlane.xlu0 %4031
    %v4033 = vadd.f32 %v3987, %v3990
    %v4034 = vadd.f32 %v4033, %v3993
    %v4035 = vadd.f32 %v4034, %v3996
    %v4036 = vadd.f32 %v4035, %v3999
    %v4037 = vadd.f32 %v4036, %v4002
    %v4038 = vadd.f32 %v4037, %v4005
    %v4039 = vadd.f32 %v4038, %v4008
    %v4040 = vadd.f32 %v4039, %v4011
    %v4041 = vadd.f32 %v4040, %v4014
    %v4042 = vadd.f32 %v4041, %v4017
    %v4043 = vadd.f32 %v4042, %v4020
    %v4044 = vadd.f32 %v4043, %v4023
    %v4045 = vadd.f32 %v4044, %v4026
    %v4046 = vadd.f32 %v4045, %v4029
    %v4047 = vadd.f32 %v4046, %v4032
    %v4048 = vmul.f32 %v4047, %v2186
    %v4049 = vsub.f32 %v3987, %v4048
    %v4050 = vsub.f32 %v3990, %v4048
    %v4051 = vsub.f32 %v3993, %v4048
    %v4052 = vsub.f32 %v3996, %v4048
    %v4053 = vsub.f32 %v3999, %v4048
    %v4054 = vsub.f32 %v4002, %v4048
    %v4055 = vsub.f32 %v4005, %v4048
    %v4056 = vsub.f32 %v4008, %v4048
    %v4057 = vsub.f32 %v4011, %v4048
    %v4058 = vsub.f32 %v4014, %v4048
    %v4059 = vsub.f32 %v4017, %v4048
    %v4060 = vsub.f32 %v4020, %v4048
    %v4061 = vsub.f32 %v4023, %v4048
    %v4062 = vsub.f32 %v4026, %v4048
    %v4063 = vsub.f32 %v4029, %v4048
    %v4064 = vsub.f32 %v4032, %v4048
    %v4065 = vmul.f32 %v4049, %v4049
    %v4066 = vmul.f32 %v4050, %v4050
    %v4067 = vmul.f32 %v4051, %v4051
    %v4068 = vmul.f32 %v4052, %v4052
    %v4069 = vmul.f32 %v4053, %v4053
    %v4070 = vmul.f32 %v4054, %v4054
    %v4071 = vmul.f32 %v4055, %v4055
    %v4072 = vmul.f32 %v4056, %v4056
    %v4073 = vmul.f32 %v4057, %v4057
    %v4074 = vmul.f32 %v4058, %v4058
    %v4075 = vmul.f32 %v4059, %v4059
    %v4076 = vmul.f32 %v4060, %v4060
    %v4077 = vmul.f32 %v4061, %v4061
    %v4078 = vmul.f32 %v4062, %v4062
    %v4079 = vmul.f32 %v4063, %v4063
    %v4080 = vmul.f32 %v4064, %v4064
    %v4081 = vadd.f32 %v4065, %v4066
    %v4082 = vadd.f32 %v4081, %v4067
    %v4083 = vadd.f32 %v4082, %v4068
    %v4084 = vadd.f32 %v4083, %v4069
    %v4085 = vadd.f32 %v4084, %v4070
    %v4086 = vadd.f32 %v4085, %v4071
    %v4087 = vadd.f32 %v4086, %v4072
    %v4088 = vadd.f32 %v4087, %v4073
    %v4089 = vadd.f32 %v4088, %v4074
    %v4090 = vadd.f32 %v4089, %v4075
    %v4091 = vadd.f32 %v4090, %v4076
    %v4092 = vadd.f32 %v4091, %v4077
    %v4093 = vadd.f32 %v4092, %v4078
    %v4094 = vadd.f32 %v4093, %v4079
    %v4095 = vadd.f32 %v4094, %v4080
    %v4096 = vmul.f32 %v4095, %v2315
    %v4097 = vrsqrt.pop %v4096
    %v4098 = vmul.f32 %v4096, %v4097
    %vm4099 = vcmp.eq.f32.partialorder %v4096, inf
    %v4100 = vsel %vm4099, %v4096, %v4098
    %vm4101 = vcmp.eq.f32.partialorder %v4096, 0.0
    %v4102 = vand.u32 %v4096, 2147483648
    %v4103 = vsel %vm4101, %v4102, %v4100
    %v4104 = vadd.f32 %v4103, 1e-05
    %v4105 = vrcp.pop %v4104
    %v4106 = vmul.f32 %v4049, %v4105
    %v4107 = vmul.f32 %v4050, %v4105
    %v4108 = vmul.f32 %v4051, %v4105
    %v4109 = vmul.f32 %v4052, %v4105
    %v4110 = vmul.f32 %v4053, %v4105
    %v4111 = vmul.f32 %v4054, %v4105
    %v4112 = vmul.f32 %v4055, %v4105
    %v4113 = vmul.f32 %v4056, %v4105
    %v4114 = vmul.f32 %v4057, %v4105
    %v4115 = vmul.f32 %v4058, %v4105
    %v4116 = vmul.f32 %v4059, %v4105
    %v4117 = vmul.f32 %v4060, %v4105
    %v4118 = vmul.f32 %v4061, %v4105
    %v4119 = vmul.f32 %v4062, %v4105
    %v4120 = vmul.f32 %v4063, %v4105
    %v4121 = vmul.f32 %v4064, %v4105
    %v4122 = vmul.f32 %v4106, %v2343
    %v4123 = vmul.f32 %v4107, %v2343
    %v4124 = vmul.f32 %v4108, %v2343
    %v4125 = vmul.f32 %v4109, %v2343
    %v4126 = vmul.f32 %v4110, %v2343
    %v4127 = vmul.f32 %v4111, %v2343
    %v4128 = vmul.f32 %v4112, %v2343
    %v4129 = vmul.f32 %v4113, %v2343
    %v4130 = vmul.f32 %v4114, %v2343
    %v4131 = vmul.f32 %v4115, %v2343
    %v4132 = vmul.f32 %v4116, %v2343
    %v4133 = vmul.f32 %v4117, %v2343
    %v4134 = vmul.f32 %v4118, %v2343
    %v4135 = vmul.f32 %v4119, %v2343
    %v4136 = vmul.f32 %v4120, %v2343
    %v4137 = vmul.f32 %v4121, %v2343
    %v4138 = vadd.f32 %v4122, %v2361
    %v4139 = vadd.f32 %v4123, %v2361
    %v4140 = vadd.f32 %v4124, %v2361
    %v4141 = vadd.f32 %v4125, %v2361
    %v4142 = vadd.f32 %v4126, %v2361
    %v4143 = vadd.f32 %v4127, %v2361
    %v4144 = vadd.f32 %v4128, %v2361
    %v4145 = vadd.f32 %v4129, %v2361
    %v4146 = vadd.f32 %v4130, %v2361
    %v4147 = vadd.f32 %v4131, %v2361
    %v4148 = vadd.f32 %v4132, %v2361
    %v4149 = vadd.f32 %v4133, %v2361
    %v4150 = vadd.f32 %v4134, %v2361
    %v4151 = vadd.f32 %v4135, %v2361
    %v4152 = vadd.f32 %v4136, %v2361
    %v4153 = vadd.f32 %v4137, %v2361
    %v4154 = vxor.u32 %v4138, 2147483648
    %v4155 = vxor.u32 %v4139, 2147483648
    %v4156 = vxor.u32 %v4140, 2147483648
    %v4157 = vxor.u32 %v4141, 2147483648
    %v4158 = vxor.u32 %v4142, 2147483648
    %v4159 = vxor.u32 %v4143, 2147483648
    %v4160 = vxor.u32 %v4144, 2147483648
    %v4161 = vxor.u32 %v4145, 2147483648
    %v4162 = vxor.u32 %v4146, 2147483648
    %v4163 = vxor.u32 %v4147, 2147483648
    %v4164 = vxor.u32 %v4148, 2147483648
    %v4165 = vxor.u32 %v4149, 2147483648
    %v4166 = vxor.u32 %v4150, 2147483648
    %v4167 = vxor.u32 %v4151, 2147483648
    %v4168 = vxor.u32 %v4152, 2147483648
    %v4169 = vxor.u32 %v4153, 2147483648
    %v4170 = vmul.f32 %v4154, 1.442695
    %v4171 = vpow.pop %v4170
    %v4172 = vmul.f32 %v4155, 1.442695
    %v4173 = vpow.pop %v4172
    %v4174 = vmul.f32 %v4156, 1.442695
    %v4175 = vpow.pop %v4174
    %v4176 = vmul.f32 %v4157, 1.442695
    %v4177 = vpow.pop %v4176
    %v4178 = vmul.f32 %v4158, 1.442695
    %v4179 = vpow.pop %v4178
    %v4180 = vmul.f32 %v4159, 1.442695
    %v4181 = vpow.pop %v4180
    %v4182 = vmul.f32 %v4160, 1.442695
    %v4183 = vpow.pop %v4182
    %v4184 = vmul.f32 %v4161, 1.442695
    %v4185 = vpow.pop %v4184
    %v4186 = vmul.f32 %v4162, 1.442695
    %v4187 = vpow.pop %v4186
    %v4188 = vmul.f32 %v4163, 1.442695
    %v4189 = vpow.pop %v4188
    %v4190 = vmul.f32 %v4164, 1.442695
    %v4191 = vpow.pop %v4190
    %v4192 = vmul.f32 %v4165, 1.442695
    %v4193 = vpow.pop %v4192
    %v4194 = vmul.f32 %v4166, 1.442695
    %v4195 = vpow.pop %v4194
    %v4196 = vmul.f32 %v4167, 1.442695
    %v4197 = vpow.pop %v4196
    %v4198 = vmul.f32 %v4168, 1.442695
    %v4199 = vpow.pop %v4198
    %v4200 = vmul.f32 %v4169, 1.442695
    %v4201 = vpow.pop %v4200
    %v4202 = vadd.f32 %v4171, 1.0
    %v4203 = vadd.f32 %v4173, 1.0
    %v4204 = vadd.f32 %v4175, 1.0
    %v4205 = vadd.f32 %v4177, 1.0
    %v4206 = vadd.f32 %v4179, 1.0
    %v4207 = vadd.f32 %v4181, 1.0
    %v4208 = vadd.f32 %v4183, 1.0
    %v4209 = vadd.f32 %v4185, 1.0
    %v4210 = vadd.f32 %v4187, 1.0
    %v4211 = vadd.f32 %v4189, 1.0
    %v4212 = vadd.f32 %v4191, 1.0
    %v4213 = vadd.f32 %v4193, 1.0
    %v4214 = vadd.f32 %v4195, 1.0
    %v4215 = vadd.f32 %v4197, 1.0
    %v4216 = vadd.f32 %v4199, 1.0
    %v4217 = vadd.f32 %v4201, 1.0
    %v4218 = vrcp.pop %v4202
    %v4219 = vmul.f32 1.0, %v4218
    %v4220 = vrcp.pop %v4203
    %v4221 = vmul.f32 1.0, %v4220
    %v4222 = vrcp.pop %v4204
    %v4223 = vmul.f32 1.0, %v4222
    %v4224 = vrcp.pop %v4205
    %v4225 = vmul.f32 1.0, %v4224
    %v4226 = vrcp.pop %v4206
    %v4227 = vmul.f32 1.0, %v4226
    %v4228 = vrcp.pop %v4207
    %v4229 = vmul.f32 1.0, %v4228
    %v4230 = vrcp.pop %v4208
    %v4231 = vmul.f32 1.0, %v4230
    %v4232 = vrcp.pop %v4209
    %v4233 = vmul.f32 1.0, %v4232
    %v4234 = vrcp.pop %v4210
    %v4235 = vmul.f32 1.0, %v4234
    %v4236 = vrcp.pop %v4211
    %v4237 = vmul.f32 1.0, %v4236
    %v4238 = vrcp.pop %v4212
    %v4239 = vmul.f32 1.0, %v4238
    %v4240 = vrcp.pop %v4213
    %v4241 = vmul.f32 1.0, %v4240
    %v4242 = vrcp.pop %v4214
    %v4243 = vmul.f32 1.0, %v4242
    %v4244 = vrcp.pop %v4215
    %v4245 = vmul.f32 1.0, %v4244
    %v4246 = vrcp.pop %v4216
    %v4247 = vmul.f32 1.0, %v4246
    %v4248 = vrcp.pop %v4217
    %v4249 = vmul.f32 1.0, %v4248
    %v4250 = vmul.f32 %v3906, %v4219
    %v4251 = vmul.f32 %v3908, %v4221
    %v4252 = vmul.f32 %v3910, %v4223
    %v4253 = vmul.f32 %v3912, %v4225
    %v4254 = vmul.f32 %v3914, %v4227
    %v4255 = vmul.f32 %v3916, %v4229
    %v4256 = vmul.f32 %v3918, %v4231
    %v4257 = vmul.f32 %v3920, %v4233
    %v4258 = vmul.f32 %v3922, %v4235
    %v4259 = vmul.f32 %v3924, %v4237
    %v4260 = vmul.f32 %v3926, %v4239
    %v4261 = vmul.f32 %v3928, %v4241
    %v4262 = vmul.f32 %v3930, %v4243
    %v4263 = vmul.f32 %v3932, %v4245
    %v4264 = vmul.f32 %v3934, %v4247
    %v4265 = vmul.f32 %v3936, %v4249
    %v4266 = vsel %vm2490, %v3906, 0.0
    %v4267 = vsel %vm2490, %v3908, 0.0
    %v4268 = vadd.f32 %v4266, %v4267
    %v4269 = vsel %vm2490, %v3910, 0.0
    %v4270 = vadd.f32 %v4268, %v4269
    %v4271 = vsel %vm2490, %v3912, 0.0
    %v4272 = vadd.f32 %v4270, %v4271
    %v4273 = vsel %vm2490, %v3914, 0.0
    %v4274 = vadd.f32 %v4272, %v4273
    %v4275 = vsel %vm2490, %v3916, 0.0
    %v4276 = vadd.f32 %v4274, %v4275
    %v4277 = vsel %vm2490, %v3918, 0.0
    %v4278 = vadd.f32 %v4276, %v4277
    %v4279 = vsel %vm2490, %v3920, 0.0
    %v4280 = vadd.f32 %v4278, %v4279
    %v4281 = vsel %vm2490, %v3922, 0.0
    %v4282 = vadd.f32 %v4280, %v4281
    %v4283 = vsel %vm2490, %v3924, 0.0
    %v4284 = vadd.f32 %v4282, %v4283
    %v4285 = vsel %vm2490, %v3926, 0.0
    %v4286 = vadd.f32 %v4284, %v4285
    %v4287 = vsel %vm2490, %v3928, 0.0
    %v4288 = vadd.f32 %v4286, %v4287
    %v4289 = vsel %vm2490, %v3930, 0.0
    %v4290 = vadd.f32 %v4288, %v4289
    %v4291 = vsel %vm2490, %v3932, 0.0
    %v4292 = vadd.f32 %v4290, %v4291
    %v4293 = vsel %vm2490, %v3934, 0.0
    %v4294 = vadd.f32 %v4292, %v4293
    %v4295 = vsel %vm2490, %v3936, 0.0
    %v4296 = vadd.f32 %v4294, %v4295
    %v4297 = vmul.f32 %v4296, %v2186
    %v4298 = vmul.f32 %v3906, %v4297
    %v4299 = vmul.f32 %v3908, %v4297
    %v4300 = vmul.f32 %v3910, %v4297
    %v4301 = vmul.f32 %v3912, %v4297
    %v4302 = vmul.f32 %v3914, %v4297
    %v4303 = vmul.f32 %v3916, %v4297
    %v4304 = vmul.f32 %v3918, %v4297
    %v4305 = vmul.f32 %v3920, %v4297
    %v4306 = vmul.f32 %v3922, %v4297
    %v4307 = vmul.f32 %v3924, %v4297
    %v4308 = vmul.f32 %v3926, %v4297
    %v4309 = vmul.f32 %v3928, %v4297
    %v4310 = vmul.f32 %v3930, %v4297
    %v4311 = vmul.f32 %v3932, %v4297
    %v4312 = vmul.f32 %v3934, %v4297
    %v4313 = vmul.f32 %v3936, %v4297
    %4330 = vrot.lane.b32.xlu0 %v4298, 112
    %v4331 = vpop.permute.xlu0 %4330
    %4332 = vrot.lane.b32.xlu0 %v4299, 112
    %v4333 = vpop.permute.xlu0 %4332
    %4334 = vrot.lane.b32.xlu0 %v4300, 112
    %v4335 = vpop.permute.xlu0 %4334
    %4336 = vrot.lane.b32.xlu0 %v4301, 112
    %v4337 = vpop.permute.xlu0 %4336
    %4338 = vrot.lane.b32.xlu0 %v4302, 112
    %v4339 = vpop.permute.xlu0 %4338
    %4340 = vrot.lane.b32.xlu0 %v4303, 112
    %v4341 = vpop.permute.xlu0 %4340
    %4342 = vrot.lane.b32.xlu0 %v4304, 112
    %v4343 = vpop.permute.xlu0 %4342
    %4344 = vrot.lane.b32.xlu0 %v4305, 112
    %v4345 = vpop.permute.xlu0 %4344
    %4346 = vrot.lane.b32.xlu0 %v4306, 112
    %v4347 = vpop.permute.xlu0 %4346
    %4348 = vrot.lane.b32.xlu0 %v4307, 112
    %v4349 = vpop.permute.xlu0 %4348
    %4350 = vrot.lane.b32.xlu0 %v4308, 112
    %v4351 = vpop.permute.xlu0 %4350
    %4352 = vrot.lane.b32.xlu0 %v4309, 112
    %v4353 = vpop.permute.xlu0 %4352
    %4354 = vrot.lane.b32.xlu0 %v4310, 112
    %v4355 = vpop.permute.xlu0 %4354
    %4356 = vrot.lane.b32.xlu0 %v4311, 112
    %v4357 = vpop.permute.xlu0 %4356
    %4358 = vrot.lane.b32.xlu0 %v4312, 112
    %v4359 = vpop.permute.xlu0 %4358
    %4360 = vrot.lane.b32.xlu0 %v4313, 112
    %v4361 = vpop.permute.xlu0 %4360
    %v4378 = vsel %vm2154, %v4331, 0.0
    %4379 = vadd.xlane.f32.xlu0 %v4378
    %v4380 = vpop.xlane.xlu0 %4379
    %v4381 = vsel %vm2154, %v4333, 0.0
    %4382 = vadd.xlane.f32.xlu0 %v4381
    %v4383 = vpop.xlane.xlu0 %4382
    %v4384 = vsel %vm2154, %v4335, 0.0
    %4385 = vadd.xlane.f32.xlu0 %v4384
    %v4386 = vpop.xlane.xlu0 %4385
    %v4387 = vsel %vm2154, %v4337, 0.0
    %4388 = vadd.xlane.f32.xlu0 %v4387
    %v4389 = vpop.xlane.xlu0 %4388
    %v4390 = vsel %vm2154, %v4339, 0.0
    %4391 = vadd.xlane.f32.xlu0 %v4390
    %v4392 = vpop.xlane.xlu0 %4391
    %v4393 = vsel %vm2154, %v4341, 0.0
    %4394 = vadd.xlane.f32.xlu0 %v4393
    %v4395 = vpop.xlane.xlu0 %4394
    %v4396 = vsel %vm2154, %v4343, 0.0
    %4397 = vadd.xlane.f32.xlu0 %v4396
    %v4398 = vpop.xlane.xlu0 %4397
    %v4399 = vsel %vm2154, %v4345, 0.0
    %4400 = vadd.xlane.f32.xlu0 %v4399
    %v4401 = vpop.xlane.xlu0 %4400
    %v4402 = vsel %vm2154, %v4347, 0.0
    %4403 = vadd.xlane.f32.xlu0 %v4402
    %v4404 = vpop.xlane.xlu0 %4403
    %v4405 = vsel %vm2154, %v4349, 0.0
    %4406 = vadd.xlane.f32.xlu0 %v4405
    %v4407 = vpop.xlane.xlu0 %4406
    %v4408 = vsel %vm2154, %v4351, 0.0
    %4409 = vadd.xlane.f32.xlu0 %v4408
    %v4410 = vpop.xlane.xlu0 %4409
    %v4411 = vsel %vm2154, %v4353, 0.0
    %4412 = vadd.xlane.f32.xlu0 %v4411
    %v4413 = vpop.xlane.xlu0 %4412
    %v4414 = vsel %vm2154, %v4355, 0.0
    %4415 = vadd.xlane.f32.xlu0 %v4414
    %v4416 = vpop.xlane.xlu0 %4415
    %v4417 = vsel %vm2154, %v4357, 0.0
    %4418 = vadd.xlane.f32.xlu0 %v4417
    %v4419 = vpop.xlane.xlu0 %4418
    %v4420 = vsel %vm2154, %v4359, 0.0
    %4421 = vadd.xlane.f32.xlu0 %v4420
    %v4422 = vpop.xlane.xlu0 %4421
    %v4423 = vsel %vm2154, %v4361, 0.0
    %4424 = vadd.xlane.f32.xlu0 %v4423
    %v4425 = vpop.xlane.xlu0 %4424
    %v4426 = vadd.f32 %v4380, %v4383
    %v4427 = vadd.f32 %v4426, %v4386
    %v4428 = vadd.f32 %v4427, %v4389
    %v4429 = vadd.f32 %v4428, %v4392
    %v4430 = vadd.f32 %v4429, %v4395
    %v4431 = vadd.f32 %v4430, %v4398
    %v4432 = vadd.f32 %v4431, %v4401
    %v4433 = vadd.f32 %v4432, %v4404
    %v4434 = vadd.f32 %v4433, %v4407
    %v4435 = vadd.f32 %v4434, %v4410
    %v4436 = vadd.f32 %v4435, %v4413
    %v4437 = vadd.f32 %v4436, %v4416
    %v4438 = vadd.f32 %v4437, %v4419
    %v4439 = vadd.f32 %v4438, %v4422
    %v4440 = vadd.f32 %v4439, %v4425
    %v4441 = vmul.f32 %v4440, %v2186
    %v4442 = vsub.f32 %v4380, %v4441
    %v4443 = vsub.f32 %v4383, %v4441
    %v4444 = vsub.f32 %v4386, %v4441
    %v4445 = vsub.f32 %v4389, %v4441
    %v4446 = vsub.f32 %v4392, %v4441
    %v4447 = vsub.f32 %v4395, %v4441
    %v4448 = vsub.f32 %v4398, %v4441
    %v4449 = vsub.f32 %v4401, %v4441
    %v4450 = vsub.f32 %v4404, %v4441
    %v4451 = vsub.f32 %v4407, %v4441
    %v4452 = vsub.f32 %v4410, %v4441
    %v4453 = vsub.f32 %v4413, %v4441
    %v4454 = vsub.f32 %v4416, %v4441
    %v4455 = vsub.f32 %v4419, %v4441
    %v4456 = vsub.f32 %v4422, %v4441
    %v4457 = vsub.f32 %v4425, %v4441
    %v4458 = vmul.f32 %v4442, %v4442
    %v4459 = vmul.f32 %v4443, %v4443
    %v4460 = vmul.f32 %v4444, %v4444
    %v4461 = vmul.f32 %v4445, %v4445
    %v4462 = vmul.f32 %v4446, %v4446
    %v4463 = vmul.f32 %v4447, %v4447
    %v4464 = vmul.f32 %v4448, %v4448
    %v4465 = vmul.f32 %v4449, %v4449
    %v4466 = vmul.f32 %v4450, %v4450
    %v4467 = vmul.f32 %v4451, %v4451
    %v4468 = vmul.f32 %v4452, %v4452
    %v4469 = vmul.f32 %v4453, %v4453
    %v4470 = vmul.f32 %v4454, %v4454
    %v4471 = vmul.f32 %v4455, %v4455
    %v4472 = vmul.f32 %v4456, %v4456
    %v4473 = vmul.f32 %v4457, %v4457
    %v4474 = vadd.f32 %v4458, %v4459
    %v4475 = vadd.f32 %v4474, %v4460
    %v4476 = vadd.f32 %v4475, %v4461
    %v4477 = vadd.f32 %v4476, %v4462
    %v4478 = vadd.f32 %v4477, %v4463
    %v4479 = vadd.f32 %v4478, %v4464
    %v4480 = vadd.f32 %v4479, %v4465
    %v4481 = vadd.f32 %v4480, %v4466
    %v4482 = vadd.f32 %v4481, %v4467
    %v4483 = vadd.f32 %v4482, %v4468
    %v4484 = vadd.f32 %v4483, %v4469
    %v4485 = vadd.f32 %v4484, %v4470
    %v4486 = vadd.f32 %v4485, %v4471
    %v4487 = vadd.f32 %v4486, %v4472
    %v4488 = vadd.f32 %v4487, %v4473
    %v4489 = vmul.f32 %v4488, %v2315
    %v4490 = vrsqrt.pop %v4489
    %v4491 = vmul.f32 %v4489, %v4490
    %vm4492 = vcmp.eq.f32.partialorder %v4489, inf
    %v4493 = vsel %vm4492, %v4489, %v4491
    %vm4494 = vcmp.eq.f32.partialorder %v4489, 0.0
    %v4495 = vand.u32 %v4489, 2147483648
    %v4496 = vsel %vm4494, %v4495, %v4493
    %v4497 = vadd.f32 %v4496, 1e-05
    %v4498 = vrcp.pop %v4497
    %v4499 = vmul.f32 %v4442, %v4498
    %v4500 = vmul.f32 %v4443, %v4498
    %v4501 = vmul.f32 %v4444, %v4498
    %v4502 = vmul.f32 %v4445, %v4498
    %v4503 = vmul.f32 %v4446, %v4498
    %v4504 = vmul.f32 %v4447, %v4498
    %v4505 = vmul.f32 %v4448, %v4498
    %v4506 = vmul.f32 %v4449, %v4498
    %v4507 = vmul.f32 %v4450, %v4498
    %v4508 = vmul.f32 %v4451, %v4498
    %v4509 = vmul.f32 %v4452, %v4498
    %v4510 = vmul.f32 %v4453, %v4498
    %v4511 = vmul.f32 %v4454, %v4498
    %v4512 = vmul.f32 %v4455, %v4498
    %v4513 = vmul.f32 %v4456, %v4498
    %v4514 = vmul.f32 %v4457, %v4498
    %v4515 = vmul.f32 %v4499, %v2741
    %v4516 = vmul.f32 %v4500, %v2741
    %v4517 = vmul.f32 %v4501, %v2741
    %v4518 = vmul.f32 %v4502, %v2741
    %v4519 = vmul.f32 %v4503, %v2741
    %v4520 = vmul.f32 %v4504, %v2741
    %v4521 = vmul.f32 %v4505, %v2741
    %v4522 = vmul.f32 %v4506, %v2741
    %v4523 = vmul.f32 %v4507, %v2741
    %v4524 = vmul.f32 %v4508, %v2741
    %v4525 = vmul.f32 %v4509, %v2741
    %v4526 = vmul.f32 %v4510, %v2741
    %v4527 = vmul.f32 %v4511, %v2741
    %v4528 = vmul.f32 %v4512, %v2741
    %v4529 = vmul.f32 %v4513, %v2741
    %v4530 = vmul.f32 %v4514, %v2741
    %v4531 = vadd.f32 %v4515, %v2759
    %v4532 = vadd.f32 %v4516, %v2759
    %v4533 = vadd.f32 %v4517, %v2759
    %v4534 = vadd.f32 %v4518, %v2759
    %v4535 = vadd.f32 %v4519, %v2759
    %v4536 = vadd.f32 %v4520, %v2759
    %v4537 = vadd.f32 %v4521, %v2759
    %v4538 = vadd.f32 %v4522, %v2759
    %v4539 = vadd.f32 %v4523, %v2759
    %v4540 = vadd.f32 %v4524, %v2759
    %v4541 = vadd.f32 %v4525, %v2759
    %v4542 = vadd.f32 %v4526, %v2759
    %v4543 = vadd.f32 %v4527, %v2759
    %v4544 = vadd.f32 %v4528, %v2759
    %v4545 = vadd.f32 %v4529, %v2759
    %v4546 = vadd.f32 %v4530, %v2759
    %v4547 = vxor.u32 %v4531, 2147483648
    %v4548 = vxor.u32 %v4532, 2147483648
    %v4549 = vxor.u32 %v4533, 2147483648
    %v4550 = vxor.u32 %v4534, 2147483648
    %v4551 = vxor.u32 %v4535, 2147483648
    %v4552 = vxor.u32 %v4536, 2147483648
    %v4553 = vxor.u32 %v4537, 2147483648
    %v4554 = vxor.u32 %v4538, 2147483648
    %v4555 = vxor.u32 %v4539, 2147483648
    %v4556 = vxor.u32 %v4540, 2147483648
    %v4557 = vxor.u32 %v4541, 2147483648
    %v4558 = vxor.u32 %v4542, 2147483648
    %v4559 = vxor.u32 %v4543, 2147483648
    %v4560 = vxor.u32 %v4544, 2147483648
    %v4561 = vxor.u32 %v4545, 2147483648
    %v4562 = vxor.u32 %v4546, 2147483648
    %v4563 = vmul.f32 %v4547, 1.442695
    %v4564 = vpow.pop %v4563
    %v4565 = vmul.f32 %v4548, 1.442695
    %v4566 = vpow.pop %v4565
    %v4567 = vmul.f32 %v4549, 1.442695
    %v4568 = vpow.pop %v4567
    %v4569 = vmul.f32 %v4550, 1.442695
    %v4570 = vpow.pop %v4569
    %v4571 = vmul.f32 %v4551, 1.442695
    %v4572 = vpow.pop %v4571
    %v4573 = vmul.f32 %v4552, 1.442695
    %v4574 = vpow.pop %v4573
    %v4575 = vmul.f32 %v4553, 1.442695
    %v4576 = vpow.pop %v4575
    %v4577 = vmul.f32 %v4554, 1.442695
    %v4578 = vpow.pop %v4577
    %v4579 = vmul.f32 %v4555, 1.442695
    %v4580 = vpow.pop %v4579
    %v4581 = vmul.f32 %v4556, 1.442695
    %v4582 = vpow.pop %v4581
    %v4583 = vmul.f32 %v4557, 1.442695
    %v4584 = vpow.pop %v4583
    %v4585 = vmul.f32 %v4558, 1.442695
    %v4586 = vpow.pop %v4585
    %v4587 = vmul.f32 %v4559, 1.442695
    %v4588 = vpow.pop %v4587
    %v4589 = vmul.f32 %v4560, 1.442695
    %v4590 = vpow.pop %v4589
    %v4591 = vmul.f32 %v4561, 1.442695
    %v4592 = vpow.pop %v4591
    %v4593 = vmul.f32 %v4562, 1.442695
    %v4594 = vpow.pop %v4593
    %v4595 = vadd.f32 %v4564, 1.0
    %v4596 = vadd.f32 %v4566, 1.0
    %v4597 = vadd.f32 %v4568, 1.0
    %v4598 = vadd.f32 %v4570, 1.0
    %v4599 = vadd.f32 %v4572, 1.0
    %v4600 = vadd.f32 %v4574, 1.0
    %v4601 = vadd.f32 %v4576, 1.0
    %v4602 = vadd.f32 %v4578, 1.0
    %v4603 = vadd.f32 %v4580, 1.0
    %v4604 = vadd.f32 %v4582, 1.0
    %v4605 = vadd.f32 %v4584, 1.0
    %v4606 = vadd.f32 %v4586, 1.0
    %v4607 = vadd.f32 %v4588, 1.0
    %v4608 = vadd.f32 %v4590, 1.0
    %v4609 = vadd.f32 %v4592, 1.0
    %v4610 = vadd.f32 %v4594, 1.0
    %v4611 = vrcp.pop %v4595
    %v4612 = vmul.f32 1.0, %v4611
    %v4613 = vrcp.pop %v4596
    %v4614 = vmul.f32 1.0, %v4613
    %v4615 = vrcp.pop %v4597
    %v4616 = vmul.f32 1.0, %v4615
    %v4617 = vrcp.pop %v4598
    %v4618 = vmul.f32 1.0, %v4617
    %v4619 = vrcp.pop %v4599
    %v4620 = vmul.f32 1.0, %v4619
    %v4621 = vrcp.pop %v4600
    %v4622 = vmul.f32 1.0, %v4621
    %v4623 = vrcp.pop %v4601
    %v4624 = vmul.f32 1.0, %v4623
    %v4625 = vrcp.pop %v4602
    %v4626 = vmul.f32 1.0, %v4625
    %v4627 = vrcp.pop %v4603
    %v4628 = vmul.f32 1.0, %v4627
    %v4629 = vrcp.pop %v4604
    %v4630 = vmul.f32 1.0, %v4629
    %v4631 = vrcp.pop %v4605
    %v4632 = vmul.f32 1.0, %v4631
    %v4633 = vrcp.pop %v4606
    %v4634 = vmul.f32 1.0, %v4633
    %v4635 = vrcp.pop %v4607
    %v4636 = vmul.f32 1.0, %v4635
    %v4637 = vrcp.pop %v4608
    %v4638 = vmul.f32 1.0, %v4637
    %v4639 = vrcp.pop %v4609
    %v4640 = vmul.f32 1.0, %v4639
    %v4641 = vrcp.pop %v4610
    %v4642 = vmul.f32 1.0, %v4641
    %v4643 = vmul.f32 %v3906, %v4612
    %v4644 = vmul.f32 %v3908, %v4614
    %v4645 = vmul.f32 %v3910, %v4616
    %v4646 = vmul.f32 %v3912, %v4618
    %v4647 = vmul.f32 %v3914, %v4620
    %v4648 = vmul.f32 %v3916, %v4622
    %v4649 = vmul.f32 %v3918, %v4624
    %v4650 = vmul.f32 %v3920, %v4626
    %v4651 = vmul.f32 %v3922, %v4628
    %v4652 = vmul.f32 %v3924, %v4630
    %v4653 = vmul.f32 %v3926, %v4632
    %v4654 = vmul.f32 %v3928, %v4634
    %v4655 = vmul.f32 %v3930, %v4636
    %v4656 = vmul.f32 %v3932, %v4638
    %v4657 = vmul.f32 %v3934, %v4640
    %v4658 = vmul.f32 %v3936, %v4642
    %v4659 = vsel %vm2888, %v3906, 0.0
    %v4660 = vsel %vm2888, %v3908, 0.0
    %v4661 = vadd.f32 %v4659, %v4660
    %v4662 = vsel %vm2888, %v3910, 0.0
    %v4663 = vadd.f32 %v4661, %v4662
    %v4664 = vsel %vm2888, %v3912, 0.0
    %v4665 = vadd.f32 %v4663, %v4664
    %v4666 = vsel %vm2888, %v3914, 0.0
    %v4667 = vadd.f32 %v4665, %v4666
    %v4668 = vsel %vm2888, %v3916, 0.0
    %v4669 = vadd.f32 %v4667, %v4668
    %v4670 = vsel %vm2888, %v3918, 0.0
    %v4671 = vadd.f32 %v4669, %v4670
    %v4672 = vsel %vm2888, %v3920, 0.0
    %v4673 = vadd.f32 %v4671, %v4672
    %v4674 = vsel %vm2888, %v3922, 0.0
    %v4675 = vadd.f32 %v4673, %v4674
    %v4676 = vsel %vm2888, %v3924, 0.0
    %v4677 = vadd.f32 %v4675, %v4676
    %v4678 = vsel %vm2888, %v3926, 0.0
    %v4679 = vadd.f32 %v4677, %v4678
    %v4680 = vsel %vm2888, %v3928, 0.0
    %v4681 = vadd.f32 %v4679, %v4680
    %v4682 = vsel %vm2888, %v3930, 0.0
    %v4683 = vadd.f32 %v4681, %v4682
    %v4684 = vsel %vm2888, %v3932, 0.0
    %v4685 = vadd.f32 %v4683, %v4684
    %v4686 = vsel %vm2888, %v3934, 0.0
    %v4687 = vadd.f32 %v4685, %v4686
    %v4688 = vsel %vm2888, %v3936, 0.0
    %v4689 = vadd.f32 %v4687, %v4688
    %v4690 = vmul.f32 %v4689, %v2186
    %v4691 = vmul.f32 %v3906, %v4690
    %v4692 = vmul.f32 %v3908, %v4690
    %v4693 = vmul.f32 %v3910, %v4690
    %v4694 = vmul.f32 %v3912, %v4690
    %v4695 = vmul.f32 %v3914, %v4690
    %v4696 = vmul.f32 %v3916, %v4690
    %v4697 = vmul.f32 %v3918, %v4690
    %v4698 = vmul.f32 %v3920, %v4690
    %v4699 = vmul.f32 %v3922, %v4690
    %v4700 = vmul.f32 %v3924, %v4690
    %v4701 = vmul.f32 %v3926, %v4690
    %v4702 = vmul.f32 %v3928, %v4690
    %v4703 = vmul.f32 %v3930, %v4690
    %v4704 = vmul.f32 %v3932, %v4690
    %v4705 = vmul.f32 %v3934, %v4690
    %v4706 = vmul.f32 %v3936, %v4690
    %4723 = vrot.lane.b32.xlu0 %v4691, 96
    %v4724 = vpop.permute.xlu0 %4723
    %4725 = vrot.lane.b32.xlu0 %v4692, 96
    %v4726 = vpop.permute.xlu0 %4725
    %4727 = vrot.lane.b32.xlu0 %v4693, 96
    %v4728 = vpop.permute.xlu0 %4727
    %4729 = vrot.lane.b32.xlu0 %v4694, 96
    %v4730 = vpop.permute.xlu0 %4729
    %4731 = vrot.lane.b32.xlu0 %v4695, 96
    %v4732 = vpop.permute.xlu0 %4731
    %4733 = vrot.lane.b32.xlu0 %v4696, 96
    %v4734 = vpop.permute.xlu0 %4733
    %4735 = vrot.lane.b32.xlu0 %v4697, 96
    %v4736 = vpop.permute.xlu0 %4735
    %4737 = vrot.lane.b32.xlu0 %v4698, 96
    %v4738 = vpop.permute.xlu0 %4737
    %4739 = vrot.lane.b32.xlu0 %v4699, 96
    %v4740 = vpop.permute.xlu0 %4739
    %4741 = vrot.lane.b32.xlu0 %v4700, 96
    %v4742 = vpop.permute.xlu0 %4741
    %4743 = vrot.lane.b32.xlu0 %v4701, 96
    %v4744 = vpop.permute.xlu0 %4743
    %4745 = vrot.lane.b32.xlu0 %v4702, 96
    %v4746 = vpop.permute.xlu0 %4745
    %4747 = vrot.lane.b32.xlu0 %v4703, 96
    %v4748 = vpop.permute.xlu0 %4747
    %4749 = vrot.lane.b32.xlu0 %v4704, 96
    %v4750 = vpop.permute.xlu0 %4749
    %4751 = vrot.lane.b32.xlu0 %v4705, 96
    %v4752 = vpop.permute.xlu0 %4751
    %4753 = vrot.lane.b32.xlu0 %v4706, 96
    %v4754 = vpop.permute.xlu0 %4753
    %v4771 = vsel %vm2154, %v4724, 0.0
    %4772 = vadd.xlane.f32.xlu0 %v4771
    %v4773 = vpop.xlane.xlu0 %4772
    %v4774 = vsel %vm2154, %v4726, 0.0
    %4775 = vadd.xlane.f32.xlu0 %v4774
    %v4776 = vpop.xlane.xlu0 %4775
    %v4777 = vsel %vm2154, %v4728, 0.0
    %4778 = vadd.xlane.f32.xlu0 %v4777
    %v4779 = vpop.xlane.xlu0 %4778
    %v4780 = vsel %vm2154, %v4730, 0.0
    %4781 = vadd.xlane.f32.xlu0 %v4780
    %v4782 = vpop.xlane.xlu0 %4781
    %v4783 = vsel %vm2154, %v4732, 0.0
    %4784 = vadd.xlane.f32.xlu0 %v4783
    %v4785 = vpop.xlane.xlu0 %4784
    %v4786 = vsel %vm2154, %v4734, 0.0
    %4787 = vadd.xlane.f32.xlu0 %v4786
    %v4788 = vpop.xlane.xlu0 %4787
    %v4789 = vsel %vm2154, %v4736, 0.0
    %4790 = vadd.xlane.f32.xlu0 %v4789
    %v4791 = vpop.xlane.xlu0 %4790
    %v4792 = vsel %vm2154, %v4738, 0.0
    %4793 = vadd.xlane.f32.xlu0 %v4792
    %v4794 = vpop.xlane.xlu0 %4793
    %v4795 = vsel %vm2154, %v4740, 0.0
    %4796 = vadd.xlane.f32.xlu0 %v4795
    %v4797 = vpop.xlane.xlu0 %4796
    %v4798 = vsel %vm2154, %v4742, 0.0
    %4799 = vadd.xlane.f32.xlu0 %v4798
    %v4800 = vpop.xlane.xlu0 %4799
    %v4801 = vsel %vm2154, %v4744, 0.0
    %4802 = vadd.xlane.f32.xlu0 %v4801
    %v4803 = vpop.xlane.xlu0 %4802
    %v4804 = vsel %vm2154, %v4746, 0.0
    %4805 = vadd.xlane.f32.xlu0 %v4804
    %v4806 = vpop.xlane.xlu0 %4805
    %v4807 = vsel %vm2154, %v4748, 0.0
    %4808 = vadd.xlane.f32.xlu0 %v4807
    %v4809 = vpop.xlane.xlu0 %4808
    %v4810 = vsel %vm2154, %v4750, 0.0
    %4811 = vadd.xlane.f32.xlu0 %v4810
    %v4812 = vpop.xlane.xlu0 %4811
    %v4813 = vsel %vm2154, %v4752, 0.0
    %4814 = vadd.xlane.f32.xlu0 %v4813
    %v4815 = vpop.xlane.xlu0 %4814
    %v4816 = vsel %vm2154, %v4754, 0.0
    %4817 = vadd.xlane.f32.xlu0 %v4816
    %v4818 = vpop.xlane.xlu0 %4817
    %v4819 = vadd.f32 %v4773, %v4776
    %v4820 = vadd.f32 %v4819, %v4779
    %v4821 = vadd.f32 %v4820, %v4782
    %v4822 = vadd.f32 %v4821, %v4785
    %v4823 = vadd.f32 %v4822, %v4788
    %v4824 = vadd.f32 %v4823, %v4791
    %v4825 = vadd.f32 %v4824, %v4794
    %v4826 = vadd.f32 %v4825, %v4797
    %v4827 = vadd.f32 %v4826, %v4800
    %v4828 = vadd.f32 %v4827, %v4803
    %v4829 = vadd.f32 %v4828, %v4806
    %v4830 = vadd.f32 %v4829, %v4809
    %v4831 = vadd.f32 %v4830, %v4812
    %v4832 = vadd.f32 %v4831, %v4815
    %v4833 = vadd.f32 %v4832, %v4818
    %v4834 = vmul.f32 %v4833, %v2186
    %v4835 = vsub.f32 %v4773, %v4834
    %v4836 = vsub.f32 %v4776, %v4834
    %v4837 = vsub.f32 %v4779, %v4834
    %v4838 = vsub.f32 %v4782, %v4834
    %v4839 = vsub.f32 %v4785, %v4834
    %v4840 = vsub.f32 %v4788, %v4834
    %v4841 = vsub.f32 %v4791, %v4834
    %v4842 = vsub.f32 %v4794, %v4834
    %v4843 = vsub.f32 %v4797, %v4834
    %v4844 = vsub.f32 %v4800, %v4834
    %v4845 = vsub.f32 %v4803, %v4834
    %v4846 = vsub.f32 %v4806, %v4834
    %v4847 = vsub.f32 %v4809, %v4834
    %v4848 = vsub.f32 %v4812, %v4834
    %v4849 = vsub.f32 %v4815, %v4834
    %v4850 = vsub.f32 %v4818, %v4834
    %v4851 = vmul.f32 %v4835, %v4835
    %v4852 = vmul.f32 %v4836, %v4836
    %v4853 = vmul.f32 %v4837, %v4837
    %v4854 = vmul.f32 %v4838, %v4838
    %v4855 = vmul.f32 %v4839, %v4839
    %v4856 = vmul.f32 %v4840, %v4840
    %v4857 = vmul.f32 %v4841, %v4841
    %v4858 = vmul.f32 %v4842, %v4842
    %v4859 = vmul.f32 %v4843, %v4843
    %v4860 = vmul.f32 %v4844, %v4844
    %v4861 = vmul.f32 %v4845, %v4845
    %v4862 = vmul.f32 %v4846, %v4846
    %v4863 = vmul.f32 %v4847, %v4847
    %v4864 = vmul.f32 %v4848, %v4848
    %v4865 = vmul.f32 %v4849, %v4849
    %v4866 = vmul.f32 %v4850, %v4850
    %v4867 = vadd.f32 %v4851, %v4852
    %v4868 = vadd.f32 %v4867, %v4853
    %v4869 = vadd.f32 %v4868, %v4854
    %v4870 = vadd.f32 %v4869, %v4855
    %v4871 = vadd.f32 %v4870, %v4856
    %v4872 = vadd.f32 %v4871, %v4857
    %v4873 = vadd.f32 %v4872, %v4858
    %v4874 = vadd.f32 %v4873, %v4859
    %v4875 = vadd.f32 %v4874, %v4860
    %v4876 = vadd.f32 %v4875, %v4861
    %v4877 = vadd.f32 %v4876, %v4862
    %v4878 = vadd.f32 %v4877, %v4863
    %v4879 = vadd.f32 %v4878, %v4864
    %v4880 = vadd.f32 %v4879, %v4865
    %v4881 = vadd.f32 %v4880, %v4866
    %v4882 = vmul.f32 %v4881, %v2315
    %v4883 = vrsqrt.pop %v4882
    %v4884 = vmul.f32 %v4882, %v4883
    %vm4885 = vcmp.eq.f32.partialorder %v4882, inf
    %v4886 = vsel %vm4885, %v4882, %v4884
    %vm4887 = vcmp.eq.f32.partialorder %v4882, 0.0
    %v4888 = vand.u32 %v4882, 2147483648
    %v4889 = vsel %vm4887, %v4888, %v4886
    %v4890 = vadd.f32 %v4889, 1e-05
    %v4891 = vrcp.pop %v4890
    %v4892 = vmul.f32 %v4835, %v4891
    %v4893 = vmul.f32 %v4836, %v4891
    %v4894 = vmul.f32 %v4837, %v4891
    %v4895 = vmul.f32 %v4838, %v4891
    %v4896 = vmul.f32 %v4839, %v4891
    %v4897 = vmul.f32 %v4840, %v4891
    %v4898 = vmul.f32 %v4841, %v4891
    %v4899 = vmul.f32 %v4842, %v4891
    %v4900 = vmul.f32 %v4843, %v4891
    %v4901 = vmul.f32 %v4844, %v4891
    %v4902 = vmul.f32 %v4845, %v4891
    %v4903 = vmul.f32 %v4846, %v4891
    %v4904 = vmul.f32 %v4847, %v4891
    %v4905 = vmul.f32 %v4848, %v4891
    %v4906 = vmul.f32 %v4849, %v4891
    %v4907 = vmul.f32 %v4850, %v4891
    %v4908 = vmul.f32 %v4892, %v3139
    %v4909 = vmul.f32 %v4893, %v3139
    %v4910 = vmul.f32 %v4894, %v3139
    %v4911 = vmul.f32 %v4895, %v3139
    %v4912 = vmul.f32 %v4896, %v3139
    %v4913 = vmul.f32 %v4897, %v3139
    %v4914 = vmul.f32 %v4898, %v3139
    %v4915 = vmul.f32 %v4899, %v3139
    %v4916 = vmul.f32 %v4900, %v3139
    %v4917 = vmul.f32 %v4901, %v3139
    %v4918 = vmul.f32 %v4902, %v3139
    %v4919 = vmul.f32 %v4903, %v3139
    %v4920 = vmul.f32 %v4904, %v3139
    %v4921 = vmul.f32 %v4905, %v3139
    %v4922 = vmul.f32 %v4906, %v3139
    %v4923 = vmul.f32 %v4907, %v3139
    %v4924 = vadd.f32 %v4908, %v3157
    %v4925 = vadd.f32 %v4909, %v3157
    %v4926 = vadd.f32 %v4910, %v3157
    %v4927 = vadd.f32 %v4911, %v3157
    %v4928 = vadd.f32 %v4912, %v3157
    %v4929 = vadd.f32 %v4913, %v3157
    %v4930 = vadd.f32 %v4914, %v3157
    %v4931 = vadd.f32 %v4915, %v3157
    %v4932 = vadd.f32 %v4916, %v3157
    %v4933 = vadd.f32 %v4917, %v3157
    %v4934 = vadd.f32 %v4918, %v3157
    %v4935 = vadd.f32 %v4919, %v3157
    %v4936 = vadd.f32 %v4920, %v3157
    %v4937 = vadd.f32 %v4921, %v3157
    %v4938 = vadd.f32 %v4922, %v3157
    %v4939 = vadd.f32 %v4923, %v3157
    %v4940 = vxor.u32 %v4924, 2147483648
    %v4941 = vxor.u32 %v4925, 2147483648
    %v4942 = vxor.u32 %v4926, 2147483648
    %v4943 = vxor.u32 %v4927, 2147483648
    %v4944 = vxor.u32 %v4928, 2147483648
    %v4945 = vxor.u32 %v4929, 2147483648
    %v4946 = vxor.u32 %v4930, 2147483648
    %v4947 = vxor.u32 %v4931, 2147483648
    %v4948 = vxor.u32 %v4932, 2147483648
    %v4949 = vxor.u32 %v4933, 2147483648
    %v4950 = vxor.u32 %v4934, 2147483648
    %v4951 = vxor.u32 %v4935, 2147483648
    %v4952 = vxor.u32 %v4936, 2147483648
    %v4953 = vxor.u32 %v4937, 2147483648
    %v4954 = vxor.u32 %v4938, 2147483648
    %v4955 = vxor.u32 %v4939, 2147483648
    %v4956 = vmul.f32 %v4940, 1.442695
    %v4957 = vpow.pop %v4956
    %v4958 = vmul.f32 %v4941, 1.442695
    %v4959 = vpow.pop %v4958
    %v4960 = vmul.f32 %v4942, 1.442695
    %v4961 = vpow.pop %v4960
    %v4962 = vmul.f32 %v4943, 1.442695
    %v4963 = vpow.pop %v4962
    %v4964 = vmul.f32 %v4944, 1.442695
    %v4965 = vpow.pop %v4964
    %v4966 = vmul.f32 %v4945, 1.442695
    %v4967 = vpow.pop %v4966
    %v4968 = vmul.f32 %v4946, 1.442695
    %v4969 = vpow.pop %v4968
    %v4970 = vmul.f32 %v4947, 1.442695
    %v4971 = vpow.pop %v4970
    %v4972 = vmul.f32 %v4948, 1.442695
    %v4973 = vpow.pop %v4972
    %v4974 = vmul.f32 %v4949, 1.442695
    %v4975 = vpow.pop %v4974
    %v4976 = vmul.f32 %v4950, 1.442695
    %v4977 = vpow.pop %v4976
    %v4978 = vmul.f32 %v4951, 1.442695
    %v4979 = vpow.pop %v4978
    %v4980 = vmul.f32 %v4952, 1.442695
    %v4981 = vpow.pop %v4980
    %v4982 = vmul.f32 %v4953, 1.442695
    %v4983 = vpow.pop %v4982
    %v4984 = vmul.f32 %v4954, 1.442695
    %v4985 = vpow.pop %v4984
    %v4986 = vmul.f32 %v4955, 1.442695
    %v4987 = vpow.pop %v4986
    %v4988 = vadd.f32 %v4957, 1.0
    %v4989 = vadd.f32 %v4959, 1.0
    %v4990 = vadd.f32 %v4961, 1.0
    %v4991 = vadd.f32 %v4963, 1.0
    %v4992 = vadd.f32 %v4965, 1.0
    %v4993 = vadd.f32 %v4967, 1.0
    %v4994 = vadd.f32 %v4969, 1.0
    %v4995 = vadd.f32 %v4971, 1.0
    %v4996 = vadd.f32 %v4973, 1.0
    %v4997 = vadd.f32 %v4975, 1.0
    %v4998 = vadd.f32 %v4977, 1.0
    %v4999 = vadd.f32 %v4979, 1.0
    %v5000 = vadd.f32 %v4981, 1.0
    %v5001 = vadd.f32 %v4983, 1.0
    %v5002 = vadd.f32 %v4985, 1.0
    %v5003 = vadd.f32 %v4987, 1.0
    %v5004 = vrcp.pop %v4988
    %v5005 = vmul.f32 1.0, %v5004
    %v5006 = vrcp.pop %v4989
    %v5007 = vmul.f32 1.0, %v5006
    %v5008 = vrcp.pop %v4990
    %v5009 = vmul.f32 1.0, %v5008
    %v5010 = vrcp.pop %v4991
    %v5011 = vmul.f32 1.0, %v5010
    %v5012 = vrcp.pop %v4992
    %v5013 = vmul.f32 1.0, %v5012
    %v5014 = vrcp.pop %v4993
    %v5015 = vmul.f32 1.0, %v5014
    %v5016 = vrcp.pop %v4994
    %v5017 = vmul.f32 1.0, %v5016
    %v5018 = vrcp.pop %v4995
    %v5019 = vmul.f32 1.0, %v5018
    %v5020 = vrcp.pop %v4996
    %v5021 = vmul.f32 1.0, %v5020
    %v5022 = vrcp.pop %v4997
    %v5023 = vmul.f32 1.0, %v5022
    %v5024 = vrcp.pop %v4998
    %v5025 = vmul.f32 1.0, %v5024
    %v5026 = vrcp.pop %v4999
    %v5027 = vmul.f32 1.0, %v5026
    %v5028 = vrcp.pop %v5000
    %v5029 = vmul.f32 1.0, %v5028
    %v5030 = vrcp.pop %v5001
    %v5031 = vmul.f32 1.0, %v5030
    %v5032 = vrcp.pop %v5002
    %v5033 = vmul.f32 1.0, %v5032
    %v5034 = vrcp.pop %v5003
    %v5035 = vmul.f32 1.0, %v5034
    %v5036 = vmul.f32 %v3906, %v5005
    %v5037 = vmul.f32 %v3908, %v5007
    %v5038 = vmul.f32 %v3910, %v5009
    %v5039 = vmul.f32 %v3912, %v5011
    %v5040 = vmul.f32 %v3914, %v5013
    %v5041 = vmul.f32 %v3916, %v5015
    %v5042 = vmul.f32 %v3918, %v5017
    %v5043 = vmul.f32 %v3920, %v5019
    %v5044 = vmul.f32 %v3922, %v5021
    %v5045 = vmul.f32 %v3924, %v5023
    %v5046 = vmul.f32 %v3926, %v5025
    %v5047 = vmul.f32 %v3928, %v5027
    %v5048 = vmul.f32 %v3930, %v5029
    %v5049 = vmul.f32 %v3932, %v5031
    %v5050 = vmul.f32 %v3934, %v5033
    %v5051 = vmul.f32 %v3936, %v5035
    %v5052 = vsel %vm3286, %v3906, 0.0
    %v5053 = vsel %vm3286, %v3908, 0.0
    %v5054 = vadd.f32 %v5052, %v5053
    %v5055 = vsel %vm3286, %v3910, 0.0
    %v5056 = vadd.f32 %v5054, %v5055
    %v5057 = vsel %vm3286, %v3912, 0.0
    %v5058 = vadd.f32 %v5056, %v5057
    %v5059 = vsel %vm3286, %v3914, 0.0
    %v5060 = vadd.f32 %v5058, %v5059
    %v5061 = vsel %vm3286, %v3916, 0.0
    %v5062 = vadd.f32 %v5060, %v5061
    %v5063 = vsel %vm3286, %v3918, 0.0
    %v5064 = vadd.f32 %v5062, %v5063
    %v5065 = vsel %vm3286, %v3920, 0.0
    %v5066 = vadd.f32 %v5064, %v5065
    %v5067 = vsel %vm3286, %v3922, 0.0
    %v5068 = vadd.f32 %v5066, %v5067
    %v5069 = vsel %vm3286, %v3924, 0.0
    %v5070 = vadd.f32 %v5068, %v5069
    %v5071 = vsel %vm3286, %v3926, 0.0
    %v5072 = vadd.f32 %v5070, %v5071
    %v5073 = vsel %vm3286, %v3928, 0.0
    %v5074 = vadd.f32 %v5072, %v5073
    %v5075 = vsel %vm3286, %v3930, 0.0
    %v5076 = vadd.f32 %v5074, %v5075
    %v5077 = vsel %vm3286, %v3932, 0.0
    %v5078 = vadd.f32 %v5076, %v5077
    %v5079 = vsel %vm3286, %v3934, 0.0
    %v5080 = vadd.f32 %v5078, %v5079
    %v5081 = vsel %vm3286, %v3936, 0.0
    %v5082 = vadd.f32 %v5080, %v5081
    %v5083 = vmul.f32 %v5082, %v2186
    %v5084 = vmul.f32 %v3906, %v5083
    %v5085 = vmul.f32 %v3908, %v5083
    %v5086 = vmul.f32 %v3910, %v5083
    %v5087 = vmul.f32 %v3912, %v5083
    %v5088 = vmul.f32 %v3914, %v5083
    %v5089 = vmul.f32 %v3916, %v5083
    %v5090 = vmul.f32 %v3918, %v5083
    %v5091 = vmul.f32 %v3920, %v5083
    %v5092 = vmul.f32 %v3922, %v5083
    %v5093 = vmul.f32 %v3924, %v5083
    %v5094 = vmul.f32 %v3926, %v5083
    %v5095 = vmul.f32 %v3928, %v5083
    %v5096 = vmul.f32 %v3930, %v5083
    %v5097 = vmul.f32 %v3932, %v5083
    %v5098 = vmul.f32 %v3934, %v5083
    %v5099 = vmul.f32 %v3936, %v5083
    %5116 = vrot.lane.b32.xlu0 %v5084, 80
    %v5117 = vpop.permute.xlu0 %5116
    %5118 = vrot.lane.b32.xlu0 %v5085, 80
    %v5119 = vpop.permute.xlu0 %5118
    %5120 = vrot.lane.b32.xlu0 %v5086, 80
    %v5121 = vpop.permute.xlu0 %5120
    %5122 = vrot.lane.b32.xlu0 %v5087, 80
    %v5123 = vpop.permute.xlu0 %5122
    %5124 = vrot.lane.b32.xlu0 %v5088, 80
    %v5125 = vpop.permute.xlu0 %5124
    %5126 = vrot.lane.b32.xlu0 %v5089, 80
    %v5127 = vpop.permute.xlu0 %5126
    %5128 = vrot.lane.b32.xlu0 %v5090, 80
    %v5129 = vpop.permute.xlu0 %5128
    %5130 = vrot.lane.b32.xlu0 %v5091, 80
    %v5131 = vpop.permute.xlu0 %5130
    %5132 = vrot.lane.b32.xlu0 %v5092, 80
    %v5133 = vpop.permute.xlu0 %5132
    %5134 = vrot.lane.b32.xlu0 %v5093, 80
    %v5135 = vpop.permute.xlu0 %5134
    %5136 = vrot.lane.b32.xlu0 %v5094, 80
    %v5137 = vpop.permute.xlu0 %5136
    %5138 = vrot.lane.b32.xlu0 %v5095, 80
    %v5139 = vpop.permute.xlu0 %5138
    %5140 = vrot.lane.b32.xlu0 %v5096, 80
    %v5141 = vpop.permute.xlu0 %5140
    %5142 = vrot.lane.b32.xlu0 %v5097, 80
    %v5143 = vpop.permute.xlu0 %5142
    %5144 = vrot.lane.b32.xlu0 %v5098, 80
    %v5145 = vpop.permute.xlu0 %5144
    %5146 = vrot.lane.b32.xlu0 %v5099, 80
    %v5147 = vpop.permute.xlu0 %5146
    %v5164 = vsel %vm2154, %v5117, 0.0
    %5165 = vadd.xlane.f32.xlu0 %v5164
    %v5166 = vpop.xlane.xlu0 %5165
    %v5167 = vsel %vm2154, %v5119, 0.0
    %5168 = vadd.xlane.f32.xlu0 %v5167
    %v5169 = vpop.xlane.xlu0 %5168
    %v5170 = vsel %vm2154, %v5121, 0.0
    %5171 = vadd.xlane.f32.xlu0 %v5170
    %v5172 = vpop.xlane.xlu0 %5171
    %v5173 = vsel %vm2154, %v5123, 0.0
    %5174 = vadd.xlane.f32.xlu0 %v5173
    %v5175 = vpop.xlane.xlu0 %5174
    %v5176 = vsel %vm2154, %v5125, 0.0
    %5177 = vadd.xlane.f32.xlu0 %v5176
    %v5178 = vpop.xlane.xlu0 %5177
    %v5179 = vsel %vm2154, %v5127, 0.0
    %5180 = vadd.xlane.f32.xlu0 %v5179
    %v5181 = vpop.xlane.xlu0 %5180
    %v5182 = vsel %vm2154, %v5129, 0.0
    %5183 = vadd.xlane.f32.xlu0 %v5182
    %v5184 = vpop.xlane.xlu0 %5183
    %v5185 = vsel %vm2154, %v5131, 0.0
    %5186 = vadd.xlane.f32.xlu0 %v5185
    %v5187 = vpop.xlane.xlu0 %5186
    %v5188 = vsel %vm2154, %v5133, 0.0
    %5189 = vadd.xlane.f32.xlu0 %v5188
    %v5190 = vpop.xlane.xlu0 %5189
    %v5191 = vsel %vm2154, %v5135, 0.0
    %5192 = vadd.xlane.f32.xlu0 %v5191
    %v5193 = vpop.xlane.xlu0 %5192
    %v5194 = vsel %vm2154, %v5137, 0.0
    %5195 = vadd.xlane.f32.xlu0 %v5194
    %v5196 = vpop.xlane.xlu0 %5195
    %v5197 = vsel %vm2154, %v5139, 0.0
    %5198 = vadd.xlane.f32.xlu0 %v5197
    %v5199 = vpop.xlane.xlu0 %5198
    %v5200 = vsel %vm2154, %v5141, 0.0
    %5201 = vadd.xlane.f32.xlu0 %v5200
    %v5202 = vpop.xlane.xlu0 %5201
    %v5203 = vsel %vm2154, %v5143, 0.0
    %5204 = vadd.xlane.f32.xlu0 %v5203
    %v5205 = vpop.xlane.xlu0 %5204
    %v5206 = vsel %vm2154, %v5145, 0.0
    %5207 = vadd.xlane.f32.xlu0 %v5206
    %v5208 = vpop.xlane.xlu0 %5207
    %v5209 = vsel %vm2154, %v5147, 0.0
    %5210 = vadd.xlane.f32.xlu0 %v5209
    %v5211 = vpop.xlane.xlu0 %5210
    %v5212 = vadd.f32 %v5166, %v5169
    %v5213 = vadd.f32 %v5212, %v5172
    %v5214 = vadd.f32 %v5213, %v5175
    %v5215 = vadd.f32 %v5214, %v5178
    %v5216 = vadd.f32 %v5215, %v5181
    %v5217 = vadd.f32 %v5216, %v5184
    %v5218 = vadd.f32 %v5217, %v5187
    %v5219 = vadd.f32 %v5218, %v5190
    %v5220 = vadd.f32 %v5219, %v5193
    %v5221 = vadd.f32 %v5220, %v5196
    %v5222 = vadd.f32 %v5221, %v5199
    %v5223 = vadd.f32 %v5222, %v5202
    %v5224 = vadd.f32 %v5223, %v5205
    %v5225 = vadd.f32 %v5224, %v5208
    %v5226 = vadd.f32 %v5225, %v5211
    %v5227 = vmul.f32 %v5226, %v2186
    %v5228 = vsub.f32 %v5166, %v5227
    %v5229 = vsub.f32 %v5169, %v5227
    %v5230 = vsub.f32 %v5172, %v5227
    %v5231 = vsub.f32 %v5175, %v5227
    %v5232 = vsub.f32 %v5178, %v5227
    %v5233 = vsub.f32 %v5181, %v5227
    %v5234 = vsub.f32 %v5184, %v5227
    %v5235 = vsub.f32 %v5187, %v5227
    %v5236 = vsub.f32 %v5190, %v5227
    %v5237 = vsub.f32 %v5193, %v5227
    %v5238 = vsub.f32 %v5196, %v5227
    %v5239 = vsub.f32 %v5199, %v5227
    %v5240 = vsub.f32 %v5202, %v5227
    %v5241 = vsub.f32 %v5205, %v5227
    %v5242 = vsub.f32 %v5208, %v5227
    %v5243 = vsub.f32 %v5211, %v5227
    %v5244 = vmul.f32 %v5228, %v5228
    %v5245 = vmul.f32 %v5229, %v5229
    %v5246 = vmul.f32 %v5230, %v5230
    %v5247 = vmul.f32 %v5231, %v5231
    %v5248 = vmul.f32 %v5232, %v5232
    %v5249 = vmul.f32 %v5233, %v5233
    %v5250 = vmul.f32 %v5234, %v5234
    %v5251 = vmul.f32 %v5235, %v5235
    %v5252 = vmul.f32 %v5236, %v5236
    %v5253 = vmul.f32 %v5237, %v5237
    %v5254 = vmul.f32 %v5238, %v5238
    %v5255 = vmul.f32 %v5239, %v5239
    %v5256 = vmul.f32 %v5240, %v5240
    %v5257 = vmul.f32 %v5241, %v5241
    %v5258 = vmul.f32 %v5242, %v5242
    %v5259 = vmul.f32 %v5243, %v5243
    %v5260 = vadd.f32 %v5244, %v5245
    %v5261 = vadd.f32 %v5260, %v5246
    %v5262 = vadd.f32 %v5261, %v5247
    %v5263 = vadd.f32 %v5262, %v5248
    %v5264 = vadd.f32 %v5263, %v5249
    %v5265 = vadd.f32 %v5264, %v5250
    %v5266 = vadd.f32 %v5265, %v5251
    %v5267 = vadd.f32 %v5266, %v5252
    %v5268 = vadd.f32 %v5267, %v5253
    %v5269 = vadd.f32 %v5268, %v5254
    %v5270 = vadd.f32 %v5269, %v5255
    %v5271 = vadd.f32 %v5270, %v5256
    %v5272 = vadd.f32 %v5271, %v5257
    %v5273 = vadd.f32 %v5272, %v5258
    %v5274 = vadd.f32 %v5273, %v5259
    %v5275 = vmul.f32 %v5274, %v2315
    %v5276 = vrsqrt.pop %v5275
    %v5277 = vmul.f32 %v5275, %v5276
    %vm5278 = vcmp.eq.f32.partialorder %v5275, inf
    %v5279 = vsel %vm5278, %v5275, %v5277
    %vm5280 = vcmp.eq.f32.partialorder %v5275, 0.0
    %v5281 = vand.u32 %v5275, 2147483648
    %v5282 = vsel %vm5280, %v5281, %v5279
    %v5283 = vadd.f32 %v5282, 1e-05
    %v5284 = vrcp.pop %v5283
    %v5285 = vmul.f32 %v5228, %v5284
    %v5286 = vmul.f32 %v5229, %v5284
    %v5287 = vmul.f32 %v5230, %v5284
    %v5288 = vmul.f32 %v5231, %v5284
    %v5289 = vmul.f32 %v5232, %v5284
    %v5290 = vmul.f32 %v5233, %v5284
    %v5291 = vmul.f32 %v5234, %v5284
    %v5292 = vmul.f32 %v5235, %v5284
    %v5293 = vmul.f32 %v5236, %v5284
    %v5294 = vmul.f32 %v5237, %v5284
    %v5295 = vmul.f32 %v5238, %v5284
    %v5296 = vmul.f32 %v5239, %v5284
    %v5297 = vmul.f32 %v5240, %v5284
    %v5298 = vmul.f32 %v5241, %v5284
    %v5299 = vmul.f32 %v5242, %v5284
    %v5300 = vmul.f32 %v5243, %v5284
    %v5301 = vmul.f32 %v5285, %v3537
    %v5302 = vmul.f32 %v5286, %v3537
    %v5303 = vmul.f32 %v5287, %v3537
    %v5304 = vmul.f32 %v5288, %v3537
    %v5305 = vmul.f32 %v5289, %v3537
    %v5306 = vmul.f32 %v5290, %v3537
    %v5307 = vmul.f32 %v5291, %v3537
    %v5308 = vmul.f32 %v5292, %v3537
    %v5309 = vmul.f32 %v5293, %v3537
    %v5310 = vmul.f32 %v5294, %v3537
    %v5311 = vmul.f32 %v5295, %v3537
    %v5312 = vmul.f32 %v5296, %v3537
    %v5313 = vmul.f32 %v5297, %v3537
    %v5314 = vmul.f32 %v5298, %v3537
    %v5315 = vmul.f32 %v5299, %v3537
    %v5316 = vmul.f32 %v5300, %v3537
    %v5317 = vadd.f32 %v5301, %v3555
    %v5318 = vadd.f32 %v5302, %v3555
    %v5319 = vadd.f32 %v5303, %v3555
    %v5320 = vadd.f32 %v5304, %v3555
    %v5321 = vadd.f32 %v5305, %v3555
    %v5322 = vadd.f32 %v5306, %v3555
    %v5323 = vadd.f32 %v5307, %v3555
    %v5324 = vadd.f32 %v5308, %v3555
    %v5325 = vadd.f32 %v5309, %v3555
    %v5326 = vadd.f32 %v5310, %v3555
    %v5327 = vadd.f32 %v5311, %v3555
    %v5328 = vadd.f32 %v5312, %v3555
    %v5329 = vadd.f32 %v5313, %v3555
    %v5330 = vadd.f32 %v5314, %v3555
    %v5331 = vadd.f32 %v5315, %v3555
    %v5332 = vadd.f32 %v5316, %v3555
    %v5333 = vxor.u32 %v5317, 2147483648
    %v5334 = vxor.u32 %v5318, 2147483648
    %v5335 = vxor.u32 %v5319, 2147483648
    %v5336 = vxor.u32 %v5320, 2147483648
    %v5337 = vxor.u32 %v5321, 2147483648
    %v5338 = vxor.u32 %v5322, 2147483648
    %v5339 = vxor.u32 %v5323, 2147483648
    %v5340 = vxor.u32 %v5324, 2147483648
    %v5341 = vxor.u32 %v5325, 2147483648
    %v5342 = vxor.u32 %v5326, 2147483648
    %v5343 = vxor.u32 %v5327, 2147483648
    %v5344 = vxor.u32 %v5328, 2147483648
    %v5345 = vxor.u32 %v5329, 2147483648
    %v5346 = vxor.u32 %v5330, 2147483648
    %v5347 = vxor.u32 %v5331, 2147483648
    %v5348 = vxor.u32 %v5332, 2147483648
    %v5349 = vmul.f32 %v5333, 1.442695
    %v5350 = vpow.pop %v5349
    %v5351 = vmul.f32 %v5334, 1.442695
    %v5352 = vpow.pop %v5351
    %v5353 = vmul.f32 %v5335, 1.442695
    %v5354 = vpow.pop %v5353
    %v5355 = vmul.f32 %v5336, 1.442695
    %v5356 = vpow.pop %v5355
    %v5357 = vmul.f32 %v5337, 1.442695
    %v5358 = vpow.pop %v5357
    %v5359 = vmul.f32 %v5338, 1.442695
    %v5360 = vpow.pop %v5359
    %v5361 = vmul.f32 %v5339, 1.442695
    %v5362 = vpow.pop %v5361
    %v5363 = vmul.f32 %v5340, 1.442695
    %v5364 = vpow.pop %v5363
    %v5365 = vmul.f32 %v5341, 1.442695
    %v5366 = vpow.pop %v5365
    %v5367 = vmul.f32 %v5342, 1.442695
    %v5368 = vpow.pop %v5367
    %v5369 = vmul.f32 %v5343, 1.442695
    %v5370 = vpow.pop %v5369
    %v5371 = vmul.f32 %v5344, 1.442695
    %v5372 = vpow.pop %v5371
    %v5373 = vmul.f32 %v5345, 1.442695
    %v5374 = vpow.pop %v5373
    %v5375 = vmul.f32 %v5346, 1.442695
    %v5376 = vpow.pop %v5375
    %v5377 = vmul.f32 %v5347, 1.442695
    %v5378 = vpow.pop %v5377
    %v5379 = vmul.f32 %v5348, 1.442695
    %v5380 = vpow.pop %v5379
    %v5381 = vadd.f32 %v5350, 1.0
    %v5382 = vadd.f32 %v5352, 1.0
    %v5383 = vadd.f32 %v5354, 1.0
    %v5384 = vadd.f32 %v5356, 1.0
    %v5385 = vadd.f32 %v5358, 1.0
    %v5386 = vadd.f32 %v5360, 1.0
    %v5387 = vadd.f32 %v5362, 1.0
    %v5388 = vadd.f32 %v5364, 1.0
    %v5389 = vadd.f32 %v5366, 1.0
    %v5390 = vadd.f32 %v5368, 1.0
    %v5391 = vadd.f32 %v5370, 1.0
    %v5392 = vadd.f32 %v5372, 1.0
    %v5393 = vadd.f32 %v5374, 1.0
    %v5394 = vadd.f32 %v5376, 1.0
    %v5395 = vadd.f32 %v5378, 1.0
    %v5396 = vadd.f32 %v5380, 1.0
    %v5397 = vrcp.pop %v5381
    %v5398 = vmul.f32 1.0, %v5397
    %v5399 = vrcp.pop %v5382
    %v5400 = vmul.f32 1.0, %v5399
    %v5401 = vrcp.pop %v5383
    %v5402 = vmul.f32 1.0, %v5401
    %v5403 = vrcp.pop %v5384
    %v5404 = vmul.f32 1.0, %v5403
    %v5405 = vrcp.pop %v5385
    %v5406 = vmul.f32 1.0, %v5405
    %v5407 = vrcp.pop %v5386
    %v5408 = vmul.f32 1.0, %v5407
    %v5409 = vrcp.pop %v5387
    %v5410 = vmul.f32 1.0, %v5409
    %v5411 = vrcp.pop %v5388
    %v5412 = vmul.f32 1.0, %v5411
    %v5413 = vrcp.pop %v5389
    %v5414 = vmul.f32 1.0, %v5413
    %v5415 = vrcp.pop %v5390
    %v5416 = vmul.f32 1.0, %v5415
    %v5417 = vrcp.pop %v5391
    %v5418 = vmul.f32 1.0, %v5417
    %v5419 = vrcp.pop %v5392
    %v5420 = vmul.f32 1.0, %v5419
    %v5421 = vrcp.pop %v5393
    %v5422 = vmul.f32 1.0, %v5421
    %v5423 = vrcp.pop %v5394
    %v5424 = vmul.f32 1.0, %v5423
    %v5425 = vrcp.pop %v5395
    %v5426 = vmul.f32 1.0, %v5425
    %v5427 = vrcp.pop %v5396
    %v5428 = vmul.f32 1.0, %v5427
    %v5429 = vmul.f32 %v3906, %v5398
    %v5430 = vmul.f32 %v3908, %v5400
    %v5431 = vmul.f32 %v3910, %v5402
    %v5432 = vmul.f32 %v3912, %v5404
    %v5433 = vmul.f32 %v3914, %v5406
    %v5434 = vmul.f32 %v3916, %v5408
    %v5435 = vmul.f32 %v3918, %v5410
    %v5436 = vmul.f32 %v3920, %v5412
    %v5437 = vmul.f32 %v3922, %v5414
    %v5438 = vmul.f32 %v3924, %v5416
    %v5439 = vmul.f32 %v3926, %v5418
    %v5440 = vmul.f32 %v3928, %v5420
    %v5441 = vmul.f32 %v3930, %v5422
    %v5442 = vmul.f32 %v3932, %v5424
    %v5443 = vmul.f32 %v3934, %v5426
    %v5444 = vmul.f32 %v3936, %v5428
    %v5445 = vsel %vm2154, %v4250, %v4643
    %v5446 = vsel %vm2154, %v4251, %v4644
    %v5447 = vsel %vm2154, %v4252, %v4645
    %v5448 = vsel %vm2154, %v4253, %v4646
    %v5449 = vsel %vm2154, %v4254, %v4647
    %v5450 = vsel %vm2154, %v4255, %v4648
    %v5451 = vsel %vm2154, %v4256, %v4649
    %v5452 = vsel %vm2154, %v4257, %v4650
    %v5453 = vsel %vm2154, %v4258, %v4651
    %v5454 = vsel %vm2154, %v4259, %v4652
    %v5455 = vsel %vm2154, %v4260, %v4653
    %v5456 = vsel %vm2154, %v4261, %v4654
    %v5457 = vsel %vm2154, %v4262, %v4655
    %v5458 = vsel %vm2154, %v4263, %v4656
    %v5459 = vsel %vm2154, %v4264, %v4657
    %v5460 = vsel %vm2154, %v4265, %v4658
    %v5461 = vsel %vm250, %v5445, %v5036
    %v5462 = vsel %vm250, %v5446, %v5037
    %v5463 = vsel %vm250, %v5447, %v5038
    %v5464 = vsel %vm250, %v5448, %v5039
    %v5465 = vsel %vm250, %v5449, %v5040
    %v5466 = vsel %vm250, %v5450, %v5041
    %v5467 = vsel %vm250, %v5451, %v5042
    %v5468 = vsel %vm250, %v5452, %v5043
    %v5469 = vsel %vm250, %v5453, %v5044
    %v5470 = vsel %vm250, %v5454, %v5045
    %v5471 = vsel %vm250, %v5455, %v5046
    %v5472 = vsel %vm250, %v5456, %v5047
    %v5473 = vsel %vm250, %v5457, %v5048
    %v5474 = vsel %vm250, %v5458, %v5049
    %v5475 = vsel %vm250, %v5459, %v5050
    %v5476 = vsel %vm250, %v5460, %v5051
    %v5477 = vsel %vm3716, %v5461, %v5429
    %v5478 = vsel %vm3716, %v5462, %v5430
    %v5479 = vsel %vm3716, %v5463, %v5431
    %v5480 = vsel %vm3716, %v5464, %v5432
    %v5481 = vsel %vm3716, %v5465, %v5433
    %v5482 = vsel %vm3716, %v5466, %v5434
    %v5483 = vsel %vm3716, %v5467, %v5435
    %v5484 = vsel %vm3716, %v5468, %v5436
    %v5485 = vsel %vm3716, %v5469, %v5437
    %v5486 = vsel %vm3716, %v5470, %v5438
    %v5487 = vsel %vm3716, %v5471, %v5439
    %v5488 = vsel %vm3716, %v5472, %v5440
    %v5489 = vsel %vm3716, %v5473, %v5441
    %v5490 = vsel %vm3716, %v5474, %v5442
    %v5491 = vsel %vm3716, %v5475, %v5443
    %v5492 = vsel %vm3716, %v5476, %v5444
    %v5493 = vsel %vm267, %v5477, -inf
    %v5494 = vsel %vm267, %v5478, -inf
    %v5495 = vsel %vm267, %v5479, -inf
    %v5496 = vsel %vm267, %v5480, -inf
    %v5497 = vmax.f32 %v5493, %v5494
    %v5498 = vmax.f32 %v5495, %v5496
    %v5499 = vmax.f32 %v5497, %v5498
    %v5500 = vsel %vm267, %v5481, -inf
    %v5501 = vsel %vm267, %v5482, -inf
    %v5502 = vsel %vm267, %v5483, -inf
    %v5503 = vsel %vm267, %v5484, -inf
    %v5504 = vmax.f32 %v5500, %v5501
    %v5505 = vmax.f32 %v5502, %v5503
    %v5506 = vmax.f32 %v5504, %v5505
    %v5507 = vsel %vm267, %v5485, -inf
    %v5508 = vsel %vm267, %v5486, -inf
    %v5509 = vsel %vm267, %v5487, -inf
    %v5510 = vsel %vm267, %v5488, -inf
    %v5511 = vmax.f32 %v5507, %v5508
    %v5512 = vmax.f32 %v5509, %v5510
    %v5513 = vmax.f32 %v5511, %v5512
    %v5514 = vsel %vm267, %v5489, -inf
    %v5515 = vsel %vm267, %v5490, -inf
    %v5516 = vsel %vm267, %v5491, -inf
    %v5517 = vsel %vm267, %v5492, -inf
    %v5518 = vmax.f32 %v5514, %v5515
    %v5519 = vmax.f32 %v5516, %v5517
    %v5520 = vmax.f32 %v5518, %v5519
    %5525 = vrot.lane.b32.xlu0 %v5499, 64
    %v5526 = vpop.permute.xlu0 %5525
    %5527 = vrot.lane.b32.xlu0 %v5506, 64
    %v5528 = vpop.permute.xlu0 %5527
    %5529 = vrot.lane.b32.xlu0 %v5513, 64
    %v5530 = vpop.permute.xlu0 %5529
    %5531 = vrot.lane.b32.xlu0 %v5520, 64
    %v5532 = vpop.permute.xlu0 %5531
    %v5537 = vsel %vm267, %v3739, %v5526
    %v5538 = vsel %vm267, %v3746, %v5528
    %v5539 = vsel %vm267, %v3753, %v5530
    %v5540 = vsel %vm267, %v3760, %v5532
    %v5541 = vld [vmem:[%s9] sm:$0xff]
    %v5542 = vld [vmem:[%s9 + $0x8] sm:$0xff]
    %v5543 = vld [vmem:[%s9 + $0x10] sm:$0xf]
    %v5544 = vld [vmem:[%s9 + $0x18] sm:$0xff]
    %v5545 = vld [vmem:[%s9 + $0x20] sm:$0xff]
    %v5546 = vld [vmem:[%s9 + $0x28] sm:$0xf]
    %v5547 = vld [vmem:[%s9 + $0x30] sm:$0xff]
    %v5548 = vld [vmem:[%s9 + $0x38] sm:$0xff]
    %v5549 = vld [vmem:[%s9 + $0x40] sm:$0xf]
    %v5550 = vld [vmem:[%s9 + $0x48] sm:$0xff]
    %v5551 = vld [vmem:[%s9 + $0x50] sm:$0xff]
    %v5552 = vld [vmem:[%s9 + $0x58] sm:$0xf]
    %v5553 = vld [vmem:[%s7] sm:$0xff]
    %v5554 = vld [vmem:[%s7 + $0x8] sm:$0xff]
    %v5555 = vld [vmem:[%s7 + $0x10] sm:$0xff]
    %v5556 = vld [vmem:[%s7 + $0x18] sm:$0xff]
    %v5557 = vld [vmem:[%s7 + $0x20] sm:$0xff]
    %v5558 = vld [vmem:[%s7 + $0x28] sm:$0xff]
    %v5559 = vld [vmem:[%s7 + $0x30] sm:$0xff]
    %v5560 = vld [vmem:[%s7 + $0x38] sm:$0xff]
    %v5561 = vld [vmem:[%s7 + $0x40] sm:$0xff]
    %v5562 = vld [vmem:[%s7 + $0x48] sm:$0xff]
    %v5563 = vld [vmem:[%s7 + $0x50] sm:$0xff]
    %v5564 = vld [vmem:[%s7 + $0x58] sm:$0xff]
    %v5565 = vld [vmem:[%s7 + $0x60] sm:$0xff]
    %v5566 = vld [vmem:[%s7 + $0x68] sm:$0xff]
    %v5567 = vld [vmem:[%s7 + $0x70] sm:$0xff]
    %v5568 = vld [vmem:[%s7 + $0x78] sm:$0xff]
    %v5569 = vld [vmem:[%s7 + $0x80] sm:$0xff]
    %v5570 = vld [vmem:[%s7 + $0x88] sm:$0xff]
    %v5571 = vld [vmem:[%s7 + $0x90] sm:$0xff]
    %v5572 = vld [vmem:[%s7 + $0x98] sm:$0xff]
    %v5573 = vld [vmem:[%s7 + $0xa0] sm:$0xff]
    %v5574 = vld [vmem:[%s7 + $0xa8] sm:$0xff]
    %v5575 = vld [vmem:[%s7 + $0xb0] sm:$0xff]
    %v5576 = vld [vmem:[%s7 + $0xb8] sm:$0xff]
    %v5577 = vld [vmem:[%s7 + $0xc0] sm:$0xff]
    %v5578 = vld [vmem:[%s7 + $0xc8] sm:$0xff]
    %v5579 = vld [vmem:[%s7 + $0xd0] sm:$0xff]
    %v5580 = vld [vmem:[%s7 + $0xd8] sm:$0xff]
    %v5581 = vld [vmem:[%s7 + $0xe0] sm:$0xff]
    %v5582 = vld [vmem:[%s7 + $0xe8] sm:$0xff]
    %v5583 = vld [vmem:[%s7 + $0xf0] sm:$0xff]
    %v5584 = vld [vmem:[%s7 + $0xf8] sm:$0xff]
    %v5585 = vld [vmem:[%s7 + $0x100] sm:$0xff]
    %v5586 = vld [vmem:[%s7 + $0x108] sm:$0xff]
    %v5587 = vld [vmem:[%s7 + $0x110] sm:$0xff]
    %v5588 = vld [vmem:[%s7 + $0x118] sm:$0xff]
    %v5589 = vld [vmem:[%s7 + $0x120] sm:$0xff]
    %v5590 = vld [vmem:[%s7 + $0x128] sm:$0xff]
    %v5591 = vld [vmem:[%s7 + $0x130] sm:$0xff]
    %v5592 = vld [vmem:[%s7 + $0x138] sm:$0xff]
    %v5593 = vld [vmem:[%s7 + $0x140] sm:$0xff]
    %v5594 = vld [vmem:[%s7 + $0x148] sm:$0xff]
    %v5595 = vld [vmem:[%s7 + $0x150] sm:$0xff]
    %v5596 = vld [vmem:[%s7 + $0x158] sm:$0xff]
    %v5597 = vld [vmem:[%s7 + $0x160] sm:$0xff]
    %v5598 = vld [vmem:[%s7 + $0x168] sm:$0xff]
    %v5599 = vld [vmem:[%s7 + $0x170] sm:$0xff]
    %v5600 = vld [vmem:[%s7 + $0x178] sm:$0xff]
    %v5601 = vld [vmem:[%s8] sm:$0x1]
    %v5603 = vlaneseq
    %v5604 = vshrl.u32 %v5603, 7
    %v5605 = vsub.s32 0, %v5604
    %v5606 = vrot.slane %v5601, %v5605
    %5608 = vmatprep.subr.mxu0 0.0
    %5609 = vmatpush1.msra.mxu0 %v5553
    %5610 = vmatprep.subr.mxu0 0.0
    %5611 = vmatpush1.msra.mxu0 %v5554
    %5612 = vmatprep.subr.mxu0 0.0
    %5613 = vmatpush1.msra.mxu0 %v5555
    %5614 = vmatprep.subr.mxu0 0.0
    %5615 = vmatpush1.msra.mxu0 %v5556
    %5616 = vmatprep.subr.mxu0 0.0
    %5617 = vmatpush1.msra.mxu0 %v5557
    %5618 = vmatprep.subr.mxu0 0.0
    %5619 = vmatpush1.msra.mxu0 %v5558
    %5620 = vmatprep.subr.mxu0 0.0
    %5621 = vmatpush1.msra.mxu0 %v5559
    %5622 = vmatprep.subr.mxu0 0.0
    %5623 = vmatpush1.msra.mxu0 %v5560
    %5624 = vmatprep.subr.mxu0 0.0
    %5625 = vmatpush1.msra.mxu0 %v5561
    %5626 = vmatprep.subr.mxu0 0.0
    %5627 = vmatpush1.msra.mxu0 %v5562
    %5628 = vmatprep.subr.mxu0 0.0
    %5629 = vmatpush1.msra.mxu0 %v5563
    %5630 = vmatprep.subr.mxu0 0.0
    %5631 = vmatpush1.msra.mxu0 %v5564
    %5632 = vmatprep.subr.mxu0 0.0
    %5633 = vmatpush1.msra.mxu0 %v5565
    %5634 = vmatprep.subr.mxu0 0.0
    %5635 = vmatpush1.msra.mxu0 %v5566
    %5636 = vmatprep.subr.mxu0 0.0
    %5637 = vmatpush1.msra.mxu0 %v5567
    %5638 = vmatprep.subr.mxu0 0.0
    %5639 = vmatpush1.msra.mxu0 %v5568
    %5640 = vmatprep.subr.mxu0 0.0
    %5641 = vmatpush1.msra.mxu0 %v5569
    %5642 = vmatprep.subr.mxu0 0.0
    %5643 = vmatpush1.msra.mxu0 %v5570
    %5644 = vmatprep.subr.mxu0 0.0
    %5645 = vmatpush1.msra.mxu0 %v5571
    %5646 = vmatprep.subr.mxu0 0.0
    %5647 = vmatpush1.msra.mxu0 %v5572
    %5648 = vmatprep.subr.mxu0 0.0
    %5649 = vmatpush1.msra.mxu0 %v5573
    %5650 = vmatprep.subr.mxu0 0.0
    %5651 = vmatpush1.msra.mxu0 %v5574
    %5652 = vmatprep.subr.mxu0 0.0
    %5653 = vmatpush1.msra.mxu0 %v5575
    %5654 = vmatprep.subr.mxu0 0.0
    %5655 = vmatpush1.msra.mxu0 %v5576
    %5656 = vmatprep.subr.mxu0 0.0
    %5657 = vmatpush1.msra.mxu0 %v5577
    %5658 = vmatprep.subr.mxu0 0.0
    %5659 = vmatpush1.msra.mxu0 %v5578
    %5660 = vmatprep.subr.mxu0 0.0
    %5661 = vmatpush1.msra.mxu0 %v5579
    %5662 = vmatprep.subr.mxu0 0.0
    %5663 = vmatpush1.msra.mxu0 %v5580
    %5664 = vmatprep.subr.mxu0 0.0
    %5665 = vmatpush1.msra.mxu0 %v5581
    %5666 = vmatprep.subr.mxu0 0.0
    %5667 = vmatpush1.msra.mxu0 %v5582
    %5668 = vmatprep.subr.mxu0 0.0
    %5669 = vmatpush1.msra.mxu0 %v5583
    %5670 = vmatprep.subr.mxu0 0.0
    %5671 = vmatpush1.msra.mxu0 %v5584
    %5672 = vmatprep.mubr.f32.mxu0 %v5537
    %5673 = vmatmul.mubr.f32.gmra.mrb[0].mxu0 0.0
    %v5674 = vpop.f32.mrb[0].mxu0
    %v5675 = vadd.f32 %v5606, %v5674
    %v5676 = vpop.f32.mrb[0].mxu0
    %5677 = vdwg.mxu0
    %5678 = vmatprep.subr.mxu0 0.0
    %5679 = vmatpush1.msra.mxu0 %v5585
    %5680 = vmatprep.subr.mxu0 0.0
    %5681 = vmatpush1.msra.mxu0 %v5586
    %5682 = vmatprep.subr.mxu0 0.0
    %5683 = vmatpush1.msra.mxu0 %v5587
    %5684 = vmatprep.subr.mxu0 0.0
    %5685 = vmatpush1.msra.mxu0 %v5588
    %5686 = vmatprep.subr.mxu0 0.0
    %5687 = vmatpush1.msra.mxu0 %v5589
    %5688 = vmatprep.subr.mxu0 0.0
    %5689 = vmatpush1.msra.mxu0 %v5590
    %5690 = vmatprep.subr.mxu0 0.0
    %5691 = vmatpush1.msra.mxu0 %v5591
    %5692 = vmatprep.subr.mxu0 0.0
    %5693 = vmatpush1.msra.mxu0 %v5592
    %5694 = vmatprep.subr.mxu0 0.0
    %5695 = vmatpush1.msra.mxu0 %v5593
    %5696 = vmatprep.subr.mxu0 0.0
    %5697 = vmatpush1.msra.mxu0 %v5594
    %5698 = vmatprep.subr.mxu0 0.0
    %5699 = vmatpush1.msra.mxu0 %v5595
    %5700 = vmatprep.subr.mxu0 0.0
    %5701 = vmatpush1.msra.mxu0 %v5596
    %5702 = vmatprep.subr.mxu0 0.0
    %5703 = vmatpush1.msra.mxu0 %v5597
    %5704 = vmatprep.subr.mxu0 0.0
    %5705 = vmatpush1.msra.mxu0 %v5598
    %5706 = vmatprep.subr.mxu0 0.0
    %5707 = vmatpush1.msra.mxu0 %v5599
    %5708 = vmatprep.subr.mxu0 0.0
    %5709 = vmatpush1.msra.mxu0 %v5600
    %5710 = vmatprep.subr.mxu0 0.0
    %5711 = vmatpush1.msra.mxu0 0.0
    %5712 = vmatprep.subr.mxu0 0.0
    %5713 = vmatpush1.msra.mxu0 0.0
    %5714 = vmatprep.subr.mxu0 0.0
    %5715 = vmatpush1.msra.mxu0 0.0
    %5716 = vmatprep.subr.mxu0 0.0
    %5717 = vmatpush1.msra.mxu0 0.0
    %5718 = vmatprep.subr.mxu0 0.0
    %5719 = vmatpush1.msra.mxu0 0.0
    %5720 = vmatprep.subr.mxu0 0.0
    %5721 = vmatpush1.msra.mxu0 0.0
    %5722 = vmatprep.subr.mxu0 0.0
    %5723 = vmatpush1.msra.mxu0 0.0
    %5724 = vmatprep.subr.mxu0 0.0
    %5725 = vmatpush1.msra.mxu0 0.0
    %5726 = vmatprep.subr.mxu0 0.0
    %5727 = vmatpush1.msra.mxu0 0.0
    %5728 = vmatprep.subr.mxu0 0.0
    %5729 = vmatpush1.msra.mxu0 0.0
    %5730 = vmatprep.subr.mxu0 0.0
    %5731 = vmatpush1.msra.mxu0 0.0
    %5732 = vmatprep.subr.mxu0 0.0
    %5733 = vmatpush1.msra.mxu0 0.0
    %5734 = vmatprep.subr.mxu0 0.0
    %5735 = vmatpush1.msra.mxu0 0.0
    %5736 = vmatprep.subr.mxu0 0.0
    %5737 = vmatpush1.msra.mxu0 0.0
    %5738 = vmatprep.subr.mxu0 0.0
    %5739 = vmatpush1.msra.mxu0 0.0
    %5740 = vmatprep.subr.mxu0 0.0
    %5741 = vmatpush1.msra.mxu0 0.0
    %5742 = vmatprep.mubr.f32.mxu0 0.0
    %5743 = vmatmul.mubr.f32.gmra.mrb[0].mxu0 %v5538
    %v5744 = vpop.f32.mrb[0].mxu0
    %v5745 = vadd.f32 %v5675, %v5744
    %v5746 = vpop.f32.mrb[0].mxu0
    %5747 = vdwg.mxu0
    %v5748 = vmax.f32 %v5745, 0.0
    %5749 = vmatprep.subr.mxu0 0.0
    %5750 = vmatpush1.msra.mxu0 %v5553
    %5751 = vmatprep.subr.mxu0 0.0
    %5752 = vmatpush1.msra.mxu0 %v5554
    %5753 = vmatprep.subr.mxu0 0.0
    %5754 = vmatpush1.msra.mxu0 %v5555
    %5755 = vmatprep.subr.mxu0 0.0
    %5756 = vmatpush1.msra.mxu0 %v5556
    %5757 = vmatprep.subr.mxu0 0.0
    %5758 = vmatpush1.msra.mxu0 %v5557
    %5759 = vmatprep.subr.mxu0 0.0
    %5760 = vmatpush1.msra.mxu0 %v5558
    %5761 = vmatprep.subr.mxu0 0.0
    %5762 = vmatpush1.msra.mxu0 %v5559
    %5763 = vmatprep.subr.mxu0 0.0
    %5764 = vmatpush1.msra.mxu0 %v5560
    %5765 = vmatprep.subr.mxu0 0.0
    %5766 = vmatpush1.msra.mxu0 %v5561
    %5767 = vmatprep.subr.mxu0 0.0
    %5768 = vmatpush1.msra.mxu0 %v5562
    %5769 = vmatprep.subr.mxu0 0.0
    %5770 = vmatpush1.msra.mxu0 %v5563
    %5771 = vmatprep.subr.mxu0 0.0
    %5772 = vmatpush1.msra.mxu0 %v5564
    %5773 = vmatprep.subr.mxu0 0.0
    %5774 = vmatpush1.msra.mxu0 %v5565
    %5775 = vmatprep.subr.mxu0 0.0
    %5776 = vmatpush1.msra.mxu0 %v5566
    %5777 = vmatprep.subr.mxu0 0.0
    %5778 = vmatpush1.msra.mxu0 %v5567
    %5779 = vmatprep.subr.mxu0 0.0
    %5780 = vmatpush1.msra.mxu0 %v5568
    %5781 = vmatprep.subr.mxu0 0.0
    %5782 = vmatpush1.msra.mxu0 %v5569
    %5783 = vmatprep.subr.mxu0 0.0
    %5784 = vmatpush1.msra.mxu0 %v5570
    %5785 = vmatprep.subr.mxu0 0.0
    %5786 = vmatpush1.msra.mxu0 %v5571
    %5787 = vmatprep.subr.mxu0 0.0
    %5788 = vmatpush1.msra.mxu0 %v5572
    %5789 = vmatprep.subr.mxu0 0.0
    %5790 = vmatpush1.msra.mxu0 %v5573
    %5791 = vmatprep.subr.mxu0 0.0
    %5792 = vmatpush1.msra.mxu0 %v5574
    %5793 = vmatprep.subr.mxu0 0.0
    %5794 = vmatpush1.msra.mxu0 %v5575
    %5795 = vmatprep.subr.mxu0 0.0
    %5796 = vmatpush1.msra.mxu0 %v5576
    %5797 = vmatprep.subr.mxu0 0.0
    %5798 = vmatpush1.msra.mxu0 %v5577
    %5799 = vmatprep.subr.mxu0 0.0
    %5800 = vmatpush1.msra.mxu0 %v5578
    %5801 = vmatprep.subr.mxu0 0.0
    %5802 = vmatpush1.msra.mxu0 %v5579
    %5803 = vmatprep.subr.mxu0 0.0
    %5804 = vmatpush1.msra.mxu0 %v5580
    %5805 = vmatprep.subr.mxu0 0.0
    %5806 = vmatpush1.msra.mxu0 %v5581
    %5807 = vmatprep.subr.mxu0 0.0
    %5808 = vmatpush1.msra.mxu0 %v5582
    %5809 = vmatprep.subr.mxu0 0.0
    %5810 = vmatpush1.msra.mxu0 %v5583
    %5811 = vmatprep.subr.mxu0 0.0
    %5812 = vmatpush1.msra.mxu0 %v5584
    %5813 = vmatprep.mubr.f32.mxu0 %v5538
    %5814 = vmatmul.mubr.f32.gmra.mrb[0].mxu0 %v5537
    %v5815 = vpop.f32.mrb[0].mxu0
    %v5816 = vadd.f32 %v5606, %v5815
    %v5817 = vpop.f32.mrb[0].mxu0
    %5818 = vdwg.mxu0
    %5819 = vmatprep.subr.mxu0 0.0
    %5820 = vmatpush1.msra.mxu0 %v5585
    %5821 = vmatprep.subr.mxu0 0.0
    %5822 = vmatpush1.msra.mxu0 %v5586
    %5823 = vmatprep.subr.mxu0 0.0
    %5824 = vmatpush1.msra.mxu0 %v5587
    %5825 = vmatprep.subr.mxu0 0.0
    %5826 = vmatpush1.msra.mxu0 %v5588
    %5827 = vmatprep.subr.mxu0 0.0
    %5828 = vmatpush1.msra.mxu0 %v5589
    %5829 = vmatprep.subr.mxu0 0.0
    %5830 = vmatpush1.msra.mxu0 %v5590
    %5831 = vmatprep.subr.mxu0 0.0
    %5832 = vmatpush1.msra.mxu0 %v5591
    %5833 = vmatprep.subr.mxu0 0.0
    %5834 = vmatpush1.msra.mxu0 %v5592
    %5835 = vmatprep.subr.mxu0 0.0
    %5836 = vmatpush1.msra.mxu0 %v5593
    %5837 = vmatprep.subr.mxu0 0.0
    %5838 = vmatpush1.msra.mxu0 %v5594
    %5839 = vmatprep.subr.mxu0 0.0
    %5840 = vmatpush1.msra.mxu0 %v5595
    %5841 = vmatprep.subr.mxu0 0.0
    %5842 = vmatpush1.msra.mxu0 %v5596
    %5843 = vmatprep.subr.mxu0 0.0
    %5844 = vmatpush1.msra.mxu0 %v5597
    %5845 = vmatprep.subr.mxu0 0.0
    %5846 = vmatpush1.msra.mxu0 %v5598
    %5847 = vmatprep.subr.mxu0 0.0
    %5848 = vmatpush1.msra.mxu0 %v5599
    %5849 = vmatprep.subr.mxu0 0.0
    %5850 = vmatpush1.msra.mxu0 %v5600
    %5851 = vmatprep.subr.mxu0 0.0
    %5852 = vmatpush1.msra.mxu0 0.0
    %5853 = vmatprep.subr.mxu0 0.0
    %5854 = vmatpush1.msra.mxu0 0.0
    %5855 = vmatprep.subr.mxu0 0.0
    %5856 = vmatpush1.msra.mxu0 0.0
    %5857 = vmatprep.subr.mxu0 0.0
    %5858 = vmatpush1.msra.mxu0 0.0
    %5859 = vmatprep.subr.mxu0 0.0
    %5860 = vmatpush1.msra.mxu0 0.0
    %5861 = vmatprep.subr.mxu0 0.0
    %5862 = vmatpush1.msra.mxu0 0.0
    %5863 = vmatprep.subr.mxu0 0.0
    %5864 = vmatpush1.msra.mxu0 0.0
    %5865 = vmatprep.subr.mxu0 0.0
    %5866 = vmatpush1.msra.mxu0 0.0
    %5867 = vmatprep.subr.mxu0 0.0
    %5868 = vmatpush1.msra.mxu0 0.0
    %5869 = vmatprep.subr.mxu0 0.0
    %5870 = vmatpush1.msra.mxu0 0.0
    %5871 = vmatprep.subr.mxu0 0.0
    %5872 = vmatpush1.msra.mxu0 0.0
    %5873 = vmatprep.subr.mxu0 0.0
    %5874 = vmatpush1.msra.mxu0 0.0
    %5875 = vmatprep.subr.mxu0 0.0
    %5876 = vmatpush1.msra.mxu0 0.0
    %5877 = vmatprep.subr.mxu0 0.0
    %5878 = vmatpush1.msra.mxu0 0.0
    %5879 = vmatprep.subr.mxu0 0.0
    %5880 = vmatpush1.msra.mxu0 0.0
    %5881 = vmatprep.subr.mxu0 0.0
    %5882 = vmatpush1.msra.mxu0 0.0
    %5883 = vmatprep.mubr.f32.mxu0 0.0
    %5884 = vmatmul.mubr.f32.gmra.mrb[0].mxu0 %v5539
    %v5885 = vpop.f32.mrb[0].mxu0
    %v5886 = vadd.f32 %v5816, %v5885
    %v5887 = vpop.f32.mrb[0].mxu0
    %5888 = vdwg.mxu0
    %v5889 = vmax.f32 %v5886, 0.0
    %vm5890 = vcmask 162816
    %v5892 = vsel %vm5890, %v5889, 0
    %vm5894 = vcmask 1043456
    %v5896 = vsel %vm5894, %v5546, 0
    %5898 = vmatprep.subr.mxu0 0.0
    %5899 = vmatpush1.msra.mxu0 %v5544
    %5900 = vmatprep.subr.mxu0 0.0
    %5901 = vmatpush1.msra.mxu0 %v5545
    %5902 = vmatprep.subr.mxu0 0.0
    %5903 = vmatpush1.msra.mxu0 %v5896
    %5904 = vmatprep.subr.mxu0 0.0
    %5905 = vmatpush1.msra.mxu0 0.0
    %5906 = vmatprep.subr.mxu0 0.0
    %5907 = vmatpush1.msra.mxu0 0.0
    %5908 = vmatprep.subr.mxu0 0.0
    %5909 = vmatpush1.msra.mxu0 0.0
    %5910 = vmatprep.subr.mxu0 0.0
    %5911 = vmatpush1.msra.mxu0 0.0
    %5912 = vmatprep.subr.mxu0 0.0
    %5913 = vmatpush1.msra.mxu0 0.0
    %5914 = vmatprep.subr.mxu0 0.0
    %5915 = vmatpush1.msra.mxu0 0.0
    %5916 = vmatprep.subr.mxu0 0.0
    %5917 = vmatpush1.msra.mxu0 0.0
    %5918 = vmatprep.subr.mxu0 0.0
    %5919 = vmatpush1.msra.mxu0 0.0
    %5920 = vmatprep.subr.mxu0 0.0
    %5921 = vmatpush1.msra.mxu0 0.0
    %5922 = vmatprep.subr.mxu0 0.0
    %5923 = vmatpush1.msra.mxu0 0.0
    %5924 = vmatprep.subr.mxu0 0.0
    %5925 = vmatpush1.msra.mxu0 0.0
    %5926 = vmatprep.subr.mxu0 0.0
    %5927 = vmatpush1.msra.mxu0 0.0
    %5928 = vmatprep.subr.mxu0 0.0
    %5929 = vmatpush1.msra.mxu0 0.0
    %5930 = vmatprep.subr.mxu0 0.0
    %5931 = vmatpush1.msra.mxu0 0.0
    %5932 = vmatprep.subr.mxu0 0.0
    %5933 = vmatpush1.msra.mxu0 0.0
    %5934 = vmatprep.subr.mxu0 0.0
    %5935 = vmatpush1.msra.mxu0 0.0
    %5936 = vmatprep.subr.mxu0 0.0
    %5937 = vmatpush1.msra.mxu0 0.0
    %5938 = vmatprep.subr.mxu0 0.0
    %5939 = vmatpush1.msra.mxu0 0.0
    %5940 = vmatprep.subr.mxu0 0.0
    %5941 = vmatpush1.msra.mxu0 0.0
    %5942 = vmatprep.subr.mxu0 0.0
    %5943 = vmatpush1.msra.mxu0 0.0
    %5944 = vmatprep.subr.mxu0 0.0
    %5945 = vmatpush1.msra.mxu0 0.0
    %5946 = vmatprep.subr.mxu0 0.0
    %5947 = vmatpush1.msra.mxu0 0.0
    %5948 = vmatprep.subr.mxu0 0.0
    %5949 = vmatpush1.msra.mxu0 0.0
    %5950 = vmatprep.subr.mxu0 0.0
    %5951 = vmatpush1.msra.mxu0 0.0
    %5952 = vmatprep.subr.mxu0 0.0
    %5953 = vmatpush1.msra.mxu0 0.0
    %5954 = vmatprep.subr.mxu0 0.0
    %5955 = vmatpush1.msra.mxu0 0.0
    %5956 = vmatprep.subr.mxu0 0.0
    %5957 = vmatpush1.msra.mxu0 0.0
    %5958 = vmatprep.subr.mxu0 0.0
    %5959 = vmatpush1.msra.mxu0 0.0
    %5960 = vmatprep.subr.mxu0 0.0
    %5961 = vmatpush1.msra.mxu0 0.0
    %5962 = vmatprep.mubr.f32.mxu0 0.0
    %5963 = vmatmul.mubr.f32.gmra.mrb[0].mxu0 %v5892
    %v5964 = vpop.f32.mrb[0].mxu0
    %v5965 = vadd.f32 0.0, %v5964
    %v5966 = vpop.f32.mrb[0].mxu0
    %5967 = vdwg.mxu0
    %v5969 = vsel %vm5890, %v5748, 0
    %v5972 = vsel %vm5894, %v5543, 0
    %5974 = vmatprep.subr.mxu0 0.0
    %5975 = vmatpush1.msra.mxu0 %v5541
    %5976 = vmatprep.subr.mxu0 0.0
    %5977 = vmatpush1.msra.mxu0 %v5542
    %5978 = vmatprep.subr.mxu0 0.0
    %5979 = vmatpush1.msra.mxu0 %v5972
    %5980 = vmatprep.subr.mxu0 0.0
    %5981 = vmatpush1.msra.mxu0 0.0
    %5982 = vmatprep.subr.mxu0 0.0
    %5983 = vmatpush1.msra.mxu0 0.0
    %5984 = vmatprep.subr.mxu0 0.0
    %5985 = vmatpush1.msra.mxu0 0.0
    %5986 = vmatprep.subr.mxu0 0.0
    %5987 = vmatpush1.msra.mxu0 0.0
    %5988 = vmatprep.subr.mxu0 0.0
    %5989 = vmatpush1.msra.mxu0 0.0
    %5990 = vmatprep.subr.mxu0 0.0
    %5991 = vmatpush1.msra.mxu0 0.0
    %5992 = vmatprep.subr.mxu0 0.0
    %5993 = vmatpush1.msra.mxu0 0.0
    %5994 = vmatprep.subr.mxu0 0.0
    %5995 = vmatpush1.msra.mxu0 0.0
    %5996 = vmatprep.subr.mxu0 0.0
    %5997 = vmatpush1.msra.mxu0 0.0
    %5998 = vmatprep.subr.mxu0 0.0
    %5999 = vmatpush1.msra.mxu0 0.0
    %6000 = vmatprep.subr.mxu0 0.0
    %6001 = vmatpush1.msra.mxu0 0.0
    %6002 = vmatprep.subr.mxu0 0.0
    %6003 = vmatpush1.msra.mxu0 0.0
    %6004 = vmatprep.subr.mxu0 0.0
    %6005 = vmatpush1.msra.mxu0 0.0
    %6006 = vmatprep.subr.mxu0 0.0
    %6007 = vmatpush1.msra.mxu0 0.0
    %6008 = vmatprep.subr.mxu0 0.0
    %6009 = vmatpush1.msra.mxu0 0.0
    %6010 = vmatprep.subr.mxu0 0.0
    %6011 = vmatpush1.msra.mxu0 0.0
    %6012 = vmatprep.subr.mxu0 0.0
    %6013 = vmatpush1.msra.mxu0 0.0
    %6014 = vmatprep.subr.mxu0 0.0
    %6015 = vmatpush1.msra.mxu0 0.0
    %6016 = vmatprep.subr.mxu0 0.0
    %6017 = vmatpush1.msra.mxu0 0.0
    %6018 = vmatprep.subr.mxu0 0.0
    %6019 = vmatpush1.msra.mxu0 0.0
    %6020 = vmatprep.subr.mxu0 0.0
    %6021 = vmatpush1.msra.mxu0 0.0
    %6022 = vmatprep.subr.mxu0 0.0
    %6023 = vmatpush1.msra.mxu0 0.0
    %6024 = vmatprep.subr.mxu0 0.0
    %6025 = vmatpush1.msra.mxu0 0.0
    %6026 = vmatprep.subr.mxu0 0.0
    %6027 = vmatpush1.msra.mxu0 0.0
    %6028 = vmatprep.subr.mxu0 0.0
    %6029 = vmatpush1.msra.mxu0 0.0
    %6030 = vmatprep.subr.mxu0 0.0
    %6031 = vmatpush1.msra.mxu0 0.0
    %6032 = vmatprep.subr.mxu0 0.0
    %6033 = vmatpush1.msra.mxu0 0.0
    %6034 = vmatprep.subr.mxu0 0.0
    %6035 = vmatpush1.msra.mxu0 0.0
    %6036 = vmatprep.subr.mxu0 0.0
    %6037 = vmatpush1.msra.mxu0 0.0
    %6038 = vmatprep.mubr.f32.mxu0 0.0
    %6039 = vmatmul.mubr.f32.gmra.mrb[0].mxu0 %v5969
    %v6040 = vpop.f32.mrb[0].mxu0
    %v6041 = vadd.f32 %v5965, %v6040
    %v6042 = vpop.f32.mrb[0].mxu0
    %6043 = vdwg.mxu0
    %6044 = vmatprep.subr.mxu0 0.0
    %6045 = vmatpush1.msra.mxu0 %v5553
    %6046 = vmatprep.subr.mxu0 0.0
    %6047 = vmatpush1.msra.mxu0 %v5554
    %6048 = vmatprep.subr.mxu0 0.0
    %6049 = vmatpush1.msra.mxu0 %v5555
    %6050 = vmatprep.subr.mxu0 0.0
    %6051 = vmatpush1.msra.mxu0 %v5556
    %6052 = vmatprep.subr.mxu0 0.0
    %6053 = vmatpush1.msra.mxu0 %v5557
    %6054 = vmatprep.subr.mxu0 0.0
    %6055 = vmatpush1.msra.mxu0 %v5558
    %6056 = vmatprep.subr.mxu0 0.0
    %6057 = vmatpush1.msra.mxu0 %v5559
    %6058 = vmatprep.subr.mxu0 0.0
    %6059 = vmatpush1.msra.mxu0 %v5560
    %6060 = vmatprep.subr.mxu0 0.0
    %6061 = vmatpush1.msra.mxu0 %v5561
    %6062 = vmatprep.subr.mxu0 0.0
    %6063 = vmatpush1.msra.mxu0 %v5562
    %6064 = vmatprep.subr.mxu0 0.0
    %6065 = vmatpush1.msra.mxu0 %v5563
    %6066 = vmatprep.subr.mxu0 0.0
    %6067 = vmatpush1.msra.mxu0 %v5564
    %6068 = vmatprep.subr.mxu0 0.0
    %6069 = vmatpush1.msra.mxu0 %v5565
    %6070 = vmatprep.subr.mxu0 0.0
    %6071 = vmatpush1.msra.mxu0 %v5566
    %6072 = vmatprep.subr.mxu0 0.0
    %6073 = vmatpush1.msra.mxu0 %v5567
    %6074 = vmatprep.subr.mxu0 0.0
    %6075 = vmatpush1.msra.mxu0 %v5568
    %6076 = vmatprep.subr.mxu0 0.0
    %6077 = vmatpush1.msra.mxu0 %v5569
    %6078 = vmatprep.subr.mxu0 0.0
    %6079 = vmatpush1.msra.mxu0 %v5570
    %6080 = vmatprep.subr.mxu0 0.0
    %6081 = vmatpush1.msra.mxu0 %v5571
    %6082 = vmatprep.subr.mxu0 0.0
    %6083 = vmatpush1.msra.mxu0 %v5572
    %6084 = vmatprep.subr.mxu0 0.0
    %6085 = vmatpush1.msra.mxu0 %v5573
    %6086 = vmatprep.subr.mxu0 0.0
    %6087 = vmatpush1.msra.mxu0 %v5574
    %6088 = vmatprep.subr.mxu0 0.0
    %6089 = vmatpush1.msra.mxu0 %v5575
    %6090 = vmatprep.subr.mxu0 0.0
    %6091 = vmatpush1.msra.mxu0 %v5576
    %6092 = vmatprep.subr.mxu0 0.0
    %6093 = vmatpush1.msra.mxu0 %v5577
    %6094 = vmatprep.subr.mxu0 0.0
    %6095 = vmatpush1.msra.mxu0 %v5578
    %6096 = vmatprep.subr.mxu0 0.0
    %6097 = vmatpush1.msra.mxu0 %v5579
    %6098 = vmatprep.subr.mxu0 0.0
    %6099 = vmatpush1.msra.mxu0 %v5580
    %6100 = vmatprep.subr.mxu0 0.0
    %6101 = vmatpush1.msra.mxu0 %v5581
    %6102 = vmatprep.subr.mxu0 0.0
    %6103 = vmatpush1.msra.mxu0 %v5582
    %6104 = vmatprep.subr.mxu0 0.0
    %6105 = vmatpush1.msra.mxu0 %v5583
    %6106 = vmatprep.subr.mxu0 0.0
    %6107 = vmatpush1.msra.mxu0 %v5584
    %6108 = vmatprep.mubr.f32.mxu0 %v5539
    %6109 = vmatmul.mubr.f32.gmra.mrb[0].mxu0 %v5538
    %v6110 = vpop.f32.mrb[0].mxu0
    %v6111 = vadd.f32 %v5606, %v6110
    %v6112 = vpop.f32.mrb[0].mxu0
    %6113 = vdwg.mxu0
    %6114 = vmatprep.subr.mxu0 0.0
    %6115 = vmatpush1.msra.mxu0 %v5585
    %6116 = vmatprep.subr.mxu0 0.0
    %6117 = vmatpush1.msra.mxu0 %v5586
    %6118 = vmatprep.subr.mxu0 0.0
    %6119 = vmatpush1.msra.mxu0 %v5587
    %6120 = vmatprep.subr.mxu0 0.0
    %6121 = vmatpush1.msra.mxu0 %v5588
    %6122 = vmatprep.subr.mxu0 0.0
    %6123 = vmatpush1.msra.mxu0 %v5589
    %6124 = vmatprep.subr.mxu0 0.0
    %6125 = vmatpush1.msra.mxu0 %v5590
    %6126 = vmatprep.subr.mxu0 0.0
    %6127 = vmatpush1.msra.mxu0 %v5591
    %6128 = vmatprep.subr.mxu0 0.0
    %6129 = vmatpush1.msra.mxu0 %v5592
    %6130 = vmatprep.subr.mxu0 0.0
    %6131 = vmatpush1.msra.mxu0 %v5593
    %6132 = vmatprep.subr.mxu0 0.0
    %6133 = vmatpush1.msra.mxu0 %v5594
    %6134 = vmatprep.subr.mxu0 0.0
    %6135 = vmatpush1.msra.mxu0 %v5595
    %6136 = vmatprep.subr.mxu0 0.0
    %6137 = vmatpush1.msra.mxu0 %v5596
    %6138 = vmatprep.subr.mxu0 0.0
    %6139 = vmatpush1.msra.mxu0 %v5597
    %6140 = vmatprep.subr.mxu0 0.0
    %6141 = vmatpush1.msra.mxu0 %v5598
    %6142 = vmatprep.subr.mxu0 0.0
    %6143 = vmatpush1.msra.mxu0 %v5599
    %6144 = vmatprep.subr.mxu0 0.0
    %6145 = vmatpush1.msra.mxu0 %v5600
    %6146 = vmatprep.subr.mxu0 0.0
    %6147 = vmatpush1.msra.mxu0 0.0
    %6148 = vmatprep.subr.mxu0 0.0
    %6149 = vmatpush1.msra.mxu0 0.0
    %6150 = vmatprep.subr.mxu0 0.0
    %6151 = vmatpush1.msra.mxu0 0.0
    %6152 = vmatprep.subr.mxu0 0.0
    %6153 = vmatpush1.msra.mxu0 0.0
    %6154 = vmatprep.subr.mxu0 0.0
    %6155 = vmatpush1.msra.mxu0 0.0
    %6156 = vmatprep.subr.mxu0 0.0
    %6157 = vmatpush1.msra.mxu0 0.0
    %6158 = vmatprep.subr.mxu0 0.0
    %6159 = vmatpush1.msra.mxu0 0.0
    %6160 = vmatprep.subr.mxu0 0.0
    %6161 = vmatpush1.msra.mxu0 0.0
    %6162 = vmatprep.subr.mxu0 0.0
    %6163 = vmatpush1.msra.mxu0 0.0
    %6164 = vmatprep.subr.mxu0 0.0
    %6165 = vmatpush1.msra.mxu0 0.0
    %6166 = vmatprep.subr.mxu0 0.0
    %6167 = vmatpush1.msra.mxu0 0.0
    %6168 = vmatprep.subr.mxu0 0.0
    %6169 = vmatpush1.msra.mxu0 0.0
    %6170 = vmatprep.subr.mxu0 0.0
    %6171 = vmatpush1.msra.mxu0 0.0
    %6172 = vmatprep.subr.mxu0 0.0
    %6173 = vmatpush1.msra.mxu0 0.0
    %6174 = vmatprep.subr.mxu0 0.0
    %6175 = vmatpush1.msra.mxu0 0.0
    %6176 = vmatprep.subr.mxu0 0.0
    %6177 = vmatpush1.msra.mxu0 0.0
    %6178 = vmatprep.mubr.f32.mxu0 0.0
    %6179 = vmatmul.mubr.f32.gmra.mrb[0].mxu0 %v5540
    %v6180 = vpop.f32.mrb[0].mxu0
    %v6181 = vadd.f32 %v6111, %v6180
    %v6182 = vpop.f32.mrb[0].mxu0
    %6183 = vdwg.mxu0
    %v6184 = vmax.f32 %v6181, 0.0
    %v6186 = vsel %vm5890, %v6184, 0
    %v6189 = vsel %vm5894, %v5549, 0
    %6191 = vmatprep.subr.mxu0 0.0
    %6192 = vmatpush1.msra.mxu0 %v5547
    %6193 = vmatprep.subr.mxu0 0.0
    %6194 = vmatpush1.msra.mxu0 %v5548
    %6195 = vmatprep.subr.mxu0 0.0
    %6196 = vmatpush1.msra.mxu0 %v6189
    %6197 = vmatprep.subr.mxu0 0.0
    %6198 = vmatpush1.msra.mxu0 0.0
    %6199 = vmatprep.subr.mxu0 0.0
    %6200 = vmatpush1.msra.mxu0 0.0
    %6201 = vmatprep.subr.mxu0 0.0
    %6202 = vmatpush1.msra.mxu0 0.0
    %6203 = vmatprep.subr.mxu0 0.0
    %6204 = vmatpush1.msra.mxu0 0.0
    %6205 = vmatprep.subr.mxu0 0.0
    %6206 = vmatpush1.msra.mxu0 0.0
    %6207 = vmatprep.subr.mxu0 0.0
    %6208 = vmatpush1.msra.mxu0 0.0
    %6209 = vmatprep.subr.mxu0 0.0
    %6210 = vmatpush1.msra.mxu0 0.0
    %6211 = vmatprep.subr.mxu0 0.0
    %6212 = vmatpush1.msra.mxu0 0.0
    %6213 = vmatprep.subr.mxu0 0.0
    %6214 = vmatpush1.msra.mxu0 0.0
    %6215 = vmatprep.subr.mxu0 0.0
    %6216 = vmatpush1.msra.mxu0 0.0
    %6217 = vmatprep.subr.mxu0 0.0
    %6218 = vmatpush1.msra.mxu0 0.0
    %6219 = vmatprep.subr.mxu0 0.0
    %6220 = vmatpush1.msra.mxu0 0.0
    %6221 = vmatprep.subr.mxu0 0.0
    %6222 = vmatpush1.msra.mxu0 0.0
    %6223 = vmatprep.subr.mxu0 0.0
    %6224 = vmatpush1.msra.mxu0 0.0
    %6225 = vmatprep.subr.mxu0 0.0
    %6226 = vmatpush1.msra.mxu0 0.0
    %6227 = vmatprep.subr.mxu0 0.0
    %6228 = vmatpush1.msra.mxu0 0.0
    %6229 = vmatprep.subr.mxu0 0.0
    %6230 = vmatpush1.msra.mxu0 0.0
    %6231 = vmatprep.subr.mxu0 0.0
    %6232 = vmatpush1.msra.mxu0 0.0
    %6233 = vmatprep.subr.mxu0 0.0
    %6234 = vmatpush1.msra.mxu0 0.0
    %6235 = vmatprep.subr.mxu0 0.0
    %6236 = vmatpush1.msra.mxu0 0.0
    %6237 = vmatprep.subr.mxu0 0.0
    %6238 = vmatpush1.msra.mxu0 0.0
    %6239 = vmatprep.subr.mxu0 0.0
    %6240 = vmatpush1.msra.mxu0 0.0
    %6241 = vmatprep.subr.mxu0 0.0
    %6242 = vmatpush1.msra.mxu0 0.0
    %6243 = vmatprep.subr.mxu0 0.0
    %6244 = vmatpush1.msra.mxu0 0.0
    %6245 = vmatprep.subr.mxu0 0.0
    %6246 = vmatpush1.msra.mxu0 0.0
    %6247 = vmatprep.subr.mxu0 0.0
    %6248 = vmatpush1.msra.mxu0 0.0
    %6249 = vmatprep.subr.mxu0 0.0
    %6250 = vmatpush1.msra.mxu0 0.0
    %6251 = vmatprep.subr.mxu0 0.0
    %6252 = vmatpush1.msra.mxu0 0.0
    %6253 = vmatprep.subr.mxu0 0.0
    %6254 = vmatpush1.msra.mxu0 0.0
    %6255 = vmatprep.mubr.f32.mxu0 0.0
    %6256 = vmatmul.mubr.f32.gmra.mrb[0].mxu0 %v6186
    %v6257 = vpop.f32.mrb[0].mxu0
    %v6258 = vadd.f32 0.0, %v6257
    %v6259 = vpop.f32.mrb[0].mxu0
    %6260 = vdwg.mxu0
    %v6261 = vadd.f32 %v6041, %v6258
    %6262 = vmatprep.subr.mxu0 0.0
    %6263 = vmatpush1.msra.mxu0 %v5553
    %6264 = vmatprep.subr.mxu0 0.0
    %6265 = vmatpush1.msra.mxu0 %v5554
    %6266 = vmatprep.subr.mxu0 0.0
    %6267 = vmatpush1.msra.mxu0 %v5555
    %6268 = vmatprep.subr.mxu0 0.0
    %6269 = vmatpush1.msra.mxu0 %v5556
    %6270 = vmatprep.subr.mxu0 0.0
    %6271 = vmatpush1.msra.mxu0 %v5557
    %6272 = vmatprep.subr.mxu0 0.0
    %6273 = vmatpush1.msra.mxu0 %v5558
    %6274 = vmatprep.subr.mxu0 0.0
    %6275 = vmatpush1.msra.mxu0 %v5559
    %6276 = vmatprep.subr.mxu0 0.0
    %6277 = vmatpush1.msra.mxu0 %v5560
    %6278 = vmatprep.subr.mxu0 0.0
    %6279 = vmatpush1.msra.mxu0 %v5561
    %6280 = vmatprep.subr.mxu0 0.0
    %6281 = vmatpush1.msra.mxu0 %v5562
    %6282 = vmatprep.subr.mxu0 0.0
    %6283 = vmatpush1.msra.mxu0 %v5563
    %6284 = vmatprep.subr.mxu0 0.0
    %6285 = vmatpush1.msra.mxu0 %v5564
    %6286 = vmatprep.subr.mxu0 0.0
    %6287 = vmatpush1.msra.mxu0 %v5565
    %6288 = vmatprep.subr.mxu0 0.0
    %6289 = vmatpush1.msra.mxu0 %v5566
    %6290 = vmatprep.subr.mxu0 0.0
    %6291 = vmatpush1.msra.mxu0 %v5567
    %6292 = vmatprep.subr.mxu0 0.0
    %6293 = vmatpush1.msra.mxu0 %v5568
    %6294 = vmatprep.subr.mxu0 0.0
    %6295 = vmatpush1.msra.mxu0 %v5569
    %6296 = vmatprep.subr.mxu0 0.0
    %6297 = vmatpush1.msra.mxu0 %v5570
    %6298 = vmatprep.subr.mxu0 0.0
    %6299 = vmatpush1.msra.mxu0 %v5571
    %6300 = vmatprep.subr.mxu0 0.0
    %6301 = vmatpush1.msra.mxu0 %v5572
    %6302 = vmatprep.subr.mxu0 0.0
    %6303 = vmatpush1.msra.mxu0 %v5573
    %6304 = vmatprep.subr.mxu0 0.0
    %6305 = vmatpush1.msra.mxu0 %v5574
    %6306 = vmatprep.subr.mxu0 0.0
    %6307 = vmatpush1.msra.mxu0 %v5575
    %6308 = vmatprep.subr.mxu0 0.0
    %6309 = vmatpush1.msra.mxu0 %v5576
    %6310 = vmatprep.subr.mxu0 0.0
    %6311 = vmatpush1.msra.mxu0 %v5577
    %6312 = vmatprep.subr.mxu0 0.0
    %6313 = vmatpush1.msra.mxu0 %v5578
    %6314 = vmatprep.subr.mxu0 0.0
    %6315 = vmatpush1.msra.mxu0 %v5579
    %6316 = vmatprep.subr.mxu0 0.0
    %6317 = vmatpush1.msra.mxu0 %v5580
    %6318 = vmatprep.subr.mxu0 0.0
    %6319 = vmatpush1.msra.mxu0 %v5581
    %6320 = vmatprep.subr.mxu0 0.0
    %6321 = vmatpush1.msra.mxu0 %v5582
    %6322 = vmatprep.subr.mxu0 0.0
    %6323 = vmatpush1.msra.mxu0 %v5583
    %6324 = vmatprep.subr.mxu0 0.0
    %6325 = vmatpush1.msra.mxu0 %v5584
    %6326 = vmatprep.mubr.f32.mxu0 %v5540
    %6327 = vmatmul.mubr.f32.gmra.mrb[0].mxu0 %v5539
    %v6328 = vpop.f32.mrb[0].mxu0
    %v6329 = vadd.f32 %v5606, %v6328
    %v6330 = vpop.f32.mrb[0].mxu0
    %6331 = vdwg.mxu0
    %6332 = vmatprep.subr.mxu0 0.0
    %6333 = vmatpush1.msra.mxu0 %v5585
    %6334 = vmatprep.subr.mxu0 0.0
    %6335 = vmatpush1.msra.mxu0 %v5586
    %6336 = vmatprep.subr.mxu0 0.0
    %6337 = vmatpush1.msra.mxu0 %v5587
    %6338 = vmatprep.subr.mxu0 0.0
    %6339 = vmatpush1.msra.mxu0 %v5588
    %6340 = vmatprep.subr.mxu0 0.0
    %6341 = vmatpush1.msra.mxu0 %v5589
    %6342 = vmatprep.subr.mxu0 0.0
    %6343 = vmatpush1.msra.mxu0 %v5590
    %6344 = vmatprep.subr.mxu0 0.0
    %6345 = vmatpush1.msra.mxu0 %v5591
    %6346 = vmatprep.subr.mxu0 0.0
    %6347 = vmatpush1.msra.mxu0 %v5592
    %6348 = vmatprep.subr.mxu0 0.0
    %6349 = vmatpush1.msra.mxu0 %v5593
    %6350 = vmatprep.subr.mxu0 0.0
    %6351 = vmatpush1.msra.mxu0 %v5594
    %6352 = vmatprep.subr.mxu0 0.0
    %6353 = vmatpush1.msra.mxu0 %v5595
    %6354 = vmatprep.subr.mxu0 0.0
    %6355 = vmatpush1.msra.mxu0 %v5596
    %6356 = vmatprep.subr.mxu0 0.0
    %6357 = vmatpush1.msra.mxu0 %v5597
    %6358 = vmatprep.subr.mxu0 0.0
    %6359 = vmatpush1.msra.mxu0 %v5598
    %6360 = vmatprep.subr.mxu0 0.0
    %6361 = vmatpush1.msra.mxu0 %v5599
    %6362 = vmatprep.subr.mxu0 0.0
    %6363 = vmatpush1.msra.mxu0 %v5600
    %6364 = vmatprep.subr.mxu0 0.0
    %6365 = vmatpush1.msra.mxu0 0.0
    %6366 = vmatprep.subr.mxu0 0.0
    %6367 = vmatpush1.msra.mxu0 0.0
    %6368 = vmatprep.subr.mxu0 0.0
    %6369 = vmatpush1.msra.mxu0 0.0
    %6370 = vmatprep.subr.mxu0 0.0
    %6371 = vmatpush1.msra.mxu0 0.0
    %6372 = vmatprep.subr.mxu0 0.0
    %6373 = vmatpush1.msra.mxu0 0.0
    %6374 = vmatprep.subr.mxu0 0.0
    %6375 = vmatpush1.msra.mxu0 0.0
    %6376 = vmatprep.subr.mxu0 0.0
    %6377 = vmatpush1.msra.mxu0 0.0
    %6378 = vmatprep.subr.mxu0 0.0
    %6379 = vmatpush1.msra.mxu0 0.0
    %6380 = vmatprep.subr.mxu0 0.0
    %6381 = vmatpush1.msra.mxu0 0.0
    %6382 = vmatprep.subr.mxu0 0.0
    %6383 = vmatpush1.msra.mxu0 0.0
    %6384 = vmatprep.subr.mxu0 0.0
    %6385 = vmatpush1.msra.mxu0 0.0
    %6386 = vmatprep.subr.mxu0 0.0
    %6387 = vmatpush1.msra.mxu0 0.0
    %6388 = vmatprep.subr.mxu0 0.0
    %6389 = vmatpush1.msra.mxu0 0.0
    %6390 = vmatprep.subr.mxu0 0.0
    %6391 = vmatpush1.msra.mxu0 0.0
    %6392 = vmatprep.subr.mxu0 0.0
    %6393 = vmatpush1.msra.mxu0 0.0
    %6394 = vmatprep.subr.mxu0 0.0
    %6395 = vmatpush1.msra.mxu0 0.0
    %6396 = vmatprep.mubr.f32.mxu0 0.0
    %6397 = vmatmul.mubr.f32.gmra.mrb[0].mxu0 0.0
    %v6398 = vpop.f32.mrb[0].mxu0
    %v6399 = vadd.f32 %v6329, %v6398
    %v6400 = vpop.f32.mrb[0].mxu0
    %6401 = vdwg.mxu0
    %v6402 = vmax.f32 %v6399, 0.0
    %v6404 = vsel %vm5890, %v6402, 0
    %v6407 = vsel %vm5894, %v5552, 0
    %6409 = vmatprep.subr.mxu0 0.0
    %6410 = vmatpush1.msra.mxu0 %v5550
    %6411 = vmatprep.subr.mxu0 0.0
    %6412 = vmatpush1.msra.mxu0 %v5551
    %6413 = vmatprep.subr.mxu0 0.0
    %6414 = vmatpush1.msra.mxu0 %v6407
    %6415 = vmatprep.subr.mxu0 0.0
    %6416 = vmatpush1.msra.mxu0 0.0
    %6417 = vmatprep.subr.mxu0 0.0
    %6418 = vmatpush1.msra.mxu0 0.0
    %6419 = vmatprep.subr.mxu0 0.0
    %6420 = vmatpush1.msra.mxu0 0.0
    %6421 = vmatprep.subr.mxu0 0.0
    %6422 = vmatpush1.msra.mxu0 0.0
    %6423 = vmatprep.subr.mxu0 0.0
    %6424 = vmatpush1.msra.mxu0 0.0
    %6425 = vmatprep.subr.mxu0 0.0
    %6426 = vmatpush1.msra.mxu0 0.0
    %6427 = vmatprep.subr.mxu0 0.0
    %6428 = vmatpush1.msra.mxu0 0.0
    %6429 = vmatprep.subr.mxu0 0.0
    %6430 = vmatpush1.msra.mxu0 0.0
    %6431 = vmatprep.subr.mxu0 0.0
    %6432 = vmatpush1.msra.mxu0 0.0
    %6433 = vmatprep.subr.mxu0 0.0
    %6434 = vmatpush1.msra.mxu0 0.0
    %6435 = vmatprep.subr.mxu0 0.0
    %6436 = vmatpush1.msra.mxu0 0.0
    %6437 = vmatprep.subr.mxu0 0.0
    %6438 = vmatpush1.msra.mxu0 0.0
    %6439 = vmatprep.subr.mxu0 0.0
    %6440 = vmatpush1.msra.mxu0 0.0
    %6441 = vmatprep.subr.mxu0 0.0
    %6442 = vmatpush1.msra.mxu0 0.0
    %6443 = vmatprep.subr.mxu0 0.0
    %6444 = vmatpush1.msra.mxu0 0.0
    %6445 = vmatprep.subr.mxu0 0.0
    %6446 = vmatpush1.msra.mxu0 0.0
    %6447 = vmatprep.subr.mxu0 0.0
    %6448 = vmatpush1.msra.mxu0 0.0
    %6449 = vmatprep.subr.mxu0 0.0
    %6450 = vmatpush1.msra.mxu0 0.0
    %6451 = vmatprep.subr.mxu0 0.0
    %6452 = vmatpush1.msra.mxu0 0.0
    %6453 = vmatprep.subr.mxu0 0.0
    %6454 = vmatpush1.msra.mxu0 0.0
    %6455 = vmatprep.subr.mxu0 0.0
    %6456 = vmatpush1.msra.mxu0 0.0
    %6457 = vmatprep.subr.mxu0 0.0
    %6458 = vmatpush1.msra.mxu0 0.0
    %6459 = vmatprep.subr.mxu0 0.0
    %6460 = vmatpush1.msra.mxu0 0.0
    %6461 = vmatprep.subr.mxu0 0.0
    %6462 = vmatpush1.msra.mxu0 0.0
    %6463 = vmatprep.subr.mxu0 0.0
    %6464 = vmatpush1.msra.mxu0 0.0
    %6465 = vmatprep.subr.mxu0 0.0
    %6466 = vmatpush1.msra.mxu0 0.0
    %6467 = vmatprep.subr.mxu0 0.0
    %6468 = vmatpush1.msra.mxu0 0.0
    %6469 = vmatprep.subr.mxu0 0.0
    %6470 = vmatpush1.msra.mxu0 0.0
    %6471 = vmatprep.subr.mxu0 0.0
    %6472 = vmatpush1.msra.mxu0 0.0
    %6473 = vmatprep.mubr.f32.mxu0 0.0
    %6474 = vmatmul.mubr.f32.gmra.mrb[0].mxu0 %v6404
    %v6475 = vpop.f32.mrb[0].mxu0
    %v6476 = vadd.f32 0.0, %v6475
    %v6477 = vpop.f32.mrb[0].mxu0
    %6478 = vdwg.mxu0
    %v6479 = vadd.f32 %v6261, %v6476
    %v6480 = vld [vmem:[%s10] sm:$0x1]
    %v6482 = vlaneseq
    %v6483 = vshrl.u32 %v6482, 7
    %v6484 = vsub.s32 0, %v6483
    %v6485 = vrot.slane %v6480, %v6484
    %v6487 = vadd.f32 %v6479, %v6485
    %vm6488 = vcmask 15360
    %v6489 = vsel %vm6488, %v6487, -inf
    %6490 = vmax.xlane.f32.xlu0 %v6489
    %v6491 = vpop.xlane.xlu0 %6490
    %v6492 = vsub.f32 %v6487, %v6491
    %v6493 = vmul.f32 %v6492, 1.442695
    %v6494 = vpow.pop %v6493
    %v6495 = vsel %vm6488, %v6494, 0.0
    %6496 = vadd.xlane.f32.xlu0 %v6495
    %v6497 = vpop.xlane.xlu0 %6496
    %v6498 = vrcp.pop %v6497
    %v6499 = vmul.f32 %v6494, %v6498
    %vm6500 = vcmask 9216
    %6501 = vst.msk [vmem:[#allocation7] sm:$0x3] %vm6500, %v6499
    %6502 = vst.msk [vmem:[#allocation8] sm:$0x3] %vm6500, %v6487
    // Predicated region
    $region62: #{_lambda_.1} parent=1 // pred_check
      _
    $region63: #{_lambda_.1} parent=1 // pred_check_branch
      %6504 = sbr.rel (0) target = $region65
    $region64: #{_lambda_.1} parent=1 // pred_region
      %s6506 = ssub.s32 32, 32
      %6507 = vsyncadd [#allocation3], %s6506
      %s6509 = sshll.u32 [#allocation7], 4
      %s6510 = int_to_ptr.vmem [resolvable:$true] %s6509
      %6512 = dma.vmem_to_hbm [thread:$0]  %s6510, 32, %s13, [#allocation3]
    $region65: #{_lambda_.1} parent=1 // pred_fallthru
      _
    // Predicated region
    $region66: #{_lambda_.1} parent=1 // pred_check
      _
    $region67: #{_lambda_.1} parent=1 // pred_check_branch
      %6514 = sbr.rel (0) target = $region69
    $region68: #{_lambda_.1} parent=1 // pred_region
      %s6516 = ssub.s32 32, 32
      %6517 = vsyncadd [#allocation9], %s6516
      %s6519 = sshll.u32 [#allocation8], 4
      %s6520 = int_to_ptr.vmem [resolvable:$true] %s6519
      %6522 = dma.vmem_to_hbm [thread:$0]  %s6520, 32, %s14, [#allocation9]
    $region69: #{_lambda_.1} parent=1 // pred_fallthru
      _
    // Predicated region
    $region70: #{_lambda_.1} parent=1 // pred_check
      _
    $region71: #{_lambda_.1} parent=1 // pred_check_branch
      %6524 = sbr.rel (0) target = $region73
    $region72: #{_lambda_.1} parent=1 // pred_region
      %6525 = dma.done [#allocation3], 32
    $region73: #{_lambda_.1} parent=1 // pred_fallthru
      _
    // Predicated region
    $region74: #{_lambda_.1} parent=1 // pred_check
      _
    $region75: #{_lambda_.1} parent=1 // pred_check_branch
      %6527 = sbr.rel (0) target = $region77
    $region76: #{_lambda_.1} parent=1 // pred_region
      %6528 = dma.done [#allocation9], 32
    $region77: #{_lambda_.1} parent=1 // pred_fallthru
      _
    %6529 = vsyncpa [#allocation3], 1
    %6530 = vsyncpa [#allocation9], 1
    %6531 = vsyncpa [#allocation4], 1
    %6532 = vsyncpa [#allocation6], 1

</llo_original>
